<compile_context>
chip_gen: v5e
topology: v5e:2x2
jax: 0.10.0
libtpu: 0.0.40
codegen_flags: <defaults>
</compile_context>

<pallas_src>
import functools

import jax
import jax.numpy as jnp
from jax import lax
from jax.experimental import pallas as pl
from jax.experimental.pallas import tpu as pltpu

LANES = 128


# ----------------------------------------------------------------------------
# Fused Pallas kernel: whole LeNet-5 forward for one batch tile.
# ----------------------------------------------------------------------------
def _lenet5_kernel(patches_ref, w1_ref, w2_ref, w3_ref, w4_ref, w5_ref,
                   bias_ref, out_ref,
                   a1_s, t1_s, p1_s, a2_s, t2_s, p2_s, *, tb):
    f32 = jnp.float32

    # ---- conv1 (im2col matmul) + bias + ReLU ------------------------------
    a1 = jnp.dot(patches_ref[...], w1_ref[...], preferred_element_type=f32)
    a1 = jnp.maximum(a1 + bias_ref[0:1, :], 0.0)              # [tb*576, 128]
    # rows are (b, h, w); expose the h-parity as a leading dim (layout-free
    # reshape: innermost sublane extent stays a multiple of 8).
    a1_s[...] = a1.reshape(tb * 12, 2, 24, LANES)

    # ---- pool1: 2x2 / stride 2 --------------------------------------------
    t1_s[...] = jnp.maximum(a1_s[:, 0, :, :], a1_s[:, 1, :, :])     # h-pool
    p1 = jnp.maximum(t1_s[:, pl.ds(0, 12, 2), :],                   # w-pool
                     t1_s[:, pl.ds(1, 12, 2), :])            # [tb*12, 12, 128]
    p1_s[...] = p1.reshape(tb, 12, 12, LANES)

    # ---- conv2: direct conv as 25 shifted MXU matmuls ----------------------
    acc2 = jnp.zeros((tb * 64, LANES), f32)
    for i in range(5):
        for j in range(5):
            win = p1_s[:, pl.ds(i, 8), pl.ds(j, 8), :]        # [tb, 8, 8, 128]
            acc2 = acc2 + jnp.dot(win.reshape(tb * 64, LANES),
                                  w2_ref[i * 5 + j, :, :],
                                  preferred_element_type=f32)
    a2 = jnp.maximum(acc2 + bias_ref[1:2, :], 0.0)            # [tb*64, 128]
    a2_s[...] = a2.reshape(tb * 4, 2, 8, LANES)

    # ---- pool2 --------------------------------------------------------------
    t2_s[...] = jnp.maximum(a2_s[:, 0, :, :], a2_s[:, 1, :, :])
    p2 = jnp.maximum(t2_s[:, pl.ds(0, 4, 2), :],
                     t2_s[:, pl.ds(1, 4, 2), :])              # [tb*4, 4, 128]
    p2_s[...] = p2.reshape(tb, 4, 4, LANES)

    # ---- fc3: 16 per-position matmuls (absorbs PyTorch (C,H,W) flatten) ----
    acc3 = jnp.zeros((tb, LANES), f32)
    for h in range(4):
        for w in range(4):
            acc3 = acc3 + jnp.dot(p2_s[:, h, w, :],
                                  w3_ref[h * 4 + w, :, :],
                                  preferred_element_type=f32)
    z3 = jnp.maximum(acc3 + bias_ref[2:3, :], 0.0)

    # ---- fc4 / fc5 ----------------------------------------------------------
    z4 = jnp.maximum(jnp.dot(z3, w4_ref[...], preferred_element_type=f32)
                     + bias_ref[3:4, :], 0.0)
    z5 = jnp.dot(z4, w5_ref[...], preferred_element_type=f32) + bias_ref[4:5, :]
    out_ref[...] = z5.astype(out_ref.dtype)


# ----------------------------------------------------------------------------
# Parameter prep: permute / zero-pad PyTorch-layout weights to lane-dense
# (128-wide) MXU operands.  Padding is all-zero so padded lanes stay 0.
# ----------------------------------------------------------------------------
def _prep_params(params):
    (w1, b1), (w2, b2), (w3, b3), (w4, b4), (w5, b5) = params
    f32 = jnp.float32

    # conv1 [6,1,5,5]  -> [K=25 -> 128, Cout=6 -> 128]
    w1p = jnp.zeros((LANES, LANES), f32).at[:25, :6].set(
        w1.reshape(6, 25).T.astype(f32))

    # conv2 [16,6,5,5] -> per (kh,kw): [Cin=6 -> 128, Cout=16 -> 128]
    w2m = jnp.transpose(w2.astype(f32), (2, 3, 1, 0)).reshape(25, 6, 16)
    w2p = jnp.zeros((25, LANES, LANES), f32).at[:, :6, :16].set(w2m)

    # fc3 [120,256] (input flattened in PyTorch (C,H,W) order) ->
    #     per (h,w): [C=16 -> 128, N=120 -> 128]
    w3m = jnp.transpose(w3.astype(f32).reshape(120, 16, 4, 4), (2, 3, 1, 0))
    w3p = jnp.zeros((16, LANES, LANES), f32).at[:, :16, :120].set(
        w3m.reshape(16, 16, 120))

    w4p = jnp.zeros((LANES, LANES), f32).at[:120, :84].set(w4.T.astype(f32))
    w5p = jnp.zeros((LANES, LANES), f32).at[:84, :10].set(w5.T.astype(f32))

    biases = jnp.zeros((8, LANES), f32)
    biases = (biases.at[0, :6].set(b1).at[1, :16].set(b2).at[2, :120].set(b3)
                    .at[3, :84].set(b4).at[4, :10].set(b5))
    return w1p, w2p, w3p, w4p, w5p, biases


# ----------------------------------------------------------------------------
# Public forward: one fused pallas_call, grid tiled over batch.
# ----------------------------------------------------------------------------
def lenet5_forward(x_nchw, params):
    """Pallas LeNet-5 forward.  x_nchw: [B,1,28,28] -> logits [B,10]."""
    w1p, w2p, w3p, w4p, w5p, biases = _prep_params(params)

    B = x_nchw.shape[0]
    TB = B if B <= 8 else 8                      # batch tile per grid step
    B_pad = -(-B // TB) * TB

    x = x_nchw.astype(jnp.float32)
    if B_pad != B:
        x = jnp.pad(x, ((0, B_pad - B), (0, 0), (0, 0), (0, 0)))

    # im2col for conv1 (single XLA op); feature order (kh, kw) matches the
    # PyTorch Conv2d weight flatten (Cin=1).  K padded 25 -> 128 lanes.
    patches = lax.conv_general_dilated_patches(
        x, filter_shape=(5, 5), window_strides=(1, 1), padding="VALID",
        dimension_numbers=("NCHW", "OIHW", "NCHW"),
        precision=lax.Precision.HIGHEST)                     # [B, 25, 24, 24]
    patches = jnp.transpose(patches, (0, 2, 3, 1)).reshape(B_pad * 576, 25)
    patches = jnp.pad(patches, ((0, 0), (0, LANES - 25)))    # [B*576, 128]

    out = pl.pallas_call(
        functools.partial(_lenet5_kernel, tb=TB),
        out_shape=jax.ShapeDtypeStruct((B_pad, LANES), jnp.float32),
        grid=(B_pad // TB,),
        in_specs=[
            pl.BlockSpec((TB * 576, LANES), lambda i: (i, 0)),     # patches
            pl.BlockSpec((LANES, LANES), lambda i: (0, 0)),        # w1
            pl.BlockSpec((25, LANES, LANES), lambda i: (0, 0, 0)),  # w2
            pl.BlockSpec((16, LANES, LANES), lambda i: (0, 0, 0)),  # w3
            pl.BlockSpec((LANES, LANES), lambda i: (0, 0)),        # w4
            pl.BlockSpec((LANES, LANES), lambda i: (0, 0)),        # w5
            pl.BlockSpec((8, LANES), lambda i: (0, 0)),            # biases
        ],
        out_specs=pl.BlockSpec((TB, LANES), lambda i: (i, 0)),
        scratch_shapes=[
            pltpu.VMEM((TB * 12, 2, 24, LANES), jnp.float32),   # conv1 out
            pltpu.VMEM((TB * 12, 24, LANES), jnp.float32),      # h-pooled 1
            pltpu.VMEM((TB, 12, 12, LANES), jnp.float32),       # pool1 out
            pltpu.VMEM((TB * 4, 2, 8, LANES), jnp.float32),     # conv2 out
            pltpu.VMEM((TB * 4, 8, LANES), jnp.float32),        # h-pooled 2
            pltpu.VMEM((TB, 4, 4, LANES), jnp.float32),         # pool2 out
        ],
        compiler_params=pltpu.CompilerParams(
            dimension_semantics=("parallel",),
            vmem_limit_bytes=32 * 1024 * 1024),
    )(patches, w1p, w2p, w3p, w4p, w5p, biases)

    return out[:B, :10]


# ----------------------------------------------------------------------------
# Pure-JAX reference (same parameters) for verification.
# ----------------------------------------------------------------------------
def lenet5_reference(x_nchw, params):
    (w1, b1), (w2, b2), (w3, b3), (w4, b4), (w5, b5) = params

    def conv(x, w, b):
        y = lax.conv_general_dilated(
            x, w, window_strides=(1, 1), padding="VALID",
            dimension_numbers=("NCHW", "OIHW", "NCHW"))
        return jnp.maximum(y + b[None, :, None, None], 0.0)

    def pool(x):
        B, C, H, W = x.shape
        return x.reshape(B, C, H // 2, 2, W // 2, 2).max(axis=(3, 5))

    x = pool(conv(x_nchw, w1, b1))
    x = pool(conv(x, w2, b2))
    x = x.reshape(x.shape[0], -1)
    x = jnp.maximum(x @ w3.T + b3, 0.0)
    x = jnp.maximum(x @ w4.T + b4, 0.0)
    return x @ w5.T + b5


# ----------------------------------------------------------------------------
# Deterministic parameter init (shapes from LeNet5.__init__)
# ----------------------------------------------------------------------------
def init_params(key):
    shapes = [
        ((6, 1, 5, 5), (6,)),       # conv1
        ((16, 6, 5, 5), (16,)),     # conv2
        ((120, 256), (120,)),       # fc3
        ((84, 120), (84,)),         # fc4
        ((10, 84), (10,)),          # fc5
    ]
    params = []
    for wshape, bshape in shapes:
        key, kw, kb = jax.random.split(key, 3)
        fan_in = 1
        for d in wshape[1:]:
            fan_in *= d
        scale = 1.0 / jnp.sqrt(jnp.float32(fan_in))
        w = jax.random.uniform(kw, wshape, jnp.float32, -scale, scale)
        b = jax.random.uniform(kb, bshape, jnp.float32, -scale, scale)
        params.append((w, b))
    return params


if __name__ == "__main__":
    key = jax.random.PRNGKey(0)
    kx, kp = jax.random.split(key)
    # LeNet-5: fc3 expects 16*4*4 = 256 features => input must be [B,1,28,28].
    x = jax.random.normal(kx, (2, 1, 28, 28), dtype=jnp.float32)
    params = init_params(kp)

    fwd = jax.jit(lenet5_forward)
    out = jax.block_until_ready(fwd(x, params))

    ref = jax.block_until_ready(lenet5_reference(x, params))
    assert out.shape == (2, 10), out.shape
    max_diff = float(jnp.max(jnp.abs(out - ref)))
    assert jnp.allclose(out, ref, atol=1e-2, rtol=1e-2), (
        f"mismatch vs reference: max abs diff {max_diff}")
    print("KERNEL_OK")
</pallas_src>

<mosaic_0001>
module attributes {stable_mosaic.version = 11 : i64} {
  func.func @_lenet5_kernel(%arg0: i32, %arg1: memref<1152x128xf32, #tpu.memory_space<vmem>>, %arg2: memref<128x128xf32, #tpu.memory_space<vmem>>, %arg3: memref<25x128x128xf32, #tpu.memory_space<vmem>>, %arg4: memref<16x128x128xf32, #tpu.memory_space<vmem>>, %arg5: memref<128x128xf32, #tpu.memory_space<vmem>>, %arg6: memref<128x128xf32, #tpu.memory_space<vmem>>, %arg7: memref<8x128xf32, #tpu.memory_space<vmem>>, %arg8: memref<2x128xf32, #tpu.memory_space<vmem>>, %arg9: memref<24x2x24x128xf32, #tpu.memory_space<vmem>>, %arg10: memref<24x24x128xf32, #tpu.memory_space<vmem>>, %arg11: memref<2x12x12x128xf32, #tpu.memory_space<vmem>>, %arg12: memref<8x2x8x128xf32, #tpu.memory_space<vmem>>, %arg13: memref<8x8x128xf32, #tpu.memory_space<vmem>>, %arg14: memref<2x4x4x128xf32, #tpu.memory_space<vmem>>) attributes {dimension_semantics = [#tpu.dimension_semantics<parallel>], iteration_bounds = array<i64: 1>, scalar_prefetch = 0 : i64, scratch_operands = 6 : i64, tpu.core_type = #tpu.core_type<tc>, window_params = [{transform_indices = @transform_0, window_bounds = array<i64: 1152, 128>}, {pipeline_mode = #tpu.pipeline_mode<synchronous>, transform_indices = @transform_1, window_bounds = array<i64: 128, 128>}, {pipeline_mode = #tpu.pipeline_mode<synchronous>, transform_indices = @transform_2, window_bounds = array<i64: 25, 128, 128>}, {pipeline_mode = #tpu.pipeline_mode<synchronous>, transform_indices = @transform_3, window_bounds = array<i64: 16, 128, 128>}, {pipeline_mode = #tpu.pipeline_mode<synchronous>, transform_indices = @transform_4, window_bounds = array<i64: 128, 128>}, {pipeline_mode = #tpu.pipeline_mode<synchronous>, transform_indices = @transform_5, window_bounds = array<i64: 128, 128>}, {pipeline_mode = #tpu.pipeline_mode<synchronous>, transform_indices = @transform_6, window_bounds = array<i64: 8, 128>}, {transform_indices = @transform_7, window_bounds = array<i64: 2, 128>}]} {
    %c0 = arith.constant 0 : index
    %c0_0 = arith.constant 0 : index
    %0 = vector.load %arg1[%c0, %c0_0] : memref<1152x128xf32, #tpu.memory_space<vmem>>, vector<1152x128xf32>
    %c0_1 = arith.constant 0 : index
    %c0_2 = arith.constant 0 : index
    %1 = vector.load %arg2[%c0_1, %c0_2] : memref<128x128xf32, #tpu.memory_space<vmem>>, vector<128x128xf32>
    %cst = arith.constant dense<0.000000e+00> : vector<1152x128xf32>
    %2 = tpu.matmul %0, %1, %cst {dimension_numbers = #tpu.dot_dimension_numbers<[1], [0], [0], [1], [0, 0, 1, 1], [], []>} : vector<1152x128xf32>, vector<128x128xf32>, vector<1152x128xf32> -> vector<1152x128xf32>
    %c0_3 = arith.constant 0 : index
    %c0_4 = arith.constant 0 : index
    %3 = vector.load %arg7[%c0_3, %c0_4] : memref<8x128xf32, #tpu.memory_space<vmem>>, vector<1x128xf32>
    %4 = vector.broadcast %3 : vector<1x128xf32> to vector<1152x128xf32>
    %5 = arith.addf %2, %4 : vector<1152x128xf32>
    %cst_5 = arith.constant 0.000000e+00 : f32
    %6 = vector.broadcast %cst_5 : f32 to vector<1152x128xf32>
    %7 = arith.maximumf %5, %6 : vector<1152x128xf32>
    %8 = vector.shape_cast %7 : vector<1152x128xf32> to vector<24x2x24x128xf32>
    %c0_6 = arith.constant 0 : index
    %c0_7 = arith.constant 0 : index
    %c0_8 = arith.constant 0 : index
    %c0_9 = arith.constant 0 : index
    %9 = vector.load %arg9[%c0_6, %c0_7, %c0_8, %c0_9] : memref<24x2x24x128xf32, #tpu.memory_space<vmem>>, vector<24x2x24x128xf32>
    tpu.vector_store %arg9[%c0_6, %c0_7, %c0_8, %c0_9], %8 {strides = array<i32>} : memref<24x2x24x128xf32, #tpu.memory_space<vmem>>, vector<24x2x24x128xf32>,
    %c0_10 = arith.constant 0 : index
    %c0_11 = arith.constant 0 : index
    %c0_12 = arith.constant 0 : index
    %c0_13 = arith.constant 0 : index
    %10 = vector.load %arg9[%c0_10, %c0_11, %c0_12, %c0_13] : memref<24x2x24x128xf32, #tpu.memory_space<vmem>>, vector<24x1x24x128xf32>
    %11 = vector.shape_cast %10 : vector<24x1x24x128xf32> to vector<24x24x128xf32>
    %c0_14 = arith.constant 0 : index
    %c1 = arith.constant 1 : index
    %c0_15 = arith.constant 0 : index
    %c0_16 = arith.constant 0 : index
    %12 = vector.load %arg9[%c0_14, %c1, %c0_15, %c0_16] : memref<24x2x24x128xf32, #tpu.memory_space<vmem>>, vector<24x1x24x128xf32>
    %13 = vector.shape_cast %12 : vector<24x1x24x128xf32> to vector<24x24x128xf32>
    %14 = arith.maximumf %11, %13 : vector<24x24x128xf32>
    %c0_17 = arith.constant 0 : index
    %c0_18 = arith.constant 0 : index
    %c0_19 = arith.constant 0 : index
    %15 = vector.load %arg10[%c0_17, %c0_18, %c0_19] : memref<24x24x128xf32, #tpu.memory_space<vmem>>, vector<24x24x128xf32>
    tpu.vector_store %arg10[%c0_17, %c0_18, %c0_19], %14 {strides = array<i32>} : memref<24x24x128xf32, #tpu.memory_space<vmem>>, vector<24x24x128xf32>,
    %c0_20 = arith.constant 0 : index
    %c0_21 = arith.constant 0 : index
    %c0_22 = arith.constant 0 : index
    %16 = tpu.strided_load %arg10[%c0_20, %c0_21, %c0_22] {strides = array<i32: 1, 2, 1>} : memref<24x24x128xf32, #tpu.memory_space<vmem>>, vector<24x12x128xf32>
    %c0_23 = arith.constant 0 : index
    %c1_24 = arith.constant 1 : index
    %c0_25 = arith.constant 0 : index
    %17 = tpu.strided_load %arg10[%c0_23, %c1_24, %c0_25] {strides = array<i32: 1, 2, 1>} : memref<24x24x128xf32, #tpu.memory_space<vmem>>, vector<24x12x128xf32>
    %18 = arith.maximumf %16, %17 : vector<24x12x128xf32>
    %19 = vector.shape_cast %18 : vector<24x12x128xf32> to vector<2x12x12x128xf32>
    %c0_26 = arith.constant 0 : index
    %c0_27 = arith.constant 0 : index
    %c0_28 = arith.constant 0 : index
    %c0_29 = arith.constant 0 : index
    %20 = vector.load %arg11[%c0_26, %c0_27, %c0_28, %c0_29] : memref<2x12x12x128xf32, #tpu.memory_space<vmem>>, vector<2x12x12x128xf32>
    tpu.vector_store %arg11[%c0_26, %c0_27, %c0_28, %c0_29], %19 {strides = array<i32>} : memref<2x12x12x128xf32, #tpu.memory_space<vmem>>, vector<2x12x12x128xf32>,
    %cst_30 = arith.constant 0.000000e+00 : f32
    %21 = vector.broadcast %cst_30 : f32 to vector<128x128xf32>
    %c0_31 = arith.constant 0 : index
    %c0_32 = arith.constant 0 : index
    %c0_33 = arith.constant 0 : index
    %c0_34 = arith.constant 0 : index
    %22 = vector.load %arg11[%c0_31, %c0_32, %c0_33, %c0_34] : memref<2x12x12x128xf32, #tpu.memory_space<vmem>>, vector<2x8x8x128xf32>
    %23 = vector.shape_cast %22 : vector<2x8x8x128xf32> to vector<128x128xf32>
    %c0_35 = arith.constant 0 : index
    %c0_36 = arith.constant 0 : index
    %c0_37 = arith.constant 0 : index
    %24 = vector.load %arg3[%c0_35, %c0_36, %c0_37] : memref<25x128x128xf32, #tpu.memory_space<vmem>>, vector<1x128x128xf32>
    %25 = vector.shape_cast %24 : vector<1x128x128xf32> to vector<128x128xf32>
    %cst_38 = arith.constant dense<0.000000e+00> : vector<128x128xf32>
    %26 = tpu.matmul %23, %25, %cst_38 {dimension_numbers = #tpu.dot_dimension_numbers<[1], [0], [0], [1], [0, 0, 1, 1], [], []>} : vector<128x128xf32>, vector<128x128xf32>, vector<128x128xf32> -> vector<128x128xf32>
    %27 = arith.addf %21, %26 : vector<128x128xf32>
    %c0_39 = arith.constant 0 : index
    %c0_40 = arith.constant 0 : index
    %c1_41 = arith.constant 1 : index
    %c0_42 = arith.constant 0 : index
    %28 = vector.load %arg11[%c0_39, %c0_40, %c1_41, %c0_42] : memref<2x12x12x128xf32, #tpu.memory_space<vmem>>, vector<2x8x8x128xf32>
    %29 = vector.shape_cast %28 : vector<2x8x8x128xf32> to vector<128x128xf32>
    %c1_43 = arith.constant 1 : index
    %c0_44 = arith.constant 0 : index
    %c0_45 = arith.constant 0 : index
    %30 = vector.load %arg3[%c1_43, %c0_44, %c0_45] : memref<25x128x128xf32, #tpu.memory_space<vmem>>, vector<1x128x128xf32>
    %31 = vector.shape_cast %30 : vector<1x128x128xf32> to vector<128x128xf32>
    %cst_46 = arith.constant dense<0.000000e+00> : vector<128x128xf32>
    %32 = tpu.matmul %29, %31, %cst_46 {dimension_numbers = #tpu.dot_dimension_numbers<[1], [0], [0], [1], [0, 0, 1, 1], [], []>} : vector<128x128xf32>, vector<128x128xf32>, vector<128x128xf32> -> vector<128x128xf32>
    %33 = arith.addf %27, %32 : vector<128x128xf32>
    %c0_47 = arith.constant 0 : index
    %c0_48 = arith.constant 0 : index
    %c2 = arith.constant 2 : index
    %c0_49 = arith.constant 0 : index
    %34 = vector.load %arg11[%c0_47, %c0_48, %c2, %c0_49] : memref<2x12x12x128xf32, #tpu.memory_space<vmem>>, vector<2x8x8x128xf32>
    %35 = vector.shape_cast %34 : vector<2x8x8x128xf32> to vector<128x128xf32>
    %c2_50 = arith.constant 2 : index
    %c0_51 = arith.constant 0 : index
    %c0_52 = arith.constant 0 : index
    %36 = vector.load %arg3[%c2_50, %c0_51, %c0_52] : memref<25x128x128xf32, #tpu.memory_space<vmem>>, vector<1x128x128xf32>
    %37 = vector.shape_cast %36 : vector<1x128x128xf32> to vector<128x128xf32>
    %cst_53 = arith.constant dense<0.000000e+00> : vector<128x128xf32>
    %38 = tpu.matmul %35, %37, %cst_53 {dimension_numbers = #tpu.dot_dimension_numbers<[1], [0], [0], [1], [0, 0, 1, 1], [], []>} : vector<128x128xf32>, vector<128x128xf32>, vector<128x128xf32> -> vector<128x128xf32>
    %39 = arith.addf %33, %38 : vector<128x128xf32>
    %c0_54 = arith.constant 0 : index
    %c0_55 = arith.constant 0 : index
    %c3 = arith.constant 3 : index
    %c0_56 = arith.constant 0 : index
    %40 = vector.load %arg11[%c0_54, %c0_55, %c3, %c0_56] : memref<2x12x12x128xf32, #tpu.memory_space<vmem>>, vector<2x8x8x128xf32>
    %41 = vector.shape_cast %40 : vector<2x8x8x128xf32> to vector<128x128xf32>
    %c3_57 = arith.constant 3 : index
    %c0_58 = arith.constant 0 : index
    %c0_59 = arith.constant 0 : index
    %42 = vector.load %arg3[%c3_57, %c0_58, %c0_59] : memref<25x128x128xf32, #tpu.memory_space<vmem>>, vector<1x128x128xf32>
    %43 = vector.shape_cast %42 : vector<1x128x128xf32> to vector<128x128xf32>
    %cst_60 = arith.constant dense<0.000000e+00> : vector<128x128xf32>
    %44 = tpu.matmul %41, %43, %cst_60 {dimension_numbers = #tpu.dot_dimension_numbers<[1], [0], [0], [1], [0, 0, 1, 1], [], []>} : vector<128x128xf32>, vector<128x128xf32>, vector<128x128xf32> -> vector<128x128xf32>
    %45 = arith.addf %39, %44 : vector<128x128xf32>
    %c0_61 = arith.constant 0 : index
    %c0_62 = arith.constant 0 : index
    %c4 = arith.constant 4 : index
    %c0_63 = arith.constant 0 : index
    %46 = vector.load %arg11[%c0_61, %c0_62, %c4, %c0_63] : memref<2x12x12x128xf32, #tpu.memory_space<vmem>>, vector<2x8x8x128xf32>
    %47 = vector.shape_cast %46 : vector<2x8x8x128xf32> to vector<128x128xf32>
    %c4_64 = arith.constant 4 : index
    %c0_65 = arith.constant 0 : index
    %c0_66 = arith.constant 0 : index
    %48 = vector.load %arg3[%c4_64, %c0_65, %c0_66] : memref<25x128x128xf32, #tpu.memory_space<vmem>>, vector<1x128x128xf32>
    %49 = vector.shape_cast %48 : vector<1x128x128xf32> to vector<128x128xf32>
    %cst_67 = arith.constant dense<0.000000e+00> : vector<128x128xf32>
    %50 = tpu.matmul %47, %49, %cst_67 {dimension_numbers = #tpu.dot_dimension_numbers<[1], [0], [0], [1], [0, 0, 1, 1], [], []>} : vector<128x128xf32>, vector<128x128xf32>, vector<128x128xf32> -> vector<128x128xf32>
    %51 = arith.addf %45, %50 : vector<128x128xf32>
    %c0_68 = arith.constant 0 : index
    %c1_69 = arith.constant 1 : index
    %c0_70 = arith.constant 0 : index
    %c0_71 = arith.constant 0 : index
    %52 = vector.load %arg11[%c0_68, %c1_69, %c0_70, %c0_71] : memref<2x12x12x128xf32, #tpu.memory_space<vmem>>, vector<2x8x8x128xf32>
    %53 = vector.shape_cast %52 : vector<2x8x8x128xf32> to vector<128x128xf32>
    %c5 = arith.constant 5 : index
    %c0_72 = arith.constant 0 : index
    %c0_73 = arith.constant 0 : index
    %54 = vector.load %arg3[%c5, %c0_72, %c0_73] : memref<25x128x128xf32, #tpu.memory_space<vmem>>, vector<1x128x128xf32>
    %55 = vector.shape_cast %54 : vector<1x128x128xf32> to vector<128x128xf32>
    %cst_74 = arith.constant dense<0.000000e+00> : vector<128x128xf32>
    %56 = tpu.matmul %53, %55, %cst_74 {dimension_numbers = #tpu.dot_dimension_numbers<[1], [0], [0], [1], [0, 0, 1, 1], [], []>} : vector<128x128xf32>, vector<128x128xf32>, vector<128x128xf32> -> vector<128x128xf32>
    %57 = arith.addf %51, %56 : vector<128x128xf32>
    %c0_75 = arith.constant 0 : index
    %c1_76 = arith.constant 1 : index
    %c1_77 = arith.constant 1 : index
    %c0_78 = arith.constant 0 : index
    %58 = vector.load %arg11[%c0_75, %c1_76, %c1_77, %c0_78] : memref<2x12x12x128xf32, #tpu.memory_space<vmem>>, vector<2x8x8x128xf32>
    %59 = vector.shape_cast %58 : vector<2x8x8x128xf32> to vector<128x128xf32>
    %c6 = arith.constant 6 : index
    %c0_79 = arith.constant 0 : index
    %c0_80 = arith.constant 0 : index
    %60 = vector.load %arg3[%c6, %c0_79, %c0_80] : memref<25x128x128xf32, #tpu.memory_space<vmem>>, vector<1x128x128xf32>
    %61 = vector.shape_cast %60 : vector<1x128x128xf32> to vector<128x128xf32>
    %cst_81 = arith.constant dense<0.000000e+00> : vector<128x128xf32>
    %62 = tpu.matmul %59, %61, %cst_81 {dimension_numbers = #tpu.dot_dimension_numbers<[1], [0], [0], [1], [0, 0, 1, 1], [], []>} : vector<128x128xf32>, vector<128x128xf32>, vector<128x128xf32> -> vector<128x128xf32>
    %63 = arith.addf %57, %62 : vector<128x128xf32>
    %c0_82 = arith.constant 0 : index
    %c1_83 = arith.constant 1 : index
    %c2_84 = arith.constant 2 : index
    %c0_85 = arith.constant 0 : index
    %64 = vector.load %arg11[%c0_82, %c1_83, %c2_84, %c0_85] : memref<2x12x12x128xf32, #tpu.memory_space<vmem>>, vector<2x8x8x128xf32>
    %65 = vector.shape_cast %64 : vector<2x8x8x128xf32> to vector<128x128xf32>
    %c7 = arith.constant 7 : index
    %c0_86 = arith.constant 0 : index
    %c0_87 = arith.constant 0 : index
    %66 = vector.load %arg3[%c7, %c0_86, %c0_87] : memref<25x128x128xf32, #tpu.memory_space<vmem>>, vector<1x128x128xf32>
    %67 = vector.shape_cast %66 : vector<1x128x128xf32> to vector<128x128xf32>
    %cst_88 = arith.constant dense<0.000000e+00> : vector<128x128xf32>
    %68 = tpu.matmul %65, %67, %cst_88 {dimension_numbers = #tpu.dot_dimension_numbers<[1], [0], [0], [1], [0, 0, 1, 1], [], []>} : vector<128x128xf32>, vector<128x128xf32>, vector<128x128xf32> -> vector<128x128xf32>
    %69 = arith.addf %63, %68 : vector<128x128xf32>
    %c0_89 = arith.constant 0 : index
    %c1_90 = arith.constant 1 : index
    %c3_91 = arith.constant 3 : index
    %c0_92 = arith.constant 0 : index
    %70 = vector.load %arg11[%c0_89, %c1_90, %c3_91, %c0_92] : memref<2x12x12x128xf32, #tpu.memory_space<vmem>>, vector<2x8x8x128xf32>
    %71 = vector.shape_cast %70 : vector<2x8x8x128xf32> to vector<128x128xf32>
    %c8 = arith.constant 8 : index
    %c0_93 = arith.constant 0 : index
    %c0_94 = arith.constant 0 : index
    %72 = vector.load %arg3[%c8, %c0_93, %c0_94] : memref<25x128x128xf32, #tpu.memory_space<vmem>>, vector<1x128x128xf32>
    %73 = vector.shape_cast %72 : vector<1x128x128xf32> to vector<128x128xf32>
    %cst_95 = arith.constant dense<0.000000e+00> : vector<128x128xf32>
    %74 = tpu.matmul %71, %73, %cst_95 {dimension_numbers = #tpu.dot_dimension_numbers<[1], [0], [0], [1], [0, 0, 1, 1], [], []>} : vector<128x128xf32>, vector<128x128xf32>, vector<128x128xf32> -> vector<128x128xf32>
    %75 = arith.addf %69, %74 : vector<128x128xf32>
    %c0_96 = arith.constant 0 : index
    %c1_97 = arith.constant 1 : index
    %c4_98 = arith.constant 4 : index
    %c0_99 = arith.constant 0 : index
    %76 = vector.load %arg11[%c0_96, %c1_97, %c4_98, %c0_99] : memref<2x12x12x128xf32, #tpu.memory_space<vmem>>, vector<2x8x8x128xf32>
    %77 = vector.shape_cast %76 : vector<2x8x8x128xf32> to vector<128x128xf32>
    %c9 = arith.constant 9 : index
    %c0_100 = arith.constant 0 : index
    %c0_101 = arith.constant 0 : index
    %78 = vector.load %arg3[%c9, %c0_100, %c0_101] : memref<25x128x128xf32, #tpu.memory_space<vmem>>, vector<1x128x128xf32>
    %79 = vector.shape_cast %78 : vector<1x128x128xf32> to vector<128x128xf32>
    %cst_102 = arith.constant dense<0.000000e+00> : vector<128x128xf32>
    %80 = tpu.matmul %77, %79, %cst_102 {dimension_numbers = #tpu.dot_dimension_numbers<[1], [0], [0], [1], [0, 0, 1, 1], [], []>} : vector<128x128xf32>, vector<128x128xf32>, vector<128x128xf32> -> vector<128x128xf32>
    %81 = arith.addf %75, %80 : vector<128x128xf32>
    %c0_103 = arith.constant 0 : index
    %c2_104 = arith.constant 2 : index
    %c0_105 = arith.constant 0 : index
    %c0_106 = arith.constant 0 : index
    %82 = vector.load %arg11[%c0_103, %c2_104, %c0_105, %c0_106] : memref<2x12x12x128xf32, #tpu.memory_space<vmem>>, vector<2x8x8x128xf32>
    %83 = vector.shape_cast %82 : vector<2x8x8x128xf32> to vector<128x128xf32>
    %c10 = arith.constant 10 : index
    %c0_107 = arith.constant 0 : index
    %c0_108 = arith.constant 0 : index
    %84 = vector.load %arg3[%c10, %c0_107, %c0_108] : memref<25x128x128xf32, #tpu.memory_space<vmem>>, vector<1x128x128xf32>
    %85 = vector.shape_cast %84 : vector<1x128x128xf32> to vector<128x128xf32>
    %cst_109 = arith.constant dense<0.000000e+00> : vector<128x128xf32>
    %86 = tpu.matmul %83, %85, %cst_109 {dimension_numbers = #tpu.dot_dimension_numbers<[1], [0], [0], [1], [0, 0, 1, 1], [], []>} : vector<128x128xf32>, vector<128x128xf32>, vector<128x128xf32> -> vector<128x128xf32>
    %87 = arith.addf %81, %86 : vector<128x128xf32>
    %c0_110 = arith.constant 0 : index
    %c2_111 = arith.constant 2 : index
    %c1_112 = arith.constant 1 : index
    %c0_113 = arith.constant 0 : index
    %88 = vector.load %arg11[%c0_110, %c2_111, %c1_112, %c0_113] : memref<2x12x12x128xf32, #tpu.memory_space<vmem>>, vector<2x8x8x128xf32>
    %89 = vector.shape_cast %88 : vector<2x8x8x128xf32> to vector<128x128xf32>
    %c11 = arith.constant 11 : index
    %c0_114 = arith.constant 0 : index
    %c0_115 = arith.constant 0 : index
    %90 = vector.load %arg3[%c11, %c0_114, %c0_115] : memref<25x128x128xf32, #tpu.memory_space<vmem>>, vector<1x128x128xf32>
    %91 = vector.shape_cast %90 : vector<1x128x128xf32> to vector<128x128xf32>
    %cst_116 = arith.constant dense<0.000000e+00> : vector<128x128xf32>
    %92 = tpu.matmul %89, %91, %cst_116 {dimension_numbers = #tpu.dot_dimension_numbers<[1], [0], [0], [1], [0, 0, 1, 1], [], []>} : vector<128x128xf32>, vector<128x128xf32>, vector<128x128xf32> -> vector<128x128xf32>
    %93 = arith.addf %87, %92 : vector<128x128xf32>
    %c0_117 = arith.constant 0 : index
    %c2_118 = arith.constant 2 : index
    %c2_119 = arith.constant 2 : index
    %c0_120 = arith.constant 0 : index
    %94 = vector.load %arg11[%c0_117, %c2_118, %c2_119, %c0_120] : memref<2x12x12x128xf32, #tpu.memory_space<vmem>>, vector<2x8x8x128xf32>
    %95 = vector.shape_cast %94 : vector<2x8x8x128xf32> to vector<128x128xf32>
    %c12 = arith.constant 12 : index
    %c0_121 = arith.constant 0 : index
    %c0_122 = arith.constant 0 : index
    %96 = vector.load %arg3[%c12, %c0_121, %c0_122] : memref<25x128x128xf32, #tpu.memory_space<vmem>>, vector<1x128x128xf32>
    %97 = vector.shape_cast %96 : vector<1x128x128xf32> to vector<128x128xf32>
    %cst_123 = arith.constant dense<0.000000e+00> : vector<128x128xf32>
    %98 = tpu.matmul %95, %97, %cst_123 {dimension_numbers = #tpu.dot_dimension_numbers<[1], [0], [0], [1], [0, 0, 1, 1], [], []>} : vector<128x128xf32>, vector<128x128xf32>, vector<128x128xf32> -> vector<128x128xf32>
    %99 = arith.addf %93, %98 : vector<128x128xf32>
    %c0_124 = arith.constant 0 : index
    %c2_125 = arith.constant 2 : index
    %c3_126 = arith.constant 3 : index
    %c0_127 = arith.constant 0 : index
    %100 = vector.load %arg11[%c0_124, %c2_125, %c3_126, %c0_127] : memref<2x12x12x128xf32, #tpu.memory_space<vmem>>, vector<2x8x8x128xf32>
    %101 = vector.shape_cast %100 : vector<2x8x8x128xf32> to vector<128x128xf32>
    %c13 = arith.constant 13 : index
    %c0_128 = arith.constant 0 : index
    %c0_129 = arith.constant 0 : index
    %102 = vector.load %arg3[%c13, %c0_128, %c0_129] : memref<25x128x128xf32, #tpu.memory_space<vmem>>, vector<1x128x128xf32>
    %103 = vector.shape_cast %102 : vector<1x128x128xf32> to vector<128x128xf32>
    %cst_130 = arith.constant dense<0.000000e+00> : vector<128x128xf32>
    %104 = tpu.matmul %101, %103, %cst_130 {dimension_numbers = #tpu.dot_dimension_numbers<[1], [0], [0], [1], [0, 0, 1, 1], [], []>} : vector<128x128xf32>, vector<128x128xf32>, vector<128x128xf32> -> vector<128x128xf32>
    %105 = arith.addf %99, %104 : vector<128x128xf32>
    %c0_131 = arith.constant 0 : index
    %c2_132 = arith.constant 2 : index
    %c4_133 = arith.constant 4 : index
    %c0_134 = arith.constant 0 : index
    %106 = vector.load %arg11[%c0_131, %c2_132, %c4_133, %c0_134] : memref<2x12x12x128xf32, #tpu.memory_space<vmem>>, vector<2x8x8x128xf32>
    %107 = vector.shape_cast %106 : vector<2x8x8x128xf32> to vector<128x128xf32>
    %c14 = arith.constant 14 : index
    %c0_135 = arith.constant 0 : index
    %c0_136 = arith.constant 0 : index
    %108 = vector.load %arg3[%c14, %c0_135, %c0_136] : memref<25x128x128xf32, #tpu.memory_space<vmem>>, vector<1x128x128xf32>
    %109 = vector.shape_cast %108 : vector<1x128x128xf32> to vector<128x128xf32>
    %cst_137 = arith.constant dense<0.000000e+00> : vector<128x128xf32>
    %110 = tpu.matmul %107, %109, %cst_137 {dimension_numbers = #tpu.dot_dimension_numbers<[1], [0], [0], [1], [0, 0, 1, 1], [], []>} : vector<128x128xf32>, vector<128x128xf32>, vector<128x128xf32> -> vector<128x128xf32>
    %111 = arith.addf %105, %110 : vector<128x128xf32>
    %c0_138 = arith.constant 0 : index
    %c3_139 = arith.constant 3 : index
    %c0_140 = arith.constant 0 : index
    %c0_141 = arith.constant 0 : index
    %112 = vector.load %arg11[%c0_138, %c3_139, %c0_140, %c0_141] : memref<2x12x12x128xf32, #tpu.memory_space<vmem>>, vector<2x8x8x128xf32>
    %113 = vector.shape_cast %112 : vector<2x8x8x128xf32> to vector<128x128xf32>
    %c15 = arith.constant 15 : index
    %c0_142 = arith.constant 0 : index
    %c0_143 = arith.constant 0 : index
    %114 = vector.load %arg3[%c15, %c0_142, %c0_143] : memref<25x128x128xf32, #tpu.memory_space<vmem>>, vector<1x128x128xf32>
    %115 = vector.shape_cast %114 : vector<1x128x128xf32> to vector<128x128xf32>
    %cst_144 = arith.constant dense<0.000000e+00> : vector<128x128xf32>
    %116 = tpu.matmul %113, %115, %cst_144 {dimension_numbers = #tpu.dot_dimension_numbers<[1], [0], [0], [1], [0, 0, 1, 1], [], []>} : vector<128x128xf32>, vector<128x128xf32>, vector<128x128xf32> -> vector<128x128xf32>
    %117 = arith.addf %111, %116 : vector<128x128xf32>
    %c0_145 = arith.constant 0 : index
    %c3_146 = arith.constant 3 : index
    %c1_147 = arith.constant 1 : index
    %c0_148 = arith.constant 0 : index
    %118 = vector.load %arg11[%c0_145, %c3_146, %c1_147, %c0_148] : memref<2x12x12x128xf32, #tpu.memory_space<vmem>>, vector<2x8x8x128xf32>
    %119 = vector.shape_cast %118 : vector<2x8x8x128xf32> to vector<128x128xf32>
    %c16 = arith.constant 16 : index
    %c0_149 = arith.constant 0 : index
    %c0_150 = arith.constant 0 : index
    %120 = vector.load %arg3[%c16, %c0_149, %c0_150] : memref<25x128x128xf32, #tpu.memory_space<vmem>>, vector<1x128x128xf32>
    %121 = vector.shape_cast %120 : vector<1x128x128xf32> to vector<128x128xf32>
    %cst_151 = arith.constant dense<0.000000e+00> : vector<128x128xf32>
    %122 = tpu.matmul %119, %121, %cst_151 {dimension_numbers = #tpu.dot_dimension_numbers<[1], [0], [0], [1], [0, 0, 1, 1], [], []>} : vector<128x128xf32>, vector<128x128xf32>, vector<128x128xf32> -> vector<128x128xf32>
    %123 = arith.addf %117, %122 : vector<128x128xf32>
    %c0_152 = arith.constant 0 : index
    %c3_153 = arith.constant 3 : index
    %c2_154 = arith.constant 2 : index
    %c0_155 = arith.constant 0 : index
    %124 = vector.load %arg11[%c0_152, %c3_153, %c2_154, %c0_155] : memref<2x12x12x128xf32, #tpu.memory_space<vmem>>, vector<2x8x8x128xf32>
    %125 = vector.shape_cast %124 : vector<2x8x8x128xf32> to vector<128x128xf32>
    %c17 = arith.constant 17 : index
    %c0_156 = arith.constant 0 : index
    %c0_157 = arith.constant 0 : index
    %126 = vector.load %arg3[%c17, %c0_156, %c0_157] : memref<25x128x128xf32, #tpu.memory_space<vmem>>, vector<1x128x128xf32>
    %127 = vector.shape_cast %126 : vector<1x128x128xf32> to vector<128x128xf32>
    %cst_158 = arith.constant dense<0.000000e+00> : vector<128x128xf32>
    %128 = tpu.matmul %125, %127, %cst_158 {dimension_numbers = #tpu.dot_dimension_numbers<[1], [0], [0], [1], [0, 0, 1, 1], [], []>} : vector<128x128xf32>, vector<128x128xf32>, vector<128x128xf32> -> vector<128x128xf32>
    %129 = arith.addf %123, %128 : vector<128x128xf32>
    %c0_159 = arith.constant 0 : index
    %c3_160 = arith.constant 3 : index
    %c3_161 = arith.constant 3 : index
    %c0_162 = arith.constant 0 : index
    %130 = vector.load %arg11[%c0_159, %c3_160, %c3_161, %c0_162] : memref<2x12x12x128xf32, #tpu.memory_space<vmem>>, vector<2x8x8x128xf32>
    %131 = vector.shape_cast %130 : vector<2x8x8x128xf32> to vector<128x128xf32>
    %c18 = arith.constant 18 : index
    %c0_163 = arith.constant 0 : index
    %c0_164 = arith.constant 0 : index
    %132 = vector.load %arg3[%c18, %c0_163, %c0_164] : memref<25x128x128xf32, #tpu.memory_space<vmem>>, vector<1x128x128xf32>
    %133 = vector.shape_cast %132 : vector<1x128x128xf32> to vector<128x128xf32>
    %cst_165 = arith.constant dense<0.000000e+00> : vector<128x128xf32>
    %134 = tpu.matmul %131, %133, %cst_165 {dimension_numbers = #tpu.dot_dimension_numbers<[1], [0], [0], [1], [0, 0, 1, 1], [], []>} : vector<128x128xf32>, vector<128x128xf32>, vector<128x128xf32> -> vector<128x128xf32>
    %135 = arith.addf %129, %134 : vector<128x128xf32>
    %c0_166 = arith.constant 0 : index
    %c3_167 = arith.constant 3 : index
    %c4_168 = arith.constant 4 : index
    %c0_169 = arith.constant 0 : index
    %136 = vector.load %arg11[%c0_166, %c3_167, %c4_168, %c0_169] : memref<2x12x12x128xf32, #tpu.memory_space<vmem>>, vector<2x8x8x128xf32>
    %137 = vector.shape_cast %136 : vector<2x8x8x128xf32> to vector<128x128xf32>
    %c19 = arith.constant 19 : index
    %c0_170 = arith.constant 0 : index
    %c0_171 = arith.constant 0 : index
    %138 = vector.load %arg3[%c19, %c0_170, %c0_171] : memref<25x128x128xf32, #tpu.memory_space<vmem>>, vector<1x128x128xf32>
    %139 = vector.shape_cast %138 : vector<1x128x128xf32> to vector<128x128xf32>
    %cst_172 = arith.constant dense<0.000000e+00> : vector<128x128xf32>
    %140 = tpu.matmul %137, %139, %cst_172 {dimension_numbers = #tpu.dot_dimension_numbers<[1], [0], [0], [1], [0, 0, 1, 1], [], []>} : vector<128x128xf32>, vector<128x128xf32>, vector<128x128xf32> -> vector<128x128xf32>
    %141 = arith.addf %135, %140 : vector<128x128xf32>
    %c0_173 = arith.constant 0 : index
    %c4_174 = arith.constant 4 : index
    %c0_175 = arith.constant 0 : index
    %c0_176 = arith.constant 0 : index
    %142 = vector.load %arg11[%c0_173, %c4_174, %c0_175, %c0_176] : memref<2x12x12x128xf32, #tpu.memory_space<vmem>>, vector<2x8x8x128xf32>
    %143 = vector.shape_cast %142 : vector<2x8x8x128xf32> to vector<128x128xf32>
    %c20 = arith.constant 20 : index
    %c0_177 = arith.constant 0 : index
    %c0_178 = arith.constant 0 : index
    %144 = vector.load %arg3[%c20, %c0_177, %c0_178] : memref<25x128x128xf32, #tpu.memory_space<vmem>>, vector<1x128x128xf32>
    %145 = vector.shape_cast %144 : vector<1x128x128xf32> to vector<128x128xf32>
    %cst_179 = arith.constant dense<0.000000e+00> : vector<128x128xf32>
    %146 = tpu.matmul %143, %145, %cst_179 {dimension_numbers = #tpu.dot_dimension_numbers<[1], [0], [0], [1], [0, 0, 1, 1], [], []>} : vector<128x128xf32>, vector<128x128xf32>, vector<128x128xf32> -> vector<128x128xf32>
    %147 = arith.addf %141, %146 : vector<128x128xf32>
    %c0_180 = arith.constant 0 : index
    %c4_181 = arith.constant 4 : index
    %c1_182 = arith.constant 1 : index
    %c0_183 = arith.constant 0 : index
    %148 = vector.load %arg11[%c0_180, %c4_181, %c1_182, %c0_183] : memref<2x12x12x128xf32, #tpu.memory_space<vmem>>, vector<2x8x8x128xf32>
    %149 = vector.shape_cast %148 : vector<2x8x8x128xf32> to vector<128x128xf32>
    %c21 = arith.constant 21 : index
    %c0_184 = arith.constant 0 : index
    %c0_185 = arith.constant 0 : index
    %150 = vector.load %arg3[%c21, %c0_184, %c0_185] : memref<25x128x128xf32, #tpu.memory_space<vmem>>, vector<1x128x128xf32>
    %151 = vector.shape_cast %150 : vector<1x128x128xf32> to vector<128x128xf32>
    %cst_186 = arith.constant dense<0.000000e+00> : vector<128x128xf32>
    %152 = tpu.matmul %149, %151, %cst_186 {dimension_numbers = #tpu.dot_dimension_numbers<[1], [0], [0], [1], [0, 0, 1, 1], [], []>} : vector<128x128xf32>, vector<128x128xf32>, vector<128x128xf32> -> vector<128x128xf32>
    %153 = arith.addf %147, %152 : vector<128x128xf32>
    %c0_187 = arith.constant 0 : index
    %c4_188 = arith.constant 4 : index
    %c2_189 = arith.constant 2 : index
    %c0_190 = arith.constant 0 : index
    %154 = vector.load %arg11[%c0_187, %c4_188, %c2_189, %c0_190] : memref<2x12x12x128xf32, #tpu.memory_space<vmem>>, vector<2x8x8x128xf32>
    %155 = vector.shape_cast %154 : vector<2x8x8x128xf32> to vector<128x128xf32>
    %c22 = arith.constant 22 : index
    %c0_191 = arith.constant 0 : index
    %c0_192 = arith.constant 0 : index
    %156 = vector.load %arg3[%c22, %c0_191, %c0_192] : memref<25x128x128xf32, #tpu.memory_space<vmem>>, vector<1x128x128xf32>
    %157 = vector.shape_cast %156 : vector<1x128x128xf32> to vector<128x128xf32>
    %cst_193 = arith.constant dense<0.000000e+00> : vector<128x128xf32>
    %158 = tpu.matmul %155, %157, %cst_193 {dimension_numbers = #tpu.dot_dimension_numbers<[1], [0], [0], [1], [0, 0, 1, 1], [], []>} : vector<128x128xf32>, vector<128x128xf32>, vector<128x128xf32> -> vector<128x128xf32>
    %159 = arith.addf %153, %158 : vector<128x128xf32>
    %c0_194 = arith.constant 0 : index
    %c4_195 = arith.constant 4 : index
    %c3_196 = arith.constant 3 : index
    %c0_197 = arith.constant 0 : index
    %160 = vector.load %arg11[%c0_194, %c4_195, %c3_196, %c0_197] : memref<2x12x12x128xf32, #tpu.memory_space<vmem>>, vector<2x8x8x128xf32>
    %161 = vector.shape_cast %160 : vector<2x8x8x128xf32> to vector<128x128xf32>
    %c23 = arith.constant 23 : index
    %c0_198 = arith.constant 0 : index
    %c0_199 = arith.constant 0 : index
    %162 = vector.load %arg3[%c23, %c0_198, %c0_199] : memref<25x128x128xf32, #tpu.memory_space<vmem>>, vector<1x128x128xf32>
    %163 = vector.shape_cast %162 : vector<1x128x128xf32> to vector<128x128xf32>
    %cst_200 = arith.constant dense<0.000000e+00> : vector<128x128xf32>
    %164 = tpu.matmul %161, %163, %cst_200 {dimension_numbers = #tpu.dot_dimension_numbers<[1], [0], [0], [1], [0, 0, 1, 1], [], []>} : vector<128x128xf32>, vector<128x128xf32>, vector<128x128xf32> -> vector<128x128xf32>
    %165 = arith.addf %159, %164 : vector<128x128xf32>
    %c0_201 = arith.constant 0 : index
    %c4_202 = arith.constant 4 : index
    %c4_203 = arith.constant 4 : index
    %c0_204 = arith.constant 0 : index
    %166 = vector.load %arg11[%c0_201, %c4_202, %c4_203, %c0_204] : memref<2x12x12x128xf32, #tpu.memory_space<vmem>>, vector<2x8x8x128xf32>
    %167 = vector.shape_cast %166 : vector<2x8x8x128xf32> to vector<128x128xf32>
    %c24 = arith.constant 24 : index
    %c0_205 = arith.constant 0 : index
    %c0_206 = arith.constant 0 : index
    %168 = vector.load %arg3[%c24, %c0_205, %c0_206] : memref<25x128x128xf32, #tpu.memory_space<vmem>>, vector<1x128x128xf32>
    %169 = vector.shape_cast %168 : vector<1x128x128xf32> to vector<128x128xf32>
    %cst_207 = arith.constant dense<0.000000e+00> : vector<128x128xf32>
    %170 = tpu.matmul %167, %169, %cst_207 {dimension_numbers = #tpu.dot_dimension_numbers<[1], [0], [0], [1], [0, 0, 1, 1], [], []>} : vector<128x128xf32>, vector<128x128xf32>, vector<128x128xf32> -> vector<128x128xf32>
    %171 = arith.addf %165, %170 : vector<128x128xf32>
    %c1_208 = arith.constant 1 : index
    %c0_209 = arith.constant 0 : index
    %172 = vector.load %arg7[%c1_208, %c0_209] : memref<8x128xf32, #tpu.memory_space<vmem>>, vector<1x128xf32>
    %173 = vector.broadcast %172 : vector<1x128xf32> to vector<128x128xf32>
    %174 = arith.addf %171, %173 : vector<128x128xf32>
    %cst_210 = arith.constant 0.000000e+00 : f32
    %175 = vector.broadcast %cst_210 : f32 to vector<128x128xf32>
    %176 = arith.maximumf %174, %175 : vector<128x128xf32>
    %177 = vector.shape_cast %176 : vector<128x128xf32> to vector<8x2x8x128xf32>
    %c0_211 = arith.constant 0 : index
    %c0_212 = arith.constant 0 : index
    %c0_213 = arith.constant 0 : index
    %c0_214 = arith.constant 0 : index
    %178 = vector.load %arg12[%c0_211, %c0_212, %c0_213, %c0_214] : memref<8x2x8x128xf32, #tpu.memory_space<vmem>>, vector<8x2x8x128xf32>
    tpu.vector_store %arg12[%c0_211, %c0_212, %c0_213, %c0_214], %177 {strides = array<i32>} : memref<8x2x8x128xf32, #tpu.memory_space<vmem>>, vector<8x2x8x128xf32>,
    %c0_215 = arith.constant 0 : index
    %c0_216 = arith.constant 0 : index
    %c0_217 = arith.constant 0 : index
    %c0_218 = arith.constant 0 : index
    %179 = vector.load %arg12[%c0_215, %c0_216, %c0_217, %c0_218] : memref<8x2x8x128xf32, #tpu.memory_space<vmem>>, vector<8x1x8x128xf32>
    %180 = vector.shape_cast %179 : vector<8x1x8x128xf32> to vector<8x8x128xf32>
    %c0_219 = arith.constant 0 : index
    %c1_220 = arith.constant 1 : index
    %c0_221 = arith.constant 0 : index
    %c0_222 = arith.constant 0 : index
    %181 = vector.load %arg12[%c0_219, %c1_220, %c0_221, %c0_222] : memref<8x2x8x128xf32, #tpu.memory_space<vmem>>, vector<8x1x8x128xf32>
    %182 = vector.shape_cast %181 : vector<8x1x8x128xf32> to vector<8x8x128xf32>
    %183 = arith.maximumf %180, %182 : vector<8x8x128xf32>
    %c0_223 = arith.constant 0 : index
    %c0_224 = arith.constant 0 : index
    %c0_225 = arith.constant 0 : index
    %184 = vector.load %arg13[%c0_223, %c0_224, %c0_225] : memref<8x8x128xf32, #tpu.memory_space<vmem>>, vector<8x8x128xf32>
    tpu.vector_store %arg13[%c0_223, %c0_224, %c0_225], %183 {strides = array<i32>} : memref<8x8x128xf32, #tpu.memory_space<vmem>>, vector<8x8x128xf32>,
    %c0_226 = arith.constant 0 : index
    %c0_227 = arith.constant 0 : index
    %c0_228 = arith.constant 0 : index
    %185 = tpu.strided_load %arg13[%c0_226, %c0_227, %c0_228] {strides = array<i32: 1, 2, 1>} : memref<8x8x128xf32, #tpu.memory_space<vmem>>, vector<8x4x128xf32>
    %c0_229 = arith.constant 0 : index
    %c1_230 = arith.constant 1 : index
    %c0_231 = arith.constant 0 : index
    %186 = tpu.strided_load %arg13[%c0_229, %c1_230, %c0_231] {strides = array<i32: 1, 2, 1>} : memref<8x8x128xf32, #tpu.memory_space<vmem>>, vector<8x4x128xf32>
    %187 = arith.maximumf %185, %186 : vector<8x4x128xf32>
    %188 = vector.shape_cast %187 : vector<8x4x128xf32> to vector<2x4x4x128xf32>
    %c0_232 = arith.constant 0 : index
    %c0_233 = arith.constant 0 : index
    %c0_234 = arith.constant 0 : index
    %c0_235 = arith.constant 0 : index
    %189 = vector.load %arg14[%c0_232, %c0_233, %c0_234, %c0_235] : memref<2x4x4x128xf32, #tpu.memory_space<vmem>>, vector<2x4x4x128xf32>
    tpu.vector_store %arg14[%c0_232, %c0_233, %c0_234, %c0_235], %188 {strides = array<i32>} : memref<2x4x4x128xf32, #tpu.memory_space<vmem>>, vector<2x4x4x128xf32>,
    %cst_236 = arith.constant 0.000000e+00 : f32
    %190 = vector.broadcast %cst_236 : f32 to vector<2x128xf32>
    %c0_237 = arith.constant 0 : index
    %c0_238 = arith.constant 0 : index
    %c0_239 = arith.constant 0 : index
    %c0_240 = arith.constant 0 : index
    %191 = vector.load %arg14[%c0_237, %c0_238, %c0_239, %c0_240] : memref<2x4x4x128xf32, #tpu.memory_space<vmem>>, vector<2x1x1x128xf32>
    %192 = vector.shape_cast %191 : vector<2x1x1x128xf32> to vector<2x128xf32>
    %c0_241 = arith.constant 0 : index
    %c0_242 = arith.constant 0 : index
    %c0_243 = arith.constant 0 : index
    %193 = vector.load %arg4[%c0_241, %c0_242, %c0_243] : memref<16x128x128xf32, #tpu.memory_space<vmem>>, vector<1x128x128xf32>
    %194 = vector.shape_cast %193 : vector<1x128x128xf32> to vector<128x128xf32>
    %cst_244 = arith.constant dense<0.000000e+00> : vector<2x128xf32>
    %195 = tpu.matmul %192, %194, %cst_244 {dimension_numbers = #tpu.dot_dimension_numbers<[1], [0], [0], [1], [0, 0, 1, 1], [], []>} : vector<2x128xf32>, vector<128x128xf32>, vector<2x128xf32> -> vector<2x128xf32>
    %196 = arith.addf %190, %195 : vector<2x128xf32>
    %c0_245 = arith.constant 0 : index
    %c0_246 = arith.constant 0 : index
    %c1_247 = arith.constant 1 : index
    %c0_248 = arith.constant 0 : index
    %197 = vector.load %arg14[%c0_245, %c0_246, %c1_247, %c0_248] : memref<2x4x4x128xf32, #tpu.memory_space<vmem>>, vector<2x1x1x128xf32>
    %198 = vector.shape_cast %197 : vector<2x1x1x128xf32> to vector<2x128xf32>
    %c1_249 = arith.constant 1 : index
    %c0_250 = arith.constant 0 : index
    %c0_251 = arith.constant 0 : index
    %199 = vector.load %arg4[%c1_249, %c0_250, %c0_251] : memref<16x128x128xf32, #tpu.memory_space<vmem>>, vector<1x128x128xf32>
    %200 = vector.shape_cast %199 : vector<1x128x128xf32> to vector<128x128xf32>
    %cst_252 = arith.constant dense<0.000000e+00> : vector<2x128xf32>
    %201 = tpu.matmul %198, %200, %cst_252 {dimension_numbers = #tpu.dot_dimension_numbers<[1], [0], [0], [1], [0, 0, 1, 1], [], []>} : vector<2x128xf32>, vector<128x128xf32>, vector<2x128xf32> -> vector<2x128xf32>
    %202 = arith.addf %196, %201 : vector<2x128xf32>
    %c0_253 = arith.constant 0 : index
    %c0_254 = arith.constant 0 : index
    %c2_255 = arith.constant 2 : index
    %c0_256 = arith.constant 0 : index
    %203 = vector.load %arg14[%c0_253, %c0_254, %c2_255, %c0_256] : memref<2x4x4x128xf32, #tpu.memory_space<vmem>>, vector<2x1x1x128xf32>
    %204 = vector.shape_cast %203 : vector<2x1x1x128xf32> to vector<2x128xf32>
    %c2_257 = arith.constant 2 : index
    %c0_258 = arith.constant 0 : index
    %c0_259 = arith.constant 0 : index
    %205 = vector.load %arg4[%c2_257, %c0_258, %c0_259] : memref<16x128x128xf32, #tpu.memory_space<vmem>>, vector<1x128x128xf32>
    %206 = vector.shape_cast %205 : vector<1x128x128xf32> to vector<128x128xf32>
    %cst_260 = arith.constant dense<0.000000e+00> : vector<2x128xf32>
    %207 = tpu.matmul %204, %206, %cst_260 {dimension_numbers = #tpu.dot_dimension_numbers<[1], [0], [0], [1], [0, 0, 1, 1], [], []>} : vector<2x128xf32>, vector<128x128xf32>, vector<2x128xf32> -> vector<2x128xf32>
    %208 = arith.addf %202, %207 : vector<2x128xf32>
    %c0_261 = arith.constant 0 : index
    %c0_262 = arith.constant 0 : index
    %c3_263 = arith.constant 3 : index
    %c0_264 = arith.constant 0 : index
    %209 = vector.load %arg14[%c0_261, %c0_262, %c3_263, %c0_264] : memref<2x4x4x128xf32, #tpu.memory_space<vmem>>, vector<2x1x1x128xf32>
    %210 = vector.shape_cast %209 : vector<2x1x1x128xf32> to vector<2x128xf32>
    %c3_265 = arith.constant 3 : index
    %c0_266 = arith.constant 0 : index
    %c0_267 = arith.constant 0 : index
    %211 = vector.load %arg4[%c3_265, %c0_266, %c0_267] : memref<16x128x128xf32, #tpu.memory_space<vmem>>, vector<1x128x128xf32>
    %212 = vector.shape_cast %211 : vector<1x128x128xf32> to vector<128x128xf32>
    %cst_268 = arith.constant dense<0.000000e+00> : vector<2x128xf32>
    %213 = tpu.matmul %210, %212, %cst_268 {dimension_numbers = #tpu.dot_dimension_numbers<[1], [0], [0], [1], [0, 0, 1, 1], [], []>} : vector<2x128xf32>, vector<128x128xf32>, vector<2x128xf32> -> vector<2x128xf32>
    %214 = arith.addf %208, %213 : vector<2x128xf32>
    %c0_269 = arith.constant 0 : index
    %c1_270 = arith.constant 1 : index
    %c0_271 = arith.constant 0 : index
    %c0_272 = arith.constant 0 : index
    %215 = vector.load %arg14[%c0_269, %c1_270, %c0_271, %c0_272] : memref<2x4x4x128xf32, #tpu.memory_space<vmem>>, vector<2x1x1x128xf32>
    %216 = vector.shape_cast %215 : vector<2x1x1x128xf32> to vector<2x128xf32>
    %c4_273 = arith.constant 4 : index
    %c0_274 = arith.constant 0 : index
    %c0_275 = arith.constant 0 : index
    %217 = vector.load %arg4[%c4_273, %c0_274, %c0_275] : memref<16x128x128xf32, #tpu.memory_space<vmem>>, vector<1x128x128xf32>
    %218 = vector.shape_cast %217 : vector<1x128x128xf32> to vector<128x128xf32>
    %cst_276 = arith.constant dense<0.000000e+00> : vector<2x128xf32>
    %219 = tpu.matmul %216, %218, %cst_276 {dimension_numbers = #tpu.dot_dimension_numbers<[1], [0], [0], [1], [0, 0, 1, 1], [], []>} : vector<2x128xf32>, vector<128x128xf32>, vector<2x128xf32> -> vector<2x128xf32>
    %220 = arith.addf %214, %219 : vector<2x128xf32>
    %c0_277 = arith.constant 0 : index
    %c1_278 = arith.constant 1 : index
    %c1_279 = arith.constant 1 : index
    %c0_280 = arith.constant 0 : index
    %221 = vector.load %arg14[%c0_277, %c1_278, %c1_279, %c0_280] : memref<2x4x4x128xf32, #tpu.memory_space<vmem>>, vector<2x1x1x128xf32>
    %222 = vector.shape_cast %221 : vector<2x1x1x128xf32> to vector<2x128xf32>
    %c5_281 = arith.constant 5 : index
    %c0_282 = arith.constant 0 : index
    %c0_283 = arith.constant 0 : index
    %223 = vector.load %arg4[%c5_281, %c0_282, %c0_283] : memref<16x128x128xf32, #tpu.memory_space<vmem>>, vector<1x128x128xf32>
    %224 = vector.shape_cast %223 : vector<1x128x128xf32> to vector<128x128xf32>
    %cst_284 = arith.constant dense<0.000000e+00> : vector<2x128xf32>
    %225 = tpu.matmul %222, %224, %cst_284 {dimension_numbers = #tpu.dot_dimension_numbers<[1], [0], [0], [1], [0, 0, 1, 1], [], []>} : vector<2x128xf32>, vector<128x128xf32>, vector<2x128xf32> -> vector<2x128xf32>
    %226 = arith.addf %220, %225 : vector<2x128xf32>
    %c0_285 = arith.constant 0 : index
    %c1_286 = arith.constant 1 : index
    %c2_287 = arith.constant 2 : index
    %c0_288 = arith.constant 0 : index
    %227 = vector.load %arg14[%c0_285, %c1_286, %c2_287, %c0_288] : memref<2x4x4x128xf32, #tpu.memory_space<vmem>>, vector<2x1x1x128xf32>
    %228 = vector.shape_cast %227 : vector<2x1x1x128xf32> to vector<2x128xf32>
    %c6_289 = arith.constant 6 : index
    %c0_290 = arith.constant 0 : index
    %c0_291 = arith.constant 0 : index
    %229 = vector.load %arg4[%c6_289, %c0_290, %c0_291] : memref<16x128x128xf32, #tpu.memory_space<vmem>>, vector<1x128x128xf32>
    %230 = vector.shape_cast %229 : vector<1x128x128xf32> to vector<128x128xf32>
    %cst_292 = arith.constant dense<0.000000e+00> : vector<2x128xf32>
    %231 = tpu.matmul %228, %230, %cst_292 {dimension_numbers = #tpu.dot_dimension_numbers<[1], [0], [0], [1], [0, 0, 1, 1], [], []>} : vector<2x128xf32>, vector<128x128xf32>, vector<2x128xf32> -> vector<2x128xf32>
    %232 = arith.addf %226, %231 : vector<2x128xf32>
    %c0_293 = arith.constant 0 : index
    %c1_294 = arith.constant 1 : index
    %c3_295 = arith.constant 3 : index
    %c0_296 = arith.constant 0 : index
    %233 = vector.load %arg14[%c0_293, %c1_294, %c3_295, %c0_296] : memref<2x4x4x128xf32, #tpu.memory_space<vmem>>, vector<2x1x1x128xf32>
    %234 = vector.shape_cast %233 : vector<2x1x1x128xf32> to vector<2x128xf32>
    %c7_297 = arith.constant 7 : index
    %c0_298 = arith.constant 0 : index
    %c0_299 = arith.constant 0 : index
    %235 = vector.load %arg4[%c7_297, %c0_298, %c0_299] : memref<16x128x128xf32, #tpu.memory_space<vmem>>, vector<1x128x128xf32>
    %236 = vector.shape_cast %235 : vector<1x128x128xf32> to vector<128x128xf32>
    %cst_300 = arith.constant dense<0.000000e+00> : vector<2x128xf32>
    %237 = tpu.matmul %234, %236, %cst_300 {dimension_numbers = #tpu.dot_dimension_numbers<[1], [0], [0], [1], [0, 0, 1, 1], [], []>} : vector<2x128xf32>, vector<128x128xf32>, vector<2x128xf32> -> vector<2x128xf32>
    %238 = arith.addf %232, %237 : vector<2x128xf32>
    %c0_301 = arith.constant 0 : index
    %c2_302 = arith.constant 2 : index
    %c0_303 = arith.constant 0 : index
    %c0_304 = arith.constant 0 : index
    %239 = vector.load %arg14[%c0_301, %c2_302, %c0_303, %c0_304] : memref<2x4x4x128xf32, #tpu.memory_space<vmem>>, vector<2x1x1x128xf32>
    %240 = vector.shape_cast %239 : vector<2x1x1x128xf32> to vector<2x128xf32>
    %c8_305 = arith.constant 8 : index
    %c0_306 = arith.constant 0 : index
    %c0_307 = arith.constant 0 : index
    %241 = vector.load %arg4[%c8_305, %c0_306, %c0_307] : memref<16x128x128xf32, #tpu.memory_space<vmem>>, vector<1x128x128xf32>
    %242 = vector.shape_cast %241 : vector<1x128x128xf32> to vector<128x128xf32>
    %cst_308 = arith.constant dense<0.000000e+00> : vector<2x128xf32>
    %243 = tpu.matmul %240, %242, %cst_308 {dimension_numbers = #tpu.dot_dimension_numbers<[1], [0], [0], [1], [0, 0, 1, 1], [], []>} : vector<2x128xf32>, vector<128x128xf32>, vector<2x128xf32> -> vector<2x128xf32>
    %244 = arith.addf %238, %243 : vector<2x128xf32>
    %c0_309 = arith.constant 0 : index
    %c2_310 = arith.constant 2 : index
    %c1_311 = arith.constant 1 : index
    %c0_312 = arith.constant 0 : index
    %245 = vector.load %arg14[%c0_309, %c2_310, %c1_311, %c0_312] : memref<2x4x4x128xf32, #tpu.memory_space<vmem>>, vector<2x1x1x128xf32>
    %246 = vector.shape_cast %245 : vector<2x1x1x128xf32> to vector<2x128xf32>
    %c9_313 = arith.constant 9 : index
    %c0_314 = arith.constant 0 : index
    %c0_315 = arith.constant 0 : index
    %247 = vector.load %arg4[%c9_313, %c0_314, %c0_315] : memref<16x128x128xf32, #tpu.memory_space<vmem>>, vector<1x128x128xf32>
    %248 = vector.shape_cast %247 : vector<1x128x128xf32> to vector<128x128xf32>
    %cst_316 = arith.constant dense<0.000000e+00> : vector<2x128xf32>
    %249 = tpu.matmul %246, %248, %cst_316 {dimension_numbers = #tpu.dot_dimension_numbers<[1], [0], [0], [1], [0, 0, 1, 1], [], []>} : vector<2x128xf32>, vector<128x128xf32>, vector<2x128xf32> -> vector<2x128xf32>
    %250 = arith.addf %244, %249 : vector<2x128xf32>
    %c0_317 = arith.constant 0 : index
    %c2_318 = arith.constant 2 : index
    %c2_319 = arith.constant 2 : index
    %c0_320 = arith.constant 0 : index
    %251 = vector.load %arg14[%c0_317, %c2_318, %c2_319, %c0_320] : memref<2x4x4x128xf32, #tpu.memory_space<vmem>>, vector<2x1x1x128xf32>
    %252 = vector.shape_cast %251 : vector<2x1x1x128xf32> to vector<2x128xf32>
    %c10_321 = arith.constant 10 : index
    %c0_322 = arith.constant 0 : index
    %c0_323 = arith.constant 0 : index
    %253 = vector.load %arg4[%c10_321, %c0_322, %c0_323] : memref<16x128x128xf32, #tpu.memory_space<vmem>>, vector<1x128x128xf32>
    %254 = vector.shape_cast %253 : vector<1x128x128xf32> to vector<128x128xf32>
    %cst_324 = arith.constant dense<0.000000e+00> : vector<2x128xf32>
    %255 = tpu.matmul %252, %254, %cst_324 {dimension_numbers = #tpu.dot_dimension_numbers<[1], [0], [0], [1], [0, 0, 1, 1], [], []>} : vector<2x128xf32>, vector<128x128xf32>, vector<2x128xf32> -> vector<2x128xf32>
    %256 = arith.addf %250, %255 : vector<2x128xf32>
    %c0_325 = arith.constant 0 : index
    %c2_326 = arith.constant 2 : index
    %c3_327 = arith.constant 3 : index
    %c0_328 = arith.constant 0 : index
    %257 = vector.load %arg14[%c0_325, %c2_326, %c3_327, %c0_328] : memref<2x4x4x128xf32, #tpu.memory_space<vmem>>, vector<2x1x1x128xf32>
    %258 = vector.shape_cast %257 : vector<2x1x1x128xf32> to vector<2x128xf32>
    %c11_329 = arith.constant 11 : index
    %c0_330 = arith.constant 0 : index
    %c0_331 = arith.constant 0 : index
    %259 = vector.load %arg4[%c11_329, %c0_330, %c0_331] : memref<16x128x128xf32, #tpu.memory_space<vmem>>, vector<1x128x128xf32>
    %260 = vector.shape_cast %259 : vector<1x128x128xf32> to vector<128x128xf32>
    %cst_332 = arith.constant dense<0.000000e+00> : vector<2x128xf32>
    %261 = tpu.matmul %258, %260, %cst_332 {dimension_numbers = #tpu.dot_dimension_numbers<[1], [0], [0], [1], [0, 0, 1, 1], [], []>} : vector<2x128xf32>, vector<128x128xf32>, vector<2x128xf32> -> vector<2x128xf32>
    %262 = arith.addf %256, %261 : vector<2x128xf32>
    %c0_333 = arith.constant 0 : index
    %c3_334 = arith.constant 3 : index
    %c0_335 = arith.constant 0 : index
    %c0_336 = arith.constant 0 : index
    %263 = vector.load %arg14[%c0_333, %c3_334, %c0_335, %c0_336] : memref<2x4x4x128xf32, #tpu.memory_space<vmem>>, vector<2x1x1x128xf32>
    %264 = vector.shape_cast %263 : vector<2x1x1x128xf32> to vector<2x128xf32>
    %c12_337 = arith.constant 12 : index
    %c0_338 = arith.constant 0 : index
    %c0_339 = arith.constant 0 : index
    %265 = vector.load %arg4[%c12_337, %c0_338, %c0_339] : memref<16x128x128xf32, #tpu.memory_space<vmem>>, vector<1x128x128xf32>
    %266 = vector.shape_cast %265 : vector<1x128x128xf32> to vector<128x128xf32>
    %cst_340 = arith.constant dense<0.000000e+00> : vector<2x128xf32>
    %267 = tpu.matmul %264, %266, %cst_340 {dimension_numbers = #tpu.dot_dimension_numbers<[1], [0], [0], [1], [0, 0, 1, 1], [], []>} : vector<2x128xf32>, vector<128x128xf32>, vector<2x128xf32> -> vector<2x128xf32>
    %268 = arith.addf %262, %267 : vector<2x128xf32>
    %c0_341 = arith.constant 0 : index
    %c3_342 = arith.constant 3 : index
    %c1_343 = arith.constant 1 : index
    %c0_344 = arith.constant 0 : index
    %269 = vector.load %arg14[%c0_341, %c3_342, %c1_343, %c0_344] : memref<2x4x4x128xf32, #tpu.memory_space<vmem>>, vector<2x1x1x128xf32>
    %270 = vector.shape_cast %269 : vector<2x1x1x128xf32> to vector<2x128xf32>
    %c13_345 = arith.constant 13 : index
    %c0_346 = arith.constant 0 : index
    %c0_347 = arith.constant 0 : index
    %271 = vector.load %arg4[%c13_345, %c0_346, %c0_347] : memref<16x128x128xf32, #tpu.memory_space<vmem>>, vector<1x128x128xf32>
    %272 = vector.shape_cast %271 : vector<1x128x128xf32> to vector<128x128xf32>
    %cst_348 = arith.constant dense<0.000000e+00> : vector<2x128xf32>
    %273 = tpu.matmul %270, %272, %cst_348 {dimension_numbers = #tpu.dot_dimension_numbers<[1], [0], [0], [1], [0, 0, 1, 1], [], []>} : vector<2x128xf32>, vector<128x128xf32>, vector<2x128xf32> -> vector<2x128xf32>
    %274 = arith.addf %268, %273 : vector<2x128xf32>
    %c0_349 = arith.constant 0 : index
    %c3_350 = arith.constant 3 : index
    %c2_351 = arith.constant 2 : index
    %c0_352 = arith.constant 0 : index
    %275 = vector.load %arg14[%c0_349, %c3_350, %c2_351, %c0_352] : memref<2x4x4x128xf32, #tpu.memory_space<vmem>>, vector<2x1x1x128xf32>
    %276 = vector.shape_cast %275 : vector<2x1x1x128xf32> to vector<2x128xf32>
    %c14_353 = arith.constant 14 : index
    %c0_354 = arith.constant 0 : index
    %c0_355 = arith.constant 0 : index
    %277 = vector.load %arg4[%c14_353, %c0_354, %c0_355] : memref<16x128x128xf32, #tpu.memory_space<vmem>>, vector<1x128x128xf32>
    %278 = vector.shape_cast %277 : vector<1x128x128xf32> to vector<128x128xf32>
    %cst_356 = arith.constant dense<0.000000e+00> : vector<2x128xf32>
    %279 = tpu.matmul %276, %278, %cst_356 {dimension_numbers = #tpu.dot_dimension_numbers<[1], [0], [0], [1], [0, 0, 1, 1], [], []>} : vector<2x128xf32>, vector<128x128xf32>, vector<2x128xf32> -> vector<2x128xf32>
    %280 = arith.addf %274, %279 : vector<2x128xf32>
    %c0_357 = arith.constant 0 : index
    %c3_358 = arith.constant 3 : index
    %c3_359 = arith.constant 3 : index
    %c0_360 = arith.constant 0 : index
    %281 = vector.load %arg14[%c0_357, %c3_358, %c3_359, %c0_360] : memref<2x4x4x128xf32, #tpu.memory_space<vmem>>, vector<2x1x1x128xf32>
    %282 = vector.shape_cast %281 : vector<2x1x1x128xf32> to vector<2x128xf32>
    %c15_361 = arith.constant 15 : index
    %c0_362 = arith.constant 0 : index
    %c0_363 = arith.constant 0 : index
    %283 = vector.load %arg4[%c15_361, %c0_362, %c0_363] : memref<16x128x128xf32, #tpu.memory_space<vmem>>, vector<1x128x128xf32>
    %284 = vector.shape_cast %283 : vector<1x128x128xf32> to vector<128x128xf32>
    %cst_364 = arith.constant dense<0.000000e+00> : vector<2x128xf32>
    %285 = tpu.matmul %282, %284, %cst_364 {dimension_numbers = #tpu.dot_dimension_numbers<[1], [0], [0], [1], [0, 0, 1, 1], [], []>} : vector<2x128xf32>, vector<128x128xf32>, vector<2x128xf32> -> vector<2x128xf32>
    %286 = arith.addf %280, %285 : vector<2x128xf32>
    %c2_365 = arith.constant 2 : index
    %c0_366 = arith.constant 0 : index
    %287 = vector.load %arg7[%c2_365, %c0_366] : memref<8x128xf32, #tpu.memory_space<vmem>>, vector<1x128xf32>
    %288 = vector.broadcast %287 : vector<1x128xf32> to vector<2x128xf32>
    %289 = arith.addf %286, %288 : vector<2x128xf32>
    %cst_367 = arith.constant 0.000000e+00 : f32
    %290 = vector.broadcast %cst_367 : f32 to vector<2x128xf32>
    %291 = arith.maximumf %289, %290 : vector<2x128xf32>
    %c0_368 = arith.constant 0 : index
    %c0_369 = arith.constant 0 : index
    %292 = vector.load %arg5[%c0_368, %c0_369] : memref<128x128xf32, #tpu.memory_space<vmem>>, vector<128x128xf32>
    %cst_370 = arith.constant dense<0.000000e+00> : vector<2x128xf32>
    %293 = tpu.matmul %291, %292, %cst_370 {dimension_numbers = #tpu.dot_dimension_numbers<[1], [0], [0], [1], [0, 0, 1, 1], [], []>} : vector<2x128xf32>, vector<128x128xf32>, vector<2x128xf32> -> vector<2x128xf32>
    %c3_371 = arith.constant 3 : index
    %c0_372 = arith.constant 0 : index
    %294 = vector.load %arg7[%c3_371, %c0_372] : memref<8x128xf32, #tpu.memory_space<vmem>>, vector<1x128xf32>
    %295 = vector.broadcast %294 : vector<1x128xf32> to vector<2x128xf32>
    %296 = arith.addf %293, %295 : vector<2x128xf32>
    %cst_373 = arith.constant 0.000000e+00 : f32
    %297 = vector.broadcast %cst_373 : f32 to vector<2x128xf32>
    %298 = arith.maximumf %296, %297 : vector<2x128xf32>
    %c0_374 = arith.constant 0 : index
    %c0_375 = arith.constant 0 : index
    %299 = vector.load %arg6[%c0_374, %c0_375] : memref<128x128xf32, #tpu.memory_space<vmem>>, vector<128x128xf32>
    %cst_376 = arith.constant dense<0.000000e+00> : vector<2x128xf32>
    %300 = tpu.matmul %298, %299, %cst_376 {dimension_numbers = #tpu.dot_dimension_numbers<[1], [0], [0], [1], [0, 0, 1, 1], [], []>} : vector<2x128xf32>, vector<128x128xf32>, vector<2x128xf32> -> vector<2x128xf32>
    %c4_377 = arith.constant 4 : index
    %c0_378 = arith.constant 0 : index
    %301 = vector.load %arg7[%c4_377, %c0_378] : memref<8x128xf32, #tpu.memory_space<vmem>>, vector<1x128xf32>
    %302 = vector.broadcast %301 : vector<1x128xf32> to vector<2x128xf32>
    %303 = arith.addf %300, %302 : vector<2x128xf32>
    %c0_379 = arith.constant 0 : index
    %c0_380 = arith.constant 0 : index
    %304 = vector.load %arg8[%c0_379, %c0_380] : memref<2x128xf32, #tpu.memory_space<vmem>>, vector<2x128xf32>
    tpu.vector_store %arg8[%c0_379, %c0_380], %303 {strides = array<i32>} : memref<2x128xf32, #tpu.memory_space<vmem>>, vector<2x128xf32>,
    return
  }
  func.func @transform_0(%arg0: i32) -> (i32, i32) {
    %c0_i32 = arith.constant 0 : i32
    %c0_i32_0 = arith.constant 0 : i32
    return %arg0, %c0_i32 : i32, i32
  }
  func.func @transform_1(%arg0: i32) -> (i32, i32) {
    %c0_i32 = arith.constant 0 : i32
    %c0_i32_0 = arith.constant 0 : i32
    %c0_i32_1 = arith.constant 0 : i32
    return %c0_i32, %c0_i32_0 : i32, i32
  }
  func.func @transform_2(%arg0: i32) -> (i32, i32, i32) {
    %c0_i32 = arith.constant 0 : i32
    %c0_i32_0 = arith.constant 0 : i32
    %c0_i32_1 = arith.constant 0 : i32
    %c0_i32_2 = arith.constant 0 : i32
    return %c0_i32, %c0_i32_0, %c0_i32_1 : i32, i32, i32
  }
  func.func @transform_3(%arg0: i32) -> (i32, i32, i32) {
    %c0_i32 = arith.constant 0 : i32
    %c0_i32_0 = arith.constant 0 : i32
    %c0_i32_1 = arith.constant 0 : i32
    %c0_i32_2 = arith.constant 0 : i32
    return %c0_i32, %c0_i32_0, %c0_i32_1 : i32, i32, i32
  }
  func.func @transform_4(%arg0: i32) -> (i32, i32) {
    %c0_i32 = arith.constant 0 : i32
    %c0_i32_0 = arith.constant 0 : i32
    %c0_i32_1 = arith.constant 0 : i32
    return %c0_i32, %c0_i32_0 : i32, i32
  }
  func.func @transform_5(%arg0: i32) -> (i32, i32) {
    %c0_i32 = arith.constant 0 : i32
    %c0_i32_0 = arith.constant 0 : i32
    %c0_i32_1 = arith.constant 0 : i32
    return %c0_i32, %c0_i32_0 : i32, i32
  }
  func.func @transform_6(%arg0: i32) -> (i32, i32) {
    %c0_i32 = arith.constant 0 : i32
    %c0_i32_0 = arith.constant 0 : i32
    %c0_i32_1 = arith.constant 0 : i32
    return %c0_i32, %c0_i32_0 : i32, i32
  }
  func.func @transform_7(%arg0: i32) -> (i32, i32) {
    %c0_i32 = arith.constant 0 : i32
    %c0_i32_0 = arith.constant 0 : i32
    return %arg0, %c0_i32 : i32, i32
  }
}

</mosaic_0001>

<llo_original>
// kernel: lenet5_forward.1
$region0: #{lenet5_forward.1}
  #allocation0 [shape = 'u32[]', space=smem, size = 0x4, offset = 0x4, fixed_abs, tag = 'smem constant byte address 0x4 - core index']
  #allocation1 [shape = 'u32[72,128]{1,0:T(1,128)}', space=vmem, size = 0x9000, scoped, tag = 'internal scratch']
  #allocation2 [shape = 'f32[24,2,24,128]{3,2,1,0:T(8,128)}', space=vmem, size = 0x90000, scoped, tag = 'scratch operand']
  #allocation3 [shape = 'f32[24,24,128]{2,1,0:T(8,128)}', space=vmem, size = 0x48000, scoped, tag = 'scratch operand']
  #allocation4 [shape = 'f32[2,12,12,128]{3,2,1,0:T(8,128)}', space=vmem, size = 0x30000, scoped, tag = 'scratch operand']
  #allocation5 [shape = 'f32[8,2,8,128]{3,2,1,0:T(8,128)}', space=vmem, size = 0x10000, scoped, tag = 'scratch operand']
  #allocation6 [shape = 'f32[8,8,128]{2,1,0:T(8,128)}', space=vmem, size = 0x8000, scoped, tag = 'scratch operand']
  #allocation7 [shape = 'f32[2,4,4,128]{3,2,1,0:T(4,128)}', space=vmem, size = 0x4000, scoped, tag = 'scratch operand']
  %s0 = inlined_call_operand.vmem [shape: f32[1152,128], index: 0, kind: input, shape index: {}]
  %s1 = inlined_call_operand.vmem [shape: f32[128,128], index: 1, kind: input, shape index: {}]
  %s2 = inlined_call_operand.vmem [shape: f32[25,128,128], index: 2, kind: input, shape index: {}]
  %s3 = inlined_call_operand.vmem [shape: f32[16,128,128], index: 3, kind: input, shape index: {}]
  %s4 = inlined_call_operand.vmem [shape: f32[128,128], index: 4, kind: input, shape index: {}]
  %s5 = inlined_call_operand.vmem [shape: f32[128,128], index: 5, kind: input, shape index: {}]
  %s6 = inlined_call_operand.vmem [shape: f32[8,128], index: 6, kind: input, shape index: {}]
  %s7 = inlined_call_operand.hbm [shape: f32[2,128], index: 7, kind: output, shape index: {}]
  %s8 = sld [smem:[#allocation0]]
  $region38: #{lenet5_forward.1} parent=0
    _
  %s10 = ssub.s32 1, %s8
  %s11 = scalar_select 0, %s10, %s8
  $region1: #{lenet5_forward.1} parent=0
    #allocation8 [shape = 'u8[1024]{0}', space=vmem, size = 0x400, scoped, tag = 'output window, operand 0, single buffered']
    #allocation9 [shape = 's32[1]{0}', space=sflag, size = 0x4, scoped, tag = 'scoped memory for lenet5_forward.1']
    %12 = vsyncpa [#allocation9], 0
    // Predicated region
    $region2: #{lenet5_forward.1} parent=1 // pred_check
      _
    $region3: #{lenet5_forward.1} parent=1 // pred_check_branch
      %14 = sbr.rel (0) target = $region5
    $region4: #{lenet5_forward.1} parent=1 // pred_region
      _
    $region5: #{lenet5_forward.1} parent=1 // pred_fallthru
      _
    // Predicated region
    $region6: #{lenet5_forward.1} parent=1 // pred_check
      _
    $region7: #{lenet5_forward.1} parent=1 // pred_check_branch
      %16 = sbr.rel (0) target = $region9
    $region8: #{lenet5_forward.1} parent=1 // pred_region
      _
    $region9: #{lenet5_forward.1} parent=1 // pred_fallthru
      _
    // Predicated region
    $region10: #{lenet5_forward.1} parent=1 // pred_check
      _
    $region11: #{lenet5_forward.1} parent=1 // pred_check_branch
      %18 = sbr.rel (0) target = $region13
    $region12: #{lenet5_forward.1} parent=1 // pred_region
      _
    $region13: #{lenet5_forward.1} parent=1 // pred_fallthru
      _
    // Predicated region
    $region14: #{lenet5_forward.1} parent=1 // pred_check
      _
    $region15: #{lenet5_forward.1} parent=1 // pred_check_branch
      %20 = sbr.rel (0) target = $region17
    $region16: #{lenet5_forward.1} parent=1 // pred_region
      _
    $region17: #{lenet5_forward.1} parent=1 // pred_fallthru
      _
    // Predicated region
    $region18: #{lenet5_forward.1} parent=1 // pred_check
      _
    $region19: #{lenet5_forward.1} parent=1 // pred_check_branch
      %22 = sbr.rel (0) target = $region21
    $region20: #{lenet5_forward.1} parent=1 // pred_region
      _
    $region21: #{lenet5_forward.1} parent=1 // pred_fallthru
      _
    // Predicated region
    $region22: #{lenet5_forward.1} parent=1 // pred_check
      _
    $region23: #{lenet5_forward.1} parent=1 // pred_check_branch
      %24 = sbr.rel (0) target = $region25
    $region24: #{lenet5_forward.1} parent=1 // pred_region
      _
    $region25: #{lenet5_forward.1} parent=1 // pred_fallthru
      _
    // Predicated region
    $region26: #{lenet5_forward.1} parent=1 // pred_check
      _
    $region27: #{lenet5_forward.1} parent=1 // pred_check_branch
      %26 = sbr.rel (0) target = $region29
    $region28: #{lenet5_forward.1} parent=1 // pred_region
      _
    $region29: #{lenet5_forward.1} parent=1 // pred_fallthru
      _
    %v27 = vld [vmem:[%s0] sm:$0xff]
    %v28 = vld [vmem:[%s0 + $0x8] sm:$0xff]
    %v29 = vld [vmem:[%s0 + $0x10] sm:$0xff]
    %v30 = vld [vmem:[%s0 + $0x18] sm:$0xff]
    %v31 = vld [vmem:[%s0 + $0x20] sm:$0xff]
    %v32 = vld [vmem:[%s0 + $0x28] sm:$0xff]
    %v33 = vld [vmem:[%s0 + $0x30] sm:$0xff]
    %v34 = vld [vmem:[%s0 + $0x38] sm:$0xff]
    %v35 = vld [vmem:[%s0 + $0x40] sm:$0xff]
    %v36 = vld [vmem:[%s0 + $0x48] sm:$0xff]
    %v37 = vld [vmem:[%s0 + $0x50] sm:$0xff]
    %v38 = vld [vmem:[%s0 + $0x58] sm:$0xff]
    %v39 = vld [vmem:[%s0 + $0x60] sm:$0xff]
    %v40 = vld [vmem:[%s0 + $0x68] sm:$0xff]
    %v41 = vld [vmem:[%s0 + $0x70] sm:$0xff]
    %v42 = vld [vmem:[%s0 + $0x78] sm:$0xff]
    %v43 = vld [vmem:[%s0 + $0x80] sm:$0xff]
    %v44 = vld [vmem:[%s0 + $0x88] sm:$0xff]
    %v45 = vld [vmem:[%s0 + $0x90] sm:$0xff]
    %v46 = vld [vmem:[%s0 + $0x98] sm:$0xff]
    %v47 = vld [vmem:[%s0 + $0xa0] sm:$0xff]
    %v48 = vld [vmem:[%s0 + $0xa8] sm:$0xff]
    %v49 = vld [vmem:[%s0 + $0xb0] sm:$0xff]
    %v50 = vld [vmem:[%s0 + $0xb8] sm:$0xff]
    %v51 = vld [vmem:[%s0 + $0xc0] sm:$0xff]
    %v52 = vld [vmem:[%s0 + $0xc8] sm:$0xff]
    %v53 = vld [vmem:[%s0 + $0xd0] sm:$0xff]
    %v54 = vld [vmem:[%s0 + $0xd8] sm:$0xff]
    %v55 = vld [vmem:[%s0 + $0xe0] sm:$0xff]
    %v56 = vld [vmem:[%s0 + $0xe8] sm:$0xff]
    %v57 = vld [vmem:[%s0 + $0xf0] sm:$0xff]
    %v58 = vld [vmem:[%s0 + $0xf8] sm:$0xff]
    %v59 = vld [vmem:[%s0 + $0x100] sm:$0xff]
    %v60 = vld [vmem:[%s0 + $0x108] sm:$0xff]
    %v61 = vld [vmem:[%s0 + $0x110] sm:$0xff]
    %v62 = vld [vmem:[%s0 + $0x118] sm:$0xff]
    %v63 = vld [vmem:[%s0 + $0x120] sm:$0xff]
    %v64 = vld [vmem:[%s0 + $0x128] sm:$0xff]
    %v65 = vld [vmem:[%s0 + $0x130] sm:$0xff]
    %v66 = vld [vmem:[%s0 + $0x138] sm:$0xff]
    %v67 = vld [vmem:[%s0 + $0x140] sm:$0xff]
    %v68 = vld [vmem:[%s0 + $0x148] sm:$0xff]
    %v69 = vld [vmem:[%s0 + $0x150] sm:$0xff]
    %v70 = vld [vmem:[%s0 + $0x158] sm:$0xff]
    %v71 = vld [vmem:[%s0 + $0x160] sm:$0xff]
    %v72 = vld [vmem:[%s0 + $0x168] sm:$0xff]
    %v73 = vld [vmem:[%s0 + $0x170] sm:$0xff]
    %v74 = vld [vmem:[%s0 + $0x178] sm:$0xff]
    %v75 = vld [vmem:[%s0 + $0x180] sm:$0xff]
    %v76 = vld [vmem:[%s0 + $0x188] sm:$0xff]
    %v77 = vld [vmem:[%s0 + $0x190] sm:$0xff]
    %v78 = vld [vmem:[%s0 + $0x198] sm:$0xff]
    %v79 = vld [vmem:[%s0 + $0x1a0] sm:$0xff]
    %v80 = vld [vmem:[%s0 + $0x1a8] sm:$0xff]
    %v81 = vld [vmem:[%s0 + $0x1b0] sm:$0xff]
    %v82 = vld [vmem:[%s0 + $0x1b8] sm:$0xff]
    %v83 = vld [vmem:[%s0 + $0x1c0] sm:$0xff]
    %v84 = vld [vmem:[%s0 + $0x1c8] sm:$0xff]
    %v85 = vld [vmem:[%s0 + $0x1d0] sm:$0xff]
    %v86 = vld [vmem:[%s0 + $0x1d8] sm:$0xff]
    %v87 = vld [vmem:[%s0 + $0x1e0] sm:$0xff]
    %v88 = vld [vmem:[%s0 + $0x1e8] sm:$0xff]
    %v89 = vld [vmem:[%s0 + $0x1f0] sm:$0xff]
    %v90 = vld [vmem:[%s0 + $0x1f8] sm:$0xff]
    %v91 = vld [vmem:[%s0 + $0x200] sm:$0xff]
    %v92 = vld [vmem:[%s0 + $0x208] sm:$0xff]
    %v93 = vld [vmem:[%s0 + $0x210] sm:$0xff]
    %v94 = vld [vmem:[%s0 + $0x218] sm:$0xff]
    %v95 = vld [vmem:[%s0 + $0x220] sm:$0xff]
    %v96 = vld [vmem:[%s0 + $0x228] sm:$0xff]
    %v97 = vld [vmem:[%s0 + $0x230] sm:$0xff]
    %v98 = vld [vmem:[%s0 + $0x238] sm:$0xff]
    %v99 = vld [vmem:[%s0 + $0x240] sm:$0xff]
    %v100 = vld [vmem:[%s0 + $0x248] sm:$0xff]
    %v101 = vld [vmem:[%s0 + $0x250] sm:$0xff]
    %v102 = vld [vmem:[%s0 + $0x258] sm:$0xff]
    %v103 = vld [vmem:[%s0 + $0x260] sm:$0xff]
    %v104 = vld [vmem:[%s0 + $0x268] sm:$0xff]
    %v105 = vld [vmem:[%s0 + $0x270] sm:$0xff]
    %v106 = vld [vmem:[%s0 + $0x278] sm:$0xff]
    %v107 = vld [vmem:[%s0 + $0x280] sm:$0xff]
    %v108 = vld [vmem:[%s0 + $0x288] sm:$0xff]
    %v109 = vld [vmem:[%s0 + $0x290] sm:$0xff]
    %v110 = vld [vmem:[%s0 + $0x298] sm:$0xff]
    %v111 = vld [vmem:[%s0 + $0x2a0] sm:$0xff]
    %v112 = vld [vmem:[%s0 + $0x2a8] sm:$0xff]
    %v113 = vld [vmem:[%s0 + $0x2b0] sm:$0xff]
    %v114 = vld [vmem:[%s0 + $0x2b8] sm:$0xff]
    %v115 = vld [vmem:[%s0 + $0x2c0] sm:$0xff]
    %v116 = vld [vmem:[%s0 + $0x2c8] sm:$0xff]
    %v117 = vld [vmem:[%s0 + $0x2d0] sm:$0xff]
    %v118 = vld [vmem:[%s0 + $0x2d8] sm:$0xff]
    %v119 = vld [vmem:[%s0 + $0x2e0] sm:$0xff]
    %v120 = vld [vmem:[%s0 + $0x2e8] sm:$0xff]
    %v121 = vld [vmem:[%s0 + $0x2f0] sm:$0xff]
    %v122 = vld [vmem:[%s0 + $0x2f8] sm:$0xff]
    %v123 = vld [vmem:[%s0 + $0x300] sm:$0xff]
    %v124 = vld [vmem:[%s0 + $0x308] sm:$0xff]
    %v125 = vld [vmem:[%s0 + $0x310] sm:$0xff]
    %v126 = vld [vmem:[%s0 + $0x318] sm:$0xff]
    %v127 = vld [vmem:[%s0 + $0x320] sm:$0xff]
    %v128 = vld [vmem:[%s0 + $0x328] sm:$0xff]
    %v129 = vld [vmem:[%s0 + $0x330] sm:$0xff]
    %v130 = vld [vmem:[%s0 + $0x338] sm:$0xff]
    %v131 = vld [vmem:[%s0 + $0x340] sm:$0xff]
    %v132 = vld [vmem:[%s0 + $0x348] sm:$0xff]
    %v133 = vld [vmem:[%s0 + $0x350] sm:$0xff]
    %v134 = vld [vmem:[%s0 + $0x358] sm:$0xff]
    %v135 = vld [vmem:[%s0 + $0x360] sm:$0xff]
    %v136 = vld [vmem:[%s0 + $0x368] sm:$0xff]
    %v137 = vld [vmem:[%s0 + $0x370] sm:$0xff]
    %v138 = vld [vmem:[%s0 + $0x378] sm:$0xff]
    %v139 = vld [vmem:[%s0 + $0x380] sm:$0xff]
    %v140 = vld [vmem:[%s0 + $0x388] sm:$0xff]
    %v141 = vld [vmem:[%s0 + $0x390] sm:$0xff]
    %v142 = vld [vmem:[%s0 + $0x398] sm:$0xff]
    %v143 = vld [vmem:[%s0 + $0x3a0] sm:$0xff]
    %v144 = vld [vmem:[%s0 + $0x3a8] sm:$0xff]
    %v145 = vld [vmem:[%s0 + $0x3b0] sm:$0xff]
    %v146 = vld [vmem:[%s0 + $0x3b8] sm:$0xff]
    %v147 = vld [vmem:[%s0 + $0x3c0] sm:$0xff]
    %v148 = vld [vmem:[%s0 + $0x3c8] sm:$0xff]
    %v149 = vld [vmem:[%s0 + $0x3d0] sm:$0xff]
    %v150 = vld [vmem:[%s0 + $0x3d8] sm:$0xff]
    %v151 = vld [vmem:[%s0 + $0x3e0] sm:$0xff]
    %v152 = vld [vmem:[%s0 + $0x3e8] sm:$0xff]
    %v153 = vld [vmem:[%s0 + $0x3f0] sm:$0xff]
    %v154 = vld [vmem:[%s0 + $0x3f8] sm:$0xff]
    %v155 = vld [vmem:[%s0 + $0x400] sm:$0xff]
    %v156 = vld [vmem:[%s0 + $0x408] sm:$0xff]
    %v157 = vld [vmem:[%s0 + $0x410] sm:$0xff]
    %v158 = vld [vmem:[%s0 + $0x418] sm:$0xff]
    %v159 = vld [vmem:[%s0 + $0x420] sm:$0xff]
    %v160 = vld [vmem:[%s0 + $0x428] sm:$0xff]
    %v161 = vld [vmem:[%s0 + $0x430] sm:$0xff]
    %v162 = vld [vmem:[%s0 + $0x438] sm:$0xff]
    %v163 = vld [vmem:[%s0 + $0x440] sm:$0xff]
    %v164 = vld [vmem:[%s0 + $0x448] sm:$0xff]
    %v165 = vld [vmem:[%s0 + $0x450] sm:$0xff]
    %v166 = vld [vmem:[%s0 + $0x458] sm:$0xff]
    %v167 = vld [vmem:[%s0 + $0x460] sm:$0xff]
    %v168 = vld [vmem:[%s0 + $0x468] sm:$0xff]
    %v169 = vld [vmem:[%s0 + $0x470] sm:$0xff]
    %v170 = vld [vmem:[%s0 + $0x478] sm:$0xff]
    %v171 = vld [vmem:[%s1] sm:$0xff]
    %v172 = vld [vmem:[%s1 + $0x8] sm:$0xff]
    %v173 = vld [vmem:[%s1 + $0x10] sm:$0xff]
    %v174 = vld [vmem:[%s1 + $0x18] sm:$0xff]
    %v175 = vld [vmem:[%s1 + $0x20] sm:$0xff]
    %v176 = vld [vmem:[%s1 + $0x28] sm:$0xff]
    %v177 = vld [vmem:[%s1 + $0x30] sm:$0xff]
    %v178 = vld [vmem:[%s1 + $0x38] sm:$0xff]
    %v179 = vld [vmem:[%s1 + $0x40] sm:$0xff]
    %v180 = vld [vmem:[%s1 + $0x48] sm:$0xff]
    %v181 = vld [vmem:[%s1 + $0x50] sm:$0xff]
    %v182 = vld [vmem:[%s1 + $0x58] sm:$0xff]
    %v183 = vld [vmem:[%s1 + $0x60] sm:$0xff]
    %v184 = vld [vmem:[%s1 + $0x68] sm:$0xff]
    %v185 = vld [vmem:[%s1 + $0x70] sm:$0xff]
    %v186 = vld [vmem:[%s1 + $0x78] sm:$0xff]
    %v187 = vld [vmem:[%s6] sm:$0x1]
    %v188 = vperm.slane %v187, 0
    %189 = vmatpush.msra.mxu0 %v186
    %190 = vmatpush.msra.mxu0 %v185
    %191 = vmatpush.msra.mxu0 %v184
    %192 = vmatpush.msra.mxu0 %v183
    %193 = vmatpush.msra.mxu0 %v182
    %194 = vmatpush.msra.mxu0 %v181
    %195 = vmatpush.msra.mxu0 %v180
    %196 = vmatpush.msra.mxu0 %v179
    %197 = vmatpush.msra.mxu0 %v178
    %198 = vmatpush.msra.mxu0 %v177
    %199 = vmatpush.msra.mxu0 %v176
    %200 = vmatpush.msra.mxu0 %v175
    %201 = vmatpush.msra.mxu0 %v174
    %202 = vmatpush.msra.mxu0 %v173
    %203 = vmatpush.msra.mxu0 %v172
    %204 = vmatpush.msra.mxu0 %v171
    %205 = vmatmul.f32.gmra.mxu0 %v27
    %v206 = vpop.f32.mrf.mxu0
    %v207 = vadd.f32 %v188, %v206
    %208 = vmatmul.f32.gmra.mxu0 %v28
    %v209 = vpop.f32.mrf.mxu0
    %v210 = vadd.f32 %v188, %v209
    %211 = vmatmul.f32.gmra.mxu0 %v29
    %v212 = vpop.f32.mrf.mxu0
    %v213 = vadd.f32 %v188, %v212
    %214 = vmatmul.f32.gmra.mxu0 %v30
    %v215 = vpop.f32.mrf.mxu0
    %v216 = vadd.f32 %v188, %v215
    %217 = vmatmul.f32.gmra.mxu0 %v31
    %v218 = vpop.f32.mrf.mxu0
    %v219 = vadd.f32 %v188, %v218
    %220 = vmatmul.f32.gmra.mxu0 %v32
    %v221 = vpop.f32.mrf.mxu0
    %v222 = vadd.f32 %v188, %v221
    %223 = vmatmul.f32.gmra.mxu0 %v33
    %v224 = vpop.f32.mrf.mxu0
    %v225 = vadd.f32 %v188, %v224
    %226 = vmatmul.f32.gmra.mxu0 %v34
    %v227 = vpop.f32.mrf.mxu0
    %v228 = vadd.f32 %v188, %v227
    %229 = vmatmul.f32.gmra.mxu0 %v35
    %v230 = vpop.f32.mrf.mxu0
    %v231 = vadd.f32 %v188, %v230
    %232 = vmatmul.f32.gmra.mxu0 %v36
    %v233 = vpop.f32.mrf.mxu0
    %v234 = vadd.f32 %v188, %v233
    %235 = vmatmul.f32.gmra.mxu0 %v37
    %v236 = vpop.f32.mrf.mxu0
    %v237 = vadd.f32 %v188, %v236
    %238 = vmatmul.f32.gmra.mxu0 %v38
    %v239 = vpop.f32.mrf.mxu0
    %v240 = vadd.f32 %v188, %v239
    %241 = vmatmul.f32.gmra.mxu0 %v39
    %v242 = vpop.f32.mrf.mxu0
    %v243 = vadd.f32 %v188, %v242
    %244 = vmatmul.f32.gmra.mxu0 %v40
    %v245 = vpop.f32.mrf.mxu0
    %v246 = vadd.f32 %v188, %v245
    %247 = vmatmul.f32.gmra.mxu0 %v41
    %v248 = vpop.f32.mrf.mxu0
    %v249 = vadd.f32 %v188, %v248
    %250 = vmatmul.f32.gmra.mxu0 %v42
    %v251 = vpop.f32.mrf.mxu0
    %v252 = vadd.f32 %v188, %v251
    %253 = vmatmul.f32.gmra.mxu0 %v43
    %v254 = vpop.f32.mrf.mxu0
    %v255 = vadd.f32 %v188, %v254
    %256 = vmatmul.f32.gmra.mxu0 %v44
    %v257 = vpop.f32.mrf.mxu0
    %v258 = vadd.f32 %v188, %v257
    %259 = vmatmul.f32.gmra.mxu0 %v45
    %v260 = vpop.f32.mrf.mxu0
    %v261 = vadd.f32 %v188, %v260
    %262 = vmatmul.f32.gmra.mxu0 %v46
    %v263 = vpop.f32.mrf.mxu0
    %v264 = vadd.f32 %v188, %v263
    %265 = vmatmul.f32.gmra.mxu0 %v47
    %v266 = vpop.f32.mrf.mxu0
    %v267 = vadd.f32 %v188, %v266
    %268 = vmatmul.f32.gmra.mxu0 %v48
    %v269 = vpop.f32.mrf.mxu0
    %v270 = vadd.f32 %v188, %v269
    %271 = vmatmul.f32.gmra.mxu0 %v49
    %v272 = vpop.f32.mrf.mxu0
    %v273 = vadd.f32 %v188, %v272
    %274 = vmatmul.f32.gmra.mxu0 %v50
    %v275 = vpop.f32.mrf.mxu0
    %v276 = vadd.f32 %v188, %v275
    %277 = vmatmul.f32.gmra.mxu0 %v51
    %v278 = vpop.f32.mrf.mxu0
    %v279 = vadd.f32 %v188, %v278
    %280 = vmatmul.f32.gmra.mxu0 %v52
    %v281 = vpop.f32.mrf.mxu0
    %v282 = vadd.f32 %v188, %v281
    %283 = vmatmul.f32.gmra.mxu0 %v53
    %v284 = vpop.f32.mrf.mxu0
    %v285 = vadd.f32 %v188, %v284
    %286 = vmatmul.f32.gmra.mxu0 %v54
    %v287 = vpop.f32.mrf.mxu0
    %v288 = vadd.f32 %v188, %v287
    %289 = vmatmul.f32.gmra.mxu0 %v55
    %v290 = vpop.f32.mrf.mxu0
    %v291 = vadd.f32 %v188, %v290
    %292 = vmatmul.f32.gmra.mxu0 %v56
    %v293 = vpop.f32.mrf.mxu0
    %v294 = vadd.f32 %v188, %v293
    %295 = vmatmul.f32.gmra.mxu0 %v57
    %v296 = vpop.f32.mrf.mxu0
    %v297 = vadd.f32 %v188, %v296
    %298 = vmatmul.f32.gmra.mxu0 %v58
    %v299 = vpop.f32.mrf.mxu0
    %v300 = vadd.f32 %v188, %v299
    %301 = vmatmul.f32.gmra.mxu0 %v59
    %v302 = vpop.f32.mrf.mxu0
    %v303 = vadd.f32 %v188, %v302
    %304 = vmatmul.f32.gmra.mxu0 %v60
    %v305 = vpop.f32.mrf.mxu0
    %v306 = vadd.f32 %v188, %v305
    %307 = vmatmul.f32.gmra.mxu0 %v61
    %v308 = vpop.f32.mrf.mxu0
    %v309 = vadd.f32 %v188, %v308
    %310 = vmatmul.f32.gmra.mxu0 %v62
    %v311 = vpop.f32.mrf.mxu0
    %v312 = vadd.f32 %v188, %v311
    %313 = vmatmul.f32.gmra.mxu0 %v63
    %v314 = vpop.f32.mrf.mxu0
    %v315 = vadd.f32 %v188, %v314
    %316 = vmatmul.f32.gmra.mxu0 %v64
    %v317 = vpop.f32.mrf.mxu0
    %v318 = vadd.f32 %v188, %v317
    %319 = vmatmul.f32.gmra.mxu0 %v65
    %v320 = vpop.f32.mrf.mxu0
    %v321 = vadd.f32 %v188, %v320
    %322 = vmatmul.f32.gmra.mxu0 %v66
    %v323 = vpop.f32.mrf.mxu0
    %v324 = vadd.f32 %v188, %v323
    %325 = vmatmul.f32.gmra.mxu0 %v67
    %v326 = vpop.f32.mrf.mxu0
    %v327 = vadd.f32 %v188, %v326
    %328 = vmatmul.f32.gmra.mxu0 %v68
    %v329 = vpop.f32.mrf.mxu0
    %v330 = vadd.f32 %v188, %v329
    %331 = vmatmul.f32.gmra.mxu0 %v69
    %v332 = vpop.f32.mrf.mxu0
    %v333 = vadd.f32 %v188, %v332
    %334 = vmatmul.f32.gmra.mxu0 %v70
    %v335 = vpop.f32.mrf.mxu0
    %v336 = vadd.f32 %v188, %v335
    %337 = vmatmul.f32.gmra.mxu0 %v71
    %v338 = vpop.f32.mrf.mxu0
    %v339 = vadd.f32 %v188, %v338
    %340 = vmatmul.f32.gmra.mxu0 %v72
    %v341 = vpop.f32.mrf.mxu0
    %v342 = vadd.f32 %v188, %v341
    %343 = vmatmul.f32.gmra.mxu0 %v73
    %v344 = vpop.f32.mrf.mxu0
    %v345 = vadd.f32 %v188, %v344
    %346 = vmatmul.f32.gmra.mxu0 %v74
    %v347 = vpop.f32.mrf.mxu0
    %v348 = vadd.f32 %v188, %v347
    %349 = vmatmul.f32.gmra.mxu0 %v75
    %v350 = vpop.f32.mrf.mxu0
    %v351 = vadd.f32 %v188, %v350
    %352 = vmatmul.f32.gmra.mxu0 %v76
    %v353 = vpop.f32.mrf.mxu0
    %v354 = vadd.f32 %v188, %v353
    %355 = vmatmul.f32.gmra.mxu0 %v77
    %v356 = vpop.f32.mrf.mxu0
    %v357 = vadd.f32 %v188, %v356
    %358 = vmatmul.f32.gmra.mxu0 %v78
    %v359 = vpop.f32.mrf.mxu0
    %v360 = vadd.f32 %v188, %v359
    %361 = vmatmul.f32.gmra.mxu0 %v79
    %v362 = vpop.f32.mrf.mxu0
    %v363 = vadd.f32 %v188, %v362
    %364 = vmatmul.f32.gmra.mxu0 %v80
    %v365 = vpop.f32.mrf.mxu0
    %v366 = vadd.f32 %v188, %v365
    %367 = vmatmul.f32.gmra.mxu0 %v81
    %v368 = vpop.f32.mrf.mxu0
    %v369 = vadd.f32 %v188, %v368
    %370 = vmatmul.f32.gmra.mxu0 %v82
    %v371 = vpop.f32.mrf.mxu0
    %v372 = vadd.f32 %v188, %v371
    %373 = vmatmul.f32.gmra.mxu0 %v83
    %v374 = vpop.f32.mrf.mxu0
    %v375 = vadd.f32 %v188, %v374
    %376 = vmatmul.f32.gmra.mxu0 %v84
    %v377 = vpop.f32.mrf.mxu0
    %v378 = vadd.f32 %v188, %v377
    %379 = vmatmul.f32.gmra.mxu0 %v85
    %v380 = vpop.f32.mrf.mxu0
    %v381 = vadd.f32 %v188, %v380
    %382 = vmatmul.f32.gmra.mxu0 %v86
    %v383 = vpop.f32.mrf.mxu0
    %v384 = vadd.f32 %v188, %v383
    %385 = vmatmul.f32.gmra.mxu0 %v87
    %v386 = vpop.f32.mrf.mxu0
    %v387 = vadd.f32 %v188, %v386
    %388 = vmatmul.f32.gmra.mxu0 %v88
    %v389 = vpop.f32.mrf.mxu0
    %v390 = vadd.f32 %v188, %v389
    %391 = vmatmul.f32.gmra.mxu0 %v89
    %v392 = vpop.f32.mrf.mxu0
    %v393 = vadd.f32 %v188, %v392
    %394 = vmatmul.f32.gmra.mxu0 %v90
    %v395 = vpop.f32.mrf.mxu0
    %v396 = vadd.f32 %v188, %v395
    %397 = vmatmul.f32.gmra.mxu0 %v91
    %v398 = vpop.f32.mrf.mxu0
    %v399 = vadd.f32 %v188, %v398
    %400 = vmatmul.f32.gmra.mxu0 %v92
    %v401 = vpop.f32.mrf.mxu0
    %v402 = vadd.f32 %v188, %v401
    %403 = vmatmul.f32.gmra.mxu0 %v93
    %v404 = vpop.f32.mrf.mxu0
    %v405 = vadd.f32 %v188, %v404
    %406 = vmatmul.f32.gmra.mxu0 %v94
    %v407 = vpop.f32.mrf.mxu0
    %v408 = vadd.f32 %v188, %v407
    %409 = vmatmul.f32.gmra.mxu0 %v95
    %v410 = vpop.f32.mrf.mxu0
    %v411 = vadd.f32 %v188, %v410
    %412 = vmatmul.f32.gmra.mxu0 %v96
    %v413 = vpop.f32.mrf.mxu0
    %v414 = vadd.f32 %v188, %v413
    %415 = vmatmul.f32.gmra.mxu0 %v97
    %v416 = vpop.f32.mrf.mxu0
    %v417 = vadd.f32 %v188, %v416
    %418 = vmatmul.f32.gmra.mxu0 %v98
    %v419 = vpop.f32.mrf.mxu0
    %v420 = vadd.f32 %v188, %v419
    %421 = vmatmul.f32.gmra.mxu0 %v99
    %v422 = vpop.f32.mrf.mxu0
    %v423 = vadd.f32 %v188, %v422
    %424 = vmatmul.f32.gmra.mxu0 %v100
    %v425 = vpop.f32.mrf.mxu0
    %v426 = vadd.f32 %v188, %v425
    %427 = vmatmul.f32.gmra.mxu0 %v101
    %v428 = vpop.f32.mrf.mxu0
    %v429 = vadd.f32 %v188, %v428
    %430 = vmatmul.f32.gmra.mxu0 %v102
    %v431 = vpop.f32.mrf.mxu0
    %v432 = vadd.f32 %v188, %v431
    %433 = vmatmul.f32.gmra.mxu0 %v103
    %v434 = vpop.f32.mrf.mxu0
    %v435 = vadd.f32 %v188, %v434
    %436 = vmatmul.f32.gmra.mxu0 %v104
    %v437 = vpop.f32.mrf.mxu0
    %v438 = vadd.f32 %v188, %v437
    %439 = vmatmul.f32.gmra.mxu0 %v105
    %v440 = vpop.f32.mrf.mxu0
    %v441 = vadd.f32 %v188, %v440
    %442 = vmatmul.f32.gmra.mxu0 %v106
    %v443 = vpop.f32.mrf.mxu0
    %v444 = vadd.f32 %v188, %v443
    %445 = vmatmul.f32.gmra.mxu0 %v107
    %v446 = vpop.f32.mrf.mxu0
    %v447 = vadd.f32 %v188, %v446
    %448 = vmatmul.f32.gmra.mxu0 %v108
    %v449 = vpop.f32.mrf.mxu0
    %v450 = vadd.f32 %v188, %v449
    %451 = vmatmul.f32.gmra.mxu0 %v109
    %v452 = vpop.f32.mrf.mxu0
    %v453 = vadd.f32 %v188, %v452
    %454 = vmatmul.f32.gmra.mxu0 %v110
    %v455 = vpop.f32.mrf.mxu0
    %v456 = vadd.f32 %v188, %v455
    %457 = vmatmul.f32.gmra.mxu0 %v111
    %v458 = vpop.f32.mrf.mxu0
    %v459 = vadd.f32 %v188, %v458
    %460 = vmatmul.f32.gmra.mxu0 %v112
    %v461 = vpop.f32.mrf.mxu0
    %v462 = vadd.f32 %v188, %v461
    %463 = vmatmul.f32.gmra.mxu0 %v113
    %v464 = vpop.f32.mrf.mxu0
    %v465 = vadd.f32 %v188, %v464
    %466 = vmatmul.f32.gmra.mxu0 %v114
    %v467 = vpop.f32.mrf.mxu0
    %v468 = vadd.f32 %v188, %v467
    %469 = vmatmul.f32.gmra.mxu0 %v115
    %v470 = vpop.f32.mrf.mxu0
    %v471 = vadd.f32 %v188, %v470
    %472 = vmatmul.f32.gmra.mxu0 %v116
    %v473 = vpop.f32.mrf.mxu0
    %v474 = vadd.f32 %v188, %v473
    %475 = vmatmul.f32.gmra.mxu0 %v117
    %v476 = vpop.f32.mrf.mxu0
    %v477 = vadd.f32 %v188, %v476
    %478 = vmatmul.f32.gmra.mxu0 %v118
    %v479 = vpop.f32.mrf.mxu0
    %v480 = vadd.f32 %v188, %v479
    %481 = vmatmul.f32.gmra.mxu0 %v119
    %v482 = vpop.f32.mrf.mxu0
    %v483 = vadd.f32 %v188, %v482
    %484 = vmatmul.f32.gmra.mxu0 %v120
    %v485 = vpop.f32.mrf.mxu0
    %v486 = vadd.f32 %v188, %v485
    %487 = vmatmul.f32.gmra.mxu0 %v121
    %v488 = vpop.f32.mrf.mxu0
    %v489 = vadd.f32 %v188, %v488
    %490 = vmatmul.f32.gmra.mxu0 %v122
    %v491 = vpop.f32.mrf.mxu0
    %v492 = vadd.f32 %v188, %v491
    %493 = vmatmul.f32.gmra.mxu0 %v123
    %v494 = vpop.f32.mrf.mxu0
    %v495 = vadd.f32 %v188, %v494
    %496 = vmatmul.f32.gmra.mxu0 %v124
    %v497 = vpop.f32.mrf.mxu0
    %v498 = vadd.f32 %v188, %v497
    %499 = vmatmul.f32.gmra.mxu0 %v125
    %v500 = vpop.f32.mrf.mxu0
    %v501 = vadd.f32 %v188, %v500
    %502 = vmatmul.f32.gmra.mxu0 %v126
    %v503 = vpop.f32.mrf.mxu0
    %v504 = vadd.f32 %v188, %v503
    %505 = vmatmul.f32.gmra.mxu0 %v127
    %v506 = vpop.f32.mrf.mxu0
    %v507 = vadd.f32 %v188, %v506
    %508 = vmatmul.f32.gmra.mxu0 %v128
    %v509 = vpop.f32.mrf.mxu0
    %v510 = vadd.f32 %v188, %v509
    %511 = vmatmul.f32.gmra.mxu0 %v129
    %v512 = vpop.f32.mrf.mxu0
    %v513 = vadd.f32 %v188, %v512
    %514 = vmatmul.f32.gmra.mxu0 %v130
    %v515 = vpop.f32.mrf.mxu0
    %v516 = vadd.f32 %v188, %v515
    %517 = vmatmul.f32.gmra.mxu0 %v131
    %v518 = vpop.f32.mrf.mxu0
    %v519 = vadd.f32 %v188, %v518
    %520 = vmatmul.f32.gmra.mxu0 %v132
    %v521 = vpop.f32.mrf.mxu0
    %v522 = vadd.f32 %v188, %v521
    %523 = vmatmul.f32.gmra.mxu0 %v133
    %v524 = vpop.f32.mrf.mxu0
    %v525 = vadd.f32 %v188, %v524
    %526 = vmatmul.f32.gmra.mxu0 %v134
    %v527 = vpop.f32.mrf.mxu0
    %v528 = vadd.f32 %v188, %v527
    %529 = vmatmul.f32.gmra.mxu0 %v135
    %v530 = vpop.f32.mrf.mxu0
    %v531 = vadd.f32 %v188, %v530
    %532 = vmatmul.f32.gmra.mxu0 %v136
    %v533 = vpop.f32.mrf.mxu0
    %v534 = vadd.f32 %v188, %v533
    %535 = vmatmul.f32.gmra.mxu0 %v137
    %v536 = vpop.f32.mrf.mxu0
    %v537 = vadd.f32 %v188, %v536
    %538 = vmatmul.f32.gmra.mxu0 %v138
    %v539 = vpop.f32.mrf.mxu0
    %v540 = vadd.f32 %v188, %v539
    %541 = vmatmul.f32.gmra.mxu0 %v139
    %v542 = vpop.f32.mrf.mxu0
    %v543 = vadd.f32 %v188, %v542
    %544 = vmatmul.f32.gmra.mxu0 %v140
    %v545 = vpop.f32.mrf.mxu0
    %v546 = vadd.f32 %v188, %v545
    %547 = vmatmul.f32.gmra.mxu0 %v141
    %v548 = vpop.f32.mrf.mxu0
    %v549 = vadd.f32 %v188, %v548
    %550 = vmatmul.f32.gmra.mxu0 %v142
    %v551 = vpop.f32.mrf.mxu0
    %v552 = vadd.f32 %v188, %v551
    %553 = vmatmul.f32.gmra.mxu0 %v143
    %v554 = vpop.f32.mrf.mxu0
    %v555 = vadd.f32 %v188, %v554
    %556 = vmatmul.f32.gmra.mxu0 %v144
    %v557 = vpop.f32.mrf.mxu0
    %v558 = vadd.f32 %v188, %v557
    %559 = vmatmul.f32.gmra.mxu0 %v145
    %v560 = vpop.f32.mrf.mxu0
    %v561 = vadd.f32 %v188, %v560
    %562 = vmatmul.f32.gmra.mxu0 %v146
    %v563 = vpop.f32.mrf.mxu0
    %v564 = vadd.f32 %v188, %v563
    %565 = vmatmul.f32.gmra.mxu0 %v147
    %v566 = vpop.f32.mrf.mxu0
    %v567 = vadd.f32 %v188, %v566
    %568 = vmatmul.f32.gmra.mxu0 %v148
    %v569 = vpop.f32.mrf.mxu0
    %v570 = vadd.f32 %v188, %v569
    %571 = vmatmul.f32.gmra.mxu0 %v149
    %v572 = vpop.f32.mrf.mxu0
    %v573 = vadd.f32 %v188, %v572
    %574 = vmatmul.f32.gmra.mxu0 %v150
    %v575 = vpop.f32.mrf.mxu0
    %v576 = vadd.f32 %v188, %v575
    %577 = vmatmul.f32.gmra.mxu0 %v151
    %v578 = vpop.f32.mrf.mxu0
    %v579 = vadd.f32 %v188, %v578
    %580 = vmatmul.f32.gmra.mxu0 %v152
    %v581 = vpop.f32.mrf.mxu0
    %v582 = vadd.f32 %v188, %v581
    %583 = vmatmul.f32.gmra.mxu0 %v153
    %v584 = vpop.f32.mrf.mxu0
    %v585 = vadd.f32 %v188, %v584
    %586 = vmatmul.f32.gmra.mxu0 %v154
    %v587 = vpop.f32.mrf.mxu0
    %v588 = vadd.f32 %v188, %v587
    %589 = vmatmul.f32.gmra.mxu0 %v155
    %v590 = vpop.f32.mrf.mxu0
    %v591 = vadd.f32 %v188, %v590
    %592 = vmatmul.f32.gmra.mxu0 %v156
    %v593 = vpop.f32.mrf.mxu0
    %v594 = vadd.f32 %v188, %v593
    %595 = vmatmul.f32.gmra.mxu0 %v157
    %v596 = vpop.f32.mrf.mxu0
    %v597 = vadd.f32 %v188, %v596
    %598 = vmatmul.f32.gmra.mxu0 %v158
    %v599 = vpop.f32.mrf.mxu0
    %v600 = vadd.f32 %v188, %v599
    %601 = vmatmul.f32.gmra.mxu0 %v159
    %v602 = vpop.f32.mrf.mxu0
    %v603 = vadd.f32 %v188, %v602
    %604 = vmatmul.f32.gmra.mxu0 %v160
    %v605 = vpop.f32.mrf.mxu0
    %v606 = vadd.f32 %v188, %v605
    %607 = vmatmul.f32.gmra.mxu0 %v161
    %v608 = vpop.f32.mrf.mxu0
    %v609 = vadd.f32 %v188, %v608
    %610 = vmatmul.f32.gmra.mxu0 %v162
    %v611 = vpop.f32.mrf.mxu0
    %v612 = vadd.f32 %v188, %v611
    %613 = vmatmul.f32.gmra.mxu0 %v163
    %v614 = vpop.f32.mrf.mxu0
    %v615 = vadd.f32 %v188, %v614
    %616 = vmatmul.f32.gmra.mxu0 %v164
    %v617 = vpop.f32.mrf.mxu0
    %v618 = vadd.f32 %v188, %v617
    %619 = vmatmul.f32.gmra.mxu0 %v165
    %v620 = vpop.f32.mrf.mxu0
    %v621 = vadd.f32 %v188, %v620
    %622 = vmatmul.f32.gmra.mxu0 %v166
    %v623 = vpop.f32.mrf.mxu0
    %v624 = vadd.f32 %v188, %v623
    %625 = vmatmul.f32.gmra.mxu0 %v167
    %v626 = vpop.f32.mrf.mxu0
    %v627 = vadd.f32 %v188, %v626
    %628 = vmatmul.f32.gmra.mxu0 %v168
    %v629 = vpop.f32.mrf.mxu0
    %v630 = vadd.f32 %v188, %v629
    %631 = vmatmul.f32.gmra.mxu0 %v169
    %v632 = vpop.f32.mrf.mxu0
    %v633 = vadd.f32 %v188, %v632
    %634 = vmatmul.f32.gmra.mxu0 %v170
    %v635 = vpop.f32.mrf.mxu0
    %v636 = vadd.f32 %v188, %v635
    %637 = vdwg.mxu0
    %v638 = vmax.f32 %v207, 0.0
    %v639 = vmax.f32 %v210, 0.0
    %v640 = vmax.f32 %v213, 0.0
    %v641 = vmax.f32 %v216, 0.0
    %v642 = vmax.f32 %v219, 0.0
    %v643 = vmax.f32 %v222, 0.0
    %v644 = vmax.f32 %v225, 0.0
    %v645 = vmax.f32 %v228, 0.0
    %v646 = vmax.f32 %v231, 0.0
    %v647 = vmax.f32 %v234, 0.0
    %v648 = vmax.f32 %v237, 0.0
    %v649 = vmax.f32 %v240, 0.0
    %v650 = vmax.f32 %v243, 0.0
    %v651 = vmax.f32 %v246, 0.0
    %v652 = vmax.f32 %v249, 0.0
    %v653 = vmax.f32 %v252, 0.0
    %v654 = vmax.f32 %v255, 0.0
    %v655 = vmax.f32 %v258, 0.0
    %v656 = vmax.f32 %v261, 0.0
    %v657 = vmax.f32 %v264, 0.0
    %v658 = vmax.f32 %v267, 0.0
    %v659 = vmax.f32 %v270, 0.0
    %v660 = vmax.f32 %v273, 0.0
    %v661 = vmax.f32 %v276, 0.0
    %v662 = vmax.f32 %v279, 0.0
    %v663 = vmax.f32 %v282, 0.0
    %v664 = vmax.f32 %v285, 0.0
    %v665 = vmax.f32 %v288, 0.0
    %v666 = vmax.f32 %v291, 0.0
    %v667 = vmax.f32 %v294, 0.0
    %v668 = vmax.f32 %v297, 0.0
    %v669 = vmax.f32 %v300, 0.0
    %v670 = vmax.f32 %v303, 0.0
    %v671 = vmax.f32 %v306, 0.0
    %v672 = vmax.f32 %v309, 0.0
    %v673 = vmax.f32 %v312, 0.0
    %v674 = vmax.f32 %v315, 0.0
    %v675 = vmax.f32 %v318, 0.0
    %v676 = vmax.f32 %v321, 0.0
    %v677 = vmax.f32 %v324, 0.0
    %v678 = vmax.f32 %v327, 0.0
    %v679 = vmax.f32 %v330, 0.0
    %v680 = vmax.f32 %v333, 0.0
    %v681 = vmax.f32 %v336, 0.0
    %v682 = vmax.f32 %v339, 0.0
    %v683 = vmax.f32 %v342, 0.0
    %v684 = vmax.f32 %v345, 0.0
    %v685 = vmax.f32 %v348, 0.0
    %v686 = vmax.f32 %v351, 0.0
    %v687 = vmax.f32 %v354, 0.0
    %v688 = vmax.f32 %v357, 0.0
    %v689 = vmax.f32 %v360, 0.0
    %v690 = vmax.f32 %v363, 0.0
    %v691 = vmax.f32 %v366, 0.0
    %v692 = vmax.f32 %v369, 0.0
    %v693 = vmax.f32 %v372, 0.0
    %v694 = vmax.f32 %v375, 0.0
    %v695 = vmax.f32 %v378, 0.0
    %v696 = vmax.f32 %v381, 0.0
    %v697 = vmax.f32 %v384, 0.0
    %v698 = vmax.f32 %v387, 0.0
    %v699 = vmax.f32 %v390, 0.0
    %v700 = vmax.f32 %v393, 0.0
    %v701 = vmax.f32 %v396, 0.0
    %v702 = vmax.f32 %v399, 0.0
    %v703 = vmax.f32 %v402, 0.0
    %v704 = vmax.f32 %v405, 0.0
    %v705 = vmax.f32 %v408, 0.0
    %v706 = vmax.f32 %v411, 0.0
    %v707 = vmax.f32 %v414, 0.0
    %v708 = vmax.f32 %v417, 0.0
    %v709 = vmax.f32 %v420, 0.0
    %v710 = vmax.f32 %v423, 0.0
    %v711 = vmax.f32 %v426, 0.0
    %v712 = vmax.f32 %v429, 0.0
    %v713 = vmax.f32 %v432, 0.0
    %v714 = vmax.f32 %v435, 0.0
    %v715 = vmax.f32 %v438, 0.0
    %v716 = vmax.f32 %v441, 0.0
    %v717 = vmax.f32 %v444, 0.0
    %v718 = vmax.f32 %v447, 0.0
    %v719 = vmax.f32 %v450, 0.0
    %v720 = vmax.f32 %v453, 0.0
    %v721 = vmax.f32 %v456, 0.0
    %v722 = vmax.f32 %v459, 0.0
    %v723 = vmax.f32 %v462, 0.0
    %v724 = vmax.f32 %v465, 0.0
    %v725 = vmax.f32 %v468, 0.0
    %v726 = vmax.f32 %v471, 0.0
    %v727 = vmax.f32 %v474, 0.0
    %v728 = vmax.f32 %v477, 0.0
    %v729 = vmax.f32 %v480, 0.0
    %v730 = vmax.f32 %v483, 0.0
    %v731 = vmax.f32 %v486, 0.0
    %v732 = vmax.f32 %v489, 0.0
    %v733 = vmax.f32 %v492, 0.0
    %v734 = vmax.f32 %v495, 0.0
    %v735 = vmax.f32 %v498, 0.0
    %v736 = vmax.f32 %v501, 0.0
    %v737 = vmax.f32 %v504, 0.0
    %v738 = vmax.f32 %v507, 0.0
    %v739 = vmax.f32 %v510, 0.0
    %v740 = vmax.f32 %v513, 0.0
    %v741 = vmax.f32 %v516, 0.0
    %v742 = vmax.f32 %v519, 0.0
    %v743 = vmax.f32 %v522, 0.0
    %v744 = vmax.f32 %v525, 0.0
    %v745 = vmax.f32 %v528, 0.0
    %v746 = vmax.f32 %v531, 0.0
    %v747 = vmax.f32 %v534, 0.0
    %v748 = vmax.f32 %v537, 0.0
    %v749 = vmax.f32 %v540, 0.0
    %v750 = vmax.f32 %v543, 0.0
    %v751 = vmax.f32 %v546, 0.0
    %v752 = vmax.f32 %v549, 0.0
    %v753 = vmax.f32 %v552, 0.0
    %v754 = vmax.f32 %v555, 0.0
    %v755 = vmax.f32 %v558, 0.0
    %v756 = vmax.f32 %v561, 0.0
    %v757 = vmax.f32 %v564, 0.0
    %v758 = vmax.f32 %v567, 0.0
    %v759 = vmax.f32 %v570, 0.0
    %v760 = vmax.f32 %v573, 0.0
    %v761 = vmax.f32 %v576, 0.0
    %v762 = vmax.f32 %v579, 0.0
    %v763 = vmax.f32 %v582, 0.0
    %v764 = vmax.f32 %v585, 0.0
    %v765 = vmax.f32 %v588, 0.0
    %v766 = vmax.f32 %v591, 0.0
    %v767 = vmax.f32 %v594, 0.0
    %v768 = vmax.f32 %v597, 0.0
    %v769 = vmax.f32 %v600, 0.0
    %v770 = vmax.f32 %v603, 0.0
    %v771 = vmax.f32 %v606, 0.0
    %v772 = vmax.f32 %v609, 0.0
    %v773 = vmax.f32 %v612, 0.0
    %v774 = vmax.f32 %v615, 0.0
    %v775 = vmax.f32 %v618, 0.0
    %v776 = vmax.f32 %v621, 0.0
    %v777 = vmax.f32 %v624, 0.0
    %v778 = vmax.f32 %v627, 0.0
    %v779 = vmax.f32 %v630, 0.0
    %v780 = vmax.f32 %v633, 0.0
    %v781 = vmax.f32 %v636, 0.0
    %782 = vst [vmem:[#allocation2] sm:$0xff] %v638
    %783 = vst [vmem:[#allocation2 + $0x8] sm:$0xff] %v639
    %784 = vst [vmem:[#allocation2 + $0x10] sm:$0xff] %v640
    %785 = vst [vmem:[#allocation2 + $0x18] sm:$0xff] %v641
    %786 = vst [vmem:[#allocation2 + $0x20] sm:$0xff] %v642
    %787 = vst [vmem:[#allocation2 + $0x28] sm:$0xff] %v643
    %788 = vst [vmem:[#allocation2 + $0x30] sm:$0xff] %v644
    %789 = vst [vmem:[#allocation2 + $0x38] sm:$0xff] %v645
    %790 = vst [vmem:[#allocation2 + $0x40] sm:$0xff] %v646
    %791 = vst [vmem:[#allocation2 + $0x48] sm:$0xff] %v647
    %792 = vst [vmem:[#allocation2 + $0x50] sm:$0xff] %v648
    %793 = vst [vmem:[#allocation2 + $0x58] sm:$0xff] %v649
    %794 = vst [vmem:[#allocation2 + $0x60] sm:$0xff] %v650
    %795 = vst [vmem:[#allocation2 + $0x68] sm:$0xff] %v651
    %796 = vst [vmem:[#allocation2 + $0x70] sm:$0xff] %v652
    %797 = vst [vmem:[#allocation2 + $0x78] sm:$0xff] %v653
    %798 = vst [vmem:[#allocation2 + $0x80] sm:$0xff] %v654
    %799 = vst [vmem:[#allocation2 + $0x88] sm:$0xff] %v655
    %800 = vst [vmem:[#allocation2 + $0x90] sm:$0xff] %v656
    %801 = vst [vmem:[#allocation2 + $0x98] sm:$0xff] %v657
    %802 = vst [vmem:[#allocation2 + $0xa0] sm:$0xff] %v658
    %803 = vst [vmem:[#allocation2 + $0xa8] sm:$0xff] %v659
    %804 = vst [vmem:[#allocation2 + $0xb0] sm:$0xff] %v660
    %805 = vst [vmem:[#allocation2 + $0xb8] sm:$0xff] %v661
    %806 = vst [vmem:[#allocation2 + $0xc0] sm:$0xff] %v662
    %807 = vst [vmem:[#allocation2 + $0xc8] sm:$0xff] %v663
    %808 = vst [vmem:[#allocation2 + $0xd0] sm:$0xff] %v664
    %809 = vst [vmem:[#allocation2 + $0xd8] sm:$0xff] %v665
    %810 = vst [vmem:[#allocation2 + $0xe0] sm:$0xff] %v666
    %811 = vst [vmem:[#allocation2 + $0xe8] sm:$0xff] %v667
    %812 = vst [vmem:[#allocation2 + $0xf0] sm:$0xff] %v668
    %813 = vst [vmem:[#allocation2 + $0xf8] sm:$0xff] %v669
    %814 = vst [vmem:[#allocation2 + $0x100] sm:$0xff] %v670
    %815 = vst [vmem:[#allocation2 + $0x108] sm:$0xff] %v671
    %816 = vst [vmem:[#allocation2 + $0x110] sm:$0xff] %v672
    %817 = vst [vmem:[#allocation2 + $0x118] sm:$0xff] %v673
    %818 = vst [vmem:[#allocation2 + $0x120] sm:$0xff] %v674
    %819 = vst [vmem:[#allocation2 + $0x128] sm:$0xff] %v675
    %820 = vst [vmem:[#allocation2 + $0x130] sm:$0xff] %v676
    %821 = vst [vmem:[#allocation2 + $0x138] sm:$0xff] %v677
    %822 = vst [vmem:[#allocation2 + $0x140] sm:$0xff] %v678
    %823 = vst [vmem:[#allocation2 + $0x148] sm:$0xff] %v679
    %824 = vst [vmem:[#allocation2 + $0x150] sm:$0xff] %v680
    %825 = vst [vmem:[#allocation2 + $0x158] sm:$0xff] %v681
    %826 = vst [vmem:[#allocation2 + $0x160] sm:$0xff] %v682
    %827 = vst [vmem:[#allocation2 + $0x168] sm:$0xff] %v683
    %828 = vst [vmem:[#allocation2 + $0x170] sm:$0xff] %v684
    %829 = vst [vmem:[#allocation2 + $0x178] sm:$0xff] %v685
    %830 = vst [vmem:[#allocation2 + $0x180] sm:$0xff] %v686
    %831 = vst [vmem:[#allocation2 + $0x188] sm:$0xff] %v687
    %832 = vst [vmem:[#allocation2 + $0x190] sm:$0xff] %v688
    %833 = vst [vmem:[#allocation2 + $0x198] sm:$0xff] %v689
    %834 = vst [vmem:[#allocation2 + $0x1a0] sm:$0xff] %v690
    %835 = vst [vmem:[#allocation2 + $0x1a8] sm:$0xff] %v691
    %836 = vst [vmem:[#allocation2 + $0x1b0] sm:$0xff] %v692
    %837 = vst [vmem:[#allocation2 + $0x1b8] sm:$0xff] %v693
    %838 = vst [vmem:[#allocation2 + $0x1c0] sm:$0xff] %v694
    %839 = vst [vmem:[#allocation2 + $0x1c8] sm:$0xff] %v695
    %840 = vst [vmem:[#allocation2 + $0x1d0] sm:$0xff] %v696
    %841 = vst [vmem:[#allocation2 + $0x1d8] sm:$0xff] %v697
    %842 = vst [vmem:[#allocation2 + $0x1e0] sm:$0xff] %v698
    %843 = vst [vmem:[#allocation2 + $0x1e8] sm:$0xff] %v699
    %844 = vst [vmem:[#allocation2 + $0x1f0] sm:$0xff] %v700
    %845 = vst [vmem:[#allocation2 + $0x1f8] sm:$0xff] %v701
    %846 = vst [vmem:[#allocation2 + $0x200] sm:$0xff] %v702
    %847 = vst [vmem:[#allocation2 + $0x208] sm:$0xff] %v703
    %848 = vst [vmem:[#allocation2 + $0x210] sm:$0xff] %v704
    %849 = vst [vmem:[#allocation2 + $0x218] sm:$0xff] %v705
    %850 = vst [vmem:[#allocation2 + $0x220] sm:$0xff] %v706
    %851 = vst [vmem:[#allocation2 + $0x228] sm:$0xff] %v707
    %852 = vst [vmem:[#allocation2 + $0x230] sm:$0xff] %v708
    %853 = vst [vmem:[#allocation2 + $0x238] sm:$0xff] %v709
    %854 = vst [vmem:[#allocation2 + $0x240] sm:$0xff] %v710
    %855 = vst [vmem:[#allocation2 + $0x248] sm:$0xff] %v711
    %856 = vst [vmem:[#allocation2 + $0x250] sm:$0xff] %v712
    %857 = vst [vmem:[#allocation2 + $0x258] sm:$0xff] %v713
    %858 = vst [vmem:[#allocation2 + $0x260] sm:$0xff] %v714
    %859 = vst [vmem:[#allocation2 + $0x268] sm:$0xff] %v715
    %860 = vst [vmem:[#allocation2 + $0x270] sm:$0xff] %v716
    %861 = vst [vmem:[#allocation2 + $0x278] sm:$0xff] %v717
    %862 = vst [vmem:[#allocation2 + $0x280] sm:$0xff] %v718
    %863 = vst [vmem:[#allocation2 + $0x288] sm:$0xff] %v719
    %864 = vst [vmem:[#allocation2 + $0x290] sm:$0xff] %v720
    %865 = vst [vmem:[#allocation2 + $0x298] sm:$0xff] %v721
    %866 = vst [vmem:[#allocation2 + $0x2a0] sm:$0xff] %v722
    %867 = vst [vmem:[#allocation2 + $0x2a8] sm:$0xff] %v723
    %868 = vst [vmem:[#allocation2 + $0x2b0] sm:$0xff] %v724
    %869 = vst [vmem:[#allocation2 + $0x2b8] sm:$0xff] %v725
    %870 = vst [vmem:[#allocation2 + $0x2c0] sm:$0xff] %v726
    %871 = vst [vmem:[#allocation2 + $0x2c8] sm:$0xff] %v727
    %872 = vst [vmem:[#allocation2 + $0x2d0] sm:$0xff] %v728
    %873 = vst [vmem:[#allocation2 + $0x2d8] sm:$0xff] %v729
    %874 = vst [vmem:[#allocation2 + $0x2e0] sm:$0xff] %v730
    %875 = vst [vmem:[#allocation2 + $0x2e8] sm:$0xff] %v731
    %876 = vst [vmem:[#allocation2 + $0x2f0] sm:$0xff] %v732
    %877 = vst [vmem:[#allocation2 + $0x2f8] sm:$0xff] %v733
    %878 = vst [vmem:[#allocation2 + $0x300] sm:$0xff] %v734
    %879 = vst [vmem:[#allocation2 + $0x308] sm:$0xff] %v735
    %880 = vst [vmem:[#allocation2 + $0x310] sm:$0xff] %v736
    %881 = vst [vmem:[#allocation2 + $0x318] sm:$0xff] %v737
    %882 = vst [vmem:[#allocation2 + $0x320] sm:$0xff] %v738
    %883 = vst [vmem:[#allocation2 + $0x328] sm:$0xff] %v739
    %884 = vst [vmem:[#allocation2 + $0x330] sm:$0xff] %v740
    %885 = vst [vmem:[#allocation2 + $0x338] sm:$0xff] %v741
    %886 = vst [vmem:[#allocation2 + $0x340] sm:$0xff] %v742
    %887 = vst [vmem:[#allocation2 + $0x348] sm:$0xff] %v743
    %888 = vst [vmem:[#allocation2 + $0x350] sm:$0xff] %v744
    %889 = vst [vmem:[#allocation2 + $0x358] sm:$0xff] %v745
    %890 = vst [vmem:[#allocation2 + $0x360] sm:$0xff] %v746
    %891 = vst [vmem:[#allocation2 + $0x368] sm:$0xff] %v747
    %892 = vst [vmem:[#allocation2 + $0x370] sm:$0xff] %v748
    %893 = vst [vmem:[#allocation2 + $0x378] sm:$0xff] %v749
    %894 = vst [vmem:[#allocation2 + $0x380] sm:$0xff] %v750
    %895 = vst [vmem:[#allocation2 + $0x388] sm:$0xff] %v751
    %896 = vst [vmem:[#allocation2 + $0x390] sm:$0xff] %v752
    %897 = vst [vmem:[#allocation2 + $0x398] sm:$0xff] %v753
    %898 = vst [vmem:[#allocation2 + $0x3a0] sm:$0xff] %v754
    %899 = vst [vmem:[#allocation2 + $0x3a8] sm:$0xff] %v755
    %900 = vst [vmem:[#allocation2 + $0x3b0] sm:$0xff] %v756
    %901 = vst [vmem:[#allocation2 + $0x3b8] sm:$0xff] %v757
    %902 = vst [vmem:[#allocation2 + $0x3c0] sm:$0xff] %v758
    %903 = vst [vmem:[#allocation2 + $0x3c8] sm:$0xff] %v759
    %904 = vst [vmem:[#allocation2 + $0x3d0] sm:$0xff] %v760
    %905 = vst [vmem:[#allocation2 + $0x3d8] sm:$0xff] %v761
    %906 = vst [vmem:[#allocation2 + $0x3e0] sm:$0xff] %v762
    %907 = vst [vmem:[#allocation2 + $0x3e8] sm:$0xff] %v763
    %908 = vst [vmem:[#allocation2 + $0x3f0] sm:$0xff] %v764
    %909 = vst [vmem:[#allocation2 + $0x3f8] sm:$0xff] %v765
    %910 = vst [vmem:[#allocation2 + $0x400] sm:$0xff] %v766
    %911 = vst [vmem:[#allocation2 + $0x408] sm:$0xff] %v767
    %912 = vst [vmem:[#allocation2 + $0x410] sm:$0xff] %v768
    %913 = vst [vmem:[#allocation2 + $0x418] sm:$0xff] %v769
    %914 = vst [vmem:[#allocation2 + $0x420] sm:$0xff] %v770
    %915 = vst [vmem:[#allocation2 + $0x428] sm:$0xff] %v771
    %916 = vst [vmem:[#allocation2 + $0x430] sm:$0xff] %v772
    %917 = vst [vmem:[#allocation2 + $0x438] sm:$0xff] %v773
    %918 = vst [vmem:[#allocation2 + $0x440] sm:$0xff] %v774
    %919 = vst [vmem:[#allocation2 + $0x448] sm:$0xff] %v775
    %920 = vst [vmem:[#allocation2 + $0x450] sm:$0xff] %v776
    %921 = vst [vmem:[#allocation2 + $0x458] sm:$0xff] %v777
    %922 = vst [vmem:[#allocation2 + $0x460] sm:$0xff] %v778
    %923 = vst [vmem:[#allocation2 + $0x468] sm:$0xff] %v779
    %924 = vst [vmem:[#allocation2 + $0x470] sm:$0xff] %v780
    %925 = vst [vmem:[#allocation2 + $0x478] sm:$0xff] %v781
    %v926 = vld [vmem:[#allocation2] sm:$0xff]
    %v927 = vld [vmem:[#allocation2 + $0x8] sm:$0xff]
    %v928 = vld [vmem:[#allocation2 + $0x10] sm:$0xff]
    %v929 = vld [vmem:[#allocation2 + $0x30] sm:$0xff]
    %v930 = vld [vmem:[#allocation2 + $0x38] sm:$0xff]
    %v931 = vld [vmem:[#allocation2 + $0x40] sm:$0xff]
    %v932 = vld [vmem:[#allocation2 + $0x60] sm:$0xff]
    %v933 = vld [vmem:[#allocation2 + $0x68] sm:$0xff]
    %v934 = vld [vmem:[#allocation2 + $0x70] sm:$0xff]
    %v935 = vld [vmem:[#allocation2 + $0x90] sm:$0xff]
    %v936 = vld [vmem:[#allocation2 + $0x98] sm:$0xff]
    %v937 = vld [vmem:[#allocation2 + $0xa0] sm:$0xff]
    %v938 = vld [vmem:[#allocation2 + $0xc0] sm:$0xff]
    %v939 = vld [vmem:[#allocation2 + $0xc8] sm:$0xff]
    %v940 = vld [vmem:[#allocation2 + $0xd0] sm:$0xff]
    %v941 = vld [vmem:[#allocation2 + $0xf0] sm:$0xff]
    %v942 = vld [vmem:[#allocation2 + $0xf8] sm:$0xff]
    %v943 = vld [vmem:[#allocation2 + $0x100] sm:$0xff]
    %v944 = vld [vmem:[#allocation2 + $0x120] sm:$0xff]
    %v945 = vld [vmem:[#allocation2 + $0x128] sm:$0xff]
    %v946 = vld [vmem:[#allocation2 + $0x130] sm:$0xff]
    %v947 = vld [vmem:[#allocation2 + $0x150] sm:$0xff]
    %v948 = vld [vmem:[#allocation2 + $0x158] sm:$0xff]
    %v949 = vld [vmem:[#allocation2 + $0x160] sm:$0xff]
    %v950 = vld [vmem:[#allocation2 + $0x180] sm:$0xff]
    %v951 = vld [vmem:[#allocation2 + $0x188] sm:$0xff]
    %v952 = vld [vmem:[#allocation2 + $0x190] sm:$0xff]
    %v953 = vld [vmem:[#allocation2 + $0x1b0] sm:$0xff]
    %v954 = vld [vmem:[#allocation2 + $0x1b8] sm:$0xff]
    %v955 = vld [vmem:[#allocation2 + $0x1c0] sm:$0xff]
    %v956 = vld [vmem:[#allocation2 + $0x1e0] sm:$0xff]
    %v957 = vld [vmem:[#allocation2 + $0x1e8] sm:$0xff]
    %v958 = vld [vmem:[#allocation2 + $0x1f0] sm:$0xff]
    %v959 = vld [vmem:[#allocation2 + $0x210] sm:$0xff]
    %v960 = vld [vmem:[#allocation2 + $0x218] sm:$0xff]
    %v961 = vld [vmem:[#allocation2 + $0x220] sm:$0xff]
    %v962 = vld [vmem:[#allocation2 + $0x240] sm:$0xff]
    %v963 = vld [vmem:[#allocation2 + $0x248] sm:$0xff]
    %v964 = vld [vmem:[#allocation2 + $0x250] sm:$0xff]
    %v965 = vld [vmem:[#allocation2 + $0x270] sm:$0xff]
    %v966 = vld [vmem:[#allocation2 + $0x278] sm:$0xff]
    %v967 = vld [vmem:[#allocation2 + $0x280] sm:$0xff]
    %v968 = vld [vmem:[#allocation2 + $0x2a0] sm:$0xff]
    %v969 = vld [vmem:[#allocation2 + $0x2a8] sm:$0xff]
    %v970 = vld [vmem:[#allocation2 + $0x2b0] sm:$0xff]
    %v971 = vld [vmem:[#allocation2 + $0x2d0] sm:$0xff]
    %v972 = vld [vmem:[#allocation2 + $0x2d8] sm:$0xff]
    %v973 = vld [vmem:[#allocation2 + $0x2e0] sm:$0xff]
    %v974 = vld [vmem:[#allocation2 + $0x300] sm:$0xff]
    %v975 = vld [vmem:[#allocation2 + $0x308] sm:$0xff]
    %v976 = vld [vmem:[#allocation2 + $0x310] sm:$0xff]
    %v977 = vld [vmem:[#allocation2 + $0x330] sm:$0xff]
    %v978 = vld [vmem:[#allocation2 + $0x338] sm:$0xff]
    %v979 = vld [vmem:[#allocation2 + $0x340] sm:$0xff]
    %v980 = vld [vmem:[#allocation2 + $0x360] sm:$0xff]
    %v981 = vld [vmem:[#allocation2 + $0x368] sm:$0xff]
    %v982 = vld [vmem:[#allocation2 + $0x370] sm:$0xff]
    %v983 = vld [vmem:[#allocation2 + $0x390] sm:$0xff]
    %v984 = vld [vmem:[#allocation2 + $0x398] sm:$0xff]
    %v985 = vld [vmem:[#allocation2 + $0x3a0] sm:$0xff]
    %v986 = vld [vmem:[#allocation2 + $0x3c0] sm:$0xff]
    %v987 = vld [vmem:[#allocation2 + $0x3c8] sm:$0xff]
    %v988 = vld [vmem:[#allocation2 + $0x3d0] sm:$0xff]
    %v989 = vld [vmem:[#allocation2 + $0x3f0] sm:$0xff]
    %v990 = vld [vmem:[#allocation2 + $0x3f8] sm:$0xff]
    %v991 = vld [vmem:[#allocation2 + $0x400] sm:$0xff]
    %v992 = vld [vmem:[#allocation2 + $0x420] sm:$0xff]
    %v993 = vld [vmem:[#allocation2 + $0x428] sm:$0xff]
    %v994 = vld [vmem:[#allocation2 + $0x430] sm:$0xff]
    %v995 = vld [vmem:[#allocation2 + $0x450] sm:$0xff]
    %v996 = vld [vmem:[#allocation2 + $0x458] sm:$0xff]
    %v997 = vld [vmem:[#allocation2 + $0x460] sm:$0xff]
    %s998 = scalar_lea.vmem [#allocation2], 24
    %v999 = vld [vmem:[%s998] sm:$0xff]
    %v1000 = vld [vmem:[%s998 + $0x8] sm:$0xff]
    %v1001 = vld [vmem:[%s998 + $0x10] sm:$0xff]
    %v1002 = vld [vmem:[%s998 + $0x30] sm:$0xff]
    %v1003 = vld [vmem:[%s998 + $0x38] sm:$0xff]
    %v1004 = vld [vmem:[%s998 + $0x40] sm:$0xff]
    %v1005 = vld [vmem:[%s998 + $0x60] sm:$0xff]
    %v1006 = vld [vmem:[%s998 + $0x68] sm:$0xff]
    %v1007 = vld [vmem:[%s998 + $0x70] sm:$0xff]
    %v1008 = vld [vmem:[%s998 + $0x90] sm:$0xff]
    %v1009 = vld [vmem:[%s998 + $0x98] sm:$0xff]
    %v1010 = vld [vmem:[%s998 + $0xa0] sm:$0xff]
    %v1011 = vld [vmem:[%s998 + $0xc0] sm:$0xff]
    %v1012 = vld [vmem:[%s998 + $0xc8] sm:$0xff]
    %v1013 = vld [vmem:[%s998 + $0xd0] sm:$0xff]
    %v1014 = vld [vmem:[%s998 + $0xf0] sm:$0xff]
    %v1015 = vld [vmem:[%s998 + $0xf8] sm:$0xff]
    %v1016 = vld [vmem:[%s998 + $0x100] sm:$0xff]
    %v1017 = vld [vmem:[%s998 + $0x120] sm:$0xff]
    %v1018 = vld [vmem:[%s998 + $0x128] sm:$0xff]
    %v1019 = vld [vmem:[%s998 + $0x130] sm:$0xff]
    %v1020 = vld [vmem:[%s998 + $0x150] sm:$0xff]
    %v1021 = vld [vmem:[%s998 + $0x158] sm:$0xff]
    %v1022 = vld [vmem:[%s998 + $0x160] sm:$0xff]
    %v1023 = vld [vmem:[%s998 + $0x180] sm:$0xff]
    %v1024 = vld [vmem:[%s998 + $0x188] sm:$0xff]
    %v1025 = vld [vmem:[%s998 + $0x190] sm:$0xff]
    %v1026 = vld [vmem:[%s998 + $0x1b0] sm:$0xff]
    %v1027 = vld [vmem:[%s998 + $0x1b8] sm:$0xff]
    %v1028 = vld [vmem:[%s998 + $0x1c0] sm:$0xff]
    %v1029 = vld [vmem:[%s998 + $0x1e0] sm:$0xff]
    %v1030 = vld [vmem:[%s998 + $0x1e8] sm:$0xff]
    %v1031 = vld [vmem:[%s998 + $0x1f0] sm:$0xff]
    %v1032 = vld [vmem:[%s998 + $0x210] sm:$0xff]
    %v1033 = vld [vmem:[%s998 + $0x218] sm:$0xff]
    %v1034 = vld [vmem:[%s998 + $0x220] sm:$0xff]
    %v1035 = vld [vmem:[%s998 + $0x240] sm:$0xff]
    %v1036 = vld [vmem:[%s998 + $0x248] sm:$0xff]
    %v1037 = vld [vmem:[%s998 + $0x250] sm:$0xff]
    %v1038 = vld [vmem:[%s998 + $0x270] sm:$0xff]
    %v1039 = vld [vmem:[%s998 + $0x278] sm:$0xff]
    %v1040 = vld [vmem:[%s998 + $0x280] sm:$0xff]
    %v1041 = vld [vmem:[%s998 + $0x2a0] sm:$0xff]
    %v1042 = vld [vmem:[%s998 + $0x2a8] sm:$0xff]
    %v1043 = vld [vmem:[%s998 + $0x2b0] sm:$0xff]
    %v1044 = vld [vmem:[%s998 + $0x2d0] sm:$0xff]
    %v1045 = vld [vmem:[%s998 + $0x2d8] sm:$0xff]
    %v1046 = vld [vmem:[%s998 + $0x2e0] sm:$0xff]
    %v1047 = vld [vmem:[%s998 + $0x300] sm:$0xff]
    %v1048 = vld [vmem:[%s998 + $0x308] sm:$0xff]
    %v1049 = vld [vmem:[%s998 + $0x310] sm:$0xff]
    %v1050 = vld [vmem:[%s998 + $0x330] sm:$0xff]
    %v1051 = vld [vmem:[%s998 + $0x338] sm:$0xff]
    %v1052 = vld [vmem:[%s998 + $0x340] sm:$0xff]
    %v1053 = vld [vmem:[%s998 + $0x360] sm:$0xff]
    %v1054 = vld [vmem:[%s998 + $0x368] sm:$0xff]
    %v1055 = vld [vmem:[%s998 + $0x370] sm:$0xff]
    %v1056 = vld [vmem:[%s998 + $0x390] sm:$0xff]
    %v1057 = vld [vmem:[%s998 + $0x398] sm:$0xff]
    %v1058 = vld [vmem:[%s998 + $0x3a0] sm:$0xff]
    %v1059 = vld [vmem:[%s998 + $0x3c0] sm:$0xff]
    %v1060 = vld [vmem:[%s998 + $0x3c8] sm:$0xff]
    %v1061 = vld [vmem:[%s998 + $0x3d0] sm:$0xff]
    %v1062 = vld [vmem:[%s998 + $0x3f0] sm:$0xff]
    %v1063 = vld [vmem:[%s998 + $0x3f8] sm:$0xff]
    %v1064 = vld [vmem:[%s998 + $0x400] sm:$0xff]
    %v1065 = vld [vmem:[%s998 + $0x420] sm:$0xff]
    %v1066 = vld [vmem:[%s998 + $0x428] sm:$0xff]
    %v1067 = vld [vmem:[%s998 + $0x430] sm:$0xff]
    %v1068 = vld [vmem:[%s998 + $0x450] sm:$0xff]
    %v1069 = vld [vmem:[%s998 + $0x458] sm:$0xff]
    %v1070 = vld [vmem:[%s998 + $0x460] sm:$0xff]
    %v1071 = vmax.f32 %v926, %v999
    %v1072 = vmax.f32 %v927, %v1000
    %v1073 = vmax.f32 %v928, %v1001
    %v1074 = vmax.f32 %v929, %v1002
    %v1075 = vmax.f32 %v930, %v1003
    %v1076 = vmax.f32 %v931, %v1004
    %v1077 = vmax.f32 %v932, %v1005
    %v1078 = vmax.f32 %v933, %v1006
    %v1079 = vmax.f32 %v934, %v1007
    %v1080 = vmax.f32 %v935, %v1008
    %v1081 = vmax.f32 %v936, %v1009
    %v1082 = vmax.f32 %v937, %v1010
    %v1083 = vmax.f32 %v938, %v1011
    %v1084 = vmax.f32 %v939, %v1012
    %v1085 = vmax.f32 %v940, %v1013
    %v1086 = vmax.f32 %v941, %v1014
    %v1087 = vmax.f32 %v942, %v1015
    %v1088 = vmax.f32 %v943, %v1016
    %v1089 = vmax.f32 %v944, %v1017
    %v1090 = vmax.f32 %v945, %v1018
    %v1091 = vmax.f32 %v946, %v1019
    %v1092 = vmax.f32 %v947, %v1020
    %v1093 = vmax.f32 %v948, %v1021
    %v1094 = vmax.f32 %v949, %v1022
    %v1095 = vmax.f32 %v950, %v1023
    %v1096 = vmax.f32 %v951, %v1024
    %v1097 = vmax.f32 %v952, %v1025
    %v1098 = vmax.f32 %v953, %v1026
    %v1099 = vmax.f32 %v954, %v1027
    %v1100 = vmax.f32 %v955, %v1028
    %v1101 = vmax.f32 %v956, %v1029
    %v1102 = vmax.f32 %v957, %v1030
    %v1103 = vmax.f32 %v958, %v1031
    %v1104 = vmax.f32 %v959, %v1032
    %v1105 = vmax.f32 %v960, %v1033
    %v1106 = vmax.f32 %v961, %v1034
    %v1107 = vmax.f32 %v962, %v1035
    %v1108 = vmax.f32 %v963, %v1036
    %v1109 = vmax.f32 %v964, %v1037
    %v1110 = vmax.f32 %v965, %v1038
    %v1111 = vmax.f32 %v966, %v1039
    %v1112 = vmax.f32 %v967, %v1040
    %v1113 = vmax.f32 %v968, %v1041
    %v1114 = vmax.f32 %v969, %v1042
    %v1115 = vmax.f32 %v970, %v1043
    %v1116 = vmax.f32 %v971, %v1044
    %v1117 = vmax.f32 %v972, %v1045
    %v1118 = vmax.f32 %v973, %v1046
    %v1119 = vmax.f32 %v974, %v1047
    %v1120 = vmax.f32 %v975, %v1048
    %v1121 = vmax.f32 %v976, %v1049
    %v1122 = vmax.f32 %v977, %v1050
    %v1123 = vmax.f32 %v978, %v1051
    %v1124 = vmax.f32 %v979, %v1052
    %v1125 = vmax.f32 %v980, %v1053
    %v1126 = vmax.f32 %v981, %v1054
    %v1127 = vmax.f32 %v982, %v1055
    %v1128 = vmax.f32 %v983, %v1056
    %v1129 = vmax.f32 %v984, %v1057
    %v1130 = vmax.f32 %v985, %v1058
    %v1131 = vmax.f32 %v986, %v1059
    %v1132 = vmax.f32 %v987, %v1060
    %v1133 = vmax.f32 %v988, %v1061
    %v1134 = vmax.f32 %v989, %v1062
    %v1135 = vmax.f32 %v990, %v1063
    %v1136 = vmax.f32 %v991, %v1064
    %v1137 = vmax.f32 %v992, %v1065
    %v1138 = vmax.f32 %v993, %v1066
    %v1139 = vmax.f32 %v994, %v1067
    %v1140 = vmax.f32 %v995, %v1068
    %v1141 = vmax.f32 %v996, %v1069
    %v1142 = vmax.f32 %v997, %v1070
    %1143 = vst [vmem:[#allocation3] sm:$0xff] %v1071
    %1144 = vst [vmem:[#allocation3 + $0x8] sm:$0xff] %v1072
    %1145 = vst [vmem:[#allocation3 + $0x10] sm:$0xff] %v1073
    %1146 = vst [vmem:[#allocation3 + $0x18] sm:$0xff] %v1074
    %1147 = vst [vmem:[#allocation3 + $0x20] sm:$0xff] %v1075
    %1148 = vst [vmem:[#allocation3 + $0x28] sm:$0xff] %v1076
    %1149 = vst [vmem:[#allocation3 + $0x30] sm:$0xff] %v1077
    %1150 = vst [vmem:[#allocation3 + $0x38] sm:$0xff] %v1078
    %1151 = vst [vmem:[#allocation3 + $0x40] sm:$0xff] %v1079
    %1152 = vst [vmem:[#allocation3 + $0x48] sm:$0xff] %v1080
    %1153 = vst [vmem:[#allocation3 + $0x50] sm:$0xff] %v1081
    %1154 = vst [vmem:[#allocation3 + $0x58] sm:$0xff] %v1082
    %1155 = vst [vmem:[#allocation3 + $0x60] sm:$0xff] %v1083
    %1156 = vst [vmem:[#allocation3 + $0x68] sm:$0xff] %v1084
    %1157 = vst [vmem:[#allocation3 + $0x70] sm:$0xff] %v1085
    %1158 = vst [vmem:[#allocation3 + $0x78] sm:$0xff] %v1086
    %1159 = vst [vmem:[#allocation3 + $0x80] sm:$0xff] %v1087
    %1160 = vst [vmem:[#allocation3 + $0x88] sm:$0xff] %v1088
    %1161 = vst [vmem:[#allocation3 + $0x90] sm:$0xff] %v1089
    %1162 = vst [vmem:[#allocation3 + $0x98] sm:$0xff] %v1090
    %1163 = vst [vmem:[#allocation3 + $0xa0] sm:$0xff] %v1091
    %1164 = vst [vmem:[#allocation3 + $0xa8] sm:$0xff] %v1092
    %1165 = vst [vmem:[#allocation3 + $0xb0] sm:$0xff] %v1093
    %1166 = vst [vmem:[#allocation3 + $0xb8] sm:$0xff] %v1094
    %1167 = vst [vmem:[#allocation3 + $0xc0] sm:$0xff] %v1095
    %1168 = vst [vmem:[#allocation3 + $0xc8] sm:$0xff] %v1096
    %1169 = vst [vmem:[#allocation3 + $0xd0] sm:$0xff] %v1097
    %1170 = vst [vmem:[#allocation3 + $0xd8] sm:$0xff] %v1098
    %1171 = vst [vmem:[#allocation3 + $0xe0] sm:$0xff] %v1099
    %1172 = vst [vmem:[#allocation3 + $0xe8] sm:$0xff] %v1100
    %1173 = vst [vmem:[#allocation3 + $0xf0] sm:$0xff] %v1101
    %1174 = vst [vmem:[#allocation3 + $0xf8] sm:$0xff] %v1102
    %1175 = vst [vmem:[#allocation3 + $0x100] sm:$0xff] %v1103
    %1176 = vst [vmem:[#allocation3 + $0x108] sm:$0xff] %v1104
    %1177 = vst [vmem:[#allocation3 + $0x110] sm:$0xff] %v1105
    %1178 = vst [vmem:[#allocation3 + $0x118] sm:$0xff] %v1106
    %1179 = vst [vmem:[#allocation3 + $0x120] sm:$0xff] %v1107
    %1180 = vst [vmem:[#allocation3 + $0x128] sm:$0xff] %v1108
    %1181 = vst [vmem:[#allocation3 + $0x130] sm:$0xff] %v1109
    %1182 = vst [vmem:[#allocation3 + $0x138] sm:$0xff] %v1110
    %1183 = vst [vmem:[#allocation3 + $0x140] sm:$0xff] %v1111
    %1184 = vst [vmem:[#allocation3 + $0x148] sm:$0xff] %v1112
    %1185 = vst [vmem:[#allocation3 + $0x150] sm:$0xff] %v1113
    %1186 = vst [vmem:[#allocation3 + $0x158] sm:$0xff] %v1114
    %1187 = vst [vmem:[#allocation3 + $0x160] sm:$0xff] %v1115
    %1188 = vst [vmem:[#allocation3 + $0x168] sm:$0xff] %v1116
    %1189 = vst [vmem:[#allocation3 + $0x170] sm:$0xff] %v1117
    %1190 = vst [vmem:[#allocation3 + $0x178] sm:$0xff] %v1118
    %1191 = vst [vmem:[#allocation3 + $0x180] sm:$0xff] %v1119
    %1192 = vst [vmem:[#allocation3 + $0x188] sm:$0xff] %v1120
    %1193 = vst [vmem:[#allocation3 + $0x190] sm:$0xff] %v1121
    %1194 = vst [vmem:[#allocation3 + $0x198] sm:$0xff] %v1122
    %1195 = vst [vmem:[#allocation3 + $0x1a0] sm:$0xff] %v1123
    %1196 = vst [vmem:[#allocation3 + $0x1a8] sm:$0xff] %v1124
    %1197 = vst [vmem:[#allocation3 + $0x1b0] sm:$0xff] %v1125
    %1198 = vst [vmem:[#allocation3 + $0x1b8] sm:$0xff] %v1126
    %1199 = vst [vmem:[#allocation3 + $0x1c0] sm:$0xff] %v1127
    %1200 = vst [vmem:[#allocation3 + $0x1c8] sm:$0xff] %v1128
    %1201 = vst [vmem:[#allocation3 + $0x1d0] sm:$0xff] %v1129
    %1202 = vst [vmem:[#allocation3 + $0x1d8] sm:$0xff] %v1130
    %1203 = vst [vmem:[#allocation3 + $0x1e0] sm:$0xff] %v1131
    %1204 = vst [vmem:[#allocation3 + $0x1e8] sm:$0xff] %v1132
    %1205 = vst [vmem:[#allocation3 + $0x1f0] sm:$0xff] %v1133
    %1206 = vst [vmem:[#allocation3 + $0x1f8] sm:$0xff] %v1134
    %1207 = vst [vmem:[#allocation3 + $0x200] sm:$0xff] %v1135
    %1208 = vst [vmem:[#allocation3 + $0x208] sm:$0xff] %v1136
    %1209 = vst [vmem:[#allocation3 + $0x210] sm:$0xff] %v1137
    %1210 = vst [vmem:[#allocation3 + $0x218] sm:$0xff] %v1138
    %1211 = vst [vmem:[#allocation3 + $0x220] sm:$0xff] %v1139
    %1212 = vst [vmem:[#allocation3 + $0x228] sm:$0xff] %v1140
    %1213 = vst [vmem:[#allocation3 + $0x230] sm:$0xff] %v1141
    %1214 = vst [vmem:[#allocation3 + $0x238] sm:$0xff] %v1142
    %v1215 = vld [vmem:[#allocation3] ss:$2 sm:$0xff]
    %s1216 = scalar_lea.vmem [#allocation3], 16
    %v1217 = vld [vmem:[%s1216] ss:$2 sm:$0xf]
    %s1218 = scalar_lea.vmem [#allocation3], 24
    %v1219 = vld [vmem:[%s1218] ss:$2 sm:$0xff]
    %s1220 = scalar_lea.vmem [#allocation3], 40
    %v1221 = vld [vmem:[%s1220] ss:$2 sm:$0xf]
    %s1222 = scalar_lea.vmem [#allocation3], 48
    %v1223 = vld [vmem:[%s1222] ss:$2 sm:$0xff]
    %s1224 = scalar_lea.vmem [#allocation3], 64
    %v1225 = vld [vmem:[%s1224] ss:$2 sm:$0xf]
    %s1226 = scalar_lea.vmem [#allocation3], 72
    %v1227 = vld [vmem:[%s1226] ss:$2 sm:$0xff]
    %s1228 = scalar_lea.vmem [#allocation3], 88
    %v1229 = vld [vmem:[%s1228] ss:$2 sm:$0xf]
    %s1230 = scalar_lea.vmem [#allocation3], 96
    %v1231 = vld [vmem:[%s1230] ss:$2 sm:$0xff]
    %s1232 = scalar_lea.vmem [#allocation3], 112
    %v1233 = vld [vmem:[%s1232] ss:$2 sm:$0xf]
    %s1234 = scalar_lea.vmem [#allocation3], 120
    %v1235 = vld [vmem:[%s1234] ss:$2 sm:$0xff]
    %s1236 = scalar_lea.vmem [#allocation3], 136
    %v1237 = vld [vmem:[%s1236] ss:$2 sm:$0xf]
    %s1238 = scalar_lea.vmem [#allocation3], 144
    %v1239 = vld [vmem:[%s1238] ss:$2 sm:$0xff]
    %s1240 = scalar_lea.vmem [#allocation3], 160
    %v1241 = vld [vmem:[%s1240] ss:$2 sm:$0xf]
    %s1242 = scalar_lea.vmem [#allocation3], 168
    %v1243 = vld [vmem:[%s1242] ss:$2 sm:$0xff]
    %s1244 = scalar_lea.vmem [#allocation3], 184
    %v1245 = vld [vmem:[%s1244] ss:$2 sm:$0xf]
    %s1246 = scalar_lea.vmem [#allocation3], 192
    %v1247 = vld [vmem:[%s1246] ss:$2 sm:$0xff]
    %s1248 = scalar_lea.vmem [#allocation3], 208
    %v1249 = vld [vmem:[%s1248] ss:$2 sm:$0xf]
    %s1250 = scalar_lea.vmem [#allocation3], 216
    %v1251 = vld [vmem:[%s1250] ss:$2 sm:$0xff]
    %s1252 = scalar_lea.vmem [#allocation3], 232
    %v1253 = vld [vmem:[%s1252] ss:$2 sm:$0xf]
    %s1254 = scalar_lea.vmem [#allocation3], 240
    %v1255 = vld [vmem:[%s1254] ss:$2 sm:$0xff]
    %s1256 = scalar_lea.vmem [#allocation3], 256
    %v1257 = vld [vmem:[%s1256] ss:$2 sm:$0xf]
    %s1258 = scalar_lea.vmem [#allocation3], 264
    %v1259 = vld [vmem:[%s1258] ss:$2 sm:$0xff]
    %s1260 = scalar_lea.vmem [#allocation3], 280
    %v1261 = vld [vmem:[%s1260] ss:$2 sm:$0xf]
    %s1262 = scalar_lea.vmem [#allocation3], 288
    %v1263 = vld [vmem:[%s1262] ss:$2 sm:$0xff]
    %s1264 = scalar_lea.vmem [#allocation3], 304
    %v1265 = vld [vmem:[%s1264] ss:$2 sm:$0xf]
    %s1266 = scalar_lea.vmem [#allocation3], 312
    %v1267 = vld [vmem:[%s1266] ss:$2 sm:$0xff]
    %s1268 = scalar_lea.vmem [#allocation3], 328
    %v1269 = vld [vmem:[%s1268] ss:$2 sm:$0xf]
    %s1270 = scalar_lea.vmem [#allocation3], 336
    %v1271 = vld [vmem:[%s1270] ss:$2 sm:$0xff]
    %s1272 = scalar_lea.vmem [#allocation3], 352
    %v1273 = vld [vmem:[%s1272] ss:$2 sm:$0xf]
    %s1274 = scalar_lea.vmem [#allocation3], 360
    %v1275 = vld [vmem:[%s1274] ss:$2 sm:$0xff]
    %s1276 = scalar_lea.vmem [#allocation3], 376
    %v1277 = vld [vmem:[%s1276] ss:$2 sm:$0xf]
    %s1278 = scalar_lea.vmem [#allocation3], 384
    %v1279 = vld [vmem:[%s1278] ss:$2 sm:$0xff]
    %s1280 = scalar_lea.vmem [#allocation3], 400
    %v1281 = vld [vmem:[%s1280] ss:$2 sm:$0xf]
    %s1282 = scalar_lea.vmem [#allocation3], 408
    %v1283 = vld [vmem:[%s1282] ss:$2 sm:$0xff]
    %s1284 = scalar_lea.vmem [#allocation3], 424
    %v1285 = vld [vmem:[%s1284] ss:$2 sm:$0xf]
    %s1286 = scalar_lea.vmem [#allocation3], 432
    %v1287 = vld [vmem:[%s1286] ss:$2 sm:$0xff]
    %s1288 = scalar_lea.vmem [#allocation3], 448
    %v1289 = vld [vmem:[%s1288] ss:$2 sm:$0xf]
    %s1290 = scalar_lea.vmem [#allocation3], 456
    %v1291 = vld [vmem:[%s1290] ss:$2 sm:$0xff]
    %s1292 = scalar_lea.vmem [#allocation3], 472
    %v1293 = vld [vmem:[%s1292] ss:$2 sm:$0xf]
    %s1294 = scalar_lea.vmem [#allocation3], 480
    %v1295 = vld [vmem:[%s1294] ss:$2 sm:$0xff]
    %s1296 = scalar_lea.vmem [#allocation3], 496
    %v1297 = vld [vmem:[%s1296] ss:$2 sm:$0xf]
    %s1298 = scalar_lea.vmem [#allocation3], 504
    %v1299 = vld [vmem:[%s1298] ss:$2 sm:$0xff]
    %s1300 = scalar_lea.vmem [#allocation3], 520
    %v1301 = vld [vmem:[%s1300] ss:$2 sm:$0xf]
    %s1302 = scalar_lea.vmem [#allocation3], 528
    %v1303 = vld [vmem:[%s1302] ss:$2 sm:$0xff]
    %s1304 = scalar_lea.vmem [#allocation3], 544
    %v1305 = vld [vmem:[%s1304] ss:$2 sm:$0xf]
    %s1306 = scalar_lea.vmem [#allocation3], 552
    %v1307 = vld [vmem:[%s1306] ss:$2 sm:$0xff]
    %s1308 = scalar_lea.vmem [#allocation3], 568
    %v1309 = vld [vmem:[%s1308] ss:$2 sm:$0xf]
    %s1310 = scalar_lea.vmem [#allocation3], 1
    %v1311 = vld [vmem:[%s1310] ss:$2 sm:$0xff]
    %s1312 = scalar_lea.vmem [#allocation3], 17
    %v1313 = vld [vmem:[%s1312] ss:$2 sm:$0xf]
    %s1314 = scalar_lea.vmem [#allocation3], 25
    %v1315 = vld [vmem:[%s1314] ss:$2 sm:$0xff]
    %s1316 = scalar_lea.vmem [#allocation3], 41
    %v1317 = vld [vmem:[%s1316] ss:$2 sm:$0xf]
    %s1318 = scalar_lea.vmem [#allocation3], 49
    %v1319 = vld [vmem:[%s1318] ss:$2 sm:$0xff]
    %s1320 = scalar_lea.vmem [#allocation3], 65
    %v1321 = vld [vmem:[%s1320] ss:$2 sm:$0xf]
    %s1322 = scalar_lea.vmem [#allocation3], 73
    %v1323 = vld [vmem:[%s1322] ss:$2 sm:$0xff]
    %s1324 = scalar_lea.vmem [#allocation3], 89
    %v1325 = vld [vmem:[%s1324] ss:$2 sm:$0xf]
    %s1326 = scalar_lea.vmem [#allocation3], 97
    %v1327 = vld [vmem:[%s1326] ss:$2 sm:$0xff]
    %s1328 = scalar_lea.vmem [#allocation3], 113
    %v1329 = vld [vmem:[%s1328] ss:$2 sm:$0xf]
    %s1330 = scalar_lea.vmem [#allocation3], 121
    %v1331 = vld [vmem:[%s1330] ss:$2 sm:$0xff]
    %s1332 = scalar_lea.vmem [#allocation3], 137
    %v1333 = vld [vmem:[%s1332] ss:$2 sm:$0xf]
    %s1334 = scalar_lea.vmem [#allocation3], 145
    %v1335 = vld [vmem:[%s1334] ss:$2 sm:$0xff]
    %s1336 = scalar_lea.vmem [#allocation3], 161
    %v1337 = vld [vmem:[%s1336] ss:$2 sm:$0xf]
    %s1338 = scalar_lea.vmem [#allocation3], 169
    %v1339 = vld [vmem:[%s1338] ss:$2 sm:$0xff]
    %s1340 = scalar_lea.vmem [#allocation3], 185
    %v1341 = vld [vmem:[%s1340] ss:$2 sm:$0xf]
    %s1342 = scalar_lea.vmem [#allocation3], 193
    %v1343 = vld [vmem:[%s1342] ss:$2 sm:$0xff]
    %s1344 = scalar_lea.vmem [#allocation3], 209
    %v1345 = vld [vmem:[%s1344] ss:$2 sm:$0xf]
    %s1346 = scalar_lea.vmem [#allocation3], 217
    %v1347 = vld [vmem:[%s1346] ss:$2 sm:$0xff]
    %s1348 = scalar_lea.vmem [#allocation3], 233
    %v1349 = vld [vmem:[%s1348] ss:$2 sm:$0xf]
    %s1350 = scalar_lea.vmem [#allocation3], 241
    %v1351 = vld [vmem:[%s1350] ss:$2 sm:$0xff]
    %s1352 = scalar_lea.vmem [#allocation3], 257
    %v1353 = vld [vmem:[%s1352] ss:$2 sm:$0xf]
    %s1354 = scalar_lea.vmem [#allocation3], 265
    %v1355 = vld [vmem:[%s1354] ss:$2 sm:$0xff]
    %s1356 = scalar_lea.vmem [#allocation3], 281
    %v1357 = vld [vmem:[%s1356] ss:$2 sm:$0xf]
    %s1358 = scalar_lea.vmem [#allocation3], 289
    %v1359 = vld [vmem:[%s1358] ss:$2 sm:$0xff]
    %s1360 = scalar_lea.vmem [#allocation3], 305
    %v1361 = vld [vmem:[%s1360] ss:$2 sm:$0xf]
    %s1362 = scalar_lea.vmem [#allocation3], 313
    %v1363 = vld [vmem:[%s1362] ss:$2 sm:$0xff]
    %s1364 = scalar_lea.vmem [#allocation3], 329
    %v1365 = vld [vmem:[%s1364] ss:$2 sm:$0xf]
    %s1366 = scalar_lea.vmem [#allocation3], 337
    %v1367 = vld [vmem:[%s1366] ss:$2 sm:$0xff]
    %s1368 = scalar_lea.vmem [#allocation3], 353
    %v1369 = vld [vmem:[%s1368] ss:$2 sm:$0xf]
    %s1370 = scalar_lea.vmem [#allocation3], 361
    %v1371 = vld [vmem:[%s1370] ss:$2 sm:$0xff]
    %s1372 = scalar_lea.vmem [#allocation3], 377
    %v1373 = vld [vmem:[%s1372] ss:$2 sm:$0xf]
    %s1374 = scalar_lea.vmem [#allocation3], 385
    %v1375 = vld [vmem:[%s1374] ss:$2 sm:$0xff]
    %s1376 = scalar_lea.vmem [#allocation3], 401
    %v1377 = vld [vmem:[%s1376] ss:$2 sm:$0xf]
    %s1378 = scalar_lea.vmem [#allocation3], 409
    %v1379 = vld [vmem:[%s1378] ss:$2 sm:$0xff]
    %s1380 = scalar_lea.vmem [#allocation3], 425
    %v1381 = vld [vmem:[%s1380] ss:$2 sm:$0xf]
    %s1382 = scalar_lea.vmem [#allocation3], 433
    %v1383 = vld [vmem:[%s1382] ss:$2 sm:$0xff]
    %s1384 = scalar_lea.vmem [#allocation3], 449
    %v1385 = vld [vmem:[%s1384] ss:$2 sm:$0xf]
    %s1386 = scalar_lea.vmem [#allocation3], 457
    %v1387 = vld [vmem:[%s1386] ss:$2 sm:$0xff]
    %s1388 = scalar_lea.vmem [#allocation3], 473
    %v1389 = vld [vmem:[%s1388] ss:$2 sm:$0xf]
    %s1390 = scalar_lea.vmem [#allocation3], 481
    %v1391 = vld [vmem:[%s1390] ss:$2 sm:$0xff]
    %s1392 = scalar_lea.vmem [#allocation3], 497
    %v1393 = vld [vmem:[%s1392] ss:$2 sm:$0xf]
    %s1394 = scalar_lea.vmem [#allocation3], 505
    %v1395 = vld [vmem:[%s1394] ss:$2 sm:$0xff]
    %s1396 = scalar_lea.vmem [#allocation3], 521
    %v1397 = vld [vmem:[%s1396] ss:$2 sm:$0xf]
    %s1398 = scalar_lea.vmem [#allocation3], 529
    %v1399 = vld [vmem:[%s1398] ss:$2 sm:$0xff]
    %s1400 = scalar_lea.vmem [#allocation3], 545
    %v1401 = vld [vmem:[%s1400] ss:$2 sm:$0xf]
    %s1402 = scalar_lea.vmem [#allocation3], 553
    %v1403 = vld [vmem:[%s1402] ss:$2 sm:$0xff]
    %s1404 = scalar_lea.vmem [#allocation3], 569
    %v1405 = vld [vmem:[%s1404] ss:$2 sm:$0xf]
    %v1406 = vmax.f32 %v1215, %v1311
    %v1407 = vmax.f32 %v1217, %v1313
    %v1408 = vmax.f32 %v1219, %v1315
    %v1409 = vmax.f32 %v1221, %v1317
    %v1410 = vmax.f32 %v1223, %v1319
    %v1411 = vmax.f32 %v1225, %v1321
    %v1412 = vmax.f32 %v1227, %v1323
    %v1413 = vmax.f32 %v1229, %v1325
    %v1414 = vmax.f32 %v1231, %v1327
    %v1415 = vmax.f32 %v1233, %v1329
    %v1416 = vmax.f32 %v1235, %v1331
    %v1417 = vmax.f32 %v1237, %v1333
    %v1418 = vmax.f32 %v1239, %v1335
    %v1419 = vmax.f32 %v1241, %v1337
    %v1420 = vmax.f32 %v1243, %v1339
    %v1421 = vmax.f32 %v1245, %v1341
    %v1422 = vmax.f32 %v1247, %v1343
    %v1423 = vmax.f32 %v1249, %v1345
    %v1424 = vmax.f32 %v1251, %v1347
    %v1425 = vmax.f32 %v1253, %v1349
    %v1426 = vmax.f32 %v1255, %v1351
    %v1427 = vmax.f32 %v1257, %v1353
    %v1428 = vmax.f32 %v1259, %v1355
    %v1429 = vmax.f32 %v1261, %v1357
    %v1430 = vmax.f32 %v1263, %v1359
    %v1431 = vmax.f32 %v1265, %v1361
    %v1432 = vmax.f32 %v1267, %v1363
    %v1433 = vmax.f32 %v1269, %v1365
    %v1434 = vmax.f32 %v1271, %v1367
    %v1435 = vmax.f32 %v1273, %v1369
    %v1436 = vmax.f32 %v1275, %v1371
    %v1437 = vmax.f32 %v1277, %v1373
    %v1438 = vmax.f32 %v1279, %v1375
    %v1439 = vmax.f32 %v1281, %v1377
    %v1440 = vmax.f32 %v1283, %v1379
    %v1441 = vmax.f32 %v1285, %v1381
    %v1442 = vmax.f32 %v1287, %v1383
    %v1443 = vmax.f32 %v1289, %v1385
    %v1444 = vmax.f32 %v1291, %v1387
    %v1445 = vmax.f32 %v1293, %v1389
    %v1446 = vmax.f32 %v1295, %v1391
    %v1447 = vmax.f32 %v1297, %v1393
    %v1448 = vmax.f32 %v1299, %v1395
    %v1449 = vmax.f32 %v1301, %v1397
    %v1450 = vmax.f32 %v1303, %v1399
    %v1451 = vmax.f32 %v1305, %v1401
    %v1452 = vmax.f32 %v1307, %v1403
    %v1453 = vmax.f32 %v1309, %v1405
    %1454 = vst [vmem:[#allocation4] sm:$0xff] %v1406
    %1455 = vst [vmem:[#allocation4 + $0x8] sm:$0xf] %v1407
    %1456 = vst [vmem:[#allocation4 + $0x10] sm:$0xff] %v1408
    %1457 = vst [vmem:[#allocation4 + $0x18] sm:$0xf] %v1409
    %1458 = vst [vmem:[#allocation4 + $0x20] sm:$0xff] %v1410
    %1459 = vst [vmem:[#allocation4 + $0x28] sm:$0xf] %v1411
    %1460 = vst [vmem:[#allocation4 + $0x30] sm:$0xff] %v1412
    %1461 = vst [vmem:[#allocation4 + $0x38] sm:$0xf] %v1413
    %1462 = vst [vmem:[#allocation4 + $0x40] sm:$0xff] %v1414
    %1463 = vst [vmem:[#allocation4 + $0x48] sm:$0xf] %v1415
    %1464 = vst [vmem:[#allocation4 + $0x50] sm:$0xff] %v1416
    %1465 = vst [vmem:[#allocation4 + $0x58] sm:$0xf] %v1417
    %1466 = vst [vmem:[#allocation4 + $0x60] sm:$0xff] %v1418
    %1467 = vst [vmem:[#allocation4 + $0x68] sm:$0xf] %v1419
    %1468 = vst [vmem:[#allocation4 + $0x70] sm:$0xff] %v1420
    %1469 = vst [vmem:[#allocation4 + $0x78] sm:$0xf] %v1421
    %1470 = vst [vmem:[#allocation4 + $0x80] sm:$0xff] %v1422
    %1471 = vst [vmem:[#allocation4 + $0x88] sm:$0xf] %v1423
    %1472 = vst [vmem:[#allocation4 + $0x90] sm:$0xff] %v1424
    %1473 = vst [vmem:[#allocation4 + $0x98] sm:$0xf] %v1425
    %1474 = vst [vmem:[#allocation4 + $0xa0] sm:$0xff] %v1426
    %1475 = vst [vmem:[#allocation4 + $0xa8] sm:$0xf] %v1427
    %1476 = vst [vmem:[#allocation4 + $0xb0] sm:$0xff] %v1428
    %1477 = vst [vmem:[#allocation4 + $0xb8] sm:$0xf] %v1429
    %1478 = vst [vmem:[#allocation4 + $0xc0] sm:$0xff] %v1430
    %1479 = vst [vmem:[#allocation4 + $0xc8] sm:$0xf] %v1431
    %1480 = vst [vmem:[#allocation4 + $0xd0] sm:$0xff] %v1432
    %1481 = vst [vmem:[#allocation4 + $0xd8] sm:$0xf] %v1433
    %1482 = vst [vmem:[#allocation4 + $0xe0] sm:$0xff] %v1434
    %1483 = vst [vmem:[#allocation4 + $0xe8] sm:$0xf] %v1435
    %1484 = vst [vmem:[#allocation4 + $0xf0] sm:$0xff] %v1436
    %1485 = vst [vmem:[#allocation4 + $0xf8] sm:$0xf] %v1437
    %1486 = vst [vmem:[#allocation4 + $0x100] sm:$0xff] %v1438
    %1487 = vst [vmem:[#allocation4 + $0x108] sm:$0xf] %v1439
    %1488 = vst [vmem:[#allocation4 + $0x110] sm:$0xff] %v1440
    %1489 = vst [vmem:[#allocation4 + $0x118] sm:$0xf] %v1441
    %1490 = vst [vmem:[#allocation4 + $0x120] sm:$0xff] %v1442
    %1491 = vst [vmem:[#allocation4 + $0x128] sm:$0xf] %v1443
    %1492 = vst [vmem:[#allocation4 + $0x130] sm:$0xff] %v1444
    %1493 = vst [vmem:[#allocation4 + $0x138] sm:$0xf] %v1445
    %1494 = vst [vmem:[#allocation4 + $0x140] sm:$0xff] %v1446
    %1495 = vst [vmem:[#allocation4 + $0x148] sm:$0xf] %v1447
    %1496 = vst [vmem:[#allocation4 + $0x150] sm:$0xff] %v1448
    %1497 = vst [vmem:[#allocation4 + $0x158] sm:$0xf] %v1449
    %1498 = vst [vmem:[#allocation4 + $0x160] sm:$0xff] %v1450
    %1499 = vst [vmem:[#allocation4 + $0x168] sm:$0xf] %v1451
    %1500 = vst [vmem:[#allocation4 + $0x170] sm:$0xff] %v1452
    %1501 = vst [vmem:[#allocation4 + $0x178] sm:$0xf] %v1453
    %v1502 = vld [vmem:[#allocation4] sm:$0xff]
    %v1503 = vld [vmem:[#allocation4 + $0x10] sm:$0xff]
    %v1504 = vld [vmem:[#allocation4 + $0x20] sm:$0xff]
    %v1505 = vld [vmem:[#allocation4 + $0x30] sm:$0xff]
    %v1506 = vld [vmem:[#allocation4 + $0x40] sm:$0xff]
    %v1507 = vld [vmem:[#allocation4 + $0x50] sm:$0xff]
    %v1508 = vld [vmem:[#allocation4 + $0x60] sm:$0xff]
    %v1509 = vld [vmem:[#allocation4 + $0x70] sm:$0xff]
    %v1510 = vld [vmem:[#allocation4 + $0xc0] sm:$0xff]
    %v1511 = vld [vmem:[#allocation4 + $0xd0] sm:$0xff]
    %v1512 = vld [vmem:[#allocation4 + $0xe0] sm:$0xff]
    %v1513 = vld [vmem:[#allocation4 + $0xf0] sm:$0xff]
    %v1514 = vld [vmem:[#allocation4 + $0x100] sm:$0xff]
    %v1515 = vld [vmem:[#allocation4 + $0x110] sm:$0xff]
    %v1516 = vld [vmem:[#allocation4 + $0x120] sm:$0xff]
    %v1517 = vld [vmem:[#allocation4 + $0x130] sm:$0xff]
    %v1518 = vld [vmem:[%s2] sm:$0xff]
    %v1519 = vld [vmem:[%s2 + $0x8] sm:$0xff]
    %v1520 = vld [vmem:[%s2 + $0x10] sm:$0xff]
    %v1521 = vld [vmem:[%s2 + $0x18] sm:$0xff]
    %v1522 = vld [vmem:[%s2 + $0x20] sm:$0xff]
    %v1523 = vld [vmem:[%s2 + $0x28] sm:$0xff]
    %v1524 = vld [vmem:[%s2 + $0x30] sm:$0xff]
    %v1525 = vld [vmem:[%s2 + $0x38] sm:$0xff]
    %v1526 = vld [vmem:[%s2 + $0x40] sm:$0xff]
    %v1527 = vld [vmem:[%s2 + $0x48] sm:$0xff]
    %v1528 = vld [vmem:[%s2 + $0x50] sm:$0xff]
    %v1529 = vld [vmem:[%s2 + $0x58] sm:$0xff]
    %v1530 = vld [vmem:[%s2 + $0x60] sm:$0xff]
    %v1531 = vld [vmem:[%s2 + $0x68] sm:$0xff]
    %v1532 = vld [vmem:[%s2 + $0x70] sm:$0xff]
    %v1533 = vld [vmem:[%s2 + $0x78] sm:$0xff]
    %v1534 = vld [vmem:[#allocation4 + $0x1] sm:$0xff]
    %v1535 = vld [vmem:[#allocation4 + $0x11] sm:$0xff]
    %v1536 = vld [vmem:[#allocation4 + $0x21] sm:$0xff]
    %v1537 = vld [vmem:[#allocation4 + $0x31] sm:$0xff]
    %v1538 = vld [vmem:[#allocation4 + $0x41] sm:$0xff]
    %v1539 = vld [vmem:[#allocation4 + $0x51] sm:$0xff]
    %v1540 = vld [vmem:[#allocation4 + $0x61] sm:$0xff]
    %v1541 = vld [vmem:[#allocation4 + $0x71] sm:$0xff]
    %v1542 = vld [vmem:[#allocation4 + $0xc1] sm:$0xff]
    %v1543 = vld [vmem:[#allocation4 + $0xd1] sm:$0xff]
    %v1544 = vld [vmem:[#allocation4 + $0xe1] sm:$0xff]
    %v1545 = vld [vmem:[#allocation4 + $0xf1] sm:$0xff]
    %v1546 = vld [vmem:[#allocation4 + $0x101] sm:$0xff]
    %v1547 = vld [vmem:[#allocation4 + $0x111] sm:$0xff]
    %v1548 = vld [vmem:[#allocation4 + $0x121] sm:$0xff]
    %v1549 = vld [vmem:[#allocation4 + $0x131] sm:$0xff]
    %s1550 = scalar_lea.vmem %s2, 128
    %v1551 = vld [vmem:[%s1550] sm:$0xff]
    %v1552 = vld [vmem:[%s1550 + $0x8] sm:$0xff]
    %v1553 = vld [vmem:[%s1550 + $0x10] sm:$0xff]
    %v1554 = vld [vmem:[%s1550 + $0x18] sm:$0xff]
    %v1555 = vld [vmem:[%s1550 + $0x20] sm:$0xff]
    %v1556 = vld [vmem:[%s1550 + $0x28] sm:$0xff]
    %v1557 = vld [vmem:[%s1550 + $0x30] sm:$0xff]
    %v1558 = vld [vmem:[%s1550 + $0x38] sm:$0xff]
    %v1559 = vld [vmem:[%s1550 + $0x40] sm:$0xff]
    %v1560 = vld [vmem:[%s1550 + $0x48] sm:$0xff]
    %v1561 = vld [vmem:[%s1550 + $0x50] sm:$0xff]
    %v1562 = vld [vmem:[%s1550 + $0x58] sm:$0xff]
    %v1563 = vld [vmem:[%s1550 + $0x60] sm:$0xff]
    %v1564 = vld [vmem:[%s1550 + $0x68] sm:$0xff]
    %v1565 = vld [vmem:[%s1550 + $0x70] sm:$0xff]
    %v1566 = vld [vmem:[%s1550 + $0x78] sm:$0xff]
    %1567 = vmatpush.msra.mxu0 %v1566
    %1568 = vmatpush.msra.mxu0 %v1565
    %1569 = vmatpush.msra.mxu0 %v1564
    %1570 = vmatpush.msra.mxu0 %v1563
    %1571 = vmatpush.msra.mxu0 %v1562
    %1572 = vmatpush.msra.mxu0 %v1561
    %1573 = vmatpush.msra.mxu0 %v1560
    %1574 = vmatpush.msra.mxu0 %v1559
    %1575 = vmatpush.msra.mxu0 %v1558
    %1576 = vmatpush.msra.mxu0 %v1557
    %1577 = vmatpush.msra.mxu0 %v1556
    %1578 = vmatpush.msra.mxu0 %v1555
    %1579 = vmatpush.msra.mxu0 %v1554
    %1580 = vmatpush.msra.mxu0 %v1553
    %1581 = vmatpush.msra.mxu0 %v1552
    %1582 = vmatpush.msra.mxu0 %v1551
    %1583 = vmatmul.f32.gmra.mxu0 %v1534
    %v1584 = vpop.f32.mrf.mxu0
    %v1585 = vadd.f32 0.0, %v1584
    %1586 = vmatmul.f32.gmra.mxu0 %v1535
    %v1587 = vpop.f32.mrf.mxu0
    %v1588 = vadd.f32 0.0, %v1587
    %1589 = vmatmul.f32.gmra.mxu0 %v1536
    %v1590 = vpop.f32.mrf.mxu0
    %v1591 = vadd.f32 0.0, %v1590
    %1592 = vmatmul.f32.gmra.mxu0 %v1537
    %v1593 = vpop.f32.mrf.mxu0
    %v1594 = vadd.f32 0.0, %v1593
    %1595 = vmatmul.f32.gmra.mxu0 %v1538
    %v1596 = vpop.f32.mrf.mxu0
    %v1597 = vadd.f32 0.0, %v1596
    %1598 = vmatmul.f32.gmra.mxu0 %v1539
    %v1599 = vpop.f32.mrf.mxu0
    %v1600 = vadd.f32 0.0, %v1599
    %1601 = vmatmul.f32.gmra.mxu0 %v1540
    %v1602 = vpop.f32.mrf.mxu0
    %v1603 = vadd.f32 0.0, %v1602
    %1604 = vmatmul.f32.gmra.mxu0 %v1541
    %v1605 = vpop.f32.mrf.mxu0
    %v1606 = vadd.f32 0.0, %v1605
    %1607 = vmatmul.f32.gmra.mxu0 %v1542
    %v1608 = vpop.f32.mrf.mxu0
    %v1609 = vadd.f32 0.0, %v1608
    %1610 = vmatmul.f32.gmra.mxu0 %v1543
    %v1611 = vpop.f32.mrf.mxu0
    %v1612 = vadd.f32 0.0, %v1611
    %1613 = vmatmul.f32.gmra.mxu0 %v1544
    %v1614 = vpop.f32.mrf.mxu0
    %v1615 = vadd.f32 0.0, %v1614
    %1616 = vmatmul.f32.gmra.mxu0 %v1545
    %v1617 = vpop.f32.mrf.mxu0
    %v1618 = vadd.f32 0.0, %v1617
    %1619 = vmatmul.f32.gmra.mxu0 %v1546
    %v1620 = vpop.f32.mrf.mxu0
    %v1621 = vadd.f32 0.0, %v1620
    %1622 = vmatmul.f32.gmra.mxu0 %v1547
    %v1623 = vpop.f32.mrf.mxu0
    %v1624 = vadd.f32 0.0, %v1623
    %1625 = vmatmul.f32.gmra.mxu0 %v1548
    %v1626 = vpop.f32.mrf.mxu0
    %v1627 = vadd.f32 0.0, %v1626
    %1628 = vmatmul.f32.gmra.mxu0 %v1549
    %v1629 = vpop.f32.mrf.mxu0
    %v1630 = vadd.f32 0.0, %v1629
    %1631 = vdwg.mxu0
    %1632 = vmatpush.msra.mxu0 %v1533
    %1633 = vmatpush.msra.mxu0 %v1532
    %1634 = vmatpush.msra.mxu0 %v1531
    %1635 = vmatpush.msra.mxu0 %v1530
    %1636 = vmatpush.msra.mxu0 %v1529
    %1637 = vmatpush.msra.mxu0 %v1528
    %1638 = vmatpush.msra.mxu0 %v1527
    %1639 = vmatpush.msra.mxu0 %v1526
    %1640 = vmatpush.msra.mxu0 %v1525
    %1641 = vmatpush.msra.mxu0 %v1524
    %1642 = vmatpush.msra.mxu0 %v1523
    %1643 = vmatpush.msra.mxu0 %v1522
    %1644 = vmatpush.msra.mxu0 %v1521
    %1645 = vmatpush.msra.mxu0 %v1520
    %1646 = vmatpush.msra.mxu0 %v1519
    %1647 = vmatpush.msra.mxu0 %v1518
    %1648 = vmatmul.f32.gmra.mxu0 %v1502
    %v1649 = vpop.f32.mrf.mxu0
    %v1650 = vadd.f32 %v1585, %v1649
    %1651 = vmatmul.f32.gmra.mxu0 %v1503
    %v1652 = vpop.f32.mrf.mxu0
    %v1653 = vadd.f32 %v1588, %v1652
    %1654 = vmatmul.f32.gmra.mxu0 %v1504
    %v1655 = vpop.f32.mrf.mxu0
    %v1656 = vadd.f32 %v1591, %v1655
    %1657 = vmatmul.f32.gmra.mxu0 %v1505
    %v1658 = vpop.f32.mrf.mxu0
    %v1659 = vadd.f32 %v1594, %v1658
    %1660 = vmatmul.f32.gmra.mxu0 %v1506
    %v1661 = vpop.f32.mrf.mxu0
    %v1662 = vadd.f32 %v1597, %v1661
    %1663 = vmatmul.f32.gmra.mxu0 %v1507
    %v1664 = vpop.f32.mrf.mxu0
    %v1665 = vadd.f32 %v1600, %v1664
    %1666 = vmatmul.f32.gmra.mxu0 %v1508
    %v1667 = vpop.f32.mrf.mxu0
    %v1668 = vadd.f32 %v1603, %v1667
    %1669 = vmatmul.f32.gmra.mxu0 %v1509
    %v1670 = vpop.f32.mrf.mxu0
    %v1671 = vadd.f32 %v1606, %v1670
    %1672 = vmatmul.f32.gmra.mxu0 %v1510
    %v1673 = vpop.f32.mrf.mxu0
    %v1674 = vadd.f32 %v1609, %v1673
    %1675 = vmatmul.f32.gmra.mxu0 %v1511
    %v1676 = vpop.f32.mrf.mxu0
    %v1677 = vadd.f32 %v1612, %v1676
    %1678 = vmatmul.f32.gmra.mxu0 %v1512
    %v1679 = vpop.f32.mrf.mxu0
    %v1680 = vadd.f32 %v1615, %v1679
    %1681 = vmatmul.f32.gmra.mxu0 %v1513
    %v1682 = vpop.f32.mrf.mxu0
    %v1683 = vadd.f32 %v1618, %v1682
    %1684 = vmatmul.f32.gmra.mxu0 %v1514
    %v1685 = vpop.f32.mrf.mxu0
    %v1686 = vadd.f32 %v1621, %v1685
    %1687 = vmatmul.f32.gmra.mxu0 %v1515
    %v1688 = vpop.f32.mrf.mxu0
    %v1689 = vadd.f32 %v1624, %v1688
    %1690 = vmatmul.f32.gmra.mxu0 %v1516
    %v1691 = vpop.f32.mrf.mxu0
    %v1692 = vadd.f32 %v1627, %v1691
    %1693 = vmatmul.f32.gmra.mxu0 %v1517
    %v1694 = vpop.f32.mrf.mxu0
    %v1695 = vadd.f32 %v1630, %v1694
    %1696 = vdwg.mxu0
    %v1697 = vld [vmem:[#allocation4 + $0x2] sm:$0xff]
    %v1698 = vld [vmem:[#allocation4 + $0x12] sm:$0xff]
    %v1699 = vld [vmem:[#allocation4 + $0x22] sm:$0xff]
    %v1700 = vld [vmem:[#allocation4 + $0x32] sm:$0xff]
    %v1701 = vld [vmem:[#allocation4 + $0x42] sm:$0xff]
    %v1702 = vld [vmem:[#allocation4 + $0x52] sm:$0xff]
    %v1703 = vld [vmem:[#allocation4 + $0x62] sm:$0xff]
    %v1704 = vld [vmem:[#allocation4 + $0x72] sm:$0xff]
    %v1705 = vld [vmem:[#allocation4 + $0xc2] sm:$0xff]
    %v1706 = vld [vmem:[#allocation4 + $0xd2] sm:$0xff]
    %v1707 = vld [vmem:[#allocation4 + $0xe2] sm:$0xff]
    %v1708 = vld [vmem:[#allocation4 + $0xf2] sm:$0xff]
    %v1709 = vld [vmem:[#allocation4 + $0x102] sm:$0xff]
    %v1710 = vld [vmem:[#allocation4 + $0x112] sm:$0xff]
    %v1711 = vld [vmem:[#allocation4 + $0x122] sm:$0xff]
    %v1712 = vld [vmem:[#allocation4 + $0x132] sm:$0xff]
    %s1713 = scalar_lea.vmem %s2, 256
    %v1714 = vld [vmem:[%s1713] sm:$0xff]
    %v1715 = vld [vmem:[%s1713 + $0x8] sm:$0xff]
    %v1716 = vld [vmem:[%s1713 + $0x10] sm:$0xff]
    %v1717 = vld [vmem:[%s1713 + $0x18] sm:$0xff]
    %v1718 = vld [vmem:[%s1713 + $0x20] sm:$0xff]
    %v1719 = vld [vmem:[%s1713 + $0x28] sm:$0xff]
    %v1720 = vld [vmem:[%s1713 + $0x30] sm:$0xff]
    %v1721 = vld [vmem:[%s1713 + $0x38] sm:$0xff]
    %v1722 = vld [vmem:[%s1713 + $0x40] sm:$0xff]
    %v1723 = vld [vmem:[%s1713 + $0x48] sm:$0xff]
    %v1724 = vld [vmem:[%s1713 + $0x50] sm:$0xff]
    %v1725 = vld [vmem:[%s1713 + $0x58] sm:$0xff]
    %v1726 = vld [vmem:[%s1713 + $0x60] sm:$0xff]
    %v1727 = vld [vmem:[%s1713 + $0x68] sm:$0xff]
    %v1728 = vld [vmem:[%s1713 + $0x70] sm:$0xff]
    %v1729 = vld [vmem:[%s1713 + $0x78] sm:$0xff]
    %1730 = vmatpush.msra.mxu0 %v1729
    %1731 = vmatpush.msra.mxu0 %v1728
    %1732 = vmatpush.msra.mxu0 %v1727
    %1733 = vmatpush.msra.mxu0 %v1726
    %1734 = vmatpush.msra.mxu0 %v1725
    %1735 = vmatpush.msra.mxu0 %v1724
    %1736 = vmatpush.msra.mxu0 %v1723
    %1737 = vmatpush.msra.mxu0 %v1722
    %1738 = vmatpush.msra.mxu0 %v1721
    %1739 = vmatpush.msra.mxu0 %v1720
    %1740 = vmatpush.msra.mxu0 %v1719
    %1741 = vmatpush.msra.mxu0 %v1718
    %1742 = vmatpush.msra.mxu0 %v1717
    %1743 = vmatpush.msra.mxu0 %v1716
    %1744 = vmatpush.msra.mxu0 %v1715
    %1745 = vmatpush.msra.mxu0 %v1714
    %1746 = vmatmul.f32.gmra.mxu0 %v1697
    %v1747 = vpop.f32.mrf.mxu0
    %v1748 = vadd.f32 0.0, %v1747
    %1749 = vmatmul.f32.gmra.mxu0 %v1698
    %v1750 = vpop.f32.mrf.mxu0
    %v1751 = vadd.f32 0.0, %v1750
    %1752 = vmatmul.f32.gmra.mxu0 %v1699
    %v1753 = vpop.f32.mrf.mxu0
    %v1754 = vadd.f32 0.0, %v1753
    %1755 = vmatmul.f32.gmra.mxu0 %v1700
    %v1756 = vpop.f32.mrf.mxu0
    %v1757 = vadd.f32 0.0, %v1756
    %1758 = vmatmul.f32.gmra.mxu0 %v1701
    %v1759 = vpop.f32.mrf.mxu0
    %v1760 = vadd.f32 0.0, %v1759
    %1761 = vmatmul.f32.gmra.mxu0 %v1702
    %v1762 = vpop.f32.mrf.mxu0
    %v1763 = vadd.f32 0.0, %v1762
    %1764 = vmatmul.f32.gmra.mxu0 %v1703
    %v1765 = vpop.f32.mrf.mxu0
    %v1766 = vadd.f32 0.0, %v1765
    %1767 = vmatmul.f32.gmra.mxu0 %v1704
    %v1768 = vpop.f32.mrf.mxu0
    %v1769 = vadd.f32 0.0, %v1768
    %1770 = vmatmul.f32.gmra.mxu0 %v1705
    %v1771 = vpop.f32.mrf.mxu0
    %v1772 = vadd.f32 0.0, %v1771
    %1773 = vmatmul.f32.gmra.mxu0 %v1706
    %v1774 = vpop.f32.mrf.mxu0
    %v1775 = vadd.f32 0.0, %v1774
    %1776 = vmatmul.f32.gmra.mxu0 %v1707
    %v1777 = vpop.f32.mrf.mxu0
    %v1778 = vadd.f32 0.0, %v1777
    %1779 = vmatmul.f32.gmra.mxu0 %v1708
    %v1780 = vpop.f32.mrf.mxu0
    %v1781 = vadd.f32 0.0, %v1780
    %1782 = vmatmul.f32.gmra.mxu0 %v1709
    %v1783 = vpop.f32.mrf.mxu0
    %v1784 = vadd.f32 0.0, %v1783
    %1785 = vmatmul.f32.gmra.mxu0 %v1710
    %v1786 = vpop.f32.mrf.mxu0
    %v1787 = vadd.f32 0.0, %v1786
    %1788 = vmatmul.f32.gmra.mxu0 %v1711
    %v1789 = vpop.f32.mrf.mxu0
    %v1790 = vadd.f32 0.0, %v1789
    %1791 = vmatmul.f32.gmra.mxu0 %v1712
    %v1792 = vpop.f32.mrf.mxu0
    %v1793 = vadd.f32 0.0, %v1792
    %1794 = vdwg.mxu0
    %v1795 = vadd.f32 %v1650, %v1748
    %v1796 = vadd.f32 %v1653, %v1751
    %v1797 = vadd.f32 %v1656, %v1754
    %v1798 = vadd.f32 %v1659, %v1757
    %v1799 = vadd.f32 %v1662, %v1760
    %v1800 = vadd.f32 %v1665, %v1763
    %v1801 = vadd.f32 %v1668, %v1766
    %v1802 = vadd.f32 %v1671, %v1769
    %v1803 = vadd.f32 %v1674, %v1772
    %v1804 = vadd.f32 %v1677, %v1775
    %v1805 = vadd.f32 %v1680, %v1778
    %v1806 = vadd.f32 %v1683, %v1781
    %v1807 = vadd.f32 %v1686, %v1784
    %v1808 = vadd.f32 %v1689, %v1787
    %v1809 = vadd.f32 %v1692, %v1790
    %v1810 = vadd.f32 %v1695, %v1793
    %v1811 = vld [vmem:[#allocation4 + $0x3] sm:$0xff]
    %v1812 = vld [vmem:[#allocation4 + $0x13] sm:$0xff]
    %v1813 = vld [vmem:[#allocation4 + $0x23] sm:$0xff]
    %v1814 = vld [vmem:[#allocation4 + $0x33] sm:$0xff]
    %v1815 = vld [vmem:[#allocation4 + $0x43] sm:$0xff]
    %v1816 = vld [vmem:[#allocation4 + $0x53] sm:$0xff]
    %v1817 = vld [vmem:[#allocation4 + $0x63] sm:$0xff]
    %v1818 = vld [vmem:[#allocation4 + $0x73] sm:$0xff]
    %v1819 = vld [vmem:[#allocation4 + $0xc3] sm:$0xff]
    %v1820 = vld [vmem:[#allocation4 + $0xd3] sm:$0xff]
    %v1821 = vld [vmem:[#allocation4 + $0xe3] sm:$0xff]
    %v1822 = vld [vmem:[#allocation4 + $0xf3] sm:$0xff]
    %v1823 = vld [vmem:[#allocation4 + $0x103] sm:$0xff]
    %v1824 = vld [vmem:[#allocation4 + $0x113] sm:$0xff]
    %v1825 = vld [vmem:[#allocation4 + $0x123] sm:$0xff]
    %v1826 = vld [vmem:[#allocation4 + $0x133] sm:$0xff]
    %s1827 = scalar_lea.vmem %s2, 384
    %v1828 = vld [vmem:[%s1827] sm:$0xff]
    %v1829 = vld [vmem:[%s1827 + $0x8] sm:$0xff]
    %v1830 = vld [vmem:[%s1827 + $0x10] sm:$0xff]
    %v1831 = vld [vmem:[%s1827 + $0x18] sm:$0xff]
    %v1832 = vld [vmem:[%s1827 + $0x20] sm:$0xff]
    %v1833 = vld [vmem:[%s1827 + $0x28] sm:$0xff]
    %v1834 = vld [vmem:[%s1827 + $0x30] sm:$0xff]
    %v1835 = vld [vmem:[%s1827 + $0x38] sm:$0xff]
    %v1836 = vld [vmem:[%s1827 + $0x40] sm:$0xff]
    %v1837 = vld [vmem:[%s1827 + $0x48] sm:$0xff]
    %v1838 = vld [vmem:[%s1827 + $0x50] sm:$0xff]
    %v1839 = vld [vmem:[%s1827 + $0x58] sm:$0xff]
    %v1840 = vld [vmem:[%s1827 + $0x60] sm:$0xff]
    %v1841 = vld [vmem:[%s1827 + $0x68] sm:$0xff]
    %v1842 = vld [vmem:[%s1827 + $0x70] sm:$0xff]
    %v1843 = vld [vmem:[%s1827 + $0x78] sm:$0xff]
    %1844 = vmatpush.msra.mxu0 %v1843
    %1845 = vmatpush.msra.mxu0 %v1842
    %1846 = vmatpush.msra.mxu0 %v1841
    %1847 = vmatpush.msra.mxu0 %v1840
    %1848 = vmatpush.msra.mxu0 %v1839
    %1849 = vmatpush.msra.mxu0 %v1838
    %1850 = vmatpush.msra.mxu0 %v1837
    %1851 = vmatpush.msra.mxu0 %v1836
    %1852 = vmatpush.msra.mxu0 %v1835
    %1853 = vmatpush.msra.mxu0 %v1834
    %1854 = vmatpush.msra.mxu0 %v1833
    %1855 = vmatpush.msra.mxu0 %v1832
    %1856 = vmatpush.msra.mxu0 %v1831
    %1857 = vmatpush.msra.mxu0 %v1830
    %1858 = vmatpush.msra.mxu0 %v1829
    %1859 = vmatpush.msra.mxu0 %v1828
    %1860 = vmatmul.f32.gmra.mxu0 %v1811
    %v1861 = vpop.f32.mrf.mxu0
    %v1862 = vadd.f32 0.0, %v1861
    %1863 = vmatmul.f32.gmra.mxu0 %v1812
    %v1864 = vpop.f32.mrf.mxu0
    %v1865 = vadd.f32 0.0, %v1864
    %1866 = vmatmul.f32.gmra.mxu0 %v1813
    %v1867 = vpop.f32.mrf.mxu0
    %v1868 = vadd.f32 0.0, %v1867
    %1869 = vmatmul.f32.gmra.mxu0 %v1814
    %v1870 = vpop.f32.mrf.mxu0
    %v1871 = vadd.f32 0.0, %v1870
    %1872 = vmatmul.f32.gmra.mxu0 %v1815
    %v1873 = vpop.f32.mrf.mxu0
    %v1874 = vadd.f32 0.0, %v1873
    %1875 = vmatmul.f32.gmra.mxu0 %v1816
    %v1876 = vpop.f32.mrf.mxu0
    %v1877 = vadd.f32 0.0, %v1876
    %1878 = vmatmul.f32.gmra.mxu0 %v1817
    %v1879 = vpop.f32.mrf.mxu0
    %v1880 = vadd.f32 0.0, %v1879
    %1881 = vmatmul.f32.gmra.mxu0 %v1818
    %v1882 = vpop.f32.mrf.mxu0
    %v1883 = vadd.f32 0.0, %v1882
    %1884 = vmatmul.f32.gmra.mxu0 %v1819
    %v1885 = vpop.f32.mrf.mxu0
    %v1886 = vadd.f32 0.0, %v1885
    %1887 = vmatmul.f32.gmra.mxu0 %v1820
    %v1888 = vpop.f32.mrf.mxu0
    %v1889 = vadd.f32 0.0, %v1888
    %1890 = vmatmul.f32.gmra.mxu0 %v1821
    %v1891 = vpop.f32.mrf.mxu0
    %v1892 = vadd.f32 0.0, %v1891
    %1893 = vmatmul.f32.gmra.mxu0 %v1822
    %v1894 = vpop.f32.mrf.mxu0
    %v1895 = vadd.f32 0.0, %v1894
    %1896 = vmatmul.f32.gmra.mxu0 %v1823
    %v1897 = vpop.f32.mrf.mxu0
    %v1898 = vadd.f32 0.0, %v1897
    %1899 = vmatmul.f32.gmra.mxu0 %v1824
    %v1900 = vpop.f32.mrf.mxu0
    %v1901 = vadd.f32 0.0, %v1900
    %1902 = vmatmul.f32.gmra.mxu0 %v1825
    %v1903 = vpop.f32.mrf.mxu0
    %v1904 = vadd.f32 0.0, %v1903
    %1905 = vmatmul.f32.gmra.mxu0 %v1826
    %v1906 = vpop.f32.mrf.mxu0
    %v1907 = vadd.f32 0.0, %v1906
    %1908 = vdwg.mxu0
    %v1909 = vadd.f32 %v1795, %v1862
    %v1910 = vadd.f32 %v1796, %v1865
    %v1911 = vadd.f32 %v1797, %v1868
    %v1912 = vadd.f32 %v1798, %v1871
    %v1913 = vadd.f32 %v1799, %v1874
    %v1914 = vadd.f32 %v1800, %v1877
    %v1915 = vadd.f32 %v1801, %v1880
    %v1916 = vadd.f32 %v1802, %v1883
    %v1917 = vadd.f32 %v1803, %v1886
    %v1918 = vadd.f32 %v1804, %v1889
    %v1919 = vadd.f32 %v1805, %v1892
    %v1920 = vadd.f32 %v1806, %v1895
    %v1921 = vadd.f32 %v1807, %v1898
    %v1922 = vadd.f32 %v1808, %v1901
    %v1923 = vadd.f32 %v1809, %v1904
    %v1924 = vadd.f32 %v1810, %v1907
    %v1925 = vld [vmem:[#allocation4 + $0x4] sm:$0xff]
    %v1926 = vld [vmem:[#allocation4 + $0x14] sm:$0xff]
    %v1927 = vld [vmem:[#allocation4 + $0x24] sm:$0xff]
    %v1928 = vld [vmem:[#allocation4 + $0x34] sm:$0xff]
    %v1929 = vld [vmem:[#allocation4 + $0x44] sm:$0xff]
    %v1930 = vld [vmem:[#allocation4 + $0x54] sm:$0xff]
    %v1931 = vld [vmem:[#allocation4 + $0x64] sm:$0xff]
    %v1932 = vld [vmem:[#allocation4 + $0x74] sm:$0xff]
    %v1933 = vld [vmem:[#allocation4 + $0xc4] sm:$0xff]
    %v1934 = vld [vmem:[#allocation4 + $0xd4] sm:$0xff]
    %v1935 = vld [vmem:[#allocation4 + $0xe4] sm:$0xff]
    %v1936 = vld [vmem:[#allocation4 + $0xf4] sm:$0xff]
    %v1937 = vld [vmem:[#allocation4 + $0x104] sm:$0xff]
    %v1938 = vld [vmem:[#allocation4 + $0x114] sm:$0xff]
    %v1939 = vld [vmem:[#allocation4 + $0x124] sm:$0xff]
    %v1940 = vld [vmem:[#allocation4 + $0x134] sm:$0xff]
    %s1941 = scalar_lea.vmem %s2, 512
    %v1942 = vld [vmem:[%s1941] sm:$0xff]
    %v1943 = vld [vmem:[%s1941 + $0x8] sm:$0xff]
    %v1944 = vld [vmem:[%s1941 + $0x10] sm:$0xff]
    %v1945 = vld [vmem:[%s1941 + $0x18] sm:$0xff]
    %v1946 = vld [vmem:[%s1941 + $0x20] sm:$0xff]
    %v1947 = vld [vmem:[%s1941 + $0x28] sm:$0xff]
    %v1948 = vld [vmem:[%s1941 + $0x30] sm:$0xff]
    %v1949 = vld [vmem:[%s1941 + $0x38] sm:$0xff]
    %v1950 = vld [vmem:[%s1941 + $0x40] sm:$0xff]
    %v1951 = vld [vmem:[%s1941 + $0x48] sm:$0xff]
    %v1952 = vld [vmem:[%s1941 + $0x50] sm:$0xff]
    %v1953 = vld [vmem:[%s1941 + $0x58] sm:$0xff]
    %v1954 = vld [vmem:[%s1941 + $0x60] sm:$0xff]
    %v1955 = vld [vmem:[%s1941 + $0x68] sm:$0xff]
    %v1956 = vld [vmem:[%s1941 + $0x70] sm:$0xff]
    %v1957 = vld [vmem:[%s1941 + $0x78] sm:$0xff]
    %1958 = vmatpush.msra.mxu0 %v1957
    %1959 = vmatpush.msra.mxu0 %v1956
    %1960 = vmatpush.msra.mxu0 %v1955
    %1961 = vmatpush.msra.mxu0 %v1954
    %1962 = vmatpush.msra.mxu0 %v1953
    %1963 = vmatpush.msra.mxu0 %v1952
    %1964 = vmatpush.msra.mxu0 %v1951
    %1965 = vmatpush.msra.mxu0 %v1950
    %1966 = vmatpush.msra.mxu0 %v1949
    %1967 = vmatpush.msra.mxu0 %v1948
    %1968 = vmatpush.msra.mxu0 %v1947
    %1969 = vmatpush.msra.mxu0 %v1946
    %1970 = vmatpush.msra.mxu0 %v1945
    %1971 = vmatpush.msra.mxu0 %v1944
    %1972 = vmatpush.msra.mxu0 %v1943
    %1973 = vmatpush.msra.mxu0 %v1942
    %1974 = vmatmul.f32.gmra.mxu0 %v1925
    %v1975 = vpop.f32.mrf.mxu0
    %v1976 = vadd.f32 0.0, %v1975
    %1977 = vmatmul.f32.gmra.mxu0 %v1926
    %v1978 = vpop.f32.mrf.mxu0
    %v1979 = vadd.f32 0.0, %v1978
    %1980 = vmatmul.f32.gmra.mxu0 %v1927
    %v1981 = vpop.f32.mrf.mxu0
    %v1982 = vadd.f32 0.0, %v1981
    %1983 = vmatmul.f32.gmra.mxu0 %v1928
    %v1984 = vpop.f32.mrf.mxu0
    %v1985 = vadd.f32 0.0, %v1984
    %1986 = vmatmul.f32.gmra.mxu0 %v1929
    %v1987 = vpop.f32.mrf.mxu0
    %v1988 = vadd.f32 0.0, %v1987
    %1989 = vmatmul.f32.gmra.mxu0 %v1930
    %v1990 = vpop.f32.mrf.mxu0
    %v1991 = vadd.f32 0.0, %v1990
    %1992 = vmatmul.f32.gmra.mxu0 %v1931
    %v1993 = vpop.f32.mrf.mxu0
    %v1994 = vadd.f32 0.0, %v1993
    %1995 = vmatmul.f32.gmra.mxu0 %v1932
    %v1996 = vpop.f32.mrf.mxu0
    %v1997 = vadd.f32 0.0, %v1996
    %1998 = vmatmul.f32.gmra.mxu0 %v1933
    %v1999 = vpop.f32.mrf.mxu0
    %v2000 = vadd.f32 0.0, %v1999
    %2001 = vmatmul.f32.gmra.mxu0 %v1934
    %v2002 = vpop.f32.mrf.mxu0
    %v2003 = vadd.f32 0.0, %v2002
    %2004 = vmatmul.f32.gmra.mxu0 %v1935
    %v2005 = vpop.f32.mrf.mxu0
    %v2006 = vadd.f32 0.0, %v2005
    %2007 = vmatmul.f32.gmra.mxu0 %v1936
    %v2008 = vpop.f32.mrf.mxu0
    %v2009 = vadd.f32 0.0, %v2008
    %2010 = vmatmul.f32.gmra.mxu0 %v1937
    %v2011 = vpop.f32.mrf.mxu0
    %v2012 = vadd.f32 0.0, %v2011
    %2013 = vmatmul.f32.gmra.mxu0 %v1938
    %v2014 = vpop.f32.mrf.mxu0
    %v2015 = vadd.f32 0.0, %v2014
    %2016 = vmatmul.f32.gmra.mxu0 %v1939
    %v2017 = vpop.f32.mrf.mxu0
    %v2018 = vadd.f32 0.0, %v2017
    %2019 = vmatmul.f32.gmra.mxu0 %v1940
    %v2020 = vpop.f32.mrf.mxu0
    %v2021 = vadd.f32 0.0, %v2020
    %2022 = vdwg.mxu0
    %v2023 = vadd.f32 %v1909, %v1976
    %v2024 = vadd.f32 %v1910, %v1979
    %v2025 = vadd.f32 %v1911, %v1982
    %v2026 = vadd.f32 %v1912, %v1985
    %v2027 = vadd.f32 %v1913, %v1988
    %v2028 = vadd.f32 %v1914, %v1991
    %v2029 = vadd.f32 %v1915, %v1994
    %v2030 = vadd.f32 %v1916, %v1997
    %v2031 = vadd.f32 %v1917, %v2000
    %v2032 = vadd.f32 %v1918, %v2003
    %v2033 = vadd.f32 %v1919, %v2006
    %v2034 = vadd.f32 %v1920, %v2009
    %v2035 = vadd.f32 %v1921, %v2012
    %v2036 = vadd.f32 %v1922, %v2015
    %v2037 = vadd.f32 %v1923, %v2018
    %v2038 = vadd.f32 %v1924, %v2021
    %s2039 = scalar_lea.vmem [#allocation4], 16
    %v2040 = vld [vmem:[%s2039] sm:$0xff]
    %v2041 = vld [vmem:[%s2039 + $0x10] sm:$0xff]
    %v2042 = vld [vmem:[%s2039 + $0x20] sm:$0xff]
    %v2043 = vld [vmem:[%s2039 + $0x30] sm:$0xff]
    %v2044 = vld [vmem:[%s2039 + $0x40] sm:$0xff]
    %v2045 = vld [vmem:[%s2039 + $0x50] sm:$0xff]
    %v2046 = vld [vmem:[%s2039 + $0x60] sm:$0xff]
    %v2047 = vld [vmem:[%s2039 + $0x70] sm:$0xff]
    %v2048 = vld [vmem:[%s2039 + $0xc0] sm:$0xff]
    %v2049 = vld [vmem:[%s2039 + $0xd0] sm:$0xff]
    %v2050 = vld [vmem:[%s2039 + $0xe0] sm:$0xff]
    %v2051 = vld [vmem:[%s2039 + $0xf0] sm:$0xff]
    %v2052 = vld [vmem:[%s2039 + $0x100] sm:$0xff]
    %v2053 = vld [vmem:[%s2039 + $0x110] sm:$0xff]
    %v2054 = vld [vmem:[%s2039 + $0x120] sm:$0xff]
    %v2055 = vld [vmem:[%s2039 + $0x130] sm:$0xff]
    %s2056 = scalar_lea.vmem %s2, 640
    %v2057 = vld [vmem:[%s2056] sm:$0xff]
    %v2058 = vld [vmem:[%s2056 + $0x8] sm:$0xff]
    %v2059 = vld [vmem:[%s2056 + $0x10] sm:$0xff]
    %v2060 = vld [vmem:[%s2056 + $0x18] sm:$0xff]
    %v2061 = vld [vmem:[%s2056 + $0x20] sm:$0xff]
    %v2062 = vld [vmem:[%s2056 + $0x28] sm:$0xff]
    %v2063 = vld [vmem:[%s2056 + $0x30] sm:$0xff]
    %v2064 = vld [vmem:[%s2056 + $0x38] sm:$0xff]
    %v2065 = vld [vmem:[%s2056 + $0x40] sm:$0xff]
    %v2066 = vld [vmem:[%s2056 + $0x48] sm:$0xff]
    %v2067 = vld [vmem:[%s2056 + $0x50] sm:$0xff]
    %v2068 = vld [vmem:[%s2056 + $0x58] sm:$0xff]
    %v2069 = vld [vmem:[%s2056 + $0x60] sm:$0xff]
    %v2070 = vld [vmem:[%s2056 + $0x68] sm:$0xff]
    %v2071 = vld [vmem:[%s2056 + $0x70] sm:$0xff]
    %v2072 = vld [vmem:[%s2056 + $0x78] sm:$0xff]
    %2073 = vmatpush.msra.mxu0 %v2072
    %2074 = vmatpush.msra.mxu0 %v2071
    %2075 = vmatpush.msra.mxu0 %v2070
    %2076 = vmatpush.msra.mxu0 %v2069
    %2077 = vmatpush.msra.mxu0 %v2068
    %2078 = vmatpush.msra.mxu0 %v2067
    %2079 = vmatpush.msra.mxu0 %v2066
    %2080 = vmatpush.msra.mxu0 %v2065
    %2081 = vmatpush.msra.mxu0 %v2064
    %2082 = vmatpush.msra.mxu0 %v2063
    %2083 = vmatpush.msra.mxu0 %v2062
    %2084 = vmatpush.msra.mxu0 %v2061
    %2085 = vmatpush.msra.mxu0 %v2060
    %2086 = vmatpush.msra.mxu0 %v2059
    %2087 = vmatpush.msra.mxu0 %v2058
    %2088 = vmatpush.msra.mxu0 %v2057
    %2089 = vmatmul.f32.gmra.mxu0 %v2040
    %v2090 = vpop.f32.mrf.mxu0
    %v2091 = vadd.f32 0.0, %v2090
    %2092 = vmatmul.f32.gmra.mxu0 %v2041
    %v2093 = vpop.f32.mrf.mxu0
    %v2094 = vadd.f32 0.0, %v2093
    %2095 = vmatmul.f32.gmra.mxu0 %v2042
    %v2096 = vpop.f32.mrf.mxu0
    %v2097 = vadd.f32 0.0, %v2096
    %2098 = vmatmul.f32.gmra.mxu0 %v2043
    %v2099 = vpop.f32.mrf.mxu0
    %v2100 = vadd.f32 0.0, %v2099
    %2101 = vmatmul.f32.gmra.mxu0 %v2044
    %v2102 = vpop.f32.mrf.mxu0
    %v2103 = vadd.f32 0.0, %v2102
    %2104 = vmatmul.f32.gmra.mxu0 %v2045
    %v2105 = vpop.f32.mrf.mxu0
    %v2106 = vadd.f32 0.0, %v2105
    %2107 = vmatmul.f32.gmra.mxu0 %v2046
    %v2108 = vpop.f32.mrf.mxu0
    %v2109 = vadd.f32 0.0, %v2108
    %2110 = vmatmul.f32.gmra.mxu0 %v2047
    %v2111 = vpop.f32.mrf.mxu0
    %v2112 = vadd.f32 0.0, %v2111
    %2113 = vmatmul.f32.gmra.mxu0 %v2048
    %v2114 = vpop.f32.mrf.mxu0
    %v2115 = vadd.f32 0.0, %v2114
    %2116 = vmatmul.f32.gmra.mxu0 %v2049
    %v2117 = vpop.f32.mrf.mxu0
    %v2118 = vadd.f32 0.0, %v2117
    %2119 = vmatmul.f32.gmra.mxu0 %v2050
    %v2120 = vpop.f32.mrf.mxu0
    %v2121 = vadd.f32 0.0, %v2120
    %2122 = vmatmul.f32.gmra.mxu0 %v2051
    %v2123 = vpop.f32.mrf.mxu0
    %v2124 = vadd.f32 0.0, %v2123
    %2125 = vmatmul.f32.gmra.mxu0 %v2052
    %v2126 = vpop.f32.mrf.mxu0
    %v2127 = vadd.f32 0.0, %v2126
    %2128 = vmatmul.f32.gmra.mxu0 %v2053
    %v2129 = vpop.f32.mrf.mxu0
    %v2130 = vadd.f32 0.0, %v2129
    %2131 = vmatmul.f32.gmra.mxu0 %v2054
    %v2132 = vpop.f32.mrf.mxu0
    %v2133 = vadd.f32 0.0, %v2132
    %2134 = vmatmul.f32.gmra.mxu0 %v2055
    %v2135 = vpop.f32.mrf.mxu0
    %v2136 = vadd.f32 0.0, %v2135
    %2137 = vdwg.mxu0
    %v2138 = vadd.f32 %v2023, %v2091
    %v2139 = vadd.f32 %v2024, %v2094
    %v2140 = vadd.f32 %v2025, %v2097
    %v2141 = vadd.f32 %v2026, %v2100
    %v2142 = vadd.f32 %v2027, %v2103
    %v2143 = vadd.f32 %v2028, %v2106
    %v2144 = vadd.f32 %v2029, %v2109
    %v2145 = vadd.f32 %v2030, %v2112
    %v2146 = vadd.f32 %v2031, %v2115
    %v2147 = vadd.f32 %v2032, %v2118
    %v2148 = vadd.f32 %v2033, %v2121
    %v2149 = vadd.f32 %v2034, %v2124
    %v2150 = vadd.f32 %v2035, %v2127
    %v2151 = vadd.f32 %v2036, %v2130
    %v2152 = vadd.f32 %v2037, %v2133
    %v2153 = vadd.f32 %v2038, %v2136
    %v2154 = vld [vmem:[%s2039 + $0x1] sm:$0xff]
    %v2155 = vld [vmem:[%s2039 + $0x11] sm:$0xff]
    %v2156 = vld [vmem:[%s2039 + $0x21] sm:$0xff]
    %v2157 = vld [vmem:[%s2039 + $0x31] sm:$0xff]
    %v2158 = vld [vmem:[%s2039 + $0x41] sm:$0xff]
    %v2159 = vld [vmem:[%s2039 + $0x51] sm:$0xff]
    %v2160 = vld [vmem:[%s2039 + $0x61] sm:$0xff]
    %v2161 = vld [vmem:[%s2039 + $0x71] sm:$0xff]
    %v2162 = vld [vmem:[%s2039 + $0xc1] sm:$0xff]
    %v2163 = vld [vmem:[%s2039 + $0xd1] sm:$0xff]
    %v2164 = vld [vmem:[%s2039 + $0xe1] sm:$0xff]
    %v2165 = vld [vmem:[%s2039 + $0xf1] sm:$0xff]
    %v2166 = vld [vmem:[%s2039 + $0x101] sm:$0xff]
    %v2167 = vld [vmem:[%s2039 + $0x111] sm:$0xff]
    %v2168 = vld [vmem:[%s2039 + $0x121] sm:$0xff]
    %v2169 = vld [vmem:[%s2039 + $0x131] sm:$0xff]
    %s2170 = scalar_lea.vmem %s2, 768
    %v2171 = vld [vmem:[%s2170] sm:$0xff]
    %v2172 = vld [vmem:[%s2170 + $0x8] sm:$0xff]
    %v2173 = vld [vmem:[%s2170 + $0x10] sm:$0xff]
    %v2174 = vld [vmem:[%s2170 + $0x18] sm:$0xff]
    %v2175 = vld [vmem:[%s2170 + $0x20] sm:$0xff]
    %v2176 = vld [vmem:[%s2170 + $0x28] sm:$0xff]
    %v2177 = vld [vmem:[%s2170 + $0x30] sm:$0xff]
    %v2178 = vld [vmem:[%s2170 + $0x38] sm:$0xff]
    %v2179 = vld [vmem:[%s2170 + $0x40] sm:$0xff]
    %v2180 = vld [vmem:[%s2170 + $0x48] sm:$0xff]
    %v2181 = vld [vmem:[%s2170 + $0x50] sm:$0xff]
    %v2182 = vld [vmem:[%s2170 + $0x58] sm:$0xff]
    %v2183 = vld [vmem:[%s2170 + $0x60] sm:$0xff]
    %v2184 = vld [vmem:[%s2170 + $0x68] sm:$0xff]
    %v2185 = vld [vmem:[%s2170 + $0x70] sm:$0xff]
    %v2186 = vld [vmem:[%s2170 + $0x78] sm:$0xff]
    %2187 = vmatpush.msra.mxu0 %v2186
    %2188 = vmatpush.msra.mxu0 %v2185
    %2189 = vmatpush.msra.mxu0 %v2184
    %2190 = vmatpush.msra.mxu0 %v2183
    %2191 = vmatpush.msra.mxu0 %v2182
    %2192 = vmatpush.msra.mxu0 %v2181
    %2193 = vmatpush.msra.mxu0 %v2180
    %2194 = vmatpush.msra.mxu0 %v2179
    %2195 = vmatpush.msra.mxu0 %v2178
    %2196 = vmatpush.msra.mxu0 %v2177
    %2197 = vmatpush.msra.mxu0 %v2176
    %2198 = vmatpush.msra.mxu0 %v2175
    %2199 = vmatpush.msra.mxu0 %v2174
    %2200 = vmatpush.msra.mxu0 %v2173
    %2201 = vmatpush.msra.mxu0 %v2172
    %2202 = vmatpush.msra.mxu0 %v2171
    %2203 = vmatmul.f32.gmra.mxu0 %v2154
    %v2204 = vpop.f32.mrf.mxu0
    %v2205 = vadd.f32 0.0, %v2204
    %2206 = vmatmul.f32.gmra.mxu0 %v2155
    %v2207 = vpop.f32.mrf.mxu0
    %v2208 = vadd.f32 0.0, %v2207
    %2209 = vmatmul.f32.gmra.mxu0 %v2156
    %v2210 = vpop.f32.mrf.mxu0
    %v2211 = vadd.f32 0.0, %v2210
    %2212 = vmatmul.f32.gmra.mxu0 %v2157
    %v2213 = vpop.f32.mrf.mxu0
    %v2214 = vadd.f32 0.0, %v2213
    %2215 = vmatmul.f32.gmra.mxu0 %v2158
    %v2216 = vpop.f32.mrf.mxu0
    %v2217 = vadd.f32 0.0, %v2216
    %2218 = vmatmul.f32.gmra.mxu0 %v2159
    %v2219 = vpop.f32.mrf.mxu0
    %v2220 = vadd.f32 0.0, %v2219
    %2221 = vmatmul.f32.gmra.mxu0 %v2160
    %v2222 = vpop.f32.mrf.mxu0
    %v2223 = vadd.f32 0.0, %v2222
    %2224 = vmatmul.f32.gmra.mxu0 %v2161
    %v2225 = vpop.f32.mrf.mxu0
    %v2226 = vadd.f32 0.0, %v2225
    %2227 = vmatmul.f32.gmra.mxu0 %v2162
    %v2228 = vpop.f32.mrf.mxu0
    %v2229 = vadd.f32 0.0, %v2228
    %2230 = vmatmul.f32.gmra.mxu0 %v2163
    %v2231 = vpop.f32.mrf.mxu0
    %v2232 = vadd.f32 0.0, %v2231
    %2233 = vmatmul.f32.gmra.mxu0 %v2164
    %v2234 = vpop.f32.mrf.mxu0
    %v2235 = vadd.f32 0.0, %v2234
    %2236 = vmatmul.f32.gmra.mxu0 %v2165
    %v2237 = vpop.f32.mrf.mxu0
    %v2238 = vadd.f32 0.0, %v2237
    %2239 = vmatmul.f32.gmra.mxu0 %v2166
    %v2240 = vpop.f32.mrf.mxu0
    %v2241 = vadd.f32 0.0, %v2240
    %2242 = vmatmul.f32.gmra.mxu0 %v2167
    %v2243 = vpop.f32.mrf.mxu0
    %v2244 = vadd.f32 0.0, %v2243
    %2245 = vmatmul.f32.gmra.mxu0 %v2168
    %v2246 = vpop.f32.mrf.mxu0
    %v2247 = vadd.f32 0.0, %v2246
    %2248 = vmatmul.f32.gmra.mxu0 %v2169
    %v2249 = vpop.f32.mrf.mxu0
    %v2250 = vadd.f32 0.0, %v2249
    %2251 = vdwg.mxu0
    %v2252 = vadd.f32 %v2138, %v2205
    %v2253 = vadd.f32 %v2139, %v2208
    %v2254 = vadd.f32 %v2140, %v2211
    %v2255 = vadd.f32 %v2141, %v2214
    %v2256 = vadd.f32 %v2142, %v2217
    %v2257 = vadd.f32 %v2143, %v2220
    %v2258 = vadd.f32 %v2144, %v2223
    %v2259 = vadd.f32 %v2145, %v2226
    %v2260 = vadd.f32 %v2146, %v2229
    %v2261 = vadd.f32 %v2147, %v2232
    %v2262 = vadd.f32 %v2148, %v2235
    %v2263 = vadd.f32 %v2149, %v2238
    %v2264 = vadd.f32 %v2150, %v2241
    %v2265 = vadd.f32 %v2151, %v2244
    %v2266 = vadd.f32 %v2152, %v2247
    %v2267 = vadd.f32 %v2153, %v2250
    %v2268 = vld [vmem:[%s2039 + $0x2] sm:$0xff]
    %v2269 = vld [vmem:[%s2039 + $0x12] sm:$0xff]
    %v2270 = vld [vmem:[%s2039 + $0x22] sm:$0xff]
    %v2271 = vld [vmem:[%s2039 + $0x32] sm:$0xff]
    %v2272 = vld [vmem:[%s2039 + $0x42] sm:$0xff]
    %v2273 = vld [vmem:[%s2039 + $0x52] sm:$0xff]
    %v2274 = vld [vmem:[%s2039 + $0x62] sm:$0xff]
    %v2275 = vld [vmem:[%s2039 + $0x72] sm:$0xff]
    %v2276 = vld [vmem:[%s2039 + $0xc2] sm:$0xff]
    %v2277 = vld [vmem:[%s2039 + $0xd2] sm:$0xff]
    %v2278 = vld [vmem:[%s2039 + $0xe2] sm:$0xff]
    %v2279 = vld [vmem:[%s2039 + $0xf2] sm:$0xff]
    %v2280 = vld [vmem:[%s2039 + $0x102] sm:$0xff]
    %v2281 = vld [vmem:[%s2039 + $0x112] sm:$0xff]
    %v2282 = vld [vmem:[%s2039 + $0x122] sm:$0xff]
    %v2283 = vld [vmem:[%s2039 + $0x132] sm:$0xff]
    %s2284 = scalar_lea.vmem %s2, 896
    %v2285 = vld [vmem:[%s2284] sm:$0xff]
    %v2286 = vld [vmem:[%s2284 + $0x8] sm:$0xff]
    %v2287 = vld [vmem:[%s2284 + $0x10] sm:$0xff]
    %v2288 = vld [vmem:[%s2284 + $0x18] sm:$0xff]
    %v2289 = vld [vmem:[%s2284 + $0x20] sm:$0xff]
    %v2290 = vld [vmem:[%s2284 + $0x28] sm:$0xff]
    %v2291 = vld [vmem:[%s2284 + $0x30] sm:$0xff]
    %v2292 = vld [vmem:[%s2284 + $0x38] sm:$0xff]
    %v2293 = vld [vmem:[%s2284 + $0x40] sm:$0xff]
    %v2294 = vld [vmem:[%s2284 + $0x48] sm:$0xff]
    %v2295 = vld [vmem:[%s2284 + $0x50] sm:$0xff]
    %v2296 = vld [vmem:[%s2284 + $0x58] sm:$0xff]
    %v2297 = vld [vmem:[%s2284 + $0x60] sm:$0xff]
    %v2298 = vld [vmem:[%s2284 + $0x68] sm:$0xff]
    %v2299 = vld [vmem:[%s2284 + $0x70] sm:$0xff]
    %v2300 = vld [vmem:[%s2284 + $0x78] sm:$0xff]
    %2301 = vmatpush.msra.mxu0 %v2300
    %2302 = vmatpush.msra.mxu0 %v2299
    %2303 = vmatpush.msra.mxu0 %v2298
    %2304 = vmatpush.msra.mxu0 %v2297
    %2305 = vmatpush.msra.mxu0 %v2296
    %2306 = vmatpush.msra.mxu0 %v2295
    %2307 = vmatpush.msra.mxu0 %v2294
    %2308 = vmatpush.msra.mxu0 %v2293
    %2309 = vmatpush.msra.mxu0 %v2292
    %2310 = vmatpush.msra.mxu0 %v2291
    %2311 = vmatpush.msra.mxu0 %v2290
    %2312 = vmatpush.msra.mxu0 %v2289
    %2313 = vmatpush.msra.mxu0 %v2288
    %2314 = vmatpush.msra.mxu0 %v2287
    %2315 = vmatpush.msra.mxu0 %v2286
    %2316 = vmatpush.msra.mxu0 %v2285
    %2317 = vmatmul.f32.gmra.mxu0 %v2268
    %v2318 = vpop.f32.mrf.mxu0
    %v2319 = vadd.f32 0.0, %v2318
    %2320 = vmatmul.f32.gmra.mxu0 %v2269
    %v2321 = vpop.f32.mrf.mxu0
    %v2322 = vadd.f32 0.0, %v2321
    %2323 = vmatmul.f32.gmra.mxu0 %v2270
    %v2324 = vpop.f32.mrf.mxu0
    %v2325 = vadd.f32 0.0, %v2324
    %2326 = vmatmul.f32.gmra.mxu0 %v2271
    %v2327 = vpop.f32.mrf.mxu0
    %v2328 = vadd.f32 0.0, %v2327
    %2329 = vmatmul.f32.gmra.mxu0 %v2272
    %v2330 = vpop.f32.mrf.mxu0
    %v2331 = vadd.f32 0.0, %v2330
    %2332 = vmatmul.f32.gmra.mxu0 %v2273
    %v2333 = vpop.f32.mrf.mxu0
    %v2334 = vadd.f32 0.0, %v2333
    %2335 = vmatmul.f32.gmra.mxu0 %v2274
    %v2336 = vpop.f32.mrf.mxu0
    %v2337 = vadd.f32 0.0, %v2336
    %2338 = vmatmul.f32.gmra.mxu0 %v2275
    %v2339 = vpop.f32.mrf.mxu0
    %v2340 = vadd.f32 0.0, %v2339
    %2341 = vmatmul.f32.gmra.mxu0 %v2276
    %v2342 = vpop.f32.mrf.mxu0
    %v2343 = vadd.f32 0.0, %v2342
    %2344 = vmatmul.f32.gmra.mxu0 %v2277
    %v2345 = vpop.f32.mrf.mxu0
    %v2346 = vadd.f32 0.0, %v2345
    %2347 = vmatmul.f32.gmra.mxu0 %v2278
    %v2348 = vpop.f32.mrf.mxu0
    %v2349 = vadd.f32 0.0, %v2348
    %2350 = vmatmul.f32.gmra.mxu0 %v2279
    %v2351 = vpop.f32.mrf.mxu0
    %v2352 = vadd.f32 0.0, %v2351
    %2353 = vmatmul.f32.gmra.mxu0 %v2280
    %v2354 = vpop.f32.mrf.mxu0
    %v2355 = vadd.f32 0.0, %v2354
    %2356 = vmatmul.f32.gmra.mxu0 %v2281
    %v2357 = vpop.f32.mrf.mxu0
    %v2358 = vadd.f32 0.0, %v2357
    %2359 = vmatmul.f32.gmra.mxu0 %v2282
    %v2360 = vpop.f32.mrf.mxu0
    %v2361 = vadd.f32 0.0, %v2360
    %2362 = vmatmul.f32.gmra.mxu0 %v2283
    %v2363 = vpop.f32.mrf.mxu0
    %v2364 = vadd.f32 0.0, %v2363
    %2365 = vdwg.mxu0
    %v2366 = vadd.f32 %v2252, %v2319
    %v2367 = vadd.f32 %v2253, %v2322
    %v2368 = vadd.f32 %v2254, %v2325
    %v2369 = vadd.f32 %v2255, %v2328
    %v2370 = vadd.f32 %v2256, %v2331
    %v2371 = vadd.f32 %v2257, %v2334
    %v2372 = vadd.f32 %v2258, %v2337
    %v2373 = vadd.f32 %v2259, %v2340
    %v2374 = vadd.f32 %v2260, %v2343
    %v2375 = vadd.f32 %v2261, %v2346
    %v2376 = vadd.f32 %v2262, %v2349
    %v2377 = vadd.f32 %v2263, %v2352
    %v2378 = vadd.f32 %v2264, %v2355
    %v2379 = vadd.f32 %v2265, %v2358
    %v2380 = vadd.f32 %v2266, %v2361
    %v2381 = vadd.f32 %v2267, %v2364
    %v2382 = vld [vmem:[%s2039 + $0x3] sm:$0xff]
    %v2383 = vld [vmem:[%s2039 + $0x13] sm:$0xff]
    %v2384 = vld [vmem:[%s2039 + $0x23] sm:$0xff]
    %v2385 = vld [vmem:[%s2039 + $0x33] sm:$0xff]
    %v2386 = vld [vmem:[%s2039 + $0x43] sm:$0xff]
    %v2387 = vld [vmem:[%s2039 + $0x53] sm:$0xff]
    %v2388 = vld [vmem:[%s2039 + $0x63] sm:$0xff]
    %v2389 = vld [vmem:[%s2039 + $0x73] sm:$0xff]
    %v2390 = vld [vmem:[%s2039 + $0xc3] sm:$0xff]
    %v2391 = vld [vmem:[%s2039 + $0xd3] sm:$0xff]
    %v2392 = vld [vmem:[%s2039 + $0xe3] sm:$0xff]
    %v2393 = vld [vmem:[%s2039 + $0xf3] sm:$0xff]
    %v2394 = vld [vmem:[%s2039 + $0x103] sm:$0xff]
    %v2395 = vld [vmem:[%s2039 + $0x113] sm:$0xff]
    %v2396 = vld [vmem:[%s2039 + $0x123] sm:$0xff]
    %v2397 = vld [vmem:[%s2039 + $0x133] sm:$0xff]
    %s2398 = scalar_lea.vmem %s2, 1024
    %v2399 = vld [vmem:[%s2398] sm:$0xff]
    %v2400 = vld [vmem:[%s2398 + $0x8] sm:$0xff]
    %v2401 = vld [vmem:[%s2398 + $0x10] sm:$0xff]
    %v2402 = vld [vmem:[%s2398 + $0x18] sm:$0xff]
    %v2403 = vld [vmem:[%s2398 + $0x20] sm:$0xff]
    %v2404 = vld [vmem:[%s2398 + $0x28] sm:$0xff]
    %v2405 = vld [vmem:[%s2398 + $0x30] sm:$0xff]
    %v2406 = vld [vmem:[%s2398 + $0x38] sm:$0xff]
    %v2407 = vld [vmem:[%s2398 + $0x40] sm:$0xff]
    %v2408 = vld [vmem:[%s2398 + $0x48] sm:$0xff]
    %v2409 = vld [vmem:[%s2398 + $0x50] sm:$0xff]
    %v2410 = vld [vmem:[%s2398 + $0x58] sm:$0xff]
    %v2411 = vld [vmem:[%s2398 + $0x60] sm:$0xff]
    %v2412 = vld [vmem:[%s2398 + $0x68] sm:$0xff]
    %v2413 = vld [vmem:[%s2398 + $0x70] sm:$0xff]
    %v2414 = vld [vmem:[%s2398 + $0x78] sm:$0xff]
    %2415 = vmatpush.msra.mxu0 %v2414
    %2416 = vmatpush.msra.mxu0 %v2413
    %2417 = vmatpush.msra.mxu0 %v2412
    %2418 = vmatpush.msra.mxu0 %v2411
    %2419 = vmatpush.msra.mxu0 %v2410
    %2420 = vmatpush.msra.mxu0 %v2409
    %2421 = vmatpush.msra.mxu0 %v2408
    %2422 = vmatpush.msra.mxu0 %v2407
    %2423 = vmatpush.msra.mxu0 %v2406
    %2424 = vmatpush.msra.mxu0 %v2405
    %2425 = vmatpush.msra.mxu0 %v2404
    %2426 = vmatpush.msra.mxu0 %v2403
    %2427 = vmatpush.msra.mxu0 %v2402
    %2428 = vmatpush.msra.mxu0 %v2401
    %2429 = vmatpush.msra.mxu0 %v2400
    %2430 = vmatpush.msra.mxu0 %v2399
    %2431 = vmatmul.f32.gmra.mxu0 %v2382
    %v2432 = vpop.f32.mrf.mxu0
    %v2433 = vadd.f32 0.0, %v2432
    %2434 = vmatmul.f32.gmra.mxu0 %v2383
    %v2435 = vpop.f32.mrf.mxu0
    %v2436 = vadd.f32 0.0, %v2435
    %2437 = vmatmul.f32.gmra.mxu0 %v2384
    %v2438 = vpop.f32.mrf.mxu0
    %v2439 = vadd.f32 0.0, %v2438
    %2440 = vmatmul.f32.gmra.mxu0 %v2385
    %v2441 = vpop.f32.mrf.mxu0
    %v2442 = vadd.f32 0.0, %v2441
    %2443 = vmatmul.f32.gmra.mxu0 %v2386
    %v2444 = vpop.f32.mrf.mxu0
    %v2445 = vadd.f32 0.0, %v2444
    %2446 = vmatmul.f32.gmra.mxu0 %v2387
    %v2447 = vpop.f32.mrf.mxu0
    %v2448 = vadd.f32 0.0, %v2447
    %2449 = vmatmul.f32.gmra.mxu0 %v2388
    %v2450 = vpop.f32.mrf.mxu0
    %v2451 = vadd.f32 0.0, %v2450
    %2452 = vmatmul.f32.gmra.mxu0 %v2389
    %v2453 = vpop.f32.mrf.mxu0
    %v2454 = vadd.f32 0.0, %v2453
    %2455 = vmatmul.f32.gmra.mxu0 %v2390
    %v2456 = vpop.f32.mrf.mxu0
    %v2457 = vadd.f32 0.0, %v2456
    %2458 = vmatmul.f32.gmra.mxu0 %v2391
    %v2459 = vpop.f32.mrf.mxu0
    %v2460 = vadd.f32 0.0, %v2459
    %2461 = vmatmul.f32.gmra.mxu0 %v2392
    %v2462 = vpop.f32.mrf.mxu0
    %v2463 = vadd.f32 0.0, %v2462
    %2464 = vmatmul.f32.gmra.mxu0 %v2393
    %v2465 = vpop.f32.mrf.mxu0
    %v2466 = vadd.f32 0.0, %v2465
    %2467 = vmatmul.f32.gmra.mxu0 %v2394
    %v2468 = vpop.f32.mrf.mxu0
    %v2469 = vadd.f32 0.0, %v2468
    %2470 = vmatmul.f32.gmra.mxu0 %v2395
    %v2471 = vpop.f32.mrf.mxu0
    %v2472 = vadd.f32 0.0, %v2471
    %2473 = vmatmul.f32.gmra.mxu0 %v2396
    %v2474 = vpop.f32.mrf.mxu0
    %v2475 = vadd.f32 0.0, %v2474
    %2476 = vmatmul.f32.gmra.mxu0 %v2397
    %v2477 = vpop.f32.mrf.mxu0
    %v2478 = vadd.f32 0.0, %v2477
    %2479 = vdwg.mxu0
    %v2480 = vadd.f32 %v2366, %v2433
    %v2481 = vadd.f32 %v2367, %v2436
    %v2482 = vadd.f32 %v2368, %v2439
    %v2483 = vadd.f32 %v2369, %v2442
    %v2484 = vadd.f32 %v2370, %v2445
    %v2485 = vadd.f32 %v2371, %v2448
    %v2486 = vadd.f32 %v2372, %v2451
    %v2487 = vadd.f32 %v2373, %v2454
    %v2488 = vadd.f32 %v2374, %v2457
    %v2489 = vadd.f32 %v2375, %v2460
    %v2490 = vadd.f32 %v2376, %v2463
    %v2491 = vadd.f32 %v2377, %v2466
    %v2492 = vadd.f32 %v2378, %v2469
    %v2493 = vadd.f32 %v2379, %v2472
    %v2494 = vadd.f32 %v2380, %v2475
    %v2495 = vadd.f32 %v2381, %v2478
    %v2496 = vld [vmem:[%s2039 + $0x4] sm:$0xff]
    %v2497 = vld [vmem:[%s2039 + $0x14] sm:$0xff]
    %v2498 = vld [vmem:[%s2039 + $0x24] sm:$0xff]
    %v2499 = vld [vmem:[%s2039 + $0x34] sm:$0xff]
    %v2500 = vld [vmem:[%s2039 + $0x44] sm:$0xff]
    %v2501 = vld [vmem:[%s2039 + $0x54] sm:$0xff]
    %v2502 = vld [vmem:[%s2039 + $0x64] sm:$0xff]
    %v2503 = vld [vmem:[%s2039 + $0x74] sm:$0xff]
    %v2504 = vld [vmem:[%s2039 + $0xc4] sm:$0xff]
    %v2505 = vld [vmem:[%s2039 + $0xd4] sm:$0xff]
    %v2506 = vld [vmem:[%s2039 + $0xe4] sm:$0xff]
    %v2507 = vld [vmem:[%s2039 + $0xf4] sm:$0xff]
    %v2508 = vld [vmem:[%s2039 + $0x104] sm:$0xff]
    %v2509 = vld [vmem:[%s2039 + $0x114] sm:$0xff]
    %v2510 = vld [vmem:[%s2039 + $0x124] sm:$0xff]
    %v2511 = vld [vmem:[%s2039 + $0x134] sm:$0xff]
    %s2512 = scalar_lea.vmem %s2, 1152
    %v2513 = vld [vmem:[%s2512] sm:$0xff]
    %v2514 = vld [vmem:[%s2512 + $0x8] sm:$0xff]
    %v2515 = vld [vmem:[%s2512 + $0x10] sm:$0xff]
    %v2516 = vld [vmem:[%s2512 + $0x18] sm:$0xff]
    %v2517 = vld [vmem:[%s2512 + $0x20] sm:$0xff]
    %v2518 = vld [vmem:[%s2512 + $0x28] sm:$0xff]
    %v2519 = vld [vmem:[%s2512 + $0x30] sm:$0xff]
    %v2520 = vld [vmem:[%s2512 + $0x38] sm:$0xff]
    %v2521 = vld [vmem:[%s2512 + $0x40] sm:$0xff]
    %v2522 = vld [vmem:[%s2512 + $0x48] sm:$0xff]
    %v2523 = vld [vmem:[%s2512 + $0x50] sm:$0xff]
    %v2524 = vld [vmem:[%s2512 + $0x58] sm:$0xff]
    %v2525 = vld [vmem:[%s2512 + $0x60] sm:$0xff]
    %v2526 = vld [vmem:[%s2512 + $0x68] sm:$0xff]
    %v2527 = vld [vmem:[%s2512 + $0x70] sm:$0xff]
    %v2528 = vld [vmem:[%s2512 + $0x78] sm:$0xff]
    %2529 = vmatpush.msra.mxu0 %v2528
    %2530 = vmatpush.msra.mxu0 %v2527
    %2531 = vmatpush.msra.mxu0 %v2526
    %2532 = vmatpush.msra.mxu0 %v2525
    %2533 = vmatpush.msra.mxu0 %v2524
    %2534 = vmatpush.msra.mxu0 %v2523
    %2535 = vmatpush.msra.mxu0 %v2522
    %2536 = vmatpush.msra.mxu0 %v2521
    %2537 = vmatpush.msra.mxu0 %v2520
    %2538 = vmatpush.msra.mxu0 %v2519
    %2539 = vmatpush.msra.mxu0 %v2518
    %2540 = vmatpush.msra.mxu0 %v2517
    %2541 = vmatpush.msra.mxu0 %v2516
    %2542 = vmatpush.msra.mxu0 %v2515
    %2543 = vmatpush.msra.mxu0 %v2514
    %2544 = vmatpush.msra.mxu0 %v2513
    %2545 = vmatmul.f32.gmra.mxu0 %v2496
    %v2546 = vpop.f32.mrf.mxu0
    %v2547 = vadd.f32 0.0, %v2546
    %2548 = vmatmul.f32.gmra.mxu0 %v2497
    %v2549 = vpop.f32.mrf.mxu0
    %v2550 = vadd.f32 0.0, %v2549
    %2551 = vmatmul.f32.gmra.mxu0 %v2498
    %v2552 = vpop.f32.mrf.mxu0
    %v2553 = vadd.f32 0.0, %v2552
    %2554 = vmatmul.f32.gmra.mxu0 %v2499
    %v2555 = vpop.f32.mrf.mxu0
    %v2556 = vadd.f32 0.0, %v2555
    %2557 = vmatmul.f32.gmra.mxu0 %v2500
    %v2558 = vpop.f32.mrf.mxu0
    %v2559 = vadd.f32 0.0, %v2558
    %2560 = vmatmul.f32.gmra.mxu0 %v2501
    %v2561 = vpop.f32.mrf.mxu0
    %v2562 = vadd.f32 0.0, %v2561
    %2563 = vmatmul.f32.gmra.mxu0 %v2502
    %v2564 = vpop.f32.mrf.mxu0
    %v2565 = vadd.f32 0.0, %v2564
    %2566 = vmatmul.f32.gmra.mxu0 %v2503
    %v2567 = vpop.f32.mrf.mxu0
    %v2568 = vadd.f32 0.0, %v2567
    %2569 = vmatmul.f32.gmra.mxu0 %v2504
    %v2570 = vpop.f32.mrf.mxu0
    %v2571 = vadd.f32 0.0, %v2570
    %2572 = vmatmul.f32.gmra.mxu0 %v2505
    %v2573 = vpop.f32.mrf.mxu0
    %v2574 = vadd.f32 0.0, %v2573
    %2575 = vmatmul.f32.gmra.mxu0 %v2506
    %v2576 = vpop.f32.mrf.mxu0
    %v2577 = vadd.f32 0.0, %v2576
    %2578 = vmatmul.f32.gmra.mxu0 %v2507
    %v2579 = vpop.f32.mrf.mxu0
    %v2580 = vadd.f32 0.0, %v2579
    %2581 = vmatmul.f32.gmra.mxu0 %v2508
    %v2582 = vpop.f32.mrf.mxu0
    %v2583 = vadd.f32 0.0, %v2582
    %2584 = vmatmul.f32.gmra.mxu0 %v2509
    %v2585 = vpop.f32.mrf.mxu0
    %v2586 = vadd.f32 0.0, %v2585
    %2587 = vmatmul.f32.gmra.mxu0 %v2510
    %v2588 = vpop.f32.mrf.mxu0
    %v2589 = vadd.f32 0.0, %v2588
    %2590 = vmatmul.f32.gmra.mxu0 %v2511
    %v2591 = vpop.f32.mrf.mxu0
    %v2592 = vadd.f32 0.0, %v2591
    %2593 = vdwg.mxu0
    %v2594 = vadd.f32 %v2480, %v2547
    %v2595 = vadd.f32 %v2481, %v2550
    %v2596 = vadd.f32 %v2482, %v2553
    %v2597 = vadd.f32 %v2483, %v2556
    %v2598 = vadd.f32 %v2484, %v2559
    %v2599 = vadd.f32 %v2485, %v2562
    %v2600 = vadd.f32 %v2486, %v2565
    %v2601 = vadd.f32 %v2487, %v2568
    %v2602 = vadd.f32 %v2488, %v2571
    %v2603 = vadd.f32 %v2489, %v2574
    %v2604 = vadd.f32 %v2490, %v2577
    %v2605 = vadd.f32 %v2491, %v2580
    %v2606 = vadd.f32 %v2492, %v2583
    %v2607 = vadd.f32 %v2493, %v2586
    %v2608 = vadd.f32 %v2494, %v2589
    %v2609 = vadd.f32 %v2495, %v2592
    %s2610 = scalar_lea.vmem [#allocation4], 32
    %v2611 = vld [vmem:[%s2610] sm:$0xff]
    %v2612 = vld [vmem:[%s2610 + $0x10] sm:$0xff]
    %v2613 = vld [vmem:[%s2610 + $0x20] sm:$0xff]
    %v2614 = vld [vmem:[%s2610 + $0x30] sm:$0xff]
    %v2615 = vld [vmem:[%s2610 + $0x40] sm:$0xff]
    %v2616 = vld [vmem:[%s2610 + $0x50] sm:$0xff]
    %v2617 = vld [vmem:[%s2610 + $0x60] sm:$0xff]
    %v2618 = vld [vmem:[%s2610 + $0x70] sm:$0xff]
    %v2619 = vld [vmem:[%s2610 + $0xc0] sm:$0xff]
    %v2620 = vld [vmem:[%s2610 + $0xd0] sm:$0xff]
    %v2621 = vld [vmem:[%s2610 + $0xe0] sm:$0xff]
    %v2622 = vld [vmem:[%s2610 + $0xf0] sm:$0xff]
    %v2623 = vld [vmem:[%s2610 + $0x100] sm:$0xff]
    %v2624 = vld [vmem:[%s2610 + $0x110] sm:$0xff]
    %v2625 = vld [vmem:[%s2610 + $0x120] sm:$0xff]
    %v2626 = vld [vmem:[%s2610 + $0x130] sm:$0xff]
    %s2627 = scalar_lea.vmem %s2, 1280
    %v2628 = vld [vmem:[%s2627] sm:$0xff]
    %v2629 = vld [vmem:[%s2627 + $0x8] sm:$0xff]
    %v2630 = vld [vmem:[%s2627 + $0x10] sm:$0xff]
    %v2631 = vld [vmem:[%s2627 + $0x18] sm:$0xff]
    %v2632 = vld [vmem:[%s2627 + $0x20] sm:$0xff]
    %v2633 = vld [vmem:[%s2627 + $0x28] sm:$0xff]
    %v2634 = vld [vmem:[%s2627 + $0x30] sm:$0xff]
    %v2635 = vld [vmem:[%s2627 + $0x38] sm:$0xff]
    %v2636 = vld [vmem:[%s2627 + $0x40] sm:$0xff]
    %v2637 = vld [vmem:[%s2627 + $0x48] sm:$0xff]
    %v2638 = vld [vmem:[%s2627 + $0x50] sm:$0xff]
    %v2639 = vld [vmem:[%s2627 + $0x58] sm:$0xff]
    %v2640 = vld [vmem:[%s2627 + $0x60] sm:$0xff]
    %v2641 = vld [vmem:[%s2627 + $0x68] sm:$0xff]
    %v2642 = vld [vmem:[%s2627 + $0x70] sm:$0xff]
    %v2643 = vld [vmem:[%s2627 + $0x78] sm:$0xff]
    %2644 = vmatpush.msra.mxu0 %v2643
    %2645 = vmatpush.msra.mxu0 %v2642
    %2646 = vmatpush.msra.mxu0 %v2641
    %2647 = vmatpush.msra.mxu0 %v2640
    %2648 = vmatpush.msra.mxu0 %v2639
    %2649 = vmatpush.msra.mxu0 %v2638
    %2650 = vmatpush.msra.mxu0 %v2637
    %2651 = vmatpush.msra.mxu0 %v2636
    %2652 = vmatpush.msra.mxu0 %v2635
    %2653 = vmatpush.msra.mxu0 %v2634
    %2654 = vmatpush.msra.mxu0 %v2633
    %2655 = vmatpush.msra.mxu0 %v2632
    %2656 = vmatpush.msra.mxu0 %v2631
    %2657 = vmatpush.msra.mxu0 %v2630
    %2658 = vmatpush.msra.mxu0 %v2629
    %2659 = vmatpush.msra.mxu0 %v2628
    %2660 = vmatmul.f32.gmra.mxu0 %v2611
    %v2661 = vpop.f32.mrf.mxu0
    %v2662 = vadd.f32 0.0, %v2661
    %2663 = vmatmul.f32.gmra.mxu0 %v2612
    %v2664 = vpop.f32.mrf.mxu0
    %v2665 = vadd.f32 0.0, %v2664
    %2666 = vmatmul.f32.gmra.mxu0 %v2613
    %v2667 = vpop.f32.mrf.mxu0
    %v2668 = vadd.f32 0.0, %v2667
    %2669 = vmatmul.f32.gmra.mxu0 %v2614
    %v2670 = vpop.f32.mrf.mxu0
    %v2671 = vadd.f32 0.0, %v2670
    %2672 = vmatmul.f32.gmra.mxu0 %v2615
    %v2673 = vpop.f32.mrf.mxu0
    %v2674 = vadd.f32 0.0, %v2673
    %2675 = vmatmul.f32.gmra.mxu0 %v2616
    %v2676 = vpop.f32.mrf.mxu0
    %v2677 = vadd.f32 0.0, %v2676
    %2678 = vmatmul.f32.gmra.mxu0 %v2617
    %v2679 = vpop.f32.mrf.mxu0
    %v2680 = vadd.f32 0.0, %v2679
    %2681 = vmatmul.f32.gmra.mxu0 %v2618
    %v2682 = vpop.f32.mrf.mxu0
    %v2683 = vadd.f32 0.0, %v2682
    %2684 = vmatmul.f32.gmra.mxu0 %v2619
    %v2685 = vpop.f32.mrf.mxu0
    %v2686 = vadd.f32 0.0, %v2685
    %2687 = vmatmul.f32.gmra.mxu0 %v2620
    %v2688 = vpop.f32.mrf.mxu0
    %v2689 = vadd.f32 0.0, %v2688
    %2690 = vmatmul.f32.gmra.mxu0 %v2621
    %v2691 = vpop.f32.mrf.mxu0
    %v2692 = vadd.f32 0.0, %v2691
    %2693 = vmatmul.f32.gmra.mxu0 %v2622
    %v2694 = vpop.f32.mrf.mxu0
    %v2695 = vadd.f32 0.0, %v2694
    %2696 = vmatmul.f32.gmra.mxu0 %v2623
    %v2697 = vpop.f32.mrf.mxu0
    %v2698 = vadd.f32 0.0, %v2697
    %2699 = vmatmul.f32.gmra.mxu0 %v2624
    %v2700 = vpop.f32.mrf.mxu0
    %v2701 = vadd.f32 0.0, %v2700
    %2702 = vmatmul.f32.gmra.mxu0 %v2625
    %v2703 = vpop.f32.mrf.mxu0
    %v2704 = vadd.f32 0.0, %v2703
    %2705 = vmatmul.f32.gmra.mxu0 %v2626
    %v2706 = vpop.f32.mrf.mxu0
    %v2707 = vadd.f32 0.0, %v2706
    %2708 = vdwg.mxu0
    %v2709 = vadd.f32 %v2594, %v2662
    %v2710 = vadd.f32 %v2595, %v2665
    %v2711 = vadd.f32 %v2596, %v2668
    %v2712 = vadd.f32 %v2597, %v2671
    %v2713 = vadd.f32 %v2598, %v2674
    %v2714 = vadd.f32 %v2599, %v2677
    %v2715 = vadd.f32 %v2600, %v2680
    %v2716 = vadd.f32 %v2601, %v2683
    %v2717 = vadd.f32 %v2602, %v2686
    %v2718 = vadd.f32 %v2603, %v2689
    %v2719 = vadd.f32 %v2604, %v2692
    %v2720 = vadd.f32 %v2605, %v2695
    %v2721 = vadd.f32 %v2606, %v2698
    %v2722 = vadd.f32 %v2607, %v2701
    %v2723 = vadd.f32 %v2608, %v2704
    %v2724 = vadd.f32 %v2609, %v2707
    %v2725 = vld [vmem:[%s2610 + $0x1] sm:$0xff]
    %v2726 = vld [vmem:[%s2610 + $0x11] sm:$0xff]
    %v2727 = vld [vmem:[%s2610 + $0x21] sm:$0xff]
    %v2728 = vld [vmem:[%s2610 + $0x31] sm:$0xff]
    %v2729 = vld [vmem:[%s2610 + $0x41] sm:$0xff]
    %v2730 = vld [vmem:[%s2610 + $0x51] sm:$0xff]
    %v2731 = vld [vmem:[%s2610 + $0x61] sm:$0xff]
    %v2732 = vld [vmem:[%s2610 + $0x71] sm:$0xff]
    %v2733 = vld [vmem:[%s2610 + $0xc1] sm:$0xff]
    %v2734 = vld [vmem:[%s2610 + $0xd1] sm:$0xff]
    %v2735 = vld [vmem:[%s2610 + $0xe1] sm:$0xff]
    %v2736 = vld [vmem:[%s2610 + $0xf1] sm:$0xff]
    %v2737 = vld [vmem:[%s2610 + $0x101] sm:$0xff]
    %v2738 = vld [vmem:[%s2610 + $0x111] sm:$0xff]
    %v2739 = vld [vmem:[%s2610 + $0x121] sm:$0xff]
    %v2740 = vld [vmem:[%s2610 + $0x131] sm:$0xff]
    %s2741 = scalar_lea.vmem %s2, 1408
    %v2742 = vld [vmem:[%s2741] sm:$0xff]
    %v2743 = vld [vmem:[%s2741 + $0x8] sm:$0xff]
    %v2744 = vld [vmem:[%s2741 + $0x10] sm:$0xff]
    %v2745 = vld [vmem:[%s2741 + $0x18] sm:$0xff]
    %v2746 = vld [vmem:[%s2741 + $0x20] sm:$0xff]
    %v2747 = vld [vmem:[%s2741 + $0x28] sm:$0xff]
    %v2748 = vld [vmem:[%s2741 + $0x30] sm:$0xff]
    %v2749 = vld [vmem:[%s2741 + $0x38] sm:$0xff]
    %v2750 = vld [vmem:[%s2741 + $0x40] sm:$0xff]
    %v2751 = vld [vmem:[%s2741 + $0x48] sm:$0xff]
    %v2752 = vld [vmem:[%s2741 + $0x50] sm:$0xff]
    %v2753 = vld [vmem:[%s2741 + $0x58] sm:$0xff]
    %v2754 = vld [vmem:[%s2741 + $0x60] sm:$0xff]
    %v2755 = vld [vmem:[%s2741 + $0x68] sm:$0xff]
    %v2756 = vld [vmem:[%s2741 + $0x70] sm:$0xff]
    %v2757 = vld [vmem:[%s2741 + $0x78] sm:$0xff]
    %2758 = vmatpush.msra.mxu0 %v2757
    %2759 = vmatpush.msra.mxu0 %v2756
    %2760 = vmatpush.msra.mxu0 %v2755
    %2761 = vmatpush.msra.mxu0 %v2754
    %2762 = vmatpush.msra.mxu0 %v2753
    %2763 = vmatpush.msra.mxu0 %v2752
    %2764 = vmatpush.msra.mxu0 %v2751
    %2765 = vmatpush.msra.mxu0 %v2750
    %2766 = vmatpush.msra.mxu0 %v2749
    %2767 = vmatpush.msra.mxu0 %v2748
    %2768 = vmatpush.msra.mxu0 %v2747
    %2769 = vmatpush.msra.mxu0 %v2746
    %2770 = vmatpush.msra.mxu0 %v2745
    %2771 = vmatpush.msra.mxu0 %v2744
    %2772 = vmatpush.msra.mxu0 %v2743
    %2773 = vmatpush.msra.mxu0 %v2742
    %2774 = vmatmul.f32.gmra.mxu0 %v2725
    %v2775 = vpop.f32.mrf.mxu0
    %v2776 = vadd.f32 0.0, %v2775
    %2777 = vmatmul.f32.gmra.mxu0 %v2726
    %v2778 = vpop.f32.mrf.mxu0
    %v2779 = vadd.f32 0.0, %v2778
    %2780 = vmatmul.f32.gmra.mxu0 %v2727
    %v2781 = vpop.f32.mrf.mxu0
    %v2782 = vadd.f32 0.0, %v2781
    %2783 = vmatmul.f32.gmra.mxu0 %v2728
    %v2784 = vpop.f32.mrf.mxu0
    %v2785 = vadd.f32 0.0, %v2784
    %2786 = vmatmul.f32.gmra.mxu0 %v2729
    %v2787 = vpop.f32.mrf.mxu0
    %v2788 = vadd.f32 0.0, %v2787
    %2789 = vmatmul.f32.gmra.mxu0 %v2730
    %v2790 = vpop.f32.mrf.mxu0
    %v2791 = vadd.f32 0.0, %v2790
    %2792 = vmatmul.f32.gmra.mxu0 %v2731
    %v2793 = vpop.f32.mrf.mxu0
    %v2794 = vadd.f32 0.0, %v2793
    %2795 = vmatmul.f32.gmra.mxu0 %v2732
    %v2796 = vpop.f32.mrf.mxu0
    %v2797 = vadd.f32 0.0, %v2796
    %2798 = vmatmul.f32.gmra.mxu0 %v2733
    %v2799 = vpop.f32.mrf.mxu0
    %v2800 = vadd.f32 0.0, %v2799
    %2801 = vmatmul.f32.gmra.mxu0 %v2734
    %v2802 = vpop.f32.mrf.mxu0
    %v2803 = vadd.f32 0.0, %v2802
    %2804 = vmatmul.f32.gmra.mxu0 %v2735
    %v2805 = vpop.f32.mrf.mxu0
    %v2806 = vadd.f32 0.0, %v2805
    %2807 = vmatmul.f32.gmra.mxu0 %v2736
    %v2808 = vpop.f32.mrf.mxu0
    %v2809 = vadd.f32 0.0, %v2808
    %2810 = vmatmul.f32.gmra.mxu0 %v2737
    %v2811 = vpop.f32.mrf.mxu0
    %v2812 = vadd.f32 0.0, %v2811
    %2813 = vmatmul.f32.gmra.mxu0 %v2738
    %v2814 = vpop.f32.mrf.mxu0
    %v2815 = vadd.f32 0.0, %v2814
    %2816 = vmatmul.f32.gmra.mxu0 %v2739
    %v2817 = vpop.f32.mrf.mxu0
    %v2818 = vadd.f32 0.0, %v2817
    %2819 = vmatmul.f32.gmra.mxu0 %v2740
    %v2820 = vpop.f32.mrf.mxu0
    %v2821 = vadd.f32 0.0, %v2820
    %2822 = vdwg.mxu0
    %v2823 = vadd.f32 %v2709, %v2776
    %v2824 = vadd.f32 %v2710, %v2779
    %v2825 = vadd.f32 %v2711, %v2782
    %v2826 = vadd.f32 %v2712, %v2785
    %v2827 = vadd.f32 %v2713, %v2788
    %v2828 = vadd.f32 %v2714, %v2791
    %v2829 = vadd.f32 %v2715, %v2794
    %v2830 = vadd.f32 %v2716, %v2797
    %v2831 = vadd.f32 %v2717, %v2800
    %v2832 = vadd.f32 %v2718, %v2803
    %v2833 = vadd.f32 %v2719, %v2806
    %v2834 = vadd.f32 %v2720, %v2809
    %v2835 = vadd.f32 %v2721, %v2812
    %v2836 = vadd.f32 %v2722, %v2815
    %v2837 = vadd.f32 %v2723, %v2818
    %v2838 = vadd.f32 %v2724, %v2821
    %v2839 = vld [vmem:[%s2610 + $0x2] sm:$0xff]
    %v2840 = vld [vmem:[%s2610 + $0x12] sm:$0xff]
    %v2841 = vld [vmem:[%s2610 + $0x22] sm:$0xff]
    %v2842 = vld [vmem:[%s2610 + $0x32] sm:$0xff]
    %v2843 = vld [vmem:[%s2610 + $0x42] sm:$0xff]
    %v2844 = vld [vmem:[%s2610 + $0x52] sm:$0xff]
    %v2845 = vld [vmem:[%s2610 + $0x62] sm:$0xff]
    %v2846 = vld [vmem:[%s2610 + $0x72] sm:$0xff]
    %v2847 = vld [vmem:[%s2610 + $0xc2] sm:$0xff]
    %v2848 = vld [vmem:[%s2610 + $0xd2] sm:$0xff]
    %v2849 = vld [vmem:[%s2610 + $0xe2] sm:$0xff]
    %v2850 = vld [vmem:[%s2610 + $0xf2] sm:$0xff]
    %v2851 = vld [vmem:[%s2610 + $0x102] sm:$0xff]
    %v2852 = vld [vmem:[%s2610 + $0x112] sm:$0xff]
    %v2853 = vld [vmem:[%s2610 + $0x122] sm:$0xff]
    %v2854 = vld [vmem:[%s2610 + $0x132] sm:$0xff]
    %s2855 = scalar_lea.vmem %s2, 1536
    %v2856 = vld [vmem:[%s2855] sm:$0xff]
    %v2857 = vld [vmem:[%s2855 + $0x8] sm:$0xff]
    %v2858 = vld [vmem:[%s2855 + $0x10] sm:$0xff]
    %v2859 = vld [vmem:[%s2855 + $0x18] sm:$0xff]
    %v2860 = vld [vmem:[%s2855 + $0x20] sm:$0xff]
    %v2861 = vld [vmem:[%s2855 + $0x28] sm:$0xff]
    %v2862 = vld [vmem:[%s2855 + $0x30] sm:$0xff]
    %v2863 = vld [vmem:[%s2855 + $0x38] sm:$0xff]
    %v2864 = vld [vmem:[%s2855 + $0x40] sm:$0xff]
    %v2865 = vld [vmem:[%s2855 + $0x48] sm:$0xff]
    %v2866 = vld [vmem:[%s2855 + $0x50] sm:$0xff]
    %v2867 = vld [vmem:[%s2855 + $0x58] sm:$0xff]
    %v2868 = vld [vmem:[%s2855 + $0x60] sm:$0xff]
    %v2869 = vld [vmem:[%s2855 + $0x68] sm:$0xff]
    %v2870 = vld [vmem:[%s2855 + $0x70] sm:$0xff]
    %v2871 = vld [vmem:[%s2855 + $0x78] sm:$0xff]
    %2872 = vmatpush.msra.mxu0 %v2871
    %2873 = vmatpush.msra.mxu0 %v2870
    %2874 = vmatpush.msra.mxu0 %v2869
    %2875 = vmatpush.msra.mxu0 %v2868
    %2876 = vmatpush.msra.mxu0 %v2867
    %2877 = vmatpush.msra.mxu0 %v2866
    %2878 = vmatpush.msra.mxu0 %v2865
    %2879 = vmatpush.msra.mxu0 %v2864
    %2880 = vmatpush.msra.mxu0 %v2863
    %2881 = vmatpush.msra.mxu0 %v2862
    %2882 = vmatpush.msra.mxu0 %v2861
    %2883 = vmatpush.msra.mxu0 %v2860
    %2884 = vmatpush.msra.mxu0 %v2859
    %2885 = vmatpush.msra.mxu0 %v2858
    %2886 = vmatpush.msra.mxu0 %v2857
    %2887 = vmatpush.msra.mxu0 %v2856
    %2888 = vmatmul.f32.gmra.mxu0 %v2839
    %v2889 = vpop.f32.mrf.mxu0
    %v2890 = vadd.f32 0.0, %v2889
    %2891 = vmatmul.f32.gmra.mxu0 %v2840
    %v2892 = vpop.f32.mrf.mxu0
    %v2893 = vadd.f32 0.0, %v2892
    %2894 = vmatmul.f32.gmra.mxu0 %v2841
    %v2895 = vpop.f32.mrf.mxu0
    %v2896 = vadd.f32 0.0, %v2895
    %2897 = vmatmul.f32.gmra.mxu0 %v2842
    %v2898 = vpop.f32.mrf.mxu0
    %v2899 = vadd.f32 0.0, %v2898
    %2900 = vmatmul.f32.gmra.mxu0 %v2843
    %v2901 = vpop.f32.mrf.mxu0
    %v2902 = vadd.f32 0.0, %v2901
    %2903 = vmatmul.f32.gmra.mxu0 %v2844
    %v2904 = vpop.f32.mrf.mxu0
    %v2905 = vadd.f32 0.0, %v2904
    %2906 = vmatmul.f32.gmra.mxu0 %v2845
    %v2907 = vpop.f32.mrf.mxu0
    %v2908 = vadd.f32 0.0, %v2907
    %2909 = vmatmul.f32.gmra.mxu0 %v2846
    %v2910 = vpop.f32.mrf.mxu0
    %v2911 = vadd.f32 0.0, %v2910
    %2912 = vmatmul.f32.gmra.mxu0 %v2847
    %v2913 = vpop.f32.mrf.mxu0
    %v2914 = vadd.f32 0.0, %v2913
    %2915 = vmatmul.f32.gmra.mxu0 %v2848
    %v2916 = vpop.f32.mrf.mxu0
    %v2917 = vadd.f32 0.0, %v2916
    %2918 = vmatmul.f32.gmra.mxu0 %v2849
    %v2919 = vpop.f32.mrf.mxu0
    %v2920 = vadd.f32 0.0, %v2919
    %2921 = vmatmul.f32.gmra.mxu0 %v2850
    %v2922 = vpop.f32.mrf.mxu0
    %v2923 = vadd.f32 0.0, %v2922
    %2924 = vmatmul.f32.gmra.mxu0 %v2851
    %v2925 = vpop.f32.mrf.mxu0
    %v2926 = vadd.f32 0.0, %v2925
    %2927 = vmatmul.f32.gmra.mxu0 %v2852
    %v2928 = vpop.f32.mrf.mxu0
    %v2929 = vadd.f32 0.0, %v2928
    %2930 = vmatmul.f32.gmra.mxu0 %v2853
    %v2931 = vpop.f32.mrf.mxu0
    %v2932 = vadd.f32 0.0, %v2931
    %2933 = vmatmul.f32.gmra.mxu0 %v2854
    %v2934 = vpop.f32.mrf.mxu0
    %v2935 = vadd.f32 0.0, %v2934
    %2936 = vdwg.mxu0
    %v2937 = vadd.f32 %v2823, %v2890
    %v2938 = vadd.f32 %v2824, %v2893
    %v2939 = vadd.f32 %v2825, %v2896
    %v2940 = vadd.f32 %v2826, %v2899
    %v2941 = vadd.f32 %v2827, %v2902
    %v2942 = vadd.f32 %v2828, %v2905
    %v2943 = vadd.f32 %v2829, %v2908
    %v2944 = vadd.f32 %v2830, %v2911
    %v2945 = vadd.f32 %v2831, %v2914
    %v2946 = vadd.f32 %v2832, %v2917
    %v2947 = vadd.f32 %v2833, %v2920
    %v2948 = vadd.f32 %v2834, %v2923
    %v2949 = vadd.f32 %v2835, %v2926
    %v2950 = vadd.f32 %v2836, %v2929
    %v2951 = vadd.f32 %v2837, %v2932
    %v2952 = vadd.f32 %v2838, %v2935
    %v2953 = vld [vmem:[%s2610 + $0x3] sm:$0xff]
    %v2954 = vld [vmem:[%s2610 + $0x13] sm:$0xff]
    %v2955 = vld [vmem:[%s2610 + $0x23] sm:$0xff]
    %v2956 = vld [vmem:[%s2610 + $0x33] sm:$0xff]
    %v2957 = vld [vmem:[%s2610 + $0x43] sm:$0xff]
    %v2958 = vld [vmem:[%s2610 + $0x53] sm:$0xff]
    %v2959 = vld [vmem:[%s2610 + $0x63] sm:$0xff]
    %v2960 = vld [vmem:[%s2610 + $0x73] sm:$0xff]
    %v2961 = vld [vmem:[%s2610 + $0xc3] sm:$0xff]
    %v2962 = vld [vmem:[%s2610 + $0xd3] sm:$0xff]
    %v2963 = vld [vmem:[%s2610 + $0xe3] sm:$0xff]
    %v2964 = vld [vmem:[%s2610 + $0xf3] sm:$0xff]
    %v2965 = vld [vmem:[%s2610 + $0x103] sm:$0xff]
    %v2966 = vld [vmem:[%s2610 + $0x113] sm:$0xff]
    %v2967 = vld [vmem:[%s2610 + $0x123] sm:$0xff]
    %v2968 = vld [vmem:[%s2610 + $0x133] sm:$0xff]
    %s2969 = scalar_lea.vmem %s2, 1664
    %v2970 = vld [vmem:[%s2969] sm:$0xff]
    %v2971 = vld [vmem:[%s2969 + $0x8] sm:$0xff]
    %v2972 = vld [vmem:[%s2969 + $0x10] sm:$0xff]
    %v2973 = vld [vmem:[%s2969 + $0x18] sm:$0xff]
    %v2974 = vld [vmem:[%s2969 + $0x20] sm:$0xff]
    %v2975 = vld [vmem:[%s2969 + $0x28] sm:$0xff]
    %v2976 = vld [vmem:[%s2969 + $0x30] sm:$0xff]
    %v2977 = vld [vmem:[%s2969 + $0x38] sm:$0xff]
    %v2978 = vld [vmem:[%s2969 + $0x40] sm:$0xff]
    %v2979 = vld [vmem:[%s2969 + $0x48] sm:$0xff]
    %v2980 = vld [vmem:[%s2969 + $0x50] sm:$0xff]
    %v2981 = vld [vmem:[%s2969 + $0x58] sm:$0xff]
    %v2982 = vld [vmem:[%s2969 + $0x60] sm:$0xff]
    %v2983 = vld [vmem:[%s2969 + $0x68] sm:$0xff]
    %v2984 = vld [vmem:[%s2969 + $0x70] sm:$0xff]
    %v2985 = vld [vmem:[%s2969 + $0x78] sm:$0xff]
    %2986 = vmatpush.msra.mxu0 %v2985
    %2987 = vmatpush.msra.mxu0 %v2984
    %2988 = vmatpush.msra.mxu0 %v2983
    %2989 = vmatpush.msra.mxu0 %v2982
    %2990 = vmatpush.msra.mxu0 %v2981
    %2991 = vmatpush.msra.mxu0 %v2980
    %2992 = vmatpush.msra.mxu0 %v2979
    %2993 = vmatpush.msra.mxu0 %v2978
    %2994 = vmatpush.msra.mxu0 %v2977
    %2995 = vmatpush.msra.mxu0 %v2976
    %2996 = vmatpush.msra.mxu0 %v2975
    %2997 = vmatpush.msra.mxu0 %v2974
    %2998 = vmatpush.msra.mxu0 %v2973
    %2999 = vmatpush.msra.mxu0 %v2972
    %3000 = vmatpush.msra.mxu0 %v2971
    %3001 = vmatpush.msra.mxu0 %v2970
    %3002 = vmatmul.f32.gmra.mxu0 %v2953
    %v3003 = vpop.f32.mrf.mxu0
    %v3004 = vadd.f32 0.0, %v3003
    %3005 = vmatmul.f32.gmra.mxu0 %v2954
    %v3006 = vpop.f32.mrf.mxu0
    %v3007 = vadd.f32 0.0, %v3006
    %3008 = vmatmul.f32.gmra.mxu0 %v2955
    %v3009 = vpop.f32.mrf.mxu0
    %v3010 = vadd.f32 0.0, %v3009
    %3011 = vmatmul.f32.gmra.mxu0 %v2956
    %v3012 = vpop.f32.mrf.mxu0
    %v3013 = vadd.f32 0.0, %v3012
    %3014 = vmatmul.f32.gmra.mxu0 %v2957
    %v3015 = vpop.f32.mrf.mxu0
    %v3016 = vadd.f32 0.0, %v3015
    %3017 = vmatmul.f32.gmra.mxu0 %v2958
    %v3018 = vpop.f32.mrf.mxu0
    %v3019 = vadd.f32 0.0, %v3018
    %3020 = vmatmul.f32.gmra.mxu0 %v2959
    %v3021 = vpop.f32.mrf.mxu0
    %v3022 = vadd.f32 0.0, %v3021
    %3023 = vmatmul.f32.gmra.mxu0 %v2960
    %v3024 = vpop.f32.mrf.mxu0
    %v3025 = vadd.f32 0.0, %v3024
    %3026 = vmatmul.f32.gmra.mxu0 %v2961
    %v3027 = vpop.f32.mrf.mxu0
    %v3028 = vadd.f32 0.0, %v3027
    %3029 = vmatmul.f32.gmra.mxu0 %v2962
    %v3030 = vpop.f32.mrf.mxu0
    %v3031 = vadd.f32 0.0, %v3030
    %3032 = vmatmul.f32.gmra.mxu0 %v2963
    %v3033 = vpop.f32.mrf.mxu0
    %v3034 = vadd.f32 0.0, %v3033
    %3035 = vmatmul.f32.gmra.mxu0 %v2964
    %v3036 = vpop.f32.mrf.mxu0
    %v3037 = vadd.f32 0.0, %v3036
    %3038 = vmatmul.f32.gmra.mxu0 %v2965
    %v3039 = vpop.f32.mrf.mxu0
    %v3040 = vadd.f32 0.0, %v3039
    %3041 = vmatmul.f32.gmra.mxu0 %v2966
    %v3042 = vpop.f32.mrf.mxu0
    %v3043 = vadd.f32 0.0, %v3042
    %3044 = vmatmul.f32.gmra.mxu0 %v2967
    %v3045 = vpop.f32.mrf.mxu0
    %v3046 = vadd.f32 0.0, %v3045
    %3047 = vmatmul.f32.gmra.mxu0 %v2968
    %v3048 = vpop.f32.mrf.mxu0
    %v3049 = vadd.f32 0.0, %v3048
    %3050 = vdwg.mxu0
    %v3051 = vadd.f32 %v2937, %v3004
    %v3052 = vadd.f32 %v2938, %v3007
    %v3053 = vadd.f32 %v2939, %v3010
    %v3054 = vadd.f32 %v2940, %v3013
    %v3055 = vadd.f32 %v2941, %v3016
    %v3056 = vadd.f32 %v2942, %v3019
    %v3057 = vadd.f32 %v2943, %v3022
    %v3058 = vadd.f32 %v2944, %v3025
    %v3059 = vadd.f32 %v2945, %v3028
    %v3060 = vadd.f32 %v2946, %v3031
    %v3061 = vadd.f32 %v2947, %v3034
    %v3062 = vadd.f32 %v2948, %v3037
    %v3063 = vadd.f32 %v2949, %v3040
    %v3064 = vadd.f32 %v2950, %v3043
    %v3065 = vadd.f32 %v2951, %v3046
    %v3066 = vadd.f32 %v2952, %v3049
    %v3067 = vld [vmem:[%s2610 + $0x4] sm:$0xff]
    %v3068 = vld [vmem:[%s2610 + $0x14] sm:$0xff]
    %v3069 = vld [vmem:[%s2610 + $0x24] sm:$0xff]
    %v3070 = vld [vmem:[%s2610 + $0x34] sm:$0xff]
    %v3071 = vld [vmem:[%s2610 + $0x44] sm:$0xff]
    %v3072 = vld [vmem:[%s2610 + $0x54] sm:$0xff]
    %v3073 = vld [vmem:[%s2610 + $0x64] sm:$0xff]
    %v3074 = vld [vmem:[%s2610 + $0x74] sm:$0xff]
    %v3075 = vld [vmem:[%s2610 + $0xc4] sm:$0xff]
    %v3076 = vld [vmem:[%s2610 + $0xd4] sm:$0xff]
    %v3077 = vld [vmem:[%s2610 + $0xe4] sm:$0xff]
    %v3078 = vld [vmem:[%s2610 + $0xf4] sm:$0xff]
    %v3079 = vld [vmem:[%s2610 + $0x104] sm:$0xff]
    %v3080 = vld [vmem:[%s2610 + $0x114] sm:$0xff]
    %v3081 = vld [vmem:[%s2610 + $0x124] sm:$0xff]
    %v3082 = vld [vmem:[%s2610 + $0x134] sm:$0xff]
    %s3083 = scalar_lea.vmem %s2, 1792
    %v3084 = vld [vmem:[%s3083] sm:$0xff]
    %v3085 = vld [vmem:[%s3083 + $0x8] sm:$0xff]
    %v3086 = vld [vmem:[%s3083 + $0x10] sm:$0xff]
    %v3087 = vld [vmem:[%s3083 + $0x18] sm:$0xff]
    %v3088 = vld [vmem:[%s3083 + $0x20] sm:$0xff]
    %v3089 = vld [vmem:[%s3083 + $0x28] sm:$0xff]
    %v3090 = vld [vmem:[%s3083 + $0x30] sm:$0xff]
    %v3091 = vld [vmem:[%s3083 + $0x38] sm:$0xff]
    %v3092 = vld [vmem:[%s3083 + $0x40] sm:$0xff]
    %v3093 = vld [vmem:[%s3083 + $0x48] sm:$0xff]
    %v3094 = vld [vmem:[%s3083 + $0x50] sm:$0xff]
    %v3095 = vld [vmem:[%s3083 + $0x58] sm:$0xff]
    %v3096 = vld [vmem:[%s3083 + $0x60] sm:$0xff]
    %v3097 = vld [vmem:[%s3083 + $0x68] sm:$0xff]
    %v3098 = vld [vmem:[%s3083 + $0x70] sm:$0xff]
    %v3099 = vld [vmem:[%s3083 + $0x78] sm:$0xff]
    %3100 = vmatpush.msra.mxu0 %v3099
    %3101 = vmatpush.msra.mxu0 %v3098
    %3102 = vmatpush.msra.mxu0 %v3097
    %3103 = vmatpush.msra.mxu0 %v3096
    %3104 = vmatpush.msra.mxu0 %v3095
    %3105 = vmatpush.msra.mxu0 %v3094
    %3106 = vmatpush.msra.mxu0 %v3093
    %3107 = vmatpush.msra.mxu0 %v3092
    %3108 = vmatpush.msra.mxu0 %v3091
    %3109 = vmatpush.msra.mxu0 %v3090
    %3110 = vmatpush.msra.mxu0 %v3089
    %3111 = vmatpush.msra.mxu0 %v3088
    %3112 = vmatpush.msra.mxu0 %v3087
    %3113 = vmatpush.msra.mxu0 %v3086
    %3114 = vmatpush.msra.mxu0 %v3085
    %3115 = vmatpush.msra.mxu0 %v3084
    %3116 = vmatmul.f32.gmra.mxu0 %v3067
    %v3117 = vpop.f32.mrf.mxu0
    %v3118 = vadd.f32 0.0, %v3117
    %3119 = vmatmul.f32.gmra.mxu0 %v3068
    %v3120 = vpop.f32.mrf.mxu0
    %v3121 = vadd.f32 0.0, %v3120
    %3122 = vmatmul.f32.gmra.mxu0 %v3069
    %v3123 = vpop.f32.mrf.mxu0
    %v3124 = vadd.f32 0.0, %v3123
    %3125 = vmatmul.f32.gmra.mxu0 %v3070
    %v3126 = vpop.f32.mrf.mxu0
    %v3127 = vadd.f32 0.0, %v3126
    %3128 = vmatmul.f32.gmra.mxu0 %v3071
    %v3129 = vpop.f32.mrf.mxu0
    %v3130 = vadd.f32 0.0, %v3129
    %3131 = vmatmul.f32.gmra.mxu0 %v3072
    %v3132 = vpop.f32.mrf.mxu0
    %v3133 = vadd.f32 0.0, %v3132
    %3134 = vmatmul.f32.gmra.mxu0 %v3073
    %v3135 = vpop.f32.mrf.mxu0
    %v3136 = vadd.f32 0.0, %v3135
    %3137 = vmatmul.f32.gmra.mxu0 %v3074
    %v3138 = vpop.f32.mrf.mxu0
    %v3139 = vadd.f32 0.0, %v3138
    %3140 = vmatmul.f32.gmra.mxu0 %v3075
    %v3141 = vpop.f32.mrf.mxu0
    %v3142 = vadd.f32 0.0, %v3141
    %3143 = vmatmul.f32.gmra.mxu0 %v3076
    %v3144 = vpop.f32.mrf.mxu0
    %v3145 = vadd.f32 0.0, %v3144
    %3146 = vmatmul.f32.gmra.mxu0 %v3077
    %v3147 = vpop.f32.mrf.mxu0
    %v3148 = vadd.f32 0.0, %v3147
    %3149 = vmatmul.f32.gmra.mxu0 %v3078
    %v3150 = vpop.f32.mrf.mxu0
    %v3151 = vadd.f32 0.0, %v3150
    %3152 = vmatmul.f32.gmra.mxu0 %v3079
    %v3153 = vpop.f32.mrf.mxu0
    %v3154 = vadd.f32 0.0, %v3153
    %3155 = vmatmul.f32.gmra.mxu0 %v3080
    %v3156 = vpop.f32.mrf.mxu0
    %v3157 = vadd.f32 0.0, %v3156
    %3158 = vmatmul.f32.gmra.mxu0 %v3081
    %v3159 = vpop.f32.mrf.mxu0
    %v3160 = vadd.f32 0.0, %v3159
    %3161 = vmatmul.f32.gmra.mxu0 %v3082
    %v3162 = vpop.f32.mrf.mxu0
    %v3163 = vadd.f32 0.0, %v3162
    %3164 = vdwg.mxu0
    %v3165 = vadd.f32 %v3051, %v3118
    %v3166 = vadd.f32 %v3052, %v3121
    %v3167 = vadd.f32 %v3053, %v3124
    %v3168 = vadd.f32 %v3054, %v3127
    %v3169 = vadd.f32 %v3055, %v3130
    %v3170 = vadd.f32 %v3056, %v3133
    %v3171 = vadd.f32 %v3057, %v3136
    %v3172 = vadd.f32 %v3058, %v3139
    %v3173 = vadd.f32 %v3059, %v3142
    %v3174 = vadd.f32 %v3060, %v3145
    %v3175 = vadd.f32 %v3061, %v3148
    %v3176 = vadd.f32 %v3062, %v3151
    %v3177 = vadd.f32 %v3063, %v3154
    %v3178 = vadd.f32 %v3064, %v3157
    %v3179 = vadd.f32 %v3065, %v3160
    %v3180 = vadd.f32 %v3066, %v3163
    %s3181 = scalar_lea.vmem [#allocation4], 48
    %v3182 = vld [vmem:[%s3181] sm:$0xff]
    %v3183 = vld [vmem:[%s3181 + $0x10] sm:$0xff]
    %v3184 = vld [vmem:[%s3181 + $0x20] sm:$0xff]
    %v3185 = vld [vmem:[%s3181 + $0x30] sm:$0xff]
    %v3186 = vld [vmem:[%s3181 + $0x40] sm:$0xff]
    %v3187 = vld [vmem:[%s3181 + $0x50] sm:$0xff]
    %v3188 = vld [vmem:[%s3181 + $0x60] sm:$0xff]
    %v3189 = vld [vmem:[%s3181 + $0x70] sm:$0xff]
    %v3190 = vld [vmem:[%s3181 + $0xc0] sm:$0xff]
    %v3191 = vld [vmem:[%s3181 + $0xd0] sm:$0xff]
    %v3192 = vld [vmem:[%s3181 + $0xe0] sm:$0xff]
    %v3193 = vld [vmem:[%s3181 + $0xf0] sm:$0xff]
    %v3194 = vld [vmem:[%s3181 + $0x100] sm:$0xff]
    %v3195 = vld [vmem:[%s3181 + $0x110] sm:$0xff]
    %v3196 = vld [vmem:[%s3181 + $0x120] sm:$0xff]
    %v3197 = vld [vmem:[%s3181 + $0x130] sm:$0xff]
    %s3198 = scalar_lea.vmem %s2, 1920
    %v3199 = vld [vmem:[%s3198] sm:$0xff]
    %v3200 = vld [vmem:[%s3198 + $0x8] sm:$0xff]
    %v3201 = vld [vmem:[%s3198 + $0x10] sm:$0xff]
    %v3202 = vld [vmem:[%s3198 + $0x18] sm:$0xff]
    %v3203 = vld [vmem:[%s3198 + $0x20] sm:$0xff]
    %v3204 = vld [vmem:[%s3198 + $0x28] sm:$0xff]
    %v3205 = vld [vmem:[%s3198 + $0x30] sm:$0xff]
    %v3206 = vld [vmem:[%s3198 + $0x38] sm:$0xff]
    %v3207 = vld [vmem:[%s3198 + $0x40] sm:$0xff]
    %v3208 = vld [vmem:[%s3198 + $0x48] sm:$0xff]
    %v3209 = vld [vmem:[%s3198 + $0x50] sm:$0xff]
    %v3210 = vld [vmem:[%s3198 + $0x58] sm:$0xff]
    %v3211 = vld [vmem:[%s3198 + $0x60] sm:$0xff]
    %v3212 = vld [vmem:[%s3198 + $0x68] sm:$0xff]
    %v3213 = vld [vmem:[%s3198 + $0x70] sm:$0xff]
    %v3214 = vld [vmem:[%s3198 + $0x78] sm:$0xff]
    %3215 = vmatpush.msra.mxu0 %v3214
    %3216 = vmatpush.msra.mxu0 %v3213
    %3217 = vmatpush.msra.mxu0 %v3212
    %3218 = vmatpush.msra.mxu0 %v3211
    %3219 = vmatpush.msra.mxu0 %v3210
    %3220 = vmatpush.msra.mxu0 %v3209
    %3221 = vmatpush.msra.mxu0 %v3208
    %3222 = vmatpush.msra.mxu0 %v3207
    %3223 = vmatpush.msra.mxu0 %v3206
    %3224 = vmatpush.msra.mxu0 %v3205
    %3225 = vmatpush.msra.mxu0 %v3204
    %3226 = vmatpush.msra.mxu0 %v3203
    %3227 = vmatpush.msra.mxu0 %v3202
    %3228 = vmatpush.msra.mxu0 %v3201
    %3229 = vmatpush.msra.mxu0 %v3200
    %3230 = vmatpush.msra.mxu0 %v3199
    %3231 = vmatmul.f32.gmra.mxu0 %v3182
    %v3232 = vpop.f32.mrf.mxu0
    %v3233 = vadd.f32 0.0, %v3232
    %3234 = vmatmul.f32.gmra.mxu0 %v3183
    %v3235 = vpop.f32.mrf.mxu0
    %v3236 = vadd.f32 0.0, %v3235
    %3237 = vmatmul.f32.gmra.mxu0 %v3184
    %v3238 = vpop.f32.mrf.mxu0
    %v3239 = vadd.f32 0.0, %v3238
    %3240 = vmatmul.f32.gmra.mxu0 %v3185
    %v3241 = vpop.f32.mrf.mxu0
    %v3242 = vadd.f32 0.0, %v3241
    %3243 = vmatmul.f32.gmra.mxu0 %v3186
    %v3244 = vpop.f32.mrf.mxu0
    %v3245 = vadd.f32 0.0, %v3244
    %3246 = vmatmul.f32.gmra.mxu0 %v3187
    %v3247 = vpop.f32.mrf.mxu0
    %v3248 = vadd.f32 0.0, %v3247
    %3249 = vmatmul.f32.gmra.mxu0 %v3188
    %v3250 = vpop.f32.mrf.mxu0
    %v3251 = vadd.f32 0.0, %v3250
    %3252 = vmatmul.f32.gmra.mxu0 %v3189
    %v3253 = vpop.f32.mrf.mxu0
    %v3254 = vadd.f32 0.0, %v3253
    %3255 = vmatmul.f32.gmra.mxu0 %v3190
    %v3256 = vpop.f32.mrf.mxu0
    %v3257 = vadd.f32 0.0, %v3256
    %3258 = vmatmul.f32.gmra.mxu0 %v3191
    %v3259 = vpop.f32.mrf.mxu0
    %v3260 = vadd.f32 0.0, %v3259
    %3261 = vmatmul.f32.gmra.mxu0 %v3192
    %v3262 = vpop.f32.mrf.mxu0
    %v3263 = vadd.f32 0.0, %v3262
    %3264 = vmatmul.f32.gmra.mxu0 %v3193
    %v3265 = vpop.f32.mrf.mxu0
    %v3266 = vadd.f32 0.0, %v3265
    %3267 = vmatmul.f32.gmra.mxu0 %v3194
    %v3268 = vpop.f32.mrf.mxu0
    %v3269 = vadd.f32 0.0, %v3268
    %3270 = vmatmul.f32.gmra.mxu0 %v3195
    %v3271 = vpop.f32.mrf.mxu0
    %v3272 = vadd.f32 0.0, %v3271
    %3273 = vmatmul.f32.gmra.mxu0 %v3196
    %v3274 = vpop.f32.mrf.mxu0
    %v3275 = vadd.f32 0.0, %v3274
    %3276 = vmatmul.f32.gmra.mxu0 %v3197
    %v3277 = vpop.f32.mrf.mxu0
    %v3278 = vadd.f32 0.0, %v3277
    %3279 = vdwg.mxu0
    %v3280 = vadd.f32 %v3165, %v3233
    %v3281 = vadd.f32 %v3166, %v3236
    %v3282 = vadd.f32 %v3167, %v3239
    %v3283 = vadd.f32 %v3168, %v3242
    %v3284 = vadd.f32 %v3169, %v3245
    %v3285 = vadd.f32 %v3170, %v3248
    %v3286 = vadd.f32 %v3171, %v3251
    %v3287 = vadd.f32 %v3172, %v3254
    %v3288 = vadd.f32 %v3173, %v3257
    %v3289 = vadd.f32 %v3174, %v3260
    %v3290 = vadd.f32 %v3175, %v3263
    %v3291 = vadd.f32 %v3176, %v3266
    %v3292 = vadd.f32 %v3177, %v3269
    %v3293 = vadd.f32 %v3178, %v3272
    %v3294 = vadd.f32 %v3179, %v3275
    %v3295 = vadd.f32 %v3180, %v3278
    %v3296 = vld [vmem:[%s3181 + $0x1] sm:$0xff]
    %v3297 = vld [vmem:[%s3181 + $0x11] sm:$0xff]
    %v3298 = vld [vmem:[%s3181 + $0x21] sm:$0xff]
    %v3299 = vld [vmem:[%s3181 + $0x31] sm:$0xff]
    %v3300 = vld [vmem:[%s3181 + $0x41] sm:$0xff]
    %v3301 = vld [vmem:[%s3181 + $0x51] sm:$0xff]
    %v3302 = vld [vmem:[%s3181 + $0x61] sm:$0xff]
    %v3303 = vld [vmem:[%s3181 + $0x71] sm:$0xff]
    %v3304 = vld [vmem:[%s3181 + $0xc1] sm:$0xff]
    %v3305 = vld [vmem:[%s3181 + $0xd1] sm:$0xff]
    %v3306 = vld [vmem:[%s3181 + $0xe1] sm:$0xff]
    %v3307 = vld [vmem:[%s3181 + $0xf1] sm:$0xff]
    %v3308 = vld [vmem:[%s3181 + $0x101] sm:$0xff]
    %v3309 = vld [vmem:[%s3181 + $0x111] sm:$0xff]
    %v3310 = vld [vmem:[%s3181 + $0x121] sm:$0xff]
    %v3311 = vld [vmem:[%s3181 + $0x131] sm:$0xff]
    %s3312 = scalar_lea.vmem %s2, 2048
    %v3313 = vld [vmem:[%s3312] sm:$0xff]
    %v3314 = vld [vmem:[%s3312 + $0x8] sm:$0xff]
    %v3315 = vld [vmem:[%s3312 + $0x10] sm:$0xff]
    %v3316 = vld [vmem:[%s3312 + $0x18] sm:$0xff]
    %v3317 = vld [vmem:[%s3312 + $0x20] sm:$0xff]
    %v3318 = vld [vmem:[%s3312 + $0x28] sm:$0xff]
    %v3319 = vld [vmem:[%s3312 + $0x30] sm:$0xff]
    %v3320 = vld [vmem:[%s3312 + $0x38] sm:$0xff]
    %v3321 = vld [vmem:[%s3312 + $0x40] sm:$0xff]
    %v3322 = vld [vmem:[%s3312 + $0x48] sm:$0xff]
    %v3323 = vld [vmem:[%s3312 + $0x50] sm:$0xff]
    %v3324 = vld [vmem:[%s3312 + $0x58] sm:$0xff]
    %v3325 = vld [vmem:[%s3312 + $0x60] sm:$0xff]
    %v3326 = vld [vmem:[%s3312 + $0x68] sm:$0xff]
    %v3327 = vld [vmem:[%s3312 + $0x70] sm:$0xff]
    %v3328 = vld [vmem:[%s3312 + $0x78] sm:$0xff]
    %3329 = vmatpush.msra.mxu0 %v3328
    %3330 = vmatpush.msra.mxu0 %v3327
    %3331 = vmatpush.msra.mxu0 %v3326
    %3332 = vmatpush.msra.mxu0 %v3325
    %3333 = vmatpush.msra.mxu0 %v3324
    %3334 = vmatpush.msra.mxu0 %v3323
    %3335 = vmatpush.msra.mxu0 %v3322
    %3336 = vmatpush.msra.mxu0 %v3321
    %3337 = vmatpush.msra.mxu0 %v3320
    %3338 = vmatpush.msra.mxu0 %v3319
    %3339 = vmatpush.msra.mxu0 %v3318
    %3340 = vmatpush.msra.mxu0 %v3317
    %3341 = vmatpush.msra.mxu0 %v3316
    %3342 = vmatpush.msra.mxu0 %v3315
    %3343 = vmatpush.msra.mxu0 %v3314
    %3344 = vmatpush.msra.mxu0 %v3313
    %3345 = vmatmul.f32.gmra.mxu0 %v3296
    %v3346 = vpop.f32.mrf.mxu0
    %v3347 = vadd.f32 0.0, %v3346
    %3348 = vmatmul.f32.gmra.mxu0 %v3297
    %v3349 = vpop.f32.mrf.mxu0
    %v3350 = vadd.f32 0.0, %v3349
    %3351 = vmatmul.f32.gmra.mxu0 %v3298
    %v3352 = vpop.f32.mrf.mxu0
    %v3353 = vadd.f32 0.0, %v3352
    %3354 = vmatmul.f32.gmra.mxu0 %v3299
    %v3355 = vpop.f32.mrf.mxu0
    %v3356 = vadd.f32 0.0, %v3355
    %3357 = vmatmul.f32.gmra.mxu0 %v3300
    %v3358 = vpop.f32.mrf.mxu0
    %v3359 = vadd.f32 0.0, %v3358
    %3360 = vmatmul.f32.gmra.mxu0 %v3301
    %v3361 = vpop.f32.mrf.mxu0
    %v3362 = vadd.f32 0.0, %v3361
    %3363 = vmatmul.f32.gmra.mxu0 %v3302
    %v3364 = vpop.f32.mrf.mxu0
    %v3365 = vadd.f32 0.0, %v3364
    %3366 = vmatmul.f32.gmra.mxu0 %v3303
    %v3367 = vpop.f32.mrf.mxu0
    %v3368 = vadd.f32 0.0, %v3367
    %3369 = vmatmul.f32.gmra.mxu0 %v3304
    %v3370 = vpop.f32.mrf.mxu0
    %v3371 = vadd.f32 0.0, %v3370
    %3372 = vmatmul.f32.gmra.mxu0 %v3305
    %v3373 = vpop.f32.mrf.mxu0
    %v3374 = vadd.f32 0.0, %v3373
    %3375 = vmatmul.f32.gmra.mxu0 %v3306
    %v3376 = vpop.f32.mrf.mxu0
    %v3377 = vadd.f32 0.0, %v3376
    %3378 = vmatmul.f32.gmra.mxu0 %v3307
    %v3379 = vpop.f32.mrf.mxu0
    %v3380 = vadd.f32 0.0, %v3379
    %3381 = vmatmul.f32.gmra.mxu0 %v3308
    %v3382 = vpop.f32.mrf.mxu0
    %v3383 = vadd.f32 0.0, %v3382
    %3384 = vmatmul.f32.gmra.mxu0 %v3309
    %v3385 = vpop.f32.mrf.mxu0
    %v3386 = vadd.f32 0.0, %v3385
    %3387 = vmatmul.f32.gmra.mxu0 %v3310
    %v3388 = vpop.f32.mrf.mxu0
    %v3389 = vadd.f32 0.0, %v3388
    %3390 = vmatmul.f32.gmra.mxu0 %v3311
    %v3391 = vpop.f32.mrf.mxu0
    %v3392 = vadd.f32 0.0, %v3391
    %3393 = vdwg.mxu0
    %v3394 = vadd.f32 %v3280, %v3347
    %v3395 = vadd.f32 %v3281, %v3350
    %v3396 = vadd.f32 %v3282, %v3353
    %v3397 = vadd.f32 %v3283, %v3356
    %v3398 = vadd.f32 %v3284, %v3359
    %v3399 = vadd.f32 %v3285, %v3362
    %v3400 = vadd.f32 %v3286, %v3365
    %v3401 = vadd.f32 %v3287, %v3368
    %v3402 = vadd.f32 %v3288, %v3371
    %v3403 = vadd.f32 %v3289, %v3374
    %v3404 = vadd.f32 %v3290, %v3377
    %v3405 = vadd.f32 %v3291, %v3380
    %v3406 = vadd.f32 %v3292, %v3383
    %v3407 = vadd.f32 %v3293, %v3386
    %v3408 = vadd.f32 %v3294, %v3389
    %v3409 = vadd.f32 %v3295, %v3392
    %v3410 = vld [vmem:[%s3181 + $0x2] sm:$0xff]
    %v3411 = vld [vmem:[%s3181 + $0x12] sm:$0xff]
    %v3412 = vld [vmem:[%s3181 + $0x22] sm:$0xff]
    %v3413 = vld [vmem:[%s3181 + $0x32] sm:$0xff]
    %v3414 = vld [vmem:[%s3181 + $0x42] sm:$0xff]
    %v3415 = vld [vmem:[%s3181 + $0x52] sm:$0xff]
    %v3416 = vld [vmem:[%s3181 + $0x62] sm:$0xff]
    %v3417 = vld [vmem:[%s3181 + $0x72] sm:$0xff]
    %v3418 = vld [vmem:[%s3181 + $0xc2] sm:$0xff]
    %v3419 = vld [vmem:[%s3181 + $0xd2] sm:$0xff]
    %v3420 = vld [vmem:[%s3181 + $0xe2] sm:$0xff]
    %v3421 = vld [vmem:[%s3181 + $0xf2] sm:$0xff]
    %v3422 = vld [vmem:[%s3181 + $0x102] sm:$0xff]
    %v3423 = vld [vmem:[%s3181 + $0x112] sm:$0xff]
    %v3424 = vld [vmem:[%s3181 + $0x122] sm:$0xff]
    %v3425 = vld [vmem:[%s3181 + $0x132] sm:$0xff]
    %s3426 = scalar_lea.vmem %s2, 2176
    %v3427 = vld [vmem:[%s3426] sm:$0xff]
    %v3428 = vld [vmem:[%s3426 + $0x8] sm:$0xff]
    %v3429 = vld [vmem:[%s3426 + $0x10] sm:$0xff]
    %v3430 = vld [vmem:[%s3426 + $0x18] sm:$0xff]
    %v3431 = vld [vmem:[%s3426 + $0x20] sm:$0xff]
    %v3432 = vld [vmem:[%s3426 + $0x28] sm:$0xff]
    %v3433 = vld [vmem:[%s3426 + $0x30] sm:$0xff]
    %v3434 = vld [vmem:[%s3426 + $0x38] sm:$0xff]
    %v3435 = vld [vmem:[%s3426 + $0x40] sm:$0xff]
    %v3436 = vld [vmem:[%s3426 + $0x48] sm:$0xff]
    %v3437 = vld [vmem:[%s3426 + $0x50] sm:$0xff]
    %v3438 = vld [vmem:[%s3426 + $0x58] sm:$0xff]
    %v3439 = vld [vmem:[%s3426 + $0x60] sm:$0xff]
    %v3440 = vld [vmem:[%s3426 + $0x68] sm:$0xff]
    %v3441 = vld [vmem:[%s3426 + $0x70] sm:$0xff]
    %v3442 = vld [vmem:[%s3426 + $0x78] sm:$0xff]
    %3443 = vmatpush.msra.mxu0 %v3442
    %3444 = vmatpush.msra.mxu0 %v3441
    %3445 = vmatpush.msra.mxu0 %v3440
    %3446 = vmatpush.msra.mxu0 %v3439
    %3447 = vmatpush.msra.mxu0 %v3438
    %3448 = vmatpush.msra.mxu0 %v3437
    %3449 = vmatpush.msra.mxu0 %v3436
    %3450 = vmatpush.msra.mxu0 %v3435
    %3451 = vmatpush.msra.mxu0 %v3434
    %3452 = vmatpush.msra.mxu0 %v3433
    %3453 = vmatpush.msra.mxu0 %v3432
    %3454 = vmatpush.msra.mxu0 %v3431
    %3455 = vmatpush.msra.mxu0 %v3430
    %3456 = vmatpush.msra.mxu0 %v3429
    %3457 = vmatpush.msra.mxu0 %v3428
    %3458 = vmatpush.msra.mxu0 %v3427
    %3459 = vmatmul.f32.gmra.mxu0 %v3410
    %v3460 = vpop.f32.mrf.mxu0
    %v3461 = vadd.f32 0.0, %v3460
    %3462 = vmatmul.f32.gmra.mxu0 %v3411
    %v3463 = vpop.f32.mrf.mxu0
    %v3464 = vadd.f32 0.0, %v3463
    %3465 = vmatmul.f32.gmra.mxu0 %v3412
    %v3466 = vpop.f32.mrf.mxu0
    %v3467 = vadd.f32 0.0, %v3466
    %3468 = vmatmul.f32.gmra.mxu0 %v3413
    %v3469 = vpop.f32.mrf.mxu0
    %v3470 = vadd.f32 0.0, %v3469
    %3471 = vmatmul.f32.gmra.mxu0 %v3414
    %v3472 = vpop.f32.mrf.mxu0
    %v3473 = vadd.f32 0.0, %v3472
    %3474 = vmatmul.f32.gmra.mxu0 %v3415
    %v3475 = vpop.f32.mrf.mxu0
    %v3476 = vadd.f32 0.0, %v3475
    %3477 = vmatmul.f32.gmra.mxu0 %v3416
    %v3478 = vpop.f32.mrf.mxu0
    %v3479 = vadd.f32 0.0, %v3478
    %3480 = vmatmul.f32.gmra.mxu0 %v3417
    %v3481 = vpop.f32.mrf.mxu0
    %v3482 = vadd.f32 0.0, %v3481
    %3483 = vmatmul.f32.gmra.mxu0 %v3418
    %v3484 = vpop.f32.mrf.mxu0
    %v3485 = vadd.f32 0.0, %v3484
    %3486 = vmatmul.f32.gmra.mxu0 %v3419
    %v3487 = vpop.f32.mrf.mxu0
    %v3488 = vadd.f32 0.0, %v3487
    %3489 = vmatmul.f32.gmra.mxu0 %v3420
    %v3490 = vpop.f32.mrf.mxu0
    %v3491 = vadd.f32 0.0, %v3490
    %3492 = vmatmul.f32.gmra.mxu0 %v3421
    %v3493 = vpop.f32.mrf.mxu0
    %v3494 = vadd.f32 0.0, %v3493
    %3495 = vmatmul.f32.gmra.mxu0 %v3422
    %v3496 = vpop.f32.mrf.mxu0
    %v3497 = vadd.f32 0.0, %v3496
    %3498 = vmatmul.f32.gmra.mxu0 %v3423
    %v3499 = vpop.f32.mrf.mxu0
    %v3500 = vadd.f32 0.0, %v3499
    %3501 = vmatmul.f32.gmra.mxu0 %v3424
    %v3502 = vpop.f32.mrf.mxu0
    %v3503 = vadd.f32 0.0, %v3502
    %3504 = vmatmul.f32.gmra.mxu0 %v3425
    %v3505 = vpop.f32.mrf.mxu0
    %v3506 = vadd.f32 0.0, %v3505
    %3507 = vdwg.mxu0
    %v3508 = vadd.f32 %v3394, %v3461
    %v3509 = vadd.f32 %v3395, %v3464
    %v3510 = vadd.f32 %v3396, %v3467
    %v3511 = vadd.f32 %v3397, %v3470
    %v3512 = vadd.f32 %v3398, %v3473
    %v3513 = vadd.f32 %v3399, %v3476
    %v3514 = vadd.f32 %v3400, %v3479
    %v3515 = vadd.f32 %v3401, %v3482
    %v3516 = vadd.f32 %v3402, %v3485
    %v3517 = vadd.f32 %v3403, %v3488
    %v3518 = vadd.f32 %v3404, %v3491
    %v3519 = vadd.f32 %v3405, %v3494
    %v3520 = vadd.f32 %v3406, %v3497
    %v3521 = vadd.f32 %v3407, %v3500
    %v3522 = vadd.f32 %v3408, %v3503
    %v3523 = vadd.f32 %v3409, %v3506
    %v3524 = vld [vmem:[%s3181 + $0x3] sm:$0xff]
    %v3525 = vld [vmem:[%s3181 + $0x13] sm:$0xff]
    %v3526 = vld [vmem:[%s3181 + $0x23] sm:$0xff]
    %v3527 = vld [vmem:[%s3181 + $0x33] sm:$0xff]
    %v3528 = vld [vmem:[%s3181 + $0x43] sm:$0xff]
    %v3529 = vld [vmem:[%s3181 + $0x53] sm:$0xff]
    %v3530 = vld [vmem:[%s3181 + $0x63] sm:$0xff]
    %v3531 = vld [vmem:[%s3181 + $0x73] sm:$0xff]
    %v3532 = vld [vmem:[%s3181 + $0xc3] sm:$0xff]
    %v3533 = vld [vmem:[%s3181 + $0xd3] sm:$0xff]
    %v3534 = vld [vmem:[%s3181 + $0xe3] sm:$0xff]
    %v3535 = vld [vmem:[%s3181 + $0xf3] sm:$0xff]
    %v3536 = vld [vmem:[%s3181 + $0x103] sm:$0xff]
    %v3537 = vld [vmem:[%s3181 + $0x113] sm:$0xff]
    %v3538 = vld [vmem:[%s3181 + $0x123] sm:$0xff]
    %v3539 = vld [vmem:[%s3181 + $0x133] sm:$0xff]
    %s3540 = scalar_lea.vmem %s2, 2304
    %v3541 = vld [vmem:[%s3540] sm:$0xff]
    %v3542 = vld [vmem:[%s3540 + $0x8] sm:$0xff]
    %v3543 = vld [vmem:[%s3540 + $0x10] sm:$0xff]
    %v3544 = vld [vmem:[%s3540 + $0x18] sm:$0xff]
    %v3545 = vld [vmem:[%s3540 + $0x20] sm:$0xff]
    %v3546 = vld [vmem:[%s3540 + $0x28] sm:$0xff]
    %v3547 = vld [vmem:[%s3540 + $0x30] sm:$0xff]
    %v3548 = vld [vmem:[%s3540 + $0x38] sm:$0xff]
    %v3549 = vld [vmem:[%s3540 + $0x40] sm:$0xff]
    %v3550 = vld [vmem:[%s3540 + $0x48] sm:$0xff]
    %v3551 = vld [vmem:[%s3540 + $0x50] sm:$0xff]
    %v3552 = vld [vmem:[%s3540 + $0x58] sm:$0xff]
    %v3553 = vld [vmem:[%s3540 + $0x60] sm:$0xff]
    %v3554 = vld [vmem:[%s3540 + $0x68] sm:$0xff]
    %v3555 = vld [vmem:[%s3540 + $0x70] sm:$0xff]
    %v3556 = vld [vmem:[%s3540 + $0x78] sm:$0xff]
    %3557 = vmatpush.msra.mxu0 %v3556
    %3558 = vmatpush.msra.mxu0 %v3555
    %3559 = vmatpush.msra.mxu0 %v3554
    %3560 = vmatpush.msra.mxu0 %v3553
    %3561 = vmatpush.msra.mxu0 %v3552
    %3562 = vmatpush.msra.mxu0 %v3551
    %3563 = vmatpush.msra.mxu0 %v3550
    %3564 = vmatpush.msra.mxu0 %v3549
    %3565 = vmatpush.msra.mxu0 %v3548
    %3566 = vmatpush.msra.mxu0 %v3547
    %3567 = vmatpush.msra.mxu0 %v3546
    %3568 = vmatpush.msra.mxu0 %v3545
    %3569 = vmatpush.msra.mxu0 %v3544
    %3570 = vmatpush.msra.mxu0 %v3543
    %3571 = vmatpush.msra.mxu0 %v3542
    %3572 = vmatpush.msra.mxu0 %v3541
    %3573 = vmatmul.f32.gmra.mxu0 %v3524
    %v3574 = vpop.f32.mrf.mxu0
    %v3575 = vadd.f32 0.0, %v3574
    %3576 = vmatmul.f32.gmra.mxu0 %v3525
    %v3577 = vpop.f32.mrf.mxu0
    %v3578 = vadd.f32 0.0, %v3577
    %3579 = vmatmul.f32.gmra.mxu0 %v3526
    %v3580 = vpop.f32.mrf.mxu0
    %v3581 = vadd.f32 0.0, %v3580
    %3582 = vmatmul.f32.gmra.mxu0 %v3527
    %v3583 = vpop.f32.mrf.mxu0
    %v3584 = vadd.f32 0.0, %v3583
    %3585 = vmatmul.f32.gmra.mxu0 %v3528
    %v3586 = vpop.f32.mrf.mxu0
    %v3587 = vadd.f32 0.0, %v3586
    %3588 = vmatmul.f32.gmra.mxu0 %v3529
    %v3589 = vpop.f32.mrf.mxu0
    %v3590 = vadd.f32 0.0, %v3589
    %3591 = vmatmul.f32.gmra.mxu0 %v3530
    %v3592 = vpop.f32.mrf.mxu0
    %v3593 = vadd.f32 0.0, %v3592
    %3594 = vmatmul.f32.gmra.mxu0 %v3531
    %v3595 = vpop.f32.mrf.mxu0
    %v3596 = vadd.f32 0.0, %v3595
    %3597 = vmatmul.f32.gmra.mxu0 %v3532
    %v3598 = vpop.f32.mrf.mxu0
    %v3599 = vadd.f32 0.0, %v3598
    %3600 = vmatmul.f32.gmra.mxu0 %v3533
    %v3601 = vpop.f32.mrf.mxu0
    %v3602 = vadd.f32 0.0, %v3601
    %3603 = vmatmul.f32.gmra.mxu0 %v3534
    %v3604 = vpop.f32.mrf.mxu0
    %v3605 = vadd.f32 0.0, %v3604
    %3606 = vmatmul.f32.gmra.mxu0 %v3535
    %v3607 = vpop.f32.mrf.mxu0
    %v3608 = vadd.f32 0.0, %v3607
    %3609 = vmatmul.f32.gmra.mxu0 %v3536
    %v3610 = vpop.f32.mrf.mxu0
    %v3611 = vadd.f32 0.0, %v3610
    %3612 = vmatmul.f32.gmra.mxu0 %v3537
    %v3613 = vpop.f32.mrf.mxu0
    %v3614 = vadd.f32 0.0, %v3613
    %3615 = vmatmul.f32.gmra.mxu0 %v3538
    %v3616 = vpop.f32.mrf.mxu0
    %v3617 = vadd.f32 0.0, %v3616
    %3618 = vmatmul.f32.gmra.mxu0 %v3539
    %v3619 = vpop.f32.mrf.mxu0
    %v3620 = vadd.f32 0.0, %v3619
    %3621 = vdwg.mxu0
    %v3622 = vadd.f32 %v3508, %v3575
    %v3623 = vadd.f32 %v3509, %v3578
    %v3624 = vadd.f32 %v3510, %v3581
    %v3625 = vadd.f32 %v3511, %v3584
    %v3626 = vadd.f32 %v3512, %v3587
    %v3627 = vadd.f32 %v3513, %v3590
    %v3628 = vadd.f32 %v3514, %v3593
    %v3629 = vadd.f32 %v3515, %v3596
    %v3630 = vadd.f32 %v3516, %v3599
    %v3631 = vadd.f32 %v3517, %v3602
    %v3632 = vadd.f32 %v3518, %v3605
    %v3633 = vadd.f32 %v3519, %v3608
    %v3634 = vadd.f32 %v3520, %v3611
    %v3635 = vadd.f32 %v3521, %v3614
    %v3636 = vadd.f32 %v3522, %v3617
    %v3637 = vadd.f32 %v3523, %v3620
    %v3638 = vld [vmem:[%s3181 + $0x4] sm:$0xff]
    %v3639 = vld [vmem:[%s3181 + $0x14] sm:$0xff]
    %v3640 = vld [vmem:[%s3181 + $0x24] sm:$0xff]
    %v3641 = vld [vmem:[%s3181 + $0x34] sm:$0xff]
    %v3642 = vld [vmem:[%s3181 + $0x44] sm:$0xff]
    %v3643 = vld [vmem:[%s3181 + $0x54] sm:$0xff]
    %v3644 = vld [vmem:[%s3181 + $0x64] sm:$0xff]
    %v3645 = vld [vmem:[%s3181 + $0x74] sm:$0xff]
    %v3646 = vld [vmem:[%s3181 + $0xc4] sm:$0xff]
    %v3647 = vld [vmem:[%s3181 + $0xd4] sm:$0xff]
    %v3648 = vld [vmem:[%s3181 + $0xe4] sm:$0xff]
    %v3649 = vld [vmem:[%s3181 + $0xf4] sm:$0xff]
    %v3650 = vld [vmem:[%s3181 + $0x104] sm:$0xff]
    %v3651 = vld [vmem:[%s3181 + $0x114] sm:$0xff]
    %v3652 = vld [vmem:[%s3181 + $0x124] sm:$0xff]
    %v3653 = vld [vmem:[%s3181 + $0x134] sm:$0xff]
    %s3654 = scalar_lea.vmem %s2, 2432
    %v3655 = vld [vmem:[%s3654] sm:$0xff]
    %v3656 = vld [vmem:[%s3654 + $0x8] sm:$0xff]
    %v3657 = vld [vmem:[%s3654 + $0x10] sm:$0xff]
    %v3658 = vld [vmem:[%s3654 + $0x18] sm:$0xff]
    %v3659 = vld [vmem:[%s3654 + $0x20] sm:$0xff]
    %v3660 = vld [vmem:[%s3654 + $0x28] sm:$0xff]
    %v3661 = vld [vmem:[%s3654 + $0x30] sm:$0xff]
    %v3662 = vld [vmem:[%s3654 + $0x38] sm:$0xff]
    %v3663 = vld [vmem:[%s3654 + $0x40] sm:$0xff]
    %v3664 = vld [vmem:[%s3654 + $0x48] sm:$0xff]
    %v3665 = vld [vmem:[%s3654 + $0x50] sm:$0xff]
    %v3666 = vld [vmem:[%s3654 + $0x58] sm:$0xff]
    %v3667 = vld [vmem:[%s3654 + $0x60] sm:$0xff]
    %v3668 = vld [vmem:[%s3654 + $0x68] sm:$0xff]
    %v3669 = vld [vmem:[%s3654 + $0x70] sm:$0xff]
    %v3670 = vld [vmem:[%s3654 + $0x78] sm:$0xff]
    %3671 = vmatpush.msra.mxu0 %v3670
    %3672 = vmatpush.msra.mxu0 %v3669
    %3673 = vmatpush.msra.mxu0 %v3668
    %3674 = vmatpush.msra.mxu0 %v3667
    %3675 = vmatpush.msra.mxu0 %v3666
    %3676 = vmatpush.msra.mxu0 %v3665
    %3677 = vmatpush.msra.mxu0 %v3664
    %3678 = vmatpush.msra.mxu0 %v3663
    %3679 = vmatpush.msra.mxu0 %v3662
    %3680 = vmatpush.msra.mxu0 %v3661
    %3681 = vmatpush.msra.mxu0 %v3660
    %3682 = vmatpush.msra.mxu0 %v3659
    %3683 = vmatpush.msra.mxu0 %v3658
    %3684 = vmatpush.msra.mxu0 %v3657
    %3685 = vmatpush.msra.mxu0 %v3656
    %3686 = vmatpush.msra.mxu0 %v3655
    %3687 = vmatmul.f32.gmra.mxu0 %v3638
    %v3688 = vpop.f32.mrf.mxu0
    %v3689 = vadd.f32 0.0, %v3688
    %3690 = vmatmul.f32.gmra.mxu0 %v3639
    %v3691 = vpop.f32.mrf.mxu0
    %v3692 = vadd.f32 0.0, %v3691
    %3693 = vmatmul.f32.gmra.mxu0 %v3640
    %v3694 = vpop.f32.mrf.mxu0
    %v3695 = vadd.f32 0.0, %v3694
    %3696 = vmatmul.f32.gmra.mxu0 %v3641
    %v3697 = vpop.f32.mrf.mxu0
    %v3698 = vadd.f32 0.0, %v3697
    %3699 = vmatmul.f32.gmra.mxu0 %v3642
    %v3700 = vpop.f32.mrf.mxu0
    %v3701 = vadd.f32 0.0, %v3700
    %3702 = vmatmul.f32.gmra.mxu0 %v3643
    %v3703 = vpop.f32.mrf.mxu0
    %v3704 = vadd.f32 0.0, %v3703
    %3705 = vmatmul.f32.gmra.mxu0 %v3644
    %v3706 = vpop.f32.mrf.mxu0
    %v3707 = vadd.f32 0.0, %v3706
    %3708 = vmatmul.f32.gmra.mxu0 %v3645
    %v3709 = vpop.f32.mrf.mxu0
    %v3710 = vadd.f32 0.0, %v3709
    %3711 = vmatmul.f32.gmra.mxu0 %v3646
    %v3712 = vpop.f32.mrf.mxu0
    %v3713 = vadd.f32 0.0, %v3712
    %3714 = vmatmul.f32.gmra.mxu0 %v3647
    %v3715 = vpop.f32.mrf.mxu0
    %v3716 = vadd.f32 0.0, %v3715
    %3717 = vmatmul.f32.gmra.mxu0 %v3648
    %v3718 = vpop.f32.mrf.mxu0
    %v3719 = vadd.f32 0.0, %v3718
    %3720 = vmatmul.f32.gmra.mxu0 %v3649
    %v3721 = vpop.f32.mrf.mxu0
    %v3722 = vadd.f32 0.0, %v3721
    %3723 = vmatmul.f32.gmra.mxu0 %v3650
    %v3724 = vpop.f32.mrf.mxu0
    %v3725 = vadd.f32 0.0, %v3724
    %3726 = vmatmul.f32.gmra.mxu0 %v3651
    %v3727 = vpop.f32.mrf.mxu0
    %v3728 = vadd.f32 0.0, %v3727
    %3729 = vmatmul.f32.gmra.mxu0 %v3652
    %v3730 = vpop.f32.mrf.mxu0
    %v3731 = vadd.f32 0.0, %v3730
    %3732 = vmatmul.f32.gmra.mxu0 %v3653
    %v3733 = vpop.f32.mrf.mxu0
    %v3734 = vadd.f32 0.0, %v3733
    %3735 = vdwg.mxu0
    %v3736 = vadd.f32 %v3622, %v3689
    %v3737 = vadd.f32 %v3623, %v3692
    %v3738 = vadd.f32 %v3624, %v3695
    %v3739 = vadd.f32 %v3625, %v3698
    %v3740 = vadd.f32 %v3626, %v3701
    %v3741 = vadd.f32 %v3627, %v3704
    %v3742 = vadd.f32 %v3628, %v3707
    %v3743 = vadd.f32 %v3629, %v3710
    %v3744 = vadd.f32 %v3630, %v3713
    %v3745 = vadd.f32 %v3631, %v3716
    %v3746 = vadd.f32 %v3632, %v3719
    %v3747 = vadd.f32 %v3633, %v3722
    %v3748 = vadd.f32 %v3634, %v3725
    %v3749 = vadd.f32 %v3635, %v3728
    %v3750 = vadd.f32 %v3636, %v3731
    %v3751 = vadd.f32 %v3637, %v3734
    %s3752 = scalar_lea.vmem [#allocation4], 64
    %v3753 = vld [vmem:[%s3752] sm:$0xff]
    %v3754 = vld [vmem:[%s3752 + $0x10] sm:$0xff]
    %v3755 = vld [vmem:[%s3752 + $0x20] sm:$0xff]
    %v3756 = vld [vmem:[%s3752 + $0x30] sm:$0xff]
    %v3757 = vld [vmem:[%s3752 + $0x40] sm:$0xff]
    %v3758 = vld [vmem:[%s3752 + $0x50] sm:$0xff]
    %v3759 = vld [vmem:[%s3752 + $0x60] sm:$0xff]
    %v3760 = vld [vmem:[%s3752 + $0x70] sm:$0xff]
    %v3761 = vld [vmem:[%s3752 + $0xc0] sm:$0xff]
    %v3762 = vld [vmem:[%s3752 + $0xd0] sm:$0xff]
    %v3763 = vld [vmem:[%s3752 + $0xe0] sm:$0xff]
    %v3764 = vld [vmem:[%s3752 + $0xf0] sm:$0xff]
    %v3765 = vld [vmem:[%s3752 + $0x100] sm:$0xff]
    %v3766 = vld [vmem:[%s3752 + $0x110] sm:$0xff]
    %v3767 = vld [vmem:[%s3752 + $0x120] sm:$0xff]
    %v3768 = vld [vmem:[%s3752 + $0x130] sm:$0xff]
    %s3769 = scalar_lea.vmem %s2, 2560
    %v3770 = vld [vmem:[%s3769] sm:$0xff]
    %v3771 = vld [vmem:[%s3769 + $0x8] sm:$0xff]
    %v3772 = vld [vmem:[%s3769 + $0x10] sm:$0xff]
    %v3773 = vld [vmem:[%s3769 + $0x18] sm:$0xff]
    %v3774 = vld [vmem:[%s3769 + $0x20] sm:$0xff]
    %v3775 = vld [vmem:[%s3769 + $0x28] sm:$0xff]
    %v3776 = vld [vmem:[%s3769 + $0x30] sm:$0xff]
    %v3777 = vld [vmem:[%s3769 + $0x38] sm:$0xff]
    %v3778 = vld [vmem:[%s3769 + $0x40] sm:$0xff]
    %v3779 = vld [vmem:[%s3769 + $0x48] sm:$0xff]
    %v3780 = vld [vmem:[%s3769 + $0x50] sm:$0xff]
    %v3781 = vld [vmem:[%s3769 + $0x58] sm:$0xff]
    %v3782 = vld [vmem:[%s3769 + $0x60] sm:$0xff]
    %v3783 = vld [vmem:[%s3769 + $0x68] sm:$0xff]
    %v3784 = vld [vmem:[%s3769 + $0x70] sm:$0xff]
    %v3785 = vld [vmem:[%s3769 + $0x78] sm:$0xff]
    %3786 = vmatpush.msra.mxu0 %v3785
    %3787 = vmatpush.msra.mxu0 %v3784
    %3788 = vmatpush.msra.mxu0 %v3783
    %3789 = vmatpush.msra.mxu0 %v3782
    %3790 = vmatpush.msra.mxu0 %v3781
    %3791 = vmatpush.msra.mxu0 %v3780
    %3792 = vmatpush.msra.mxu0 %v3779
    %3793 = vmatpush.msra.mxu0 %v3778
    %3794 = vmatpush.msra.mxu0 %v3777
    %3795 = vmatpush.msra.mxu0 %v3776
    %3796 = vmatpush.msra.mxu0 %v3775
    %3797 = vmatpush.msra.mxu0 %v3774
    %3798 = vmatpush.msra.mxu0 %v3773
    %3799 = vmatpush.msra.mxu0 %v3772
    %3800 = vmatpush.msra.mxu0 %v3771
    %3801 = vmatpush.msra.mxu0 %v3770
    %3802 = vmatmul.f32.gmra.mxu0 %v3753
    %v3803 = vpop.f32.mrf.mxu0
    %v3804 = vadd.f32 0.0, %v3803
    %3805 = vmatmul.f32.gmra.mxu0 %v3754
    %v3806 = vpop.f32.mrf.mxu0
    %v3807 = vadd.f32 0.0, %v3806
    %3808 = vmatmul.f32.gmra.mxu0 %v3755
    %v3809 = vpop.f32.mrf.mxu0
    %v3810 = vadd.f32 0.0, %v3809
    %3811 = vmatmul.f32.gmra.mxu0 %v3756
    %v3812 = vpop.f32.mrf.mxu0
    %v3813 = vadd.f32 0.0, %v3812
    %3814 = vmatmul.f32.gmra.mxu0 %v3757
    %v3815 = vpop.f32.mrf.mxu0
    %v3816 = vadd.f32 0.0, %v3815
    %3817 = vmatmul.f32.gmra.mxu0 %v3758
    %v3818 = vpop.f32.mrf.mxu0
    %v3819 = vadd.f32 0.0, %v3818
    %3820 = vmatmul.f32.gmra.mxu0 %v3759
    %v3821 = vpop.f32.mrf.mxu0
    %v3822 = vadd.f32 0.0, %v3821
    %3823 = vmatmul.f32.gmra.mxu0 %v3760
    %v3824 = vpop.f32.mrf.mxu0
    %v3825 = vadd.f32 0.0, %v3824
    %3826 = vmatmul.f32.gmra.mxu0 %v3761
    %v3827 = vpop.f32.mrf.mxu0
    %v3828 = vadd.f32 0.0, %v3827
    %3829 = vmatmul.f32.gmra.mxu0 %v3762
    %v3830 = vpop.f32.mrf.mxu0
    %v3831 = vadd.f32 0.0, %v3830
    %3832 = vmatmul.f32.gmra.mxu0 %v3763
    %v3833 = vpop.f32.mrf.mxu0
    %v3834 = vadd.f32 0.0, %v3833
    %3835 = vmatmul.f32.gmra.mxu0 %v3764
    %v3836 = vpop.f32.mrf.mxu0
    %v3837 = vadd.f32 0.0, %v3836
    %3838 = vmatmul.f32.gmra.mxu0 %v3765
    %v3839 = vpop.f32.mrf.mxu0
    %v3840 = vadd.f32 0.0, %v3839
    %3841 = vmatmul.f32.gmra.mxu0 %v3766
    %v3842 = vpop.f32.mrf.mxu0
    %v3843 = vadd.f32 0.0, %v3842
    %3844 = vmatmul.f32.gmra.mxu0 %v3767
    %v3845 = vpop.f32.mrf.mxu0
    %v3846 = vadd.f32 0.0, %v3845
    %3847 = vmatmul.f32.gmra.mxu0 %v3768
    %v3848 = vpop.f32.mrf.mxu0
    %v3849 = vadd.f32 0.0, %v3848
    %3850 = vdwg.mxu0
    %v3851 = vadd.f32 %v3736, %v3804
    %v3852 = vadd.f32 %v3737, %v3807
    %v3853 = vadd.f32 %v3738, %v3810
    %v3854 = vadd.f32 %v3739, %v3813
    %v3855 = vadd.f32 %v3740, %v3816
    %v3856 = vadd.f32 %v3741, %v3819
    %v3857 = vadd.f32 %v3742, %v3822
    %v3858 = vadd.f32 %v3743, %v3825
    %v3859 = vadd.f32 %v3744, %v3828
    %v3860 = vadd.f32 %v3745, %v3831
    %v3861 = vadd.f32 %v3746, %v3834
    %v3862 = vadd.f32 %v3747, %v3837
    %v3863 = vadd.f32 %v3748, %v3840
    %v3864 = vadd.f32 %v3749, %v3843
    %v3865 = vadd.f32 %v3750, %v3846
    %v3866 = vadd.f32 %v3751, %v3849
    %v3867 = vld [vmem:[%s3752 + $0x1] sm:$0xff]
    %v3868 = vld [vmem:[%s3752 + $0x11] sm:$0xff]
    %v3869 = vld [vmem:[%s3752 + $0x21] sm:$0xff]
    %v3870 = vld [vmem:[%s3752 + $0x31] sm:$0xff]
    %v3871 = vld [vmem:[%s3752 + $0x41] sm:$0xff]
    %v3872 = vld [vmem:[%s3752 + $0x51] sm:$0xff]
    %v3873 = vld [vmem:[%s3752 + $0x61] sm:$0xff]
    %v3874 = vld [vmem:[%s3752 + $0x71] sm:$0xff]
    %v3875 = vld [vmem:[%s3752 + $0xc1] sm:$0xff]
    %v3876 = vld [vmem:[%s3752 + $0xd1] sm:$0xff]
    %v3877 = vld [vmem:[%s3752 + $0xe1] sm:$0xff]
    %v3878 = vld [vmem:[%s3752 + $0xf1] sm:$0xff]
    %v3879 = vld [vmem:[%s3752 + $0x101] sm:$0xff]
    %v3880 = vld [vmem:[%s3752 + $0x111] sm:$0xff]
    %v3881 = vld [vmem:[%s3752 + $0x121] sm:$0xff]
    %v3882 = vld [vmem:[%s3752 + $0x131] sm:$0xff]
    %s3883 = scalar_lea.vmem %s2, 2688
    %v3884 = vld [vmem:[%s3883] sm:$0xff]
    %v3885 = vld [vmem:[%s3883 + $0x8] sm:$0xff]
    %v3886 = vld [vmem:[%s3883 + $0x10] sm:$0xff]
    %v3887 = vld [vmem:[%s3883 + $0x18] sm:$0xff]
    %v3888 = vld [vmem:[%s3883 + $0x20] sm:$0xff]
    %v3889 = vld [vmem:[%s3883 + $0x28] sm:$0xff]
    %v3890 = vld [vmem:[%s3883 + $0x30] sm:$0xff]
    %v3891 = vld [vmem:[%s3883 + $0x38] sm:$0xff]
    %v3892 = vld [vmem:[%s3883 + $0x40] sm:$0xff]
    %v3893 = vld [vmem:[%s3883 + $0x48] sm:$0xff]
    %v3894 = vld [vmem:[%s3883 + $0x50] sm:$0xff]
    %v3895 = vld [vmem:[%s3883 + $0x58] sm:$0xff]
    %v3896 = vld [vmem:[%s3883 + $0x60] sm:$0xff]
    %v3897 = vld [vmem:[%s3883 + $0x68] sm:$0xff]
    %v3898 = vld [vmem:[%s3883 + $0x70] sm:$0xff]
    %v3899 = vld [vmem:[%s3883 + $0x78] sm:$0xff]
    %3900 = vmatpush.msra.mxu0 %v3899
    %3901 = vmatpush.msra.mxu0 %v3898
    %3902 = vmatpush.msra.mxu0 %v3897
    %3903 = vmatpush.msra.mxu0 %v3896
    %3904 = vmatpush.msra.mxu0 %v3895
    %3905 = vmatpush.msra.mxu0 %v3894
    %3906 = vmatpush.msra.mxu0 %v3893
    %3907 = vmatpush.msra.mxu0 %v3892
    %3908 = vmatpush.msra.mxu0 %v3891
    %3909 = vmatpush.msra.mxu0 %v3890
    %3910 = vmatpush.msra.mxu0 %v3889
    %3911 = vmatpush.msra.mxu0 %v3888
    %3912 = vmatpush.msra.mxu0 %v3887
    %3913 = vmatpush.msra.mxu0 %v3886
    %3914 = vmatpush.msra.mxu0 %v3885
    %3915 = vmatpush.msra.mxu0 %v3884
    %3916 = vmatmul.f32.gmra.mxu0 %v3867
    %v3917 = vpop.f32.mrf.mxu0
    %v3918 = vadd.f32 0.0, %v3917
    %3919 = vmatmul.f32.gmra.mxu0 %v3868
    %v3920 = vpop.f32.mrf.mxu0
    %v3921 = vadd.f32 0.0, %v3920
    %3922 = vmatmul.f32.gmra.mxu0 %v3869
    %v3923 = vpop.f32.mrf.mxu0
    %v3924 = vadd.f32 0.0, %v3923
    %3925 = vmatmul.f32.gmra.mxu0 %v3870
    %v3926 = vpop.f32.mrf.mxu0
    %v3927 = vadd.f32 0.0, %v3926
    %3928 = vmatmul.f32.gmra.mxu0 %v3871
    %v3929 = vpop.f32.mrf.mxu0
    %v3930 = vadd.f32 0.0, %v3929
    %3931 = vmatmul.f32.gmra.mxu0 %v3872
    %v3932 = vpop.f32.mrf.mxu0
    %v3933 = vadd.f32 0.0, %v3932
    %3934 = vmatmul.f32.gmra.mxu0 %v3873
    %v3935 = vpop.f32.mrf.mxu0
    %v3936 = vadd.f32 0.0, %v3935
    %3937 = vmatmul.f32.gmra.mxu0 %v3874
    %v3938 = vpop.f32.mrf.mxu0
    %v3939 = vadd.f32 0.0, %v3938
    %3940 = vmatmul.f32.gmra.mxu0 %v3875
    %v3941 = vpop.f32.mrf.mxu0
    %v3942 = vadd.f32 0.0, %v3941
    %3943 = vmatmul.f32.gmra.mxu0 %v3876
    %v3944 = vpop.f32.mrf.mxu0
    %v3945 = vadd.f32 0.0, %v3944
    %3946 = vmatmul.f32.gmra.mxu0 %v3877
    %v3947 = vpop.f32.mrf.mxu0
    %v3948 = vadd.f32 0.0, %v3947
    %3949 = vmatmul.f32.gmra.mxu0 %v3878
    %v3950 = vpop.f32.mrf.mxu0
    %v3951 = vadd.f32 0.0, %v3950
    %3952 = vmatmul.f32.gmra.mxu0 %v3879
    %v3953 = vpop.f32.mrf.mxu0
    %v3954 = vadd.f32 0.0, %v3953
    %3955 = vmatmul.f32.gmra.mxu0 %v3880
    %v3956 = vpop.f32.mrf.mxu0
    %v3957 = vadd.f32 0.0, %v3956
    %3958 = vmatmul.f32.gmra.mxu0 %v3881
    %v3959 = vpop.f32.mrf.mxu0
    %v3960 = vadd.f32 0.0, %v3959
    %3961 = vmatmul.f32.gmra.mxu0 %v3882
    %v3962 = vpop.f32.mrf.mxu0
    %v3963 = vadd.f32 0.0, %v3962
    %3964 = vdwg.mxu0
    %v3965 = vadd.f32 %v3851, %v3918
    %v3966 = vadd.f32 %v3852, %v3921
    %v3967 = vadd.f32 %v3853, %v3924
    %v3968 = vadd.f32 %v3854, %v3927
    %v3969 = vadd.f32 %v3855, %v3930
    %v3970 = vadd.f32 %v3856, %v3933
    %v3971 = vadd.f32 %v3857, %v3936
    %v3972 = vadd.f32 %v3858, %v3939
    %v3973 = vadd.f32 %v3859, %v3942
    %v3974 = vadd.f32 %v3860, %v3945
    %v3975 = vadd.f32 %v3861, %v3948
    %v3976 = vadd.f32 %v3862, %v3951
    %v3977 = vadd.f32 %v3863, %v3954
    %v3978 = vadd.f32 %v3864, %v3957
    %v3979 = vadd.f32 %v3865, %v3960
    %v3980 = vadd.f32 %v3866, %v3963
    %v3981 = vld [vmem:[%s3752 + $0x2] sm:$0xff]
    %v3982 = vld [vmem:[%s3752 + $0x12] sm:$0xff]
    %v3983 = vld [vmem:[%s3752 + $0x22] sm:$0xff]
    %v3984 = vld [vmem:[%s3752 + $0x32] sm:$0xff]
    %v3985 = vld [vmem:[%s3752 + $0x42] sm:$0xff]
    %v3986 = vld [vmem:[%s3752 + $0x52] sm:$0xff]
    %v3987 = vld [vmem:[%s3752 + $0x62] sm:$0xff]
    %v3988 = vld [vmem:[%s3752 + $0x72] sm:$0xff]
    %v3989 = vld [vmem:[%s3752 + $0xc2] sm:$0xff]
    %v3990 = vld [vmem:[%s3752 + $0xd2] sm:$0xff]
    %v3991 = vld [vmem:[%s3752 + $0xe2] sm:$0xff]
    %v3992 = vld [vmem:[%s3752 + $0xf2] sm:$0xff]
    %v3993 = vld [vmem:[%s3752 + $0x102] sm:$0xff]
    %v3994 = vld [vmem:[%s3752 + $0x112] sm:$0xff]
    %v3995 = vld [vmem:[%s3752 + $0x122] sm:$0xff]
    %v3996 = vld [vmem:[%s3752 + $0x132] sm:$0xff]
    %s3997 = scalar_lea.vmem %s2, 2816
    %v3998 = vld [vmem:[%s3997] sm:$0xff]
    %v3999 = vld [vmem:[%s3997 + $0x8] sm:$0xff]
    %v4000 = vld [vmem:[%s3997 + $0x10] sm:$0xff]
    %v4001 = vld [vmem:[%s3997 + $0x18] sm:$0xff]
    %v4002 = vld [vmem:[%s3997 + $0x20] sm:$0xff]
    %v4003 = vld [vmem:[%s3997 + $0x28] sm:$0xff]
    %v4004 = vld [vmem:[%s3997 + $0x30] sm:$0xff]
    %v4005 = vld [vmem:[%s3997 + $0x38] sm:$0xff]
    %v4006 = vld [vmem:[%s3997 + $0x40] sm:$0xff]
    %v4007 = vld [vmem:[%s3997 + $0x48] sm:$0xff]
    %v4008 = vld [vmem:[%s3997 + $0x50] sm:$0xff]
    %v4009 = vld [vmem:[%s3997 + $0x58] sm:$0xff]
    %v4010 = vld [vmem:[%s3997 + $0x60] sm:$0xff]
    %v4011 = vld [vmem:[%s3997 + $0x68] sm:$0xff]
    %v4012 = vld [vmem:[%s3997 + $0x70] sm:$0xff]
    %v4013 = vld [vmem:[%s3997 + $0x78] sm:$0xff]
    %4014 = vmatpush.msra.mxu0 %v4013
    %4015 = vmatpush.msra.mxu0 %v4012
    %4016 = vmatpush.msra.mxu0 %v4011
    %4017 = vmatpush.msra.mxu0 %v4010
    %4018 = vmatpush.msra.mxu0 %v4009
    %4019 = vmatpush.msra.mxu0 %v4008
    %4020 = vmatpush.msra.mxu0 %v4007
    %4021 = vmatpush.msra.mxu0 %v4006
    %4022 = vmatpush.msra.mxu0 %v4005
    %4023 = vmatpush.msra.mxu0 %v4004
    %4024 = vmatpush.msra.mxu0 %v4003
    %4025 = vmatpush.msra.mxu0 %v4002
    %4026 = vmatpush.msra.mxu0 %v4001
    %4027 = vmatpush.msra.mxu0 %v4000
    %4028 = vmatpush.msra.mxu0 %v3999
    %4029 = vmatpush.msra.mxu0 %v3998
    %4030 = vmatmul.f32.gmra.mxu0 %v3981
    %v4031 = vpop.f32.mrf.mxu0
    %v4032 = vadd.f32 0.0, %v4031
    %4033 = vmatmul.f32.gmra.mxu0 %v3982
    %v4034 = vpop.f32.mrf.mxu0
    %v4035 = vadd.f32 0.0, %v4034
    %4036 = vmatmul.f32.gmra.mxu0 %v3983
    %v4037 = vpop.f32.mrf.mxu0
    %v4038 = vadd.f32 0.0, %v4037
    %4039 = vmatmul.f32.gmra.mxu0 %v3984
    %v4040 = vpop.f32.mrf.mxu0
    %v4041 = vadd.f32 0.0, %v4040
    %4042 = vmatmul.f32.gmra.mxu0 %v3985
    %v4043 = vpop.f32.mrf.mxu0
    %v4044 = vadd.f32 0.0, %v4043
    %4045 = vmatmul.f32.gmra.mxu0 %v3986
    %v4046 = vpop.f32.mrf.mxu0
    %v4047 = vadd.f32 0.0, %v4046
    %4048 = vmatmul.f32.gmra.mxu0 %v3987
    %v4049 = vpop.f32.mrf.mxu0
    %v4050 = vadd.f32 0.0, %v4049
    %4051 = vmatmul.f32.gmra.mxu0 %v3988
    %v4052 = vpop.f32.mrf.mxu0
    %v4053 = vadd.f32 0.0, %v4052
    %4054 = vmatmul.f32.gmra.mxu0 %v3989
    %v4055 = vpop.f32.mrf.mxu0
    %v4056 = vadd.f32 0.0, %v4055
    %4057 = vmatmul.f32.gmra.mxu0 %v3990
    %v4058 = vpop.f32.mrf.mxu0
    %v4059 = vadd.f32 0.0, %v4058
    %4060 = vmatmul.f32.gmra.mxu0 %v3991
    %v4061 = vpop.f32.mrf.mxu0
    %v4062 = vadd.f32 0.0, %v4061
    %4063 = vmatmul.f32.gmra.mxu0 %v3992
    %v4064 = vpop.f32.mrf.mxu0
    %v4065 = vadd.f32 0.0, %v4064
    %4066 = vmatmul.f32.gmra.mxu0 %v3993
    %v4067 = vpop.f32.mrf.mxu0
    %v4068 = vadd.f32 0.0, %v4067
    %4069 = vmatmul.f32.gmra.mxu0 %v3994
    %v4070 = vpop.f32.mrf.mxu0
    %v4071 = vadd.f32 0.0, %v4070
    %4072 = vmatmul.f32.gmra.mxu0 %v3995
    %v4073 = vpop.f32.mrf.mxu0
    %v4074 = vadd.f32 0.0, %v4073
    %4075 = vmatmul.f32.gmra.mxu0 %v3996
    %v4076 = vpop.f32.mrf.mxu0
    %v4077 = vadd.f32 0.0, %v4076
    %4078 = vdwg.mxu0
    %v4079 = vadd.f32 %v3965, %v4032
    %v4080 = vadd.f32 %v3966, %v4035
    %v4081 = vadd.f32 %v3967, %v4038
    %v4082 = vadd.f32 %v3968, %v4041
    %v4083 = vadd.f32 %v3969, %v4044
    %v4084 = vadd.f32 %v3970, %v4047
    %v4085 = vadd.f32 %v3971, %v4050
    %v4086 = vadd.f32 %v3972, %v4053
    %v4087 = vadd.f32 %v3973, %v4056
    %v4088 = vadd.f32 %v3974, %v4059
    %v4089 = vadd.f32 %v3975, %v4062
    %v4090 = vadd.f32 %v3976, %v4065
    %v4091 = vadd.f32 %v3977, %v4068
    %v4092 = vadd.f32 %v3978, %v4071
    %v4093 = vadd.f32 %v3979, %v4074
    %v4094 = vadd.f32 %v3980, %v4077
    %v4095 = vld [vmem:[%s3752 + $0x3] sm:$0xff]
    %v4096 = vld [vmem:[%s3752 + $0x13] sm:$0xff]
    %v4097 = vld [vmem:[%s3752 + $0x23] sm:$0xff]
    %v4098 = vld [vmem:[%s3752 + $0x33] sm:$0xff]
    %v4099 = vld [vmem:[%s3752 + $0x43] sm:$0xff]
    %v4100 = vld [vmem:[%s3752 + $0x53] sm:$0xff]
    %v4101 = vld [vmem:[%s3752 + $0x63] sm:$0xff]
    %v4102 = vld [vmem:[%s3752 + $0x73] sm:$0xff]
    %v4103 = vld [vmem:[%s3752 + $0xc3] sm:$0xff]
    %v4104 = vld [vmem:[%s3752 + $0xd3] sm:$0xff]
    %v4105 = vld [vmem:[%s3752 + $0xe3] sm:$0xff]
    %v4106 = vld [vmem:[%s3752 + $0xf3] sm:$0xff]
    %v4107 = vld [vmem:[%s3752 + $0x103] sm:$0xff]
    %v4108 = vld [vmem:[%s3752 + $0x113] sm:$0xff]
    %v4109 = vld [vmem:[%s3752 + $0x123] sm:$0xff]
    %v4110 = vld [vmem:[%s3752 + $0x133] sm:$0xff]
    %s4111 = scalar_lea.vmem %s2, 2944
    %v4112 = vld [vmem:[%s4111] sm:$0xff]
    %v4113 = vld [vmem:[%s4111 + $0x8] sm:$0xff]
    %v4114 = vld [vmem:[%s4111 + $0x10] sm:$0xff]
    %v4115 = vld [vmem:[%s4111 + $0x18] sm:$0xff]
    %v4116 = vld [vmem:[%s4111 + $0x20] sm:$0xff]
    %v4117 = vld [vmem:[%s4111 + $0x28] sm:$0xff]
    %v4118 = vld [vmem:[%s4111 + $0x30] sm:$0xff]
    %v4119 = vld [vmem:[%s4111 + $0x38] sm:$0xff]
    %v4120 = vld [vmem:[%s4111 + $0x40] sm:$0xff]
    %v4121 = vld [vmem:[%s4111 + $0x48] sm:$0xff]
    %v4122 = vld [vmem:[%s4111 + $0x50] sm:$0xff]
    %v4123 = vld [vmem:[%s4111 + $0x58] sm:$0xff]
    %v4124 = vld [vmem:[%s4111 + $0x60] sm:$0xff]
    %v4125 = vld [vmem:[%s4111 + $0x68] sm:$0xff]
    %v4126 = vld [vmem:[%s4111 + $0x70] sm:$0xff]
    %v4127 = vld [vmem:[%s4111 + $0x78] sm:$0xff]
    %4128 = vmatpush.msra.mxu0 %v4127
    %4129 = vmatpush.msra.mxu0 %v4126
    %4130 = vmatpush.msra.mxu0 %v4125
    %4131 = vmatpush.msra.mxu0 %v4124
    %4132 = vmatpush.msra.mxu0 %v4123
    %4133 = vmatpush.msra.mxu0 %v4122
    %4134 = vmatpush.msra.mxu0 %v4121
    %4135 = vmatpush.msra.mxu0 %v4120
    %4136 = vmatpush.msra.mxu0 %v4119
    %4137 = vmatpush.msra.mxu0 %v4118
    %4138 = vmatpush.msra.mxu0 %v4117
    %4139 = vmatpush.msra.mxu0 %v4116
    %4140 = vmatpush.msra.mxu0 %v4115
    %4141 = vmatpush.msra.mxu0 %v4114
    %4142 = vmatpush.msra.mxu0 %v4113
    %4143 = vmatpush.msra.mxu0 %v4112
    %4144 = vmatmul.f32.gmra.mxu0 %v4095
    %v4145 = vpop.f32.mrf.mxu0
    %v4146 = vadd.f32 0.0, %v4145
    %4147 = vmatmul.f32.gmra.mxu0 %v4096
    %v4148 = vpop.f32.mrf.mxu0
    %v4149 = vadd.f32 0.0, %v4148
    %4150 = vmatmul.f32.gmra.mxu0 %v4097
    %v4151 = vpop.f32.mrf.mxu0
    %v4152 = vadd.f32 0.0, %v4151
    %4153 = vmatmul.f32.gmra.mxu0 %v4098
    %v4154 = vpop.f32.mrf.mxu0
    %v4155 = vadd.f32 0.0, %v4154
    %4156 = vmatmul.f32.gmra.mxu0 %v4099
    %v4157 = vpop.f32.mrf.mxu0
    %v4158 = vadd.f32 0.0, %v4157
    %4159 = vmatmul.f32.gmra.mxu0 %v4100
    %v4160 = vpop.f32.mrf.mxu0
    %v4161 = vadd.f32 0.0, %v4160
    %4162 = vmatmul.f32.gmra.mxu0 %v4101
    %v4163 = vpop.f32.mrf.mxu0
    %v4164 = vadd.f32 0.0, %v4163
    %4165 = vmatmul.f32.gmra.mxu0 %v4102
    %v4166 = vpop.f32.mrf.mxu0
    %v4167 = vadd.f32 0.0, %v4166
    %4168 = vmatmul.f32.gmra.mxu0 %v4103
    %v4169 = vpop.f32.mrf.mxu0
    %v4170 = vadd.f32 0.0, %v4169
    %4171 = vmatmul.f32.gmra.mxu0 %v4104
    %v4172 = vpop.f32.mrf.mxu0
    %v4173 = vadd.f32 0.0, %v4172
    %4174 = vmatmul.f32.gmra.mxu0 %v4105
    %v4175 = vpop.f32.mrf.mxu0
    %v4176 = vadd.f32 0.0, %v4175
    %4177 = vmatmul.f32.gmra.mxu0 %v4106
    %v4178 = vpop.f32.mrf.mxu0
    %v4179 = vadd.f32 0.0, %v4178
    %4180 = vmatmul.f32.gmra.mxu0 %v4107
    %v4181 = vpop.f32.mrf.mxu0
    %v4182 = vadd.f32 0.0, %v4181
    %4183 = vmatmul.f32.gmra.mxu0 %v4108
    %v4184 = vpop.f32.mrf.mxu0
    %v4185 = vadd.f32 0.0, %v4184
    %4186 = vmatmul.f32.gmra.mxu0 %v4109
    %v4187 = vpop.f32.mrf.mxu0
    %v4188 = vadd.f32 0.0, %v4187
    %4189 = vmatmul.f32.gmra.mxu0 %v4110
    %v4190 = vpop.f32.mrf.mxu0
    %v4191 = vadd.f32 0.0, %v4190
    %4192 = vdwg.mxu0
    %v4193 = vadd.f32 %v4079, %v4146
    %v4194 = vadd.f32 %v4080, %v4149
    %v4195 = vadd.f32 %v4081, %v4152
    %v4196 = vadd.f32 %v4082, %v4155
    %v4197 = vadd.f32 %v4083, %v4158
    %v4198 = vadd.f32 %v4084, %v4161
    %v4199 = vadd.f32 %v4085, %v4164
    %v4200 = vadd.f32 %v4086, %v4167
    %v4201 = vadd.f32 %v4087, %v4170
    %v4202 = vadd.f32 %v4088, %v4173
    %v4203 = vadd.f32 %v4089, %v4176
    %v4204 = vadd.f32 %v4090, %v4179
    %v4205 = vadd.f32 %v4091, %v4182
    %v4206 = vadd.f32 %v4092, %v4185
    %v4207 = vadd.f32 %v4093, %v4188
    %v4208 = vadd.f32 %v4094, %v4191
    %v4209 = vld [vmem:[%s3752 + $0x4] sm:$0xff]
    %v4210 = vld [vmem:[%s3752 + $0x14] sm:$0xff]
    %v4211 = vld [vmem:[%s3752 + $0x24] sm:$0xff]
    %v4212 = vld [vmem:[%s3752 + $0x34] sm:$0xff]
    %v4213 = vld [vmem:[%s3752 + $0x44] sm:$0xff]
    %v4214 = vld [vmem:[%s3752 + $0x54] sm:$0xff]
    %v4215 = vld [vmem:[%s3752 + $0x64] sm:$0xff]
    %v4216 = vld [vmem:[%s3752 + $0x74] sm:$0xff]
    %v4217 = vld [vmem:[%s3752 + $0xc4] sm:$0xff]
    %v4218 = vld [vmem:[%s3752 + $0xd4] sm:$0xff]
    %v4219 = vld [vmem:[%s3752 + $0xe4] sm:$0xff]
    %v4220 = vld [vmem:[%s3752 + $0xf4] sm:$0xff]
    %v4221 = vld [vmem:[%s3752 + $0x104] sm:$0xff]
    %v4222 = vld [vmem:[%s3752 + $0x114] sm:$0xff]
    %v4223 = vld [vmem:[%s3752 + $0x124] sm:$0xff]
    %v4224 = vld [vmem:[%s3752 + $0x134] sm:$0xff]
    %s4225 = scalar_lea.vmem %s2, 3072
    %v4226 = vld [vmem:[%s4225] sm:$0xff]
    %v4227 = vld [vmem:[%s4225 + $0x8] sm:$0xff]
    %v4228 = vld [vmem:[%s4225 + $0x10] sm:$0xff]
    %v4229 = vld [vmem:[%s4225 + $0x18] sm:$0xff]
    %v4230 = vld [vmem:[%s4225 + $0x20] sm:$0xff]
    %v4231 = vld [vmem:[%s4225 + $0x28] sm:$0xff]
    %v4232 = vld [vmem:[%s4225 + $0x30] sm:$0xff]
    %v4233 = vld [vmem:[%s4225 + $0x38] sm:$0xff]
    %v4234 = vld [vmem:[%s4225 + $0x40] sm:$0xff]
    %v4235 = vld [vmem:[%s4225 + $0x48] sm:$0xff]
    %v4236 = vld [vmem:[%s4225 + $0x50] sm:$0xff]
    %v4237 = vld [vmem:[%s4225 + $0x58] sm:$0xff]
    %v4238 = vld [vmem:[%s4225 + $0x60] sm:$0xff]
    %v4239 = vld [vmem:[%s4225 + $0x68] sm:$0xff]
    %v4240 = vld [vmem:[%s4225 + $0x70] sm:$0xff]
    %v4241 = vld [vmem:[%s4225 + $0x78] sm:$0xff]
    %4242 = vmatpush.msra.mxu0 %v4241
    %4243 = vmatpush.msra.mxu0 %v4240
    %4244 = vmatpush.msra.mxu0 %v4239
    %4245 = vmatpush.msra.mxu0 %v4238
    %4246 = vmatpush.msra.mxu0 %v4237
    %4247 = vmatpush.msra.mxu0 %v4236
    %4248 = vmatpush.msra.mxu0 %v4235
    %4249 = vmatpush.msra.mxu0 %v4234
    %4250 = vmatpush.msra.mxu0 %v4233
    %4251 = vmatpush.msra.mxu0 %v4232
    %4252 = vmatpush.msra.mxu0 %v4231
    %4253 = vmatpush.msra.mxu0 %v4230
    %4254 = vmatpush.msra.mxu0 %v4229
    %4255 = vmatpush.msra.mxu0 %v4228
    %4256 = vmatpush.msra.mxu0 %v4227
    %4257 = vmatpush.msra.mxu0 %v4226
    %4258 = vmatmul.f32.gmra.mxu0 %v4209
    %v4259 = vpop.f32.mrf.mxu0
    %v4260 = vadd.f32 0.0, %v4259
    %4261 = vmatmul.f32.gmra.mxu0 %v4210
    %v4262 = vpop.f32.mrf.mxu0
    %v4263 = vadd.f32 0.0, %v4262
    %4264 = vmatmul.f32.gmra.mxu0 %v4211
    %v4265 = vpop.f32.mrf.mxu0
    %v4266 = vadd.f32 0.0, %v4265
    %4267 = vmatmul.f32.gmra.mxu0 %v4212
    %v4268 = vpop.f32.mrf.mxu0
    %v4269 = vadd.f32 0.0, %v4268
    %4270 = vmatmul.f32.gmra.mxu0 %v4213
    %v4271 = vpop.f32.mrf.mxu0
    %v4272 = vadd.f32 0.0, %v4271
    %4273 = vmatmul.f32.gmra.mxu0 %v4214
    %v4274 = vpop.f32.mrf.mxu0
    %v4275 = vadd.f32 0.0, %v4274
    %4276 = vmatmul.f32.gmra.mxu0 %v4215
    %v4277 = vpop.f32.mrf.mxu0
    %v4278 = vadd.f32 0.0, %v4277
    %4279 = vmatmul.f32.gmra.mxu0 %v4216
    %v4280 = vpop.f32.mrf.mxu0
    %v4281 = vadd.f32 0.0, %v4280
    %4282 = vmatmul.f32.gmra.mxu0 %v4217
    %v4283 = vpop.f32.mrf.mxu0
    %v4284 = vadd.f32 0.0, %v4283
    %4285 = vmatmul.f32.gmra.mxu0 %v4218
    %v4286 = vpop.f32.mrf.mxu0
    %v4287 = vadd.f32 0.0, %v4286
    %4288 = vmatmul.f32.gmra.mxu0 %v4219
    %v4289 = vpop.f32.mrf.mxu0
    %v4290 = vadd.f32 0.0, %v4289
    %4291 = vmatmul.f32.gmra.mxu0 %v4220
    %v4292 = vpop.f32.mrf.mxu0
    %v4293 = vadd.f32 0.0, %v4292
    %4294 = vmatmul.f32.gmra.mxu0 %v4221
    %v4295 = vpop.f32.mrf.mxu0
    %v4296 = vadd.f32 0.0, %v4295
    %4297 = vmatmul.f32.gmra.mxu0 %v4222
    %v4298 = vpop.f32.mrf.mxu0
    %v4299 = vadd.f32 0.0, %v4298
    %4300 = vmatmul.f32.gmra.mxu0 %v4223
    %v4301 = vpop.f32.mrf.mxu0
    %v4302 = vadd.f32 0.0, %v4301
    %4303 = vmatmul.f32.gmra.mxu0 %v4224
    %v4304 = vpop.f32.mrf.mxu0
    %v4305 = vadd.f32 0.0, %v4304
    %4306 = vdwg.mxu0
    %v4307 = vadd.f32 %v4193, %v4260
    %v4308 = vadd.f32 %v4194, %v4263
    %v4309 = vadd.f32 %v4195, %v4266
    %v4310 = vadd.f32 %v4196, %v4269
    %v4311 = vadd.f32 %v4197, %v4272
    %v4312 = vadd.f32 %v4198, %v4275
    %v4313 = vadd.f32 %v4199, %v4278
    %v4314 = vadd.f32 %v4200, %v4281
    %v4315 = vadd.f32 %v4201, %v4284
    %v4316 = vadd.f32 %v4202, %v4287
    %v4317 = vadd.f32 %v4203, %v4290
    %v4318 = vadd.f32 %v4204, %v4293
    %v4319 = vadd.f32 %v4205, %v4296
    %v4320 = vadd.f32 %v4206, %v4299
    %v4321 = vadd.f32 %v4207, %v4302
    %v4322 = vadd.f32 %v4208, %v4305
    %v4323 = vld [vmem:[%s6 + $0x1] sm:$0x1]
    %v4324 = vperm.slane %v4323, 0
    %v4325 = vadd.f32 %v4307, %v4324
    %v4326 = vadd.f32 %v4308, %v4324
    %v4327 = vadd.f32 %v4309, %v4324
    %v4328 = vadd.f32 %v4310, %v4324
    %v4329 = vadd.f32 %v4311, %v4324
    %v4330 = vadd.f32 %v4312, %v4324
    %v4331 = vadd.f32 %v4313, %v4324
    %v4332 = vadd.f32 %v4314, %v4324
    %v4333 = vadd.f32 %v4315, %v4324
    %v4334 = vadd.f32 %v4316, %v4324
    %v4335 = vadd.f32 %v4317, %v4324
    %v4336 = vadd.f32 %v4318, %v4324
    %v4337 = vadd.f32 %v4319, %v4324
    %v4338 = vadd.f32 %v4320, %v4324
    %v4339 = vadd.f32 %v4321, %v4324
    %v4340 = vadd.f32 %v4322, %v4324
    %v4341 = vmax.f32 %v4325, 0.0
    %v4342 = vmax.f32 %v4326, 0.0
    %v4343 = vmax.f32 %v4327, 0.0
    %v4344 = vmax.f32 %v4328, 0.0
    %v4345 = vmax.f32 %v4329, 0.0
    %v4346 = vmax.f32 %v4330, 0.0
    %v4347 = vmax.f32 %v4331, 0.0
    %v4348 = vmax.f32 %v4332, 0.0
    %v4349 = vmax.f32 %v4333, 0.0
    %v4350 = vmax.f32 %v4334, 0.0
    %v4351 = vmax.f32 %v4335, 0.0
    %v4352 = vmax.f32 %v4336, 0.0
    %v4353 = vmax.f32 %v4337, 0.0
    %v4354 = vmax.f32 %v4338, 0.0
    %v4355 = vmax.f32 %v4339, 0.0
    %v4356 = vmax.f32 %v4340, 0.0
    %4357 = vst [vmem:[#allocation5] sm:$0xff] %v4341
    %4358 = vst [vmem:[#allocation5 + $0x8] sm:$0xff] %v4342
    %4359 = vst [vmem:[#allocation5 + $0x10] sm:$0xff] %v4343
    %4360 = vst [vmem:[#allocation5 + $0x18] sm:$0xff] %v4344
    %4361 = vst [vmem:[#allocation5 + $0x20] sm:$0xff] %v4345
    %4362 = vst [vmem:[#allocation5 + $0x28] sm:$0xff] %v4346
    %4363 = vst [vmem:[#allocation5 + $0x30] sm:$0xff] %v4347
    %4364 = vst [vmem:[#allocation5 + $0x38] sm:$0xff] %v4348
    %4365 = vst [vmem:[#allocation5 + $0x40] sm:$0xff] %v4349
    %4366 = vst [vmem:[#allocation5 + $0x48] sm:$0xff] %v4350
    %4367 = vst [vmem:[#allocation5 + $0x50] sm:$0xff] %v4351
    %4368 = vst [vmem:[#allocation5 + $0x58] sm:$0xff] %v4352
    %4369 = vst [vmem:[#allocation5 + $0x60] sm:$0xff] %v4353
    %4370 = vst [vmem:[#allocation5 + $0x68] sm:$0xff] %v4354
    %4371 = vst [vmem:[#allocation5 + $0x70] sm:$0xff] %v4355
    %4372 = vst [vmem:[#allocation5 + $0x78] sm:$0xff] %v4356
    %v4373 = vld [vmem:[#allocation5] sm:$0xff]
    %v4374 = vld [vmem:[#allocation5 + $0x10] sm:$0xff]
    %v4375 = vld [vmem:[#allocation5 + $0x20] sm:$0xff]
    %v4376 = vld [vmem:[#allocation5 + $0x30] sm:$0xff]
    %v4377 = vld [vmem:[#allocation5 + $0x40] sm:$0xff]
    %v4378 = vld [vmem:[#allocation5 + $0x50] sm:$0xff]
    %v4379 = vld [vmem:[#allocation5 + $0x60] sm:$0xff]
    %v4380 = vld [vmem:[#allocation5 + $0x70] sm:$0xff]
    %s4381 = scalar_lea.vmem [#allocation5], 8
    %v4382 = vld [vmem:[%s4381] sm:$0xff]
    %v4383 = vld [vmem:[%s4381 + $0x10] sm:$0xff]
    %v4384 = vld [vmem:[%s4381 + $0x20] sm:$0xff]
    %v4385 = vld [vmem:[%s4381 + $0x30] sm:$0xff]
    %v4386 = vld [vmem:[%s4381 + $0x40] sm:$0xff]
    %v4387 = vld [vmem:[%s4381 + $0x50] sm:$0xff]
    %v4388 = vld [vmem:[%s4381 + $0x60] sm:$0xff]
    %v4389 = vld [vmem:[%s4381 + $0x70] sm:$0xff]
    %v4390 = vmax.f32 %v4373, %v4382
    %v4391 = vmax.f32 %v4374, %v4383
    %v4392 = vmax.f32 %v4375, %v4384
    %v4393 = vmax.f32 %v4376, %v4385
    %v4394 = vmax.f32 %v4377, %v4386
    %v4395 = vmax.f32 %v4378, %v4387
    %v4396 = vmax.f32 %v4379, %v4388
    %v4397 = vmax.f32 %v4380, %v4389
    %4398 = vst [vmem:[#allocation6] sm:$0xff] %v4390
    %4399 = vst [vmem:[#allocation6 + $0x8] sm:$0xff] %v4391
    %4400 = vst [vmem:[#allocation6 + $0x10] sm:$0xff] %v4392
    %4401 = vst [vmem:[#allocation6 + $0x18] sm:$0xff] %v4393
    %4402 = vst [vmem:[#allocation6 + $0x20] sm:$0xff] %v4394
    %4403 = vst [vmem:[#allocation6 + $0x28] sm:$0xff] %v4395
    %4404 = vst [vmem:[#allocation6 + $0x30] sm:$0xff] %v4396
    %4405 = vst [vmem:[#allocation6 + $0x38] sm:$0xff] %v4397
    %v4406 = vld [vmem:[#allocation6] ss:$2 sm:$0xf]
    %s4407 = scalar_lea.vmem [#allocation6], 8
    %v4408 = vld [vmem:[%s4407] ss:$2 sm:$0xf]
    %s4409 = scalar_lea.vmem [#allocation6], 16
    %v4410 = vld [vmem:[%s4409] ss:$2 sm:$0xf]
    %s4411 = scalar_lea.vmem [#allocation6], 24
    %v4412 = vld [vmem:[%s4411] ss:$2 sm:$0xf]
    %s4413 = scalar_lea.vmem [#allocation6], 32
    %v4414 = vld [vmem:[%s4413] ss:$2 sm:$0xf]
    %s4415 = scalar_lea.vmem [#allocation6], 40
    %v4416 = vld [vmem:[%s4415] ss:$2 sm:$0xf]
    %s4417 = scalar_lea.vmem [#allocation6], 48
    %v4418 = vld [vmem:[%s4417] ss:$2 sm:$0xf]
    %s4419 = scalar_lea.vmem [#allocation6], 56
    %v4420 = vld [vmem:[%s4419] ss:$2 sm:$0xf]
    %s4421 = scalar_lea.vmem [#allocation6], 1
    %v4422 = vld [vmem:[%s4421] ss:$2 sm:$0xf]
    %s4423 = scalar_lea.vmem [#allocation6], 9
    %v4424 = vld [vmem:[%s4423] ss:$2 sm:$0xf]
    %s4425 = scalar_lea.vmem [#allocation6], 17
    %v4426 = vld [vmem:[%s4425] ss:$2 sm:$0xf]
    %s4427 = scalar_lea.vmem [#allocation6], 25
    %v4428 = vld [vmem:[%s4427] ss:$2 sm:$0xf]
    %s4429 = scalar_lea.vmem [#allocation6], 33
    %v4430 = vld [vmem:[%s4429] ss:$2 sm:$0xf]
    %s4431 = scalar_lea.vmem [#allocation6], 41
    %v4432 = vld [vmem:[%s4431] ss:$2 sm:$0xf]
    %s4433 = scalar_lea.vmem [#allocation6], 49
    %v4434 = vld [vmem:[%s4433] ss:$2 sm:$0xf]
    %s4435 = scalar_lea.vmem [#allocation6], 57
    %v4436 = vld [vmem:[%s4435] ss:$2 sm:$0xf]
    %v4437 = vmax.f32 %v4406, %v4422
    %v4438 = vmax.f32 %v4408, %v4424
    %v4439 = vmax.f32 %v4410, %v4426
    %v4440 = vmax.f32 %v4412, %v4428
    %v4441 = vmax.f32 %v4414, %v4430
    %v4442 = vmax.f32 %v4416, %v4432
    %v4443 = vmax.f32 %v4418, %v4434
    %v4444 = vmax.f32 %v4420, %v4436
    %4445 = vst [vmem:[#allocation7] sm:$0xf] %v4437
    %4446 = vst [vmem:[#allocation7 + $0x4] sm:$0xf] %v4438
    %4447 = vst [vmem:[#allocation7 + $0x8] sm:$0xf] %v4439
    %4448 = vst [vmem:[#allocation7 + $0xc] sm:$0xf] %v4440
    %4449 = vst [vmem:[#allocation7 + $0x10] sm:$0xf] %v4441
    %4450 = vst [vmem:[#allocation7 + $0x14] sm:$0xf] %v4442
    %4451 = vst [vmem:[#allocation7 + $0x18] sm:$0xf] %v4443
    %4452 = vst [vmem:[#allocation7 + $0x1c] sm:$0xf] %v4444
    %v4453 = vld [vmem:[#allocation7] sm:$0x1]
    %v4454 = vld [vmem:[#allocation7 + $0x10] sm:$0x1]
    %v4455 = vld [vmem:[%s3] sm:$0xff]
    %v4456 = vld [vmem:[%s3 + $0x8] sm:$0xff]
    %v4457 = vld [vmem:[%s3 + $0x10] sm:$0xff]
    %v4458 = vld [vmem:[%s3 + $0x18] sm:$0xff]
    %v4459 = vld [vmem:[%s3 + $0x20] sm:$0xff]
    %v4460 = vld [vmem:[%s3 + $0x28] sm:$0xff]
    %v4461 = vld [vmem:[%s3 + $0x30] sm:$0xff]
    %v4462 = vld [vmem:[%s3 + $0x38] sm:$0xff]
    %v4463 = vld [vmem:[%s3 + $0x40] sm:$0xff]
    %v4464 = vld [vmem:[%s3 + $0x48] sm:$0xff]
    %v4465 = vld [vmem:[%s3 + $0x50] sm:$0xff]
    %v4466 = vld [vmem:[%s3 + $0x58] sm:$0xff]
    %v4467 = vld [vmem:[%s3 + $0x60] sm:$0xff]
    %v4468 = vld [vmem:[%s3 + $0x68] sm:$0xff]
    %v4469 = vld [vmem:[%s3 + $0x70] sm:$0xff]
    %v4470 = vld [vmem:[%s3 + $0x78] sm:$0xff]
    %v4471 = vld [vmem:[#allocation7 + $0x1] sm:$0x1]
    %v4472 = vld [vmem:[#allocation7 + $0x11] sm:$0x1]
    %s4473 = scalar_lea.vmem %s3, 128
    %v4474 = vld [vmem:[%s4473] sm:$0xff]
    %v4475 = vld [vmem:[%s4473 + $0x8] sm:$0xff]
    %v4476 = vld [vmem:[%s4473 + $0x10] sm:$0xff]
    %v4477 = vld [vmem:[%s4473 + $0x18] sm:$0xff]
    %v4478 = vld [vmem:[%s4473 + $0x20] sm:$0xff]
    %v4479 = vld [vmem:[%s4473 + $0x28] sm:$0xff]
    %v4480 = vld [vmem:[%s4473 + $0x30] sm:$0xff]
    %v4481 = vld [vmem:[%s4473 + $0x38] sm:$0xff]
    %v4482 = vld [vmem:[%s4473 + $0x40] sm:$0xff]
    %v4483 = vld [vmem:[%s4473 + $0x48] sm:$0xff]
    %v4484 = vld [vmem:[%s4473 + $0x50] sm:$0xff]
    %v4485 = vld [vmem:[%s4473 + $0x58] sm:$0xff]
    %v4486 = vld [vmem:[%s4473 + $0x60] sm:$0xff]
    %v4487 = vld [vmem:[%s4473 + $0x68] sm:$0xff]
    %v4488 = vld [vmem:[%s4473 + $0x70] sm:$0xff]
    %v4489 = vld [vmem:[%s4473 + $0x78] sm:$0xff]
    %v4492 = vrot.slane %v4472, 7
    %vm4493 = vcmask 1041409
    %v4494 = vsel %vm4493, %v4492, %v4471
    %4496 = vmatpush.msra.mxu0 %v4489
    %4497 = vmatpush.msra.mxu0 %v4488
    %4498 = vmatpush.msra.mxu0 %v4487
    %4499 = vmatpush.msra.mxu0 %v4486
    %4500 = vmatpush.msra.mxu0 %v4485
    %4501 = vmatpush.msra.mxu0 %v4484
    %4502 = vmatpush.msra.mxu0 %v4483
    %4503 = vmatpush.msra.mxu0 %v4482
    %4504 = vmatpush.msra.mxu0 %v4481
    %4505 = vmatpush.msra.mxu0 %v4480
    %4506 = vmatpush.msra.mxu0 %v4479
    %4507 = vmatpush.msra.mxu0 %v4478
    %4508 = vmatpush.msra.mxu0 %v4477
    %4509 = vmatpush.msra.mxu0 %v4476
    %4510 = vmatpush.msra.mxu0 %v4475
    %4511 = vmatpush.msra.mxu0 %v4474
    %4512 = vmatmul.f32.gmra.mxu0 %v4494
    %v4513 = vpop.f32.mrf.mxu0
    %v4514 = vadd.f32 0.0, %v4513
    %4515 = vdwg.mxu0
    %v4518 = vrot.slane %v4454, 7
    %v4519 = vsel %vm4493, %v4518, %v4453
    %4521 = vmatpush.msra.mxu0 %v4470
    %4522 = vmatpush.msra.mxu0 %v4469
    %4523 = vmatpush.msra.mxu0 %v4468
    %4524 = vmatpush.msra.mxu0 %v4467
    %4525 = vmatpush.msra.mxu0 %v4466
    %4526 = vmatpush.msra.mxu0 %v4465
    %4527 = vmatpush.msra.mxu0 %v4464
    %4528 = vmatpush.msra.mxu0 %v4463
    %4529 = vmatpush.msra.mxu0 %v4462
    %4530 = vmatpush.msra.mxu0 %v4461
    %4531 = vmatpush.msra.mxu0 %v4460
    %4532 = vmatpush.msra.mxu0 %v4459
    %4533 = vmatpush.msra.mxu0 %v4458
    %4534 = vmatpush.msra.mxu0 %v4457
    %4535 = vmatpush.msra.mxu0 %v4456
    %4536 = vmatpush.msra.mxu0 %v4455
    %4537 = vmatmul.f32.gmra.mxu0 %v4519
    %v4538 = vpop.f32.mrf.mxu0
    %v4539 = vadd.f32 %v4514, %v4538
    %4540 = vdwg.mxu0
    %v4541 = vld [vmem:[#allocation7 + $0x2] sm:$0x1]
    %v4542 = vld [vmem:[#allocation7 + $0x12] sm:$0x1]
    %s4543 = scalar_lea.vmem %s3, 256
    %v4544 = vld [vmem:[%s4543] sm:$0xff]
    %v4545 = vld [vmem:[%s4543 + $0x8] sm:$0xff]
    %v4546 = vld [vmem:[%s4543 + $0x10] sm:$0xff]
    %v4547 = vld [vmem:[%s4543 + $0x18] sm:$0xff]
    %v4548 = vld [vmem:[%s4543 + $0x20] sm:$0xff]
    %v4549 = vld [vmem:[%s4543 + $0x28] sm:$0xff]
    %v4550 = vld [vmem:[%s4543 + $0x30] sm:$0xff]
    %v4551 = vld [vmem:[%s4543 + $0x38] sm:$0xff]
    %v4552 = vld [vmem:[%s4543 + $0x40] sm:$0xff]
    %v4553 = vld [vmem:[%s4543 + $0x48] sm:$0xff]
    %v4554 = vld [vmem:[%s4543 + $0x50] sm:$0xff]
    %v4555 = vld [vmem:[%s4543 + $0x58] sm:$0xff]
    %v4556 = vld [vmem:[%s4543 + $0x60] sm:$0xff]
    %v4557 = vld [vmem:[%s4543 + $0x68] sm:$0xff]
    %v4558 = vld [vmem:[%s4543 + $0x70] sm:$0xff]
    %v4559 = vld [vmem:[%s4543 + $0x78] sm:$0xff]
    %v4562 = vrot.slane %v4542, 7
    %v4563 = vsel %vm4493, %v4562, %v4541
    %4565 = vmatpush.msra.mxu0 %v4559
    %4566 = vmatpush.msra.mxu0 %v4558
    %4567 = vmatpush.msra.mxu0 %v4557
    %4568 = vmatpush.msra.mxu0 %v4556
    %4569 = vmatpush.msra.mxu0 %v4555
    %4570 = vmatpush.msra.mxu0 %v4554
    %4571 = vmatpush.msra.mxu0 %v4553
    %4572 = vmatpush.msra.mxu0 %v4552
    %4573 = vmatpush.msra.mxu0 %v4551
    %4574 = vmatpush.msra.mxu0 %v4550
    %4575 = vmatpush.msra.mxu0 %v4549
    %4576 = vmatpush.msra.mxu0 %v4548
    %4577 = vmatpush.msra.mxu0 %v4547
    %4578 = vmatpush.msra.mxu0 %v4546
    %4579 = vmatpush.msra.mxu0 %v4545
    %4580 = vmatpush.msra.mxu0 %v4544
    %4581 = vmatmul.f32.gmra.mxu0 %v4563
    %v4582 = vpop.f32.mrf.mxu0
    %v4583 = vadd.f32 0.0, %v4582
    %4584 = vdwg.mxu0
    %v4585 = vadd.f32 %v4539, %v4583
    %v4586 = vld [vmem:[#allocation7 + $0x3] sm:$0x1]
    %v4587 = vld [vmem:[#allocation7 + $0x13] sm:$0x1]
    %s4588 = scalar_lea.vmem %s3, 384
    %v4589 = vld [vmem:[%s4588] sm:$0xff]
    %v4590 = vld [vmem:[%s4588 + $0x8] sm:$0xff]
    %v4591 = vld [vmem:[%s4588 + $0x10] sm:$0xff]
    %v4592 = vld [vmem:[%s4588 + $0x18] sm:$0xff]
    %v4593 = vld [vmem:[%s4588 + $0x20] sm:$0xff]
    %v4594 = vld [vmem:[%s4588 + $0x28] sm:$0xff]
    %v4595 = vld [vmem:[%s4588 + $0x30] sm:$0xff]
    %v4596 = vld [vmem:[%s4588 + $0x38] sm:$0xff]
    %v4597 = vld [vmem:[%s4588 + $0x40] sm:$0xff]
    %v4598 = vld [vmem:[%s4588 + $0x48] sm:$0xff]
    %v4599 = vld [vmem:[%s4588 + $0x50] sm:$0xff]
    %v4600 = vld [vmem:[%s4588 + $0x58] sm:$0xff]
    %v4601 = vld [vmem:[%s4588 + $0x60] sm:$0xff]
    %v4602 = vld [vmem:[%s4588 + $0x68] sm:$0xff]
    %v4603 = vld [vmem:[%s4588 + $0x70] sm:$0xff]
    %v4604 = vld [vmem:[%s4588 + $0x78] sm:$0xff]
    %v4607 = vrot.slane %v4587, 7
    %v4608 = vsel %vm4493, %v4607, %v4586
    %4610 = vmatpush.msra.mxu0 %v4604
    %4611 = vmatpush.msra.mxu0 %v4603
    %4612 = vmatpush.msra.mxu0 %v4602
    %4613 = vmatpush.msra.mxu0 %v4601
    %4614 = vmatpush.msra.mxu0 %v4600
    %4615 = vmatpush.msra.mxu0 %v4599
    %4616 = vmatpush.msra.mxu0 %v4598
    %4617 = vmatpush.msra.mxu0 %v4597
    %4618 = vmatpush.msra.mxu0 %v4596
    %4619 = vmatpush.msra.mxu0 %v4595
    %4620 = vmatpush.msra.mxu0 %v4594
    %4621 = vmatpush.msra.mxu0 %v4593
    %4622 = vmatpush.msra.mxu0 %v4592
    %4623 = vmatpush.msra.mxu0 %v4591
    %4624 = vmatpush.msra.mxu0 %v4590
    %4625 = vmatpush.msra.mxu0 %v4589
    %4626 = vmatmul.f32.gmra.mxu0 %v4608
    %v4627 = vpop.f32.mrf.mxu0
    %v4628 = vadd.f32 0.0, %v4627
    %4629 = vdwg.mxu0
    %v4630 = vadd.f32 %v4585, %v4628
    %s4631 = scalar_lea.vmem [#allocation7], 4
    %v4632 = vld [vmem:[%s4631] sm:$0x1]
    %v4633 = vld [vmem:[%s4631 + $0x10] sm:$0x1]
    %s4634 = scalar_lea.vmem %s3, 512
    %v4635 = vld [vmem:[%s4634] sm:$0xff]
    %v4636 = vld [vmem:[%s4634 + $0x8] sm:$0xff]
    %v4637 = vld [vmem:[%s4634 + $0x10] sm:$0xff]
    %v4638 = vld [vmem:[%s4634 + $0x18] sm:$0xff]
    %v4639 = vld [vmem:[%s4634 + $0x20] sm:$0xff]
    %v4640 = vld [vmem:[%s4634 + $0x28] sm:$0xff]
    %v4641 = vld [vmem:[%s4634 + $0x30] sm:$0xff]
    %v4642 = vld [vmem:[%s4634 + $0x38] sm:$0xff]
    %v4643 = vld [vmem:[%s4634 + $0x40] sm:$0xff]
    %v4644 = vld [vmem:[%s4634 + $0x48] sm:$0xff]
    %v4645 = vld [vmem:[%s4634 + $0x50] sm:$0xff]
    %v4646 = vld [vmem:[%s4634 + $0x58] sm:$0xff]
    %v4647 = vld [vmem:[%s4634 + $0x60] sm:$0xff]
    %v4648 = vld [vmem:[%s4634 + $0x68] sm:$0xff]
    %v4649 = vld [vmem:[%s4634 + $0x70] sm:$0xff]
    %v4650 = vld [vmem:[%s4634 + $0x78] sm:$0xff]
    %v4653 = vrot.slane %v4633, 7
    %v4654 = vsel %vm4493, %v4653, %v4632
    %4656 = vmatpush.msra.mxu0 %v4650
    %4657 = vmatpush.msra.mxu0 %v4649
    %4658 = vmatpush.msra.mxu0 %v4648
    %4659 = vmatpush.msra.mxu0 %v4647
    %4660 = vmatpush.msra.mxu0 %v4646
    %4661 = vmatpush.msra.mxu0 %v4645
    %4662 = vmatpush.msra.mxu0 %v4644
    %4663 = vmatpush.msra.mxu0 %v4643
    %4664 = vmatpush.msra.mxu0 %v4642
    %4665 = vmatpush.msra.mxu0 %v4641
    %4666 = vmatpush.msra.mxu0 %v4640
    %4667 = vmatpush.msra.mxu0 %v4639
    %4668 = vmatpush.msra.mxu0 %v4638
    %4669 = vmatpush.msra.mxu0 %v4637
    %4670 = vmatpush.msra.mxu0 %v4636
    %4671 = vmatpush.msra.mxu0 %v4635
    %4672 = vmatmul.f32.gmra.mxu0 %v4654
    %v4673 = vpop.f32.mrf.mxu0
    %v4674 = vadd.f32 0.0, %v4673
    %4675 = vdwg.mxu0
    %v4676 = vadd.f32 %v4630, %v4674
    %v4677 = vld [vmem:[%s4631 + $0x1] sm:$0x1]
    %v4678 = vld [vmem:[%s4631 + $0x11] sm:$0x1]
    %s4679 = scalar_lea.vmem %s3, 640
    %v4680 = vld [vmem:[%s4679] sm:$0xff]
    %v4681 = vld [vmem:[%s4679 + $0x8] sm:$0xff]
    %v4682 = vld [vmem:[%s4679 + $0x10] sm:$0xff]
    %v4683 = vld [vmem:[%s4679 + $0x18] sm:$0xff]
    %v4684 = vld [vmem:[%s4679 + $0x20] sm:$0xff]
    %v4685 = vld [vmem:[%s4679 + $0x28] sm:$0xff]
    %v4686 = vld [vmem:[%s4679 + $0x30] sm:$0xff]
    %v4687 = vld [vmem:[%s4679 + $0x38] sm:$0xff]
    %v4688 = vld [vmem:[%s4679 + $0x40] sm:$0xff]
    %v4689 = vld [vmem:[%s4679 + $0x48] sm:$0xff]
    %v4690 = vld [vmem:[%s4679 + $0x50] sm:$0xff]
    %v4691 = vld [vmem:[%s4679 + $0x58] sm:$0xff]
    %v4692 = vld [vmem:[%s4679 + $0x60] sm:$0xff]
    %v4693 = vld [vmem:[%s4679 + $0x68] sm:$0xff]
    %v4694 = vld [vmem:[%s4679 + $0x70] sm:$0xff]
    %v4695 = vld [vmem:[%s4679 + $0x78] sm:$0xff]
    %v4698 = vrot.slane %v4678, 7
    %v4699 = vsel %vm4493, %v4698, %v4677
    %4701 = vmatpush.msra.mxu0 %v4695
    %4702 = vmatpush.msra.mxu0 %v4694
    %4703 = vmatpush.msra.mxu0 %v4693
    %4704 = vmatpush.msra.mxu0 %v4692
    %4705 = vmatpush.msra.mxu0 %v4691
    %4706 = vmatpush.msra.mxu0 %v4690
    %4707 = vmatpush.msra.mxu0 %v4689
    %4708 = vmatpush.msra.mxu0 %v4688
    %4709 = vmatpush.msra.mxu0 %v4687
    %4710 = vmatpush.msra.mxu0 %v4686
    %4711 = vmatpush.msra.mxu0 %v4685
    %4712 = vmatpush.msra.mxu0 %v4684
    %4713 = vmatpush.msra.mxu0 %v4683
    %4714 = vmatpush.msra.mxu0 %v4682
    %4715 = vmatpush.msra.mxu0 %v4681
    %4716 = vmatpush.msra.mxu0 %v4680
    %4717 = vmatmul.f32.gmra.mxu0 %v4699
    %v4718 = vpop.f32.mrf.mxu0
    %v4719 = vadd.f32 0.0, %v4718
    %4720 = vdwg.mxu0
    %v4721 = vadd.f32 %v4676, %v4719
    %v4722 = vld [vmem:[%s4631 + $0x2] sm:$0x1]
    %v4723 = vld [vmem:[%s4631 + $0x12] sm:$0x1]
    %s4724 = scalar_lea.vmem %s3, 768
    %v4725 = vld [vmem:[%s4724] sm:$0xff]
    %v4726 = vld [vmem:[%s4724 + $0x8] sm:$0xff]
    %v4727 = vld [vmem:[%s4724 + $0x10] sm:$0xff]
    %v4728 = vld [vmem:[%s4724 + $0x18] sm:$0xff]
    %v4729 = vld [vmem:[%s4724 + $0x20] sm:$0xff]
    %v4730 = vld [vmem:[%s4724 + $0x28] sm:$0xff]
    %v4731 = vld [vmem:[%s4724 + $0x30] sm:$0xff]
    %v4732 = vld [vmem:[%s4724 + $0x38] sm:$0xff]
    %v4733 = vld [vmem:[%s4724 + $0x40] sm:$0xff]
    %v4734 = vld [vmem:[%s4724 + $0x48] sm:$0xff]
    %v4735 = vld [vmem:[%s4724 + $0x50] sm:$0xff]
    %v4736 = vld [vmem:[%s4724 + $0x58] sm:$0xff]
    %v4737 = vld [vmem:[%s4724 + $0x60] sm:$0xff]
    %v4738 = vld [vmem:[%s4724 + $0x68] sm:$0xff]
    %v4739 = vld [vmem:[%s4724 + $0x70] sm:$0xff]
    %v4740 = vld [vmem:[%s4724 + $0x78] sm:$0xff]
    %v4743 = vrot.slane %v4723, 7
    %v4744 = vsel %vm4493, %v4743, %v4722
    %4746 = vmatpush.msra.mxu0 %v4740
    %4747 = vmatpush.msra.mxu0 %v4739
    %4748 = vmatpush.msra.mxu0 %v4738
    %4749 = vmatpush.msra.mxu0 %v4737
    %4750 = vmatpush.msra.mxu0 %v4736
    %4751 = vmatpush.msra.mxu0 %v4735
    %4752 = vmatpush.msra.mxu0 %v4734
    %4753 = vmatpush.msra.mxu0 %v4733
    %4754 = vmatpush.msra.mxu0 %v4732
    %4755 = vmatpush.msra.mxu0 %v4731
    %4756 = vmatpush.msra.mxu0 %v4730
    %4757 = vmatpush.msra.mxu0 %v4729
    %4758 = vmatpush.msra.mxu0 %v4728
    %4759 = vmatpush.msra.mxu0 %v4727
    %4760 = vmatpush.msra.mxu0 %v4726
    %4761 = vmatpush.msra.mxu0 %v4725
    %4762 = vmatmul.f32.gmra.mxu0 %v4744
    %v4763 = vpop.f32.mrf.mxu0
    %v4764 = vadd.f32 0.0, %v4763
    %4765 = vdwg.mxu0
    %v4766 = vadd.f32 %v4721, %v4764
    %v4767 = vld [vmem:[%s4631 + $0x3] sm:$0x1]
    %v4768 = vld [vmem:[%s4631 + $0x13] sm:$0x1]
    %s4769 = scalar_lea.vmem %s3, 896
    %v4770 = vld [vmem:[%s4769] sm:$0xff]
    %v4771 = vld [vmem:[%s4769 + $0x8] sm:$0xff]
    %v4772 = vld [vmem:[%s4769 + $0x10] sm:$0xff]
    %v4773 = vld [vmem:[%s4769 + $0x18] sm:$0xff]
    %v4774 = vld [vmem:[%s4769 + $0x20] sm:$0xff]
    %v4775 = vld [vmem:[%s4769 + $0x28] sm:$0xff]
    %v4776 = vld [vmem:[%s4769 + $0x30] sm:$0xff]
    %v4777 = vld [vmem:[%s4769 + $0x38] sm:$0xff]
    %v4778 = vld [vmem:[%s4769 + $0x40] sm:$0xff]
    %v4779 = vld [vmem:[%s4769 + $0x48] sm:$0xff]
    %v4780 = vld [vmem:[%s4769 + $0x50] sm:$0xff]
    %v4781 = vld [vmem:[%s4769 + $0x58] sm:$0xff]
    %v4782 = vld [vmem:[%s4769 + $0x60] sm:$0xff]
    %v4783 = vld [vmem:[%s4769 + $0x68] sm:$0xff]
    %v4784 = vld [vmem:[%s4769 + $0x70] sm:$0xff]
    %v4785 = vld [vmem:[%s4769 + $0x78] sm:$0xff]
    %v4788 = vrot.slane %v4768, 7
    %v4789 = vsel %vm4493, %v4788, %v4767
    %4791 = vmatpush.msra.mxu0 %v4785
    %4792 = vmatpush.msra.mxu0 %v4784
    %4793 = vmatpush.msra.mxu0 %v4783
    %4794 = vmatpush.msra.mxu0 %v4782
    %4795 = vmatpush.msra.mxu0 %v4781
    %4796 = vmatpush.msra.mxu0 %v4780
    %4797 = vmatpush.msra.mxu0 %v4779
    %4798 = vmatpush.msra.mxu0 %v4778
    %4799 = vmatpush.msra.mxu0 %v4777
    %4800 = vmatpush.msra.mxu0 %v4776
    %4801 = vmatpush.msra.mxu0 %v4775
    %4802 = vmatpush.msra.mxu0 %v4774
    %4803 = vmatpush.msra.mxu0 %v4773
    %4804 = vmatpush.msra.mxu0 %v4772
    %4805 = vmatpush.msra.mxu0 %v4771
    %4806 = vmatpush.msra.mxu0 %v4770
    %4807 = vmatmul.f32.gmra.mxu0 %v4789
    %v4808 = vpop.f32.mrf.mxu0
    %v4809 = vadd.f32 0.0, %v4808
    %4810 = vdwg.mxu0
    %v4811 = vadd.f32 %v4766, %v4809
    %s4812 = scalar_lea.vmem [#allocation7], 8
    %v4813 = vld [vmem:[%s4812] sm:$0x1]
    %v4814 = vld [vmem:[%s4812 + $0x10] sm:$0x1]
    %s4815 = scalar_lea.vmem %s3, 1024
    %v4816 = vld [vmem:[%s4815] sm:$0xff]
    %v4817 = vld [vmem:[%s4815 + $0x8] sm:$0xff]
    %v4818 = vld [vmem:[%s4815 + $0x10] sm:$0xff]
    %v4819 = vld [vmem:[%s4815 + $0x18] sm:$0xff]
    %v4820 = vld [vmem:[%s4815 + $0x20] sm:$0xff]
    %v4821 = vld [vmem:[%s4815 + $0x28] sm:$0xff]
    %v4822 = vld [vmem:[%s4815 + $0x30] sm:$0xff]
    %v4823 = vld [vmem:[%s4815 + $0x38] sm:$0xff]
    %v4824 = vld [vmem:[%s4815 + $0x40] sm:$0xff]
    %v4825 = vld [vmem:[%s4815 + $0x48] sm:$0xff]
    %v4826 = vld [vmem:[%s4815 + $0x50] sm:$0xff]
    %v4827 = vld [vmem:[%s4815 + $0x58] sm:$0xff]
    %v4828 = vld [vmem:[%s4815 + $0x60] sm:$0xff]
    %v4829 = vld [vmem:[%s4815 + $0x68] sm:$0xff]
    %v4830 = vld [vmem:[%s4815 + $0x70] sm:$0xff]
    %v4831 = vld [vmem:[%s4815 + $0x78] sm:$0xff]
    %v4834 = vrot.slane %v4814, 7
    %v4835 = vsel %vm4493, %v4834, %v4813
    %4837 = vmatpush.msra.mxu0 %v4831
    %4838 = vmatpush.msra.mxu0 %v4830
    %4839 = vmatpush.msra.mxu0 %v4829
    %4840 = vmatpush.msra.mxu0 %v4828
    %4841 = vmatpush.msra.mxu0 %v4827
    %4842 = vmatpush.msra.mxu0 %v4826
    %4843 = vmatpush.msra.mxu0 %v4825
    %4844 = vmatpush.msra.mxu0 %v4824
    %4845 = vmatpush.msra.mxu0 %v4823
    %4846 = vmatpush.msra.mxu0 %v4822
    %4847 = vmatpush.msra.mxu0 %v4821
    %4848 = vmatpush.msra.mxu0 %v4820
    %4849 = vmatpush.msra.mxu0 %v4819
    %4850 = vmatpush.msra.mxu0 %v4818
    %4851 = vmatpush.msra.mxu0 %v4817
    %4852 = vmatpush.msra.mxu0 %v4816
    %4853 = vmatmul.f32.gmra.mxu0 %v4835
    %v4854 = vpop.f32.mrf.mxu0
    %v4855 = vadd.f32 0.0, %v4854
    %4856 = vdwg.mxu0
    %v4857 = vadd.f32 %v4811, %v4855
    %v4858 = vld [vmem:[%s4812 + $0x1] sm:$0x1]
    %v4859 = vld [vmem:[%s4812 + $0x11] sm:$0x1]
    %s4860 = scalar_lea.vmem %s3, 1152
    %v4861 = vld [vmem:[%s4860] sm:$0xff]
    %v4862 = vld [vmem:[%s4860 + $0x8] sm:$0xff]
    %v4863 = vld [vmem:[%s4860 + $0x10] sm:$0xff]
    %v4864 = vld [vmem:[%s4860 + $0x18] sm:$0xff]
    %v4865 = vld [vmem:[%s4860 + $0x20] sm:$0xff]
    %v4866 = vld [vmem:[%s4860 + $0x28] sm:$0xff]
    %v4867 = vld [vmem:[%s4860 + $0x30] sm:$0xff]
    %v4868 = vld [vmem:[%s4860 + $0x38] sm:$0xff]
    %v4869 = vld [vmem:[%s4860 + $0x40] sm:$0xff]
    %v4870 = vld [vmem:[%s4860 + $0x48] sm:$0xff]
    %v4871 = vld [vmem:[%s4860 + $0x50] sm:$0xff]
    %v4872 = vld [vmem:[%s4860 + $0x58] sm:$0xff]
    %v4873 = vld [vmem:[%s4860 + $0x60] sm:$0xff]
    %v4874 = vld [vmem:[%s4860 + $0x68] sm:$0xff]
    %v4875 = vld [vmem:[%s4860 + $0x70] sm:$0xff]
    %v4876 = vld [vmem:[%s4860 + $0x78] sm:$0xff]
    %v4879 = vrot.slane %v4859, 7
    %v4880 = vsel %vm4493, %v4879, %v4858
    %4882 = vmatpush.msra.mxu0 %v4876
    %4883 = vmatpush.msra.mxu0 %v4875
    %4884 = vmatpush.msra.mxu0 %v4874
    %4885 = vmatpush.msra.mxu0 %v4873
    %4886 = vmatpush.msra.mxu0 %v4872
    %4887 = vmatpush.msra.mxu0 %v4871
    %4888 = vmatpush.msra.mxu0 %v4870
    %4889 = vmatpush.msra.mxu0 %v4869
    %4890 = vmatpush.msra.mxu0 %v4868
    %4891 = vmatpush.msra.mxu0 %v4867
    %4892 = vmatpush.msra.mxu0 %v4866
    %4893 = vmatpush.msra.mxu0 %v4865
    %4894 = vmatpush.msra.mxu0 %v4864
    %4895 = vmatpush.msra.mxu0 %v4863
    %4896 = vmatpush.msra.mxu0 %v4862
    %4897 = vmatpush.msra.mxu0 %v4861
    %4898 = vmatmul.f32.gmra.mxu0 %v4880
    %v4899 = vpop.f32.mrf.mxu0
    %v4900 = vadd.f32 0.0, %v4899
    %4901 = vdwg.mxu0
    %v4902 = vadd.f32 %v4857, %v4900
    %v4903 = vld [vmem:[%s4812 + $0x2] sm:$0x1]
    %v4904 = vld [vmem:[%s4812 + $0x12] sm:$0x1]
    %s4905 = scalar_lea.vmem %s3, 1280
    %v4906 = vld [vmem:[%s4905] sm:$0xff]
    %v4907 = vld [vmem:[%s4905 + $0x8] sm:$0xff]
    %v4908 = vld [vmem:[%s4905 + $0x10] sm:$0xff]
    %v4909 = vld [vmem:[%s4905 + $0x18] sm:$0xff]
    %v4910 = vld [vmem:[%s4905 + $0x20] sm:$0xff]
    %v4911 = vld [vmem:[%s4905 + $0x28] sm:$0xff]
    %v4912 = vld [vmem:[%s4905 + $0x30] sm:$0xff]
    %v4913 = vld [vmem:[%s4905 + $0x38] sm:$0xff]
    %v4914 = vld [vmem:[%s4905 + $0x40] sm:$0xff]
    %v4915 = vld [vmem:[%s4905 + $0x48] sm:$0xff]
    %v4916 = vld [vmem:[%s4905 + $0x50] sm:$0xff]
    %v4917 = vld [vmem:[%s4905 + $0x58] sm:$0xff]
    %v4918 = vld [vmem:[%s4905 + $0x60] sm:$0xff]
    %v4919 = vld [vmem:[%s4905 + $0x68] sm:$0xff]
    %v4920 = vld [vmem:[%s4905 + $0x70] sm:$0xff]
    %v4921 = vld [vmem:[%s4905 + $0x78] sm:$0xff]
    %v4924 = vrot.slane %v4904, 7
    %v4925 = vsel %vm4493, %v4924, %v4903
    %4927 = vmatpush.msra.mxu0 %v4921
    %4928 = vmatpush.msra.mxu0 %v4920
    %4929 = vmatpush.msra.mxu0 %v4919
    %4930 = vmatpush.msra.mxu0 %v4918
    %4931 = vmatpush.msra.mxu0 %v4917
    %4932 = vmatpush.msra.mxu0 %v4916
    %4933 = vmatpush.msra.mxu0 %v4915
    %4934 = vmatpush.msra.mxu0 %v4914
    %4935 = vmatpush.msra.mxu0 %v4913
    %4936 = vmatpush.msra.mxu0 %v4912
    %4937 = vmatpush.msra.mxu0 %v4911
    %4938 = vmatpush.msra.mxu0 %v4910
    %4939 = vmatpush.msra.mxu0 %v4909
    %4940 = vmatpush.msra.mxu0 %v4908
    %4941 = vmatpush.msra.mxu0 %v4907
    %4942 = vmatpush.msra.mxu0 %v4906
    %4943 = vmatmul.f32.gmra.mxu0 %v4925
    %v4944 = vpop.f32.mrf.mxu0
    %v4945 = vadd.f32 0.0, %v4944
    %4946 = vdwg.mxu0
    %v4947 = vadd.f32 %v4902, %v4945
    %v4948 = vld [vmem:[%s4812 + $0x3] sm:$0x1]
    %v4949 = vld [vmem:[%s4812 + $0x13] sm:$0x1]
    %s4950 = scalar_lea.vmem %s3, 1408
    %v4951 = vld [vmem:[%s4950] sm:$0xff]
    %v4952 = vld [vmem:[%s4950 + $0x8] sm:$0xff]
    %v4953 = vld [vmem:[%s4950 + $0x10] sm:$0xff]
    %v4954 = vld [vmem:[%s4950 + $0x18] sm:$0xff]
    %v4955 = vld [vmem:[%s4950 + $0x20] sm:$0xff]
    %v4956 = vld [vmem:[%s4950 + $0x28] sm:$0xff]
    %v4957 = vld [vmem:[%s4950 + $0x30] sm:$0xff]
    %v4958 = vld [vmem:[%s4950 + $0x38] sm:$0xff]
    %v4959 = vld [vmem:[%s4950 + $0x40] sm:$0xff]
    %v4960 = vld [vmem:[%s4950 + $0x48] sm:$0xff]
    %v4961 = vld [vmem:[%s4950 + $0x50] sm:$0xff]
    %v4962 = vld [vmem:[%s4950 + $0x58] sm:$0xff]
    %v4963 = vld [vmem:[%s4950 + $0x60] sm:$0xff]
    %v4964 = vld [vmem:[%s4950 + $0x68] sm:$0xff]
    %v4965 = vld [vmem:[%s4950 + $0x70] sm:$0xff]
    %v4966 = vld [vmem:[%s4950 + $0x78] sm:$0xff]
    %v4969 = vrot.slane %v4949, 7
    %v4970 = vsel %vm4493, %v4969, %v4948
    %4972 = vmatpush.msra.mxu0 %v4966
    %4973 = vmatpush.msra.mxu0 %v4965
    %4974 = vmatpush.msra.mxu0 %v4964
    %4975 = vmatpush.msra.mxu0 %v4963
    %4976 = vmatpush.msra.mxu0 %v4962
    %4977 = vmatpush.msra.mxu0 %v4961
    %4978 = vmatpush.msra.mxu0 %v4960
    %4979 = vmatpush.msra.mxu0 %v4959
    %4980 = vmatpush.msra.mxu0 %v4958
    %4981 = vmatpush.msra.mxu0 %v4957
    %4982 = vmatpush.msra.mxu0 %v4956
    %4983 = vmatpush.msra.mxu0 %v4955
    %4984 = vmatpush.msra.mxu0 %v4954
    %4985 = vmatpush.msra.mxu0 %v4953
    %4986 = vmatpush.msra.mxu0 %v4952
    %4987 = vmatpush.msra.mxu0 %v4951
    %4988 = vmatmul.f32.gmra.mxu0 %v4970
    %v4989 = vpop.f32.mrf.mxu0
    %v4990 = vadd.f32 0.0, %v4989
    %4991 = vdwg.mxu0
    %v4992 = vadd.f32 %v4947, %v4990
    %s4993 = scalar_lea.vmem [#allocation7], 12
    %v4994 = vld [vmem:[%s4993] sm:$0x1]
    %v4995 = vld [vmem:[%s4993 + $0x10] sm:$0x1]
    %s4996 = scalar_lea.vmem %s3, 1536
    %v4997 = vld [vmem:[%s4996] sm:$0xff]
    %v4998 = vld [vmem:[%s4996 + $0x8] sm:$0xff]
    %v4999 = vld [vmem:[%s4996 + $0x10] sm:$0xff]
    %v5000 = vld [vmem:[%s4996 + $0x18] sm:$0xff]
    %v5001 = vld [vmem:[%s4996 + $0x20] sm:$0xff]
    %v5002 = vld [vmem:[%s4996 + $0x28] sm:$0xff]
    %v5003 = vld [vmem:[%s4996 + $0x30] sm:$0xff]
    %v5004 = vld [vmem:[%s4996 + $0x38] sm:$0xff]
    %v5005 = vld [vmem:[%s4996 + $0x40] sm:$0xff]
    %v5006 = vld [vmem:[%s4996 + $0x48] sm:$0xff]
    %v5007 = vld [vmem:[%s4996 + $0x50] sm:$0xff]
    %v5008 = vld [vmem:[%s4996 + $0x58] sm:$0xff]
    %v5009 = vld [vmem:[%s4996 + $0x60] sm:$0xff]
    %v5010 = vld [vmem:[%s4996 + $0x68] sm:$0xff]
    %v5011 = vld [vmem:[%s4996 + $0x70] sm:$0xff]
    %v5012 = vld [vmem:[%s4996 + $0x78] sm:$0xff]
    %v5015 = vrot.slane %v4995, 7
    %v5016 = vsel %vm4493, %v5015, %v4994
    %5018 = vmatpush.msra.mxu0 %v5012
    %5019 = vmatpush.msra.mxu0 %v5011
    %5020 = vmatpush.msra.mxu0 %v5010
    %5021 = vmatpush.msra.mxu0 %v5009
    %5022 = vmatpush.msra.mxu0 %v5008
    %5023 = vmatpush.msra.mxu0 %v5007
    %5024 = vmatpush.msra.mxu0 %v5006
    %5025 = vmatpush.msra.mxu0 %v5005
    %5026 = vmatpush.msra.mxu0 %v5004
    %5027 = vmatpush.msra.mxu0 %v5003
    %5028 = vmatpush.msra.mxu0 %v5002
    %5029 = vmatpush.msra.mxu0 %v5001
    %5030 = vmatpush.msra.mxu0 %v5000
    %5031 = vmatpush.msra.mxu0 %v4999
    %5032 = vmatpush.msra.mxu0 %v4998
    %5033 = vmatpush.msra.mxu0 %v4997
    %5034 = vmatmul.f32.gmra.mxu0 %v5016
    %v5035 = vpop.f32.mrf.mxu0
    %v5036 = vadd.f32 0.0, %v5035
    %5037 = vdwg.mxu0
    %v5038 = vadd.f32 %v4992, %v5036
    %v5039 = vld [vmem:[%s4993 + $0x1] sm:$0x1]
    %v5040 = vld [vmem:[%s4993 + $0x11] sm:$0x1]
    %s5041 = scalar_lea.vmem %s3, 1664
    %v5042 = vld [vmem:[%s5041] sm:$0xff]
    %v5043 = vld [vmem:[%s5041 + $0x8] sm:$0xff]
    %v5044 = vld [vmem:[%s5041 + $0x10] sm:$0xff]
    %v5045 = vld [vmem:[%s5041 + $0x18] sm:$0xff]
    %v5046 = vld [vmem:[%s5041 + $0x20] sm:$0xff]
    %v5047 = vld [vmem:[%s5041 + $0x28] sm:$0xff]
    %v5048 = vld [vmem:[%s5041 + $0x30] sm:$0xff]
    %v5049 = vld [vmem:[%s5041 + $0x38] sm:$0xff]
    %v5050 = vld [vmem:[%s5041 + $0x40] sm:$0xff]
    %v5051 = vld [vmem:[%s5041 + $0x48] sm:$0xff]
    %v5052 = vld [vmem:[%s5041 + $0x50] sm:$0xff]
    %v5053 = vld [vmem:[%s5041 + $0x58] sm:$0xff]
    %v5054 = vld [vmem:[%s5041 + $0x60] sm:$0xff]
    %v5055 = vld [vmem:[%s5041 + $0x68] sm:$0xff]
    %v5056 = vld [vmem:[%s5041 + $0x70] sm:$0xff]
    %v5057 = vld [vmem:[%s5041 + $0x78] sm:$0xff]
    %v5060 = vrot.slane %v5040, 7
    %v5061 = vsel %vm4493, %v5060, %v5039
    %5063 = vmatpush.msra.mxu0 %v5057
    %5064 = vmatpush.msra.mxu0 %v5056
    %5065 = vmatpush.msra.mxu0 %v5055
    %5066 = vmatpush.msra.mxu0 %v5054
    %5067 = vmatpush.msra.mxu0 %v5053
    %5068 = vmatpush.msra.mxu0 %v5052
    %5069 = vmatpush.msra.mxu0 %v5051
    %5070 = vmatpush.msra.mxu0 %v5050
    %5071 = vmatpush.msra.mxu0 %v5049
    %5072 = vmatpush.msra.mxu0 %v5048
    %5073 = vmatpush.msra.mxu0 %v5047
    %5074 = vmatpush.msra.mxu0 %v5046
    %5075 = vmatpush.msra.mxu0 %v5045
    %5076 = vmatpush.msra.mxu0 %v5044
    %5077 = vmatpush.msra.mxu0 %v5043
    %5078 = vmatpush.msra.mxu0 %v5042
    %5079 = vmatmul.f32.gmra.mxu0 %v5061
    %v5080 = vpop.f32.mrf.mxu0
    %v5081 = vadd.f32 0.0, %v5080
    %5082 = vdwg.mxu0
    %v5083 = vadd.f32 %v5038, %v5081
    %v5084 = vld [vmem:[%s4993 + $0x2] sm:$0x1]
    %v5085 = vld [vmem:[%s4993 + $0x12] sm:$0x1]
    %s5086 = scalar_lea.vmem %s3, 1792
    %v5087 = vld [vmem:[%s5086] sm:$0xff]
    %v5088 = vld [vmem:[%s5086 + $0x8] sm:$0xff]
    %v5089 = vld [vmem:[%s5086 + $0x10] sm:$0xff]
    %v5090 = vld [vmem:[%s5086 + $0x18] sm:$0xff]
    %v5091 = vld [vmem:[%s5086 + $0x20] sm:$0xff]
    %v5092 = vld [vmem:[%s5086 + $0x28] sm:$0xff]
    %v5093 = vld [vmem:[%s5086 + $0x30] sm:$0xff]
    %v5094 = vld [vmem:[%s5086 + $0x38] sm:$0xff]
    %v5095 = vld [vmem:[%s5086 + $0x40] sm:$0xff]
    %v5096 = vld [vmem:[%s5086 + $0x48] sm:$0xff]
    %v5097 = vld [vmem:[%s5086 + $0x50] sm:$0xff]
    %v5098 = vld [vmem:[%s5086 + $0x58] sm:$0xff]
    %v5099 = vld [vmem:[%s5086 + $0x60] sm:$0xff]
    %v5100 = vld [vmem:[%s5086 + $0x68] sm:$0xff]
    %v5101 = vld [vmem:[%s5086 + $0x70] sm:$0xff]
    %v5102 = vld [vmem:[%s5086 + $0x78] sm:$0xff]
    %v5105 = vrot.slane %v5085, 7
    %v5106 = vsel %vm4493, %v5105, %v5084
    %5108 = vmatpush.msra.mxu0 %v5102
    %5109 = vmatpush.msra.mxu0 %v5101
    %5110 = vmatpush.msra.mxu0 %v5100
    %5111 = vmatpush.msra.mxu0 %v5099
    %5112 = vmatpush.msra.mxu0 %v5098
    %5113 = vmatpush.msra.mxu0 %v5097
    %5114 = vmatpush.msra.mxu0 %v5096
    %5115 = vmatpush.msra.mxu0 %v5095
    %5116 = vmatpush.msra.mxu0 %v5094
    %5117 = vmatpush.msra.mxu0 %v5093
    %5118 = vmatpush.msra.mxu0 %v5092
    %5119 = vmatpush.msra.mxu0 %v5091
    %5120 = vmatpush.msra.mxu0 %v5090
    %5121 = vmatpush.msra.mxu0 %v5089
    %5122 = vmatpush.msra.mxu0 %v5088
    %5123 = vmatpush.msra.mxu0 %v5087
    %5124 = vmatmul.f32.gmra.mxu0 %v5106
    %v5125 = vpop.f32.mrf.mxu0
    %v5126 = vadd.f32 0.0, %v5125
    %5127 = vdwg.mxu0
    %v5128 = vadd.f32 %v5083, %v5126
    %v5129 = vld [vmem:[%s4993 + $0x3] sm:$0x1]
    %v5130 = vld [vmem:[%s4993 + $0x13] sm:$0x1]
    %s5131 = scalar_lea.vmem %s3, 1920
    %v5132 = vld [vmem:[%s5131] sm:$0xff]
    %v5133 = vld [vmem:[%s5131 + $0x8] sm:$0xff]
    %v5134 = vld [vmem:[%s5131 + $0x10] sm:$0xff]
    %v5135 = vld [vmem:[%s5131 + $0x18] sm:$0xff]
    %v5136 = vld [vmem:[%s5131 + $0x20] sm:$0xff]
    %v5137 = vld [vmem:[%s5131 + $0x28] sm:$0xff]
    %v5138 = vld [vmem:[%s5131 + $0x30] sm:$0xff]
    %v5139 = vld [vmem:[%s5131 + $0x38] sm:$0xff]
    %v5140 = vld [vmem:[%s5131 + $0x40] sm:$0xff]
    %v5141 = vld [vmem:[%s5131 + $0x48] sm:$0xff]
    %v5142 = vld [vmem:[%s5131 + $0x50] sm:$0xff]
    %v5143 = vld [vmem:[%s5131 + $0x58] sm:$0xff]
    %v5144 = vld [vmem:[%s5131 + $0x60] sm:$0xff]
    %v5145 = vld [vmem:[%s5131 + $0x68] sm:$0xff]
    %v5146 = vld [vmem:[%s5131 + $0x70] sm:$0xff]
    %v5147 = vld [vmem:[%s5131 + $0x78] sm:$0xff]
    %v5150 = vrot.slane %v5130, 7
    %v5151 = vsel %vm4493, %v5150, %v5129
    %5153 = vmatpush.msra.mxu0 %v5147
    %5154 = vmatpush.msra.mxu0 %v5146
    %5155 = vmatpush.msra.mxu0 %v5145
    %5156 = vmatpush.msra.mxu0 %v5144
    %5157 = vmatpush.msra.mxu0 %v5143
    %5158 = vmatpush.msra.mxu0 %v5142
    %5159 = vmatpush.msra.mxu0 %v5141
    %5160 = vmatpush.msra.mxu0 %v5140
    %5161 = vmatpush.msra.mxu0 %v5139
    %5162 = vmatpush.msra.mxu0 %v5138
    %5163 = vmatpush.msra.mxu0 %v5137
    %5164 = vmatpush.msra.mxu0 %v5136
    %5165 = vmatpush.msra.mxu0 %v5135
    %5166 = vmatpush.msra.mxu0 %v5134
    %5167 = vmatpush.msra.mxu0 %v5133
    %5168 = vmatpush.msra.mxu0 %v5132
    %5169 = vmatmul.f32.gmra.mxu0 %v5151
    %v5170 = vpop.f32.mrf.mxu0
    %v5171 = vadd.f32 0.0, %v5170
    %5172 = vdwg.mxu0
    %v5173 = vadd.f32 %v5128, %v5171
    %v5174 = vld [vmem:[%s6 + $0x2] sm:$0x1]
    %v5175 = vperm.slane %v5174, 0
    %v5176 = vadd.f32 %v5173, %v5175
    %v5177 = vmax.f32 %v5176, 0.0
    %v5178 = vld [vmem:[%s4] sm:$0xff]
    %v5179 = vld [vmem:[%s4 + $0x8] sm:$0xff]
    %v5180 = vld [vmem:[%s4 + $0x10] sm:$0xff]
    %v5181 = vld [vmem:[%s4 + $0x18] sm:$0xff]
    %v5182 = vld [vmem:[%s4 + $0x20] sm:$0xff]
    %v5183 = vld [vmem:[%s4 + $0x28] sm:$0xff]
    %v5184 = vld [vmem:[%s4 + $0x30] sm:$0xff]
    %v5185 = vld [vmem:[%s4 + $0x38] sm:$0xff]
    %v5186 = vld [vmem:[%s4 + $0x40] sm:$0xff]
    %v5187 = vld [vmem:[%s4 + $0x48] sm:$0xff]
    %v5188 = vld [vmem:[%s4 + $0x50] sm:$0xff]
    %v5189 = vld [vmem:[%s4 + $0x58] sm:$0xff]
    %v5190 = vld [vmem:[%s4 + $0x60] sm:$0xff]
    %v5191 = vld [vmem:[%s4 + $0x68] sm:$0xff]
    %v5192 = vld [vmem:[%s4 + $0x70] sm:$0xff]
    %v5193 = vld [vmem:[%s4 + $0x78] sm:$0xff]
    %v5194 = vld [vmem:[%s6 + $0x3] sm:$0x1]
    %v5195 = vperm.slane %v5194, 0
    %5196 = vmatpush.msra.mxu0 %v5193
    %5197 = vmatpush.msra.mxu0 %v5192
    %5198 = vmatpush.msra.mxu0 %v5191
    %5199 = vmatpush.msra.mxu0 %v5190
    %5200 = vmatpush.msra.mxu0 %v5189
    %5201 = vmatpush.msra.mxu0 %v5188
    %5202 = vmatpush.msra.mxu0 %v5187
    %5203 = vmatpush.msra.mxu0 %v5186
    %5204 = vmatpush.msra.mxu0 %v5185
    %5205 = vmatpush.msra.mxu0 %v5184
    %5206 = vmatpush.msra.mxu0 %v5183
    %5207 = vmatpush.msra.mxu0 %v5182
    %5208 = vmatpush.msra.mxu0 %v5181
    %5209 = vmatpush.msra.mxu0 %v5180
    %5210 = vmatpush.msra.mxu0 %v5179
    %5211 = vmatpush.msra.mxu0 %v5178
    %5212 = vmatmul.f32.gmra.mxu0 %v5177
    %v5213 = vpop.f32.mrf.mxu0
    %v5214 = vadd.f32 %v5195, %v5213
    %5215 = vdwg.mxu0
    %v5216 = vmax.f32 %v5214, 0.0
    %v5217 = vld [vmem:[%s5] sm:$0xff]
    %v5218 = vld [vmem:[%s5 + $0x8] sm:$0xff]
    %v5219 = vld [vmem:[%s5 + $0x10] sm:$0xff]
    %v5220 = vld [vmem:[%s5 + $0x18] sm:$0xff]
    %v5221 = vld [vmem:[%s5 + $0x20] sm:$0xff]
    %v5222 = vld [vmem:[%s5 + $0x28] sm:$0xff]
    %v5223 = vld [vmem:[%s5 + $0x30] sm:$0xff]
    %v5224 = vld [vmem:[%s5 + $0x38] sm:$0xff]
    %v5225 = vld [vmem:[%s5 + $0x40] sm:$0xff]
    %v5226 = vld [vmem:[%s5 + $0x48] sm:$0xff]
    %v5227 = vld [vmem:[%s5 + $0x50] sm:$0xff]
    %v5228 = vld [vmem:[%s5 + $0x58] sm:$0xff]
    %v5229 = vld [vmem:[%s5 + $0x60] sm:$0xff]
    %v5230 = vld [vmem:[%s5 + $0x68] sm:$0xff]
    %v5231 = vld [vmem:[%s5 + $0x70] sm:$0xff]
    %v5232 = vld [vmem:[%s5 + $0x78] sm:$0xff]
    %v5233 = vld [vmem:[%s6 + $0x4] sm:$0x1]
    %v5234 = vperm.slane %v5233, 0
    %5235 = vmatpush.msra.mxu0 %v5232
    %5236 = vmatpush.msra.mxu0 %v5231
    %5237 = vmatpush.msra.mxu0 %v5230
    %5238 = vmatpush.msra.mxu0 %v5229
    %5239 = vmatpush.msra.mxu0 %v5228
    %5240 = vmatpush.msra.mxu0 %v5227
    %5241 = vmatpush.msra.mxu0 %v5226
    %5242 = vmatpush.msra.mxu0 %v5225
    %5243 = vmatpush.msra.mxu0 %v5224
    %5244 = vmatpush.msra.mxu0 %v5223
    %5245 = vmatpush.msra.mxu0 %v5222
    %5246 = vmatpush.msra.mxu0 %v5221
    %5247 = vmatpush.msra.mxu0 %v5220
    %5248 = vmatpush.msra.mxu0 %v5219
    %5249 = vmatpush.msra.mxu0 %v5218
    %5250 = vmatpush.msra.mxu0 %v5217
    %5251 = vmatmul.f32.gmra.mxu0 %v5216
    %v5252 = vpop.f32.mrf.mxu0
    %v5253 = vadd.f32 %v5234, %v5252
    %5254 = vdwg.mxu0
    %5255 = vst [vmem:[#allocation8] sm:$0x3] %v5253
    // Predicated region
    $region30: #{lenet5_forward.1} parent=1 // pred_check
      _
    $region31: #{lenet5_forward.1} parent=1 // pred_check_branch
      %5257 = sbr.rel (0) target = $region33
    $region32: #{lenet5_forward.1} parent=1 // pred_region
      %5259 = vsyncadd [#allocation9], 0
      %s5261 = sshll.u32 [#allocation8], 4
      %s5262 = int_to_ptr.vmem [resolvable:$true] %s5261
      %s5263 = sshll.u32 %s7, 4
      %s5264 = int_to_ptr.hbm [resolvable:$true] %s5263
      %5266 = dma.vmem_to_hbm [thread:$0]  %s5262, 32, %s5264, [#allocation9]
    $region33: #{lenet5_forward.1} parent=1 // pred_fallthru
      _
    // Predicated region
    $region34: #{lenet5_forward.1} parent=1 // pred_check
      _
    $region35: #{lenet5_forward.1} parent=1 // pred_check_branch
      %5268 = sbr.rel (0) target = $region37
    $region36: #{lenet5_forward.1} parent=1 // pred_region
      %5270 = dma.done [#allocation9], 32
    $region37: #{lenet5_forward.1} parent=1 // pred_fallthru
      _
    %5271 = vsyncpa [#allocation9], 1

</llo_original>
